<compile_context>
chip_gen: v7x
topology: tpu7x:2x2x1
jax: 0.10.0
libtpu: 0.0.40
codegen_flags: <defaults>
</compile_context>

<pallas_src>
import functools

import jax
import jax.numpy as jnp
from jax.experimental import pallas as pl
from jax.experimental.pallas import tpu as pltpu


def _make_mlp_kernel(num_linear, in_dim, mm_dtype, act_dtype, precision):
    """Build the fused forward kernel for one batch tile.

    Ref layout (batch on sublanes, features on lanes -- native x layout, so the
    wrapper does NO transpose/pad HBM pass):
      refs[0]    x_ref : (block_m, in_dim)
      refs[1:-1]       : (wT, b) pairs; wT : (in_feat, out_feat), b : (1, out_feat) f32
      refs[-1]   o_ref : (block_m, out_dim)
    """

    def kernel(*refs):
        x_ref, o_ref = refs[0], refs[-1]
        p = refs[1:-1]

        def linear(h, wT_ref, b_ref):
            # bf16 MXU operands + f32 accumulate on the fast path; full-f32
            # (Precision.HIGHEST) on the validation path.
            return (jnp.dot(h.astype(mm_dtype), wT_ref[...].astype(mm_dtype),
                            preferred_element_type=jnp.float32,
                            precision=precision)
                    + b_ref[...])

        x = x_ref[...].astype(jnp.float32)

        # --- Layer 0 -----------------------------------------------------
        # For PINN-sized inputs (in_dim ~ 2) a K=2 MXU contraction wastes the
        # systolic array; do it as VPU broadcast multiply-adds instead.
        if in_dim <= 8:
            w0 = p[0][...].astype(jnp.float32)               # (in_dim, hidden)
            pre = p[1][...] + x[:, 0:1] * w0[0:1, :]
            for k in range(1, in_dim):
                pre = pre + x[:, k:k + 1] * w0[k:k + 1, :]
        else:
            pre = linear(x, p[0], p[1])
        h = jnp.tanh(pre.astype(act_dtype))

        # --- Hidden layers (MXU) -------------------------------------------
        for li in range(1, num_linear - 1):
            h = jnp.tanh(linear(h, p[2 * li], p[2 * li + 1]).astype(act_dtype))

        # --- Output layer (no activation) ------------------------------------
        out = linear(h, p[-2], p[-1])
        o_ref[...] = out.astype(o_ref.dtype)

    return kernel


@functools.partial(jax.jit, static_argnames=("block_m", "use_bf16", "act_dtype"))
def mlp_forward(x, params, *, block_m=2048, use_bf16=True,
                act_dtype=jnp.float32):
    """Forward pass of the PINN MLP as a single fused Pallas kernel.

    x      : (n, in_dim) f32, native PyTorch layout (no wrapper transpose/pad).
    params : list of (W [out_feat, in_feat], b [out_feat]) in PyTorch layout.
    """
    if block_m % 128 != 0:
        raise ValueError("block_m must be a multiple of 128")

    n, in_dim = x.shape
    num_linear = len(params)
    out_dim = params[-1][0].shape[0]

    mm_dtype = jnp.bfloat16 if use_bf16 else jnp.float32
    precision = None if use_bf16 else jax.lax.Precision.HIGHEST

    # Full-array block when the batch is smaller than one tile.
    bm = block_m if n >= block_m else n
    grid = (pl.cdiv(n, bm),)       # ragged tail handled by Pallas partial tiles

    # Weights are tiny: pre-transpose to (in, out), cast to the MXU operand
    # dtype once; biases stay f32 row vectors. Constant index maps keep them
    # VMEM-resident (DMA'd once, never re-fetched).
    flat_params = []
    in_specs = [pl.BlockSpec((bm, in_dim), lambda i: (i, 0))]   # x tile
    for (w, b) in params:
        wT = w.T.astype(mm_dtype)
        brow = b.reshape(1, -1).astype(jnp.float32)
        flat_params += [wT, brow]
        # TODO(synk): mark these constant operands pipeline_mode=pl.Buffered(1)
        # once single-buffered pipeline_mode is stable; double-buffering them
        # only wastes a few KiB of VMEM here.
        in_specs.append(pl.BlockSpec(wT.shape, lambda i: (0, 0)))
        in_specs.append(pl.BlockSpec(brow.shape, lambda i: (0, 0)))

    feat = [in_dim] + [w.shape[0] for (w, _) in params]
    weight_bytes = sum(w.size * (2 if use_bf16 else 4) + b.size * 4
                       for (w, b) in params)
    cost = pl.CostEstimate(
        flops=2 * n * sum(a * b for a, b in zip(feat[:-1], feat[1:])),
        transcendentals=n * sum(feat[1:-1]),
        bytes_accessed=int(x.size * x.dtype.itemsize
                           + n * out_dim * 4 + weight_bytes),
    )

    return pl.pallas_call(
        _make_mlp_kernel(num_linear, in_dim, mm_dtype, act_dtype, precision),
        out_shape=jax.ShapeDtypeStruct((n, out_dim), x.dtype),
        grid=grid,
        in_specs=in_specs,
        out_specs=pl.BlockSpec((bm, out_dim), lambda i: (i, 0)),
        compiler_params=pltpu.CompilerParams(
            dimension_semantics=("parallel",),
            vmem_limit_bytes=32 << 20),
        cost_estimate=cost,
    )(x, *flat_params)


def xavier_uniform(key, fan_out, fan_in, dtype=jnp.float32):
    """Matches nn.init.xavier_uniform_ (gain=1), PyTorch layout [out, in]."""
    bound = (6.0 / (fan_in + fan_out)) ** 0.5
    return jax.random.uniform(key, (fan_out, fan_in), dtype,
                              minval=-bound, maxval=bound)


def init_params(key, input_size, hidden_size, output_size, num_layers=2):
    keys = jax.random.split(key, num_layers + 2)
    params = [(xavier_uniform(keys[0], hidden_size, input_size),
               jnp.zeros((hidden_size,), jnp.float32))]
    for li in range(num_layers):
        params.append((xavier_uniform(keys[1 + li], hidden_size, hidden_size),
                       jnp.zeros((hidden_size,), jnp.float32)))
    params.append((xavier_uniform(keys[-1], output_size, hidden_size),
                   jnp.zeros((output_size,), jnp.float32)))
    return params


def mlp_reference(x, params):
    """Plain-JAX f32 reference of the same forward pass (PyTorch layout)."""
    h = x
    for i, (w, b) in enumerate(params):
        h = h @ w.T + b
        if i < len(params) - 1:
            h = jnp.tanh(h)
    return h


if __name__ == "__main__":
    # Poisson PINN shapes: 2-D coordinates in, scalar potential out.
    input_size, hidden_size, output_size = 2, 32, 1
    batch = 1024       # small demo batch; block_m=256 -> grid=(4,), so both
    block_m = 256      # v7x TensorCores get >=2 pipelined steps each.

    key = jax.random.PRNGKey(0)
    k_params, k_x = jax.random.split(key)
    params = init_params(k_params, input_size, hidden_size, output_size,
                         num_layers=2)
    x = jax.random.normal(k_x, (batch, input_size), dtype=jnp.float32)

    # bf16 tanh only where the EUP is bf16-native (v6e/v7x); f32 elsewhere.
    kind = jax.devices()[0].device_kind.lower()
    fast_act = (jnp.bfloat16
                if any(t in kind for t in ("v6", "v7", "7x")) else jnp.float32)

    ref = mlp_reference(x, params)

    # 1) Exact path (f32 operands, Precision.HIGHEST) -- tight correctness check.
    out_f32 = mlp_forward(x, params, block_m=block_m, use_bf16=False,
                          act_dtype=jnp.float32)
    out_f32 = jax.block_until_ready(out_f32)
    assert out_f32.shape == (batch, output_size)
    err = float(jnp.max(jnp.abs(out_f32 - ref)))
    assert err < 1e-4, f"f32 path max abs err {err}"

    # 2) Fast path (bf16 MXU operands, device-appropriate tanh dtype).
    out_fast = mlp_forward(x, params, block_m=block_m, use_bf16=True,
                           act_dtype=fast_act)
    out_fast = jax.block_until_ready(out_fast)
    assert out_fast.shape == (batch, output_size)
    err_fast = float(jnp.max(jnp.abs(out_fast - ref)))
    assert err_fast < 1e-1, f"bf16 path max abs err {err_fast}"

    print("KERNEL_OK")
</pallas_src>

<mosaic_0001>
module attributes {stable_mosaic.version = 11 : i64} {
  func.func @kernel(%arg0: i32, %arg1: memref<256x2xf32, #tpu.memory_space<vmem>>, %arg2: memref<2x32xf32, #tpu.memory_space<vmem>>, %arg3: memref<1x32xf32, #tpu.memory_space<vmem>>, %arg4: memref<32x32xf32, #tpu.memory_space<vmem>>, %arg5: memref<1x32xf32, #tpu.memory_space<vmem>>, %arg6: memref<32x32xf32, #tpu.memory_space<vmem>>, %arg7: memref<1x32xf32, #tpu.memory_space<vmem>>, %arg8: memref<32x1xf32, #tpu.memory_space<vmem>>, %arg9: memref<1x1xf32, #tpu.memory_space<vmem>>, %arg10: memref<256x1xf32, #tpu.memory_space<vmem>>) attributes {dimension_semantics = [#tpu.dimension_semantics<parallel>], iteration_bounds = array<i64: 4>, scalar_prefetch = 0 : i64, scratch_operands = 0 : i64, tpu.core_type = #tpu.core_type<tc>, window_params = [{transform_indices = @transform_0, window_bounds = array<i64: 256, 2>}, {pipeline_mode = #tpu.pipeline_mode<synchronous>, transform_indices = @transform_1, window_bounds = array<i64: 2, 32>}, {pipeline_mode = #tpu.pipeline_mode<synchronous>, transform_indices = @transform_2, window_bounds = array<i64: 1, 32>}, {pipeline_mode = #tpu.pipeline_mode<synchronous>, transform_indices = @transform_3, window_bounds = array<i64: 32, 32>}, {pipeline_mode = #tpu.pipeline_mode<synchronous>, transform_indices = @transform_4, window_bounds = array<i64: 1, 32>}, {pipeline_mode = #tpu.pipeline_mode<synchronous>, transform_indices = @transform_5, window_bounds = array<i64: 32, 32>}, {pipeline_mode = #tpu.pipeline_mode<synchronous>, transform_indices = @transform_6, window_bounds = array<i64: 1, 32>}, {pipeline_mode = #tpu.pipeline_mode<synchronous>, transform_indices = @transform_7, window_bounds = array<i64: 32, 1>}, {pipeline_mode = #tpu.pipeline_mode<synchronous>, transform_indices = @transform_8, window_bounds = array<i64: 1, 1>}, {transform_indices = @transform_9, window_bounds = array<i64: 256, 1>}]} {
    %c0 = arith.constant 0 : index
    %c0_0 = arith.constant 0 : index
    %0 = vector.load %arg1[%c0, %c0_0] : memref<256x2xf32, #tpu.memory_space<vmem>>, vector<256x2xf32>
    %c0_1 = arith.constant 0 : index
    %c0_2 = arith.constant 0 : index
    %1 = vector.load %arg2[%c0_1, %c0_2] : memref<2x32xf32, #tpu.memory_space<vmem>>, vector<2x32xf32>
    %c0_3 = arith.constant 0 : index
    %c0_4 = arith.constant 0 : index
    %2 = vector.load %arg3[%c0_3, %c0_4] : memref<1x32xf32, #tpu.memory_space<vmem>>, vector<1x32xf32>
    %3 = vector.extract_strided_slice %0 {offsets = [0, 0], sizes = [256, 1], strides = [1, 1]} : vector<256x2xf32> to vector<256x1xf32>
    %4 = vector.extract_strided_slice %1 {offsets = [0, 0], sizes = [1, 32], strides = [1, 1]} : vector<2x32xf32> to vector<1x32xf32>
    %5 = vector.broadcast %3 : vector<256x1xf32> to vector<256x32xf32>
    %6 = vector.broadcast %4 : vector<1x32xf32> to vector<256x32xf32>
    %7 = arith.mulf %5, %6 : vector<256x32xf32>
    %8 = vector.broadcast %2 : vector<1x32xf32> to vector<256x32xf32>
    %9 = arith.addf %8, %7 : vector<256x32xf32>
    %10 = vector.extract_strided_slice %0 {offsets = [0, 1], sizes = [256, 1], strides = [1, 1]} : vector<256x2xf32> to vector<256x1xf32>
    %11 = vector.extract_strided_slice %1 {offsets = [1, 0], sizes = [1, 32], strides = [1, 1]} : vector<2x32xf32> to vector<1x32xf32>
    %12 = vector.broadcast %10 : vector<256x1xf32> to vector<256x32xf32>
    %13 = vector.broadcast %11 : vector<1x32xf32> to vector<256x32xf32>
    %14 = arith.mulf %12, %13 : vector<256x32xf32>
    %15 = arith.addf %9, %14 : vector<256x32xf32>
    %16 = math.tanh %15 : vector<256x32xf32>
    %c0_5 = arith.constant 0 : index
    %c0_6 = arith.constant 0 : index
    %17 = vector.load %arg4[%c0_5, %c0_6] : memref<32x32xf32, #tpu.memory_space<vmem>>, vector<32x32xf32>
    %cst = arith.constant dense<0.000000e+00> : vector<256x32xf32>
    %18 = tpu.matmul %16, %17, %cst {dimension_numbers = #tpu.dot_dimension_numbers<[1], [0], [0], [1], [0, 0, 1, 1], [], []>, precision = #tpu.contract_precision<fp32>} : vector<256x32xf32>, vector<32x32xf32>, vector<256x32xf32> -> vector<256x32xf32>
    %c0_7 = arith.constant 0 : index
    %c0_8 = arith.constant 0 : index
    %19 = vector.load %arg5[%c0_7, %c0_8] : memref<1x32xf32, #tpu.memory_space<vmem>>, vector<1x32xf32>
    %20 = vector.broadcast %19 : vector<1x32xf32> to vector<256x32xf32>
    %21 = arith.addf %18, %20 : vector<256x32xf32>
    %22 = math.tanh %21 : vector<256x32xf32>
    %c0_9 = arith.constant 0 : index
    %c0_10 = arith.constant 0 : index
    %23 = vector.load %arg6[%c0_9, %c0_10] : memref<32x32xf32, #tpu.memory_space<vmem>>, vector<32x32xf32>
    %cst_11 = arith.constant dense<0.000000e+00> : vector<256x32xf32>
    %24 = tpu.matmul %22, %23, %cst_11 {dimension_numbers = #tpu.dot_dimension_numbers<[1], [0], [0], [1], [0, 0, 1, 1], [], []>, precision = #tpu.contract_precision<fp32>} : vector<256x32xf32>, vector<32x32xf32>, vector<256x32xf32> -> vector<256x32xf32>
    %c0_12 = arith.constant 0 : index
    %c0_13 = arith.constant 0 : index
    %25 = vector.load %arg7[%c0_12, %c0_13] : memref<1x32xf32, #tpu.memory_space<vmem>>, vector<1x32xf32>
    %26 = vector.broadcast %25 : vector<1x32xf32> to vector<256x32xf32>
    %27 = arith.addf %24, %26 : vector<256x32xf32>
    %28 = math.tanh %27 : vector<256x32xf32>
    %c0_14 = arith.constant 0 : index
    %c0_15 = arith.constant 0 : index
    %29 = vector.load %arg8[%c0_14, %c0_15] : memref<32x1xf32, #tpu.memory_space<vmem>>, vector<32x1xf32>
    %cst_16 = arith.constant dense<0.000000e+00> : vector<256x1xf32>
    %30 = tpu.matmul %28, %29, %cst_16 {dimension_numbers = #tpu.dot_dimension_numbers<[1], [0], [0], [1], [0, 0, 1, 1], [], []>, precision = #tpu.contract_precision<fp32>} : vector<256x32xf32>, vector<32x1xf32>, vector<256x1xf32> -> vector<256x1xf32>
    %c0_17 = arith.constant 0 : index
    %c0_18 = arith.constant 0 : index
    %31 = vector.load %arg9[%c0_17, %c0_18] : memref<1x1xf32, #tpu.memory_space<vmem>>, vector<1x1xf32>
    %32 = vector.broadcast %31 : vector<1x1xf32> to vector<256x1xf32>
    %33 = arith.addf %30, %32 : vector<256x1xf32>
    %c0_19 = arith.constant 0 : index
    %c0_20 = arith.constant 0 : index
    %34 = vector.load %arg10[%c0_19, %c0_20] : memref<256x1xf32, #tpu.memory_space<vmem>>, vector<256x1xf32>
    tpu.vector_store %arg10[%c0_19, %c0_20], %33 {strides = array<i32>} : memref<256x1xf32, #tpu.memory_space<vmem>>, vector<256x1xf32>,
    return
  }
  func.func @transform_0(%arg0: i32) -> (i32, i32) {
    %c0_i32 = arith.constant 0 : i32
    %c0_i32_0 = arith.constant 0 : i32
    return %arg0, %c0_i32 : i32, i32
  }
  func.func @transform_1(%arg0: i32) -> (i32, i32) {
    %c0_i32 = arith.constant 0 : i32
    %c0_i32_0 = arith.constant 0 : i32
    %c0_i32_1 = arith.constant 0 : i32
    return %c0_i32, %c0_i32_0 : i32, i32
  }
  func.func @transform_2(%arg0: i32) -> (i32, i32) {
    %c0_i32 = arith.constant 0 : i32
    %c0_i32_0 = arith.constant 0 : i32
    %c0_i32_1 = arith.constant 0 : i32
    return %c0_i32, %c0_i32_0 : i32, i32
  }
  func.func @transform_3(%arg0: i32) -> (i32, i32) {
    %c0_i32 = arith.constant 0 : i32
    %c0_i32_0 = arith.constant 0 : i32
    %c0_i32_1 = arith.constant 0 : i32
    return %c0_i32, %c0_i32_0 : i32, i32
  }
  func.func @transform_4(%arg0: i32) -> (i32, i32) {
    %c0_i32 = arith.constant 0 : i32
    %c0_i32_0 = arith.constant 0 : i32
    %c0_i32_1 = arith.constant 0 : i32
    return %c0_i32, %c0_i32_0 : i32, i32
  }
  func.func @transform_5(%arg0: i32) -> (i32, i32) {
    %c0_i32 = arith.constant 0 : i32
    %c0_i32_0 = arith.constant 0 : i32
    %c0_i32_1 = arith.constant 0 : i32
    return %c0_i32, %c0_i32_0 : i32, i32
  }
  func.func @transform_6(%arg0: i32) -> (i32, i32) {
    %c0_i32 = arith.constant 0 : i32
    %c0_i32_0 = arith.constant 0 : i32
    %c0_i32_1 = arith.constant 0 : i32
    return %c0_i32, %c0_i32_0 : i32, i32
  }
  func.func @transform_7(%arg0: i32) -> (i32, i32) {
    %c0_i32 = arith.constant 0 : i32
    %c0_i32_0 = arith.constant 0 : i32
    %c0_i32_1 = arith.constant 0 : i32
    return %c0_i32, %c0_i32_0 : i32, i32
  }
  func.func @transform_8(%arg0: i32) -> (i32, i32) {
    %c0_i32 = arith.constant 0 : i32
    %c0_i32_0 = arith.constant 0 : i32
    %c0_i32_1 = arith.constant 0 : i32
    return %c0_i32, %c0_i32_0 : i32, i32
  }
  func.func @transform_9(%arg0: i32) -> (i32, i32) {
    %c0_i32 = arith.constant 0 : i32
    %c0_i32_0 = arith.constant 0 : i32
    return %arg0, %c0_i32 : i32, i32
  }
}

</mosaic_0001>

<llo_original>
// kernel: mlp_forward.1
$region0: #{mlp_forward.1}
  #allocation0 [shape = 'u32[]', space=smem, size = 0x4, offset = 0x4, fixed_abs, tag = 'smem constant byte address 0x4 - core index']
  #allocation1 [shape = 'u32[144,128]{1,0:T(1,128)}', space=vmem, size = 0x12000, scoped, tag = 'internal scratch']
  #allocation2 [shape = 'f32[1,1]{1,0:T(1,128)S(1)}', space=vmem, size = 0x200, scoped, tag = 'scoped memory for mlp_forward.1']
  %s0 = inlined_call_operand.vmem [shape: f32[1024,2], index: 0, kind: input, shape index: {}]
  %s1 = inlined_call_operand.vmem [shape: f32[2,32], index: 1, kind: input, shape index: {}]
  %s2 = inlined_call_operand.vmem [shape: f32[1,32], index: 2, kind: input, shape index: {}]
  %s3 = inlined_call_operand.vmem [shape: f32[32,32], index: 3, kind: input, shape index: {}]
  %s4 = inlined_call_operand.vmem [shape: f32[1,32], index: 4, kind: input, shape index: {}]
  %s5 = inlined_call_operand.vmem [shape: f32[32,32], index: 5, kind: input, shape index: {}]
  %s6 = inlined_call_operand.vmem [shape: f32[1,32], index: 6, kind: input, shape index: {}]
  %s7 = inlined_call_operand.vmem [shape: f32[32,1], index: 7, kind: input, shape index: {}]
  %s8 = inlined_call_operand.<no memory space> [shape: f32[1,1], index: 8, kind: input, shape index: {}]
  %s9 = inlined_call_operand.vmem [shape: f32[1024,1], index: 9, kind: output, shape index: {}]
  %s10 = sld [smem:[#allocation0]]
  $region69: #{mlp_forward.1} parent=0
    _
  %s12 = ssub.s32 1, %s10
  %s13 = scalar_select 0, %s12, %s10
  %v14 = vstv %s8
  %15 = vst [vmem:[#allocation2] sm:$0x1] %v14
  loop: start=0, step=1, limit=6
  $region2: #{mlp_forward.1} parent=0 // loop_pre_header
    _
  $region3: #{mlp_forward.1} parent=0 // loop_header
    %s17 = sphi 0, %s21
    %p18 = scmp.ge.s32.totalorder %s17, 6
    %s27 = sphi 0, %s29
    %s30 = sphi 0, %s27
    %s31 = sphi 0, %s30
    %s47 = sphi 0, %s31
    %s51 = sphi 0, %s51
    %s53 = sphi 0, %s51
    %s54 = sphi 0, %s53
    %s68 = sphi 0, %s54
    %s72 = sphi 0, %s72
    %s74 = sphi 0, %s72
    %s75 = sphi 0, %s74
    %s89 = sphi 0, %s75
    %s93 = sphi 0, %s93
    %s95 = sphi 0, %s93
    %s96 = sphi 0, %s95
    %s110 = sphi 0, %s96
    %s114 = sphi 0, %s114
    %s116 = sphi 0, %s114
    %s117 = sphi 0, %s116
    %s131 = sphi 0, %s117
    %s135 = sphi 0, %s135
    %s137 = sphi 0, %s135
    %s138 = sphi 0, %s137
    %s152 = sphi 0, %s138
    %s156 = sphi 0, %s156
    %s158 = sphi 0, %s156
    %s159 = sphi 0, %s158
    %s173 = sphi 0, %s159
    %s177 = sphi 0, %s177
    %s179 = sphi 0, %s177
    %s180 = sphi 0, %s179
    %s194 = sphi 0, %s180
    %s198 = sphi 0, %s198
    %s200 = sphi 0, %s198
    %s201 = sphi 0, %s200
    %s215 = sphi 0, %s201
    %s221 = sphi 0, %s223
    %s224 = sphi 0, %s221
    %s225 = sphi 0, %s224
    %s241 = sphi 0, %s225
  $region4: #{mlp_forward.1} parent=0 // loop_header_branch
    %20 = sbr.rel (%p18) target = $region8
  $region5: #{mlp_forward.1} parent=0 // loop_body
    %s22 = ssub.s32 %s17, 1
    %s23 = ssub.s32 %s17, 2
    %s24 = sadd.s32 %s17, 1
    %s25 = ssub.s32 %s17, %s24
    %p26 = scmp.eq.s32.totalorder %s25, 0
    %s28 = sadd.s32 %s27, 1
    %s29 = scalar_select %p26, %s27, %s28
    %p32 = pneg %p26
    %p33 = scmp.eq.s32.totalorder %s17, 3
    %p34 = por %p32, %p33
    %p35 = scmp.ne.s32.totalorder %s27, %s30
    %p36 = scmp.eq.s32.totalorder %s17, 0
    %p37 = por %p35, %p36
    %p38 = scmp.ne.s32.totalorder %s27, %s30
    %p39 = scmp.eq.s32.totalorder %s22, 3
    %p40 = por %p38, %p39
    %p41 = scmp.ne.s32.totalorder %s30, %s31
    %p42 = scmp.eq.s32.totalorder %s22, 0
    %p43 = por %p41, %p42
    %p44 = scmp.ne.s32.totalorder %s30, %s31
    %p45 = scmp.eq.s32.totalorder %s23, 3
    %p46 = por %p44, %p45
    %p48 = scmp.ne.s32.totalorder %s31, %s47
    %p49 = scmp.eq.s32.totalorder %s23, 0
    %p50 = por %p48, %p49
    %s52 = sadd.s32 %s51, 1
    %p55 = scmp.eq.s32.totalorder %s17, 3
    %p56 = scmp.ne.s32.totalorder %s51, %s53
    %p57 = scmp.eq.s32.totalorder %s17, 0
    %p58 = por %p56, %p57
    %p59 = scmp.ne.s32.totalorder %s51, %s53
    %p60 = scmp.eq.s32.totalorder %s22, 3
    %p61 = por %p59, %p60
    %p62 = scmp.ne.s32.totalorder %s53, %s54
    %p63 = scmp.eq.s32.totalorder %s22, 0
    %p64 = por %p62, %p63
    %p65 = scmp.ne.s32.totalorder %s53, %s54
    %p66 = scmp.eq.s32.totalorder %s23, 3
    %p67 = por %p65, %p66
    %p69 = scmp.ne.s32.totalorder %s54, %s68
    %p70 = scmp.eq.s32.totalorder %s23, 0
    %p71 = por %p69, %p70
    %s73 = sadd.s32 %s72, 1
    %p76 = scmp.eq.s32.totalorder %s17, 3
    %p77 = scmp.ne.s32.totalorder %s72, %s74
    %p78 = scmp.eq.s32.totalorder %s17, 0
    %p79 = por %p77, %p78
    %p80 = scmp.ne.s32.totalorder %s72, %s74
    %p81 = scmp.eq.s32.totalorder %s22, 3
    %p82 = por %p80, %p81
    %p83 = scmp.ne.s32.totalorder %s74, %s75
    %p84 = scmp.eq.s32.totalorder %s22, 0
    %p85 = por %p83, %p84
    %p86 = scmp.ne.s32.totalorder %s74, %s75
    %p87 = scmp.eq.s32.totalorder %s23, 3
    %p88 = por %p86, %p87
    %p90 = scmp.ne.s32.totalorder %s75, %s89
    %p91 = scmp.eq.s32.totalorder %s23, 0
    %p92 = por %p90, %p91
    %s94 = sadd.s32 %s93, 1
    %p97 = scmp.eq.s32.totalorder %s17, 3
    %p98 = scmp.ne.s32.totalorder %s93, %s95
    %p99 = scmp.eq.s32.totalorder %s17, 0
    %p100 = por %p98, %p99
    %p101 = scmp.ne.s32.totalorder %s93, %s95
    %p102 = scmp.eq.s32.totalorder %s22, 3
    %p103 = por %p101, %p102
    %p104 = scmp.ne.s32.totalorder %s95, %s96
    %p105 = scmp.eq.s32.totalorder %s22, 0
    %p106 = por %p104, %p105
    %p107 = scmp.ne.s32.totalorder %s95, %s96
    %p108 = scmp.eq.s32.totalorder %s23, 3
    %p109 = por %p107, %p108
    %p111 = scmp.ne.s32.totalorder %s96, %s110
    %p112 = scmp.eq.s32.totalorder %s23, 0
    %p113 = por %p111, %p112
    %s115 = sadd.s32 %s114, 1
    %p118 = scmp.eq.s32.totalorder %s17, 3
    %p119 = scmp.ne.s32.totalorder %s114, %s116
    %p120 = scmp.eq.s32.totalorder %s17, 0
    %p121 = por %p119, %p120
    %p122 = scmp.ne.s32.totalorder %s114, %s116
    %p123 = scmp.eq.s32.totalorder %s22, 3
    %p124 = por %p122, %p123
    %p125 = scmp.ne.s32.totalorder %s116, %s117
    %p126 = scmp.eq.s32.totalorder %s22, 0
    %p127 = por %p125, %p126
    %p128 = scmp.ne.s32.totalorder %s116, %s117
    %p129 = scmp.eq.s32.totalorder %s23, 3
    %p130 = por %p128, %p129
    %p132 = scmp.ne.s32.totalorder %s117, %s131
    %p133 = scmp.eq.s32.totalorder %s23, 0
    %p134 = por %p132, %p133
    %s136 = sadd.s32 %s135, 1
    %p139 = scmp.eq.s32.totalorder %s17, 3
    %p140 = scmp.ne.s32.totalorder %s135, %s137
    %p141 = scmp.eq.s32.totalorder %s17, 0
    %p142 = por %p140, %p141
    %p143 = scmp.ne.s32.totalorder %s135, %s137
    %p144 = scmp.eq.s32.totalorder %s22, 3
    %p145 = por %p143, %p144
    %p146 = scmp.ne.s32.totalorder %s137, %s138
    %p147 = scmp.eq.s32.totalorder %s22, 0
    %p148 = por %p146, %p147
    %p149 = scmp.ne.s32.totalorder %s137, %s138
    %p150 = scmp.eq.s32.totalorder %s23, 3
    %p151 = por %p149, %p150
    %p153 = scmp.ne.s32.totalorder %s138, %s152
    %p154 = scmp.eq.s32.totalorder %s23, 0
    %p155 = por %p153, %p154
    %s157 = sadd.s32 %s156, 1
    %p160 = scmp.eq.s32.totalorder %s17, 3
    %p161 = scmp.ne.s32.totalorder %s156, %s158
    %p162 = scmp.eq.s32.totalorder %s17, 0
    %p163 = por %p161, %p162
    %p164 = scmp.ne.s32.totalorder %s156, %s158
    %p165 = scmp.eq.s32.totalorder %s22, 3
    %p166 = por %p164, %p165
    %p167 = scmp.ne.s32.totalorder %s158, %s159
    %p168 = scmp.eq.s32.totalorder %s22, 0
    %p169 = por %p167, %p168
    %p170 = scmp.ne.s32.totalorder %s158, %s159
    %p171 = scmp.eq.s32.totalorder %s23, 3
    %p172 = por %p170, %p171
    %p174 = scmp.ne.s32.totalorder %s159, %s173
    %p175 = scmp.eq.s32.totalorder %s23, 0
    %p176 = por %p174, %p175
    %s178 = sadd.s32 %s177, 1
    %p181 = scmp.eq.s32.totalorder %s17, 3
    %p182 = scmp.ne.s32.totalorder %s177, %s179
    %p183 = scmp.eq.s32.totalorder %s17, 0
    %p184 = por %p182, %p183
    %p185 = scmp.ne.s32.totalorder %s177, %s179
    %p186 = scmp.eq.s32.totalorder %s22, 3
    %p187 = por %p185, %p186
    %p188 = scmp.ne.s32.totalorder %s179, %s180
    %p189 = scmp.eq.s32.totalorder %s22, 0
    %p190 = por %p188, %p189
    %p191 = scmp.ne.s32.totalorder %s179, %s180
    %p192 = scmp.eq.s32.totalorder %s23, 3
    %p193 = por %p191, %p192
    %p195 = scmp.ne.s32.totalorder %s180, %s194
    %p196 = scmp.eq.s32.totalorder %s23, 0
    %p197 = por %p195, %p196
    %s199 = sadd.s32 %s198, 1
    %p202 = scmp.eq.s32.totalorder %s17, 3
    %p203 = scmp.ne.s32.totalorder %s198, %s200
    %p204 = scmp.eq.s32.totalorder %s17, 0
    %p205 = por %p203, %p204
    %p206 = scmp.ne.s32.totalorder %s198, %s200
    %p207 = scmp.eq.s32.totalorder %s22, 3
    %p208 = por %p206, %p207
    %p209 = scmp.ne.s32.totalorder %s200, %s201
    %p210 = scmp.eq.s32.totalorder %s22, 0
    %p211 = por %p209, %p210
    %p212 = scmp.ne.s32.totalorder %s200, %s201
    %p213 = scmp.eq.s32.totalorder %s23, 3
    %p214 = por %p212, %p213
    %p216 = scmp.ne.s32.totalorder %s201, %s215
    %p217 = scmp.eq.s32.totalorder %s23, 0
    %p218 = por %p216, %p217
    %s219 = ssub.s32 %s17, %s24
    %p220 = scmp.eq.s32.totalorder %s219, 0
    %s222 = sadd.s32 %s221, 1
    %s223 = scalar_select %p220, %s221, %s222
    %p226 = pneg %p220
    %p227 = scmp.eq.s32.totalorder %s17, 3
    %p228 = por %p226, %p227
    %p229 = scmp.ne.s32.totalorder %s221, %s224
    %p230 = scmp.eq.s32.totalorder %s17, 0
    %p231 = por %p229, %p230
    %p232 = scmp.ne.s32.totalorder %s221, %s224
    %p233 = scmp.eq.s32.totalorder %s22, 3
    %p234 = por %p232, %p233
    %p235 = scmp.ne.s32.totalorder %s224, %s225
    %p236 = scmp.eq.s32.totalorder %s22, 0
    %p237 = por %p235, %p236
    %p238 = scmp.ne.s32.totalorder %s224, %s225
    %p239 = scmp.eq.s32.totalorder %s23, 3
    %p240 = por %p238, %p239
    %p242 = scmp.ne.s32.totalorder %s225, %s241
    %p243 = scmp.eq.s32.totalorder %s23, 0
    %p244 = por %p242, %p243
    %p245 = scmp.le.s32.totalorder 1, %s17
    %p246 = scmp.lt.s32.totalorder %s17, 5
    %p247 = pnand %p245, %p246
    %p248 = pneg %p247
    // Predicated region
    $region9: #{mlp_forward.1} parent=5 // pred_check
      _
    $region10: #{mlp_forward.1} parent=5 // pred_check_branch
      %250 = sbr.rel (%p247) target = $region12
    $region11: #{mlp_forward.1} parent=5 // pred_region
      %s251 = ssub.s32 %s17, 1
      // Predicated region
      $region13: #{mlp_forward.1} parent=11 // pred_check
        %p252 = pneg %p64
      $region14: #{mlp_forward.1} parent=11 // pred_check_branch
        %254 = sbr.rel (%p252) target = $region16
      $region15: #{mlp_forward.1} parent=11 // pred_region
        _
      $region16: #{mlp_forward.1} parent=11 // pred_fallthru
        _
      // Predicated region
      $region17: #{mlp_forward.1} parent=11 // pred_check
        %p255 = pneg %p85
      $region18: #{mlp_forward.1} parent=11 // pred_check_branch
        %257 = sbr.rel (%p255) target = $region20
      $region19: #{mlp_forward.1} parent=11 // pred_region
        _
      $region20: #{mlp_forward.1} parent=11 // pred_fallthru
        _
      // Predicated region
      $region21: #{mlp_forward.1} parent=11 // pred_check
        %p258 = pneg %p106
      $region22: #{mlp_forward.1} parent=11 // pred_check_branch
        %260 = sbr.rel (%p258) target = $region24
      $region23: #{mlp_forward.1} parent=11 // pred_region
        _
      $region24: #{mlp_forward.1} parent=11 // pred_fallthru
        _
      // Predicated region
      $region25: #{mlp_forward.1} parent=11 // pred_check
        %p261 = pneg %p127
      $region26: #{mlp_forward.1} parent=11 // pred_check_branch
        %263 = sbr.rel (%p261) target = $region28
      $region27: #{mlp_forward.1} parent=11 // pred_region
        _
      $region28: #{mlp_forward.1} parent=11 // pred_fallthru
        _
      // Predicated region
      $region29: #{mlp_forward.1} parent=11 // pred_check
        %p264 = pneg %p148
      $region30: #{mlp_forward.1} parent=11 // pred_check_branch
        %266 = sbr.rel (%p264) target = $region32
      $region31: #{mlp_forward.1} parent=11 // pred_region
        _
      $region32: #{mlp_forward.1} parent=11 // pred_fallthru
        _
      // Predicated region
      $region33: #{mlp_forward.1} parent=11 // pred_check
        %p267 = pneg %p169
      $region34: #{mlp_forward.1} parent=11 // pred_check_branch
        %269 = sbr.rel (%p267) target = $region36
      $region35: #{mlp_forward.1} parent=11 // pred_region
        _
      $region36: #{mlp_forward.1} parent=11 // pred_fallthru
        _
      // Predicated region
      $region37: #{mlp_forward.1} parent=11 // pred_check
        %p270 = pneg %p190
      $region38: #{mlp_forward.1} parent=11 // pred_check_branch
        %272 = sbr.rel (%p270) target = $region40
      $region39: #{mlp_forward.1} parent=11 // pred_region
        _
      $region40: #{mlp_forward.1} parent=11 // pred_fallthru
        _
      // Predicated region
      $region41: #{mlp_forward.1} parent=11 // pred_check
        %p273 = pneg %p211
      $region42: #{mlp_forward.1} parent=11 // pred_check_branch
        %275 = sbr.rel (%p273) target = $region44
      $region43: #{mlp_forward.1} parent=11 // pred_region
        _
      $region44: #{mlp_forward.1} parent=11 // pred_fallthru
        _
    $region12: #{mlp_forward.1} parent=5 // pred_fallthru
      _
    %p276 = scmp.lt.s32.totalorder %s17, 4
    // Predicated region
    $region45: #{mlp_forward.1} parent=5 // pred_check
      %p277 = pneg %p276
    $region46: #{mlp_forward.1} parent=5 // pred_check_branch
      %279 = sbr.rel (%p277) target = $region48
    $region47: #{mlp_forward.1} parent=5 // pred_region
      // Predicated region
      $region49: #{mlp_forward.1} parent=47 // pred_check
        %p280 = pneg %p37
      $region50: #{mlp_forward.1} parent=47 // pred_check_branch
        %282 = sbr.rel (%p280) target = $region52
      $region51: #{mlp_forward.1} parent=47 // pred_region
        %s283 = smul.u32 32, %s17
        %p284 = scmp.lt.s32.totalorder %s283, 127
        %s285 = scalar_select %p284, %s283, 127
        %s286 = smul.addr %s285, 8
        %s287 = scalar_lea.vmem %s0, %s286
        %s288 = smul.u32 32, %s17
      $region52: #{mlp_forward.1} parent=47 // pred_fallthru
        _
    $region48: #{mlp_forward.1} parent=5 // pred_fallthru
      _
    %p289 = scmp.le.s32.totalorder 1, %s17
    %p290 = scmp.lt.s32.totalorder %s17, 5
    %p291 = pnand %p289, %p290
    %p292 = pneg %p291
    // Predicated region
    $region53: #{mlp_forward.1} parent=5 // pred_check
      _
    $region54: #{mlp_forward.1} parent=5 // pred_check_branch
      %294 = sbr.rel (%p291) target = $region56
    $region55: #{mlp_forward.1} parent=5 // pred_region
      %s295 = ssub.s32 %s17, 1
      %s296 = smul.u32 32, %s22
      %p297 = scmp.lt.s32.totalorder %s296, 127
      %s298 = scalar_select %p297, %s296, 127
      %s299 = smul.addr %s298, 8
      %s300 = scalar_lea.vmem %s0, %s299
      %p301 = pneg %p43
      %p302 = pneg %p40
      %p303 = pneg %p64
      %p304 = pneg %p61
      %p305 = pneg %p85
      %p306 = pneg %p82
      %p307 = pneg %p106
      %p308 = pneg %p103
      %p309 = pneg %p127
      %p310 = pneg %p124
      %p311 = pneg %p148
      %p312 = pneg %p145
      %p313 = pneg %p169
      %p314 = pneg %p166
      %p315 = pneg %p190
      %p316 = pneg %p187
      %p317 = pneg %p211
      %p318 = pneg %p208
      %p319 = pneg %p237
      %p320 = pneg %p234
      %s321 = smul.u32 32, %s22
      %p322 = scmp.lt.s32.totalorder %s321, 127
      %s323 = scalar_select %p322, %s321, 127
      %s324 = smul.addr %s323, 8
      %s325 = scalar_lea.vmem %s9, %s324
      %s326 = smul.u32 32, %s22
      %p327 = scmp.lt.s32.totalorder %s326, 127
      %s328 = scalar_select %p327, %s326, 127
      %s329 = smul.addr %s328, 8
      %s330 = scalar_lea.vmem %s0, %s329
      %s331 = smul.u32 32, %s22
      %s332 = smul.u32 32, %s22
      %p333 = scmp.lt.s32.totalorder %s332, 127
      %s334 = scalar_select %p333, %s332, 127
      %s335 = smul.addr %s334, 8
      %s336 = scalar_lea.vmem %s9, %s335
      %s337 = smul.u32 32, %s22
      %v338 = vld [vmem:[%s330] sm:$0xff]
      %v339 = vld [vmem:[%s330 + $0x8] sm:$0xff]
      %v340 = vld [vmem:[%s330 + $0x10] sm:$0xff]
      %v341 = vld [vmem:[%s330 + $0x18] sm:$0xff]
      %v342 = vld [vmem:[%s330 + $0x20] sm:$0xff]
      %v343 = vld [vmem:[%s330 + $0x28] sm:$0xff]
      %v344 = vld [vmem:[%s330 + $0x30] sm:$0xff]
      %v345 = vld [vmem:[%s330 + $0x38] sm:$0xff]
      %v346 = vld [vmem:[%s330 + $0x40] sm:$0xff]
      %v347 = vld [vmem:[%s330 + $0x48] sm:$0xff]
      %v348 = vld [vmem:[%s330 + $0x50] sm:$0xff]
      %v349 = vld [vmem:[%s330 + $0x58] sm:$0xff]
      %v350 = vld [vmem:[%s330 + $0x60] sm:$0xff]
      %v351 = vld [vmem:[%s330 + $0x68] sm:$0xff]
      %v352 = vld [vmem:[%s330 + $0x70] sm:$0xff]
      %v353 = vld [vmem:[%s330 + $0x78] sm:$0xff]
      %v354 = vld [vmem:[%s330 + $0x80] sm:$0xff]
      %v355 = vld [vmem:[%s330 + $0x88] sm:$0xff]
      %v356 = vld [vmem:[%s330 + $0x90] sm:$0xff]
      %v357 = vld [vmem:[%s330 + $0x98] sm:$0xff]
      %v358 = vld [vmem:[%s330 + $0xa0] sm:$0xff]
      %v359 = vld [vmem:[%s330 + $0xa8] sm:$0xff]
      %v360 = vld [vmem:[%s330 + $0xb0] sm:$0xff]
      %v361 = vld [vmem:[%s330 + $0xb8] sm:$0xff]
      %v362 = vld [vmem:[%s330 + $0xc0] sm:$0xff]
      %v363 = vld [vmem:[%s330 + $0xc8] sm:$0xff]
      %v364 = vld [vmem:[%s330 + $0xd0] sm:$0xff]
      %v365 = vld [vmem:[%s330 + $0xd8] sm:$0xff]
      %v366 = vld [vmem:[%s330 + $0xe0] sm:$0xff]
      %v367 = vld [vmem:[%s330 + $0xe8] sm:$0xff]
      %v368 = vld [vmem:[%s330 + $0xf0] sm:$0xff]
      %v369 = vld [vmem:[%s330 + $0xf8] sm:$0xff]
      %v370 = vld [vmem:[%s1] sm:$0x3]
      %v371 = vld [vmem:[%s2] sm:$0x1]
      %373 = vset.pattern.permute.xlu0 0
      %374 = vperm.xlu0 %373, %v338
      %v375 = vpop.permute.xlu0 %374
      %378 = vset.pattern.permute.xlu0 0
      %379 = vperm.xlu0 %378, %v339
      %v380 = vpop.permute.xlu0 %379
      %383 = vset.pattern.permute.xlu0 0
      %384 = vperm.xlu0 %383, %v340
      %v385 = vpop.permute.xlu0 %384
      %388 = vset.pattern.permute.xlu0 0
      %389 = vperm.xlu0 %388, %v341
      %v390 = vpop.permute.xlu0 %389
      %393 = vset.pattern.permute.xlu0 0
      %394 = vperm.xlu0 %393, %v342
      %v395 = vpop.permute.xlu0 %394
      %398 = vset.pattern.permute.xlu0 0
      %399 = vperm.xlu0 %398, %v343
      %v400 = vpop.permute.xlu0 %399
      %403 = vset.pattern.permute.xlu0 0
      %404 = vperm.xlu0 %403, %v344
      %v405 = vpop.permute.xlu0 %404
      %408 = vset.pattern.permute.xlu0 0
      %409 = vperm.xlu0 %408, %v345
      %v410 = vpop.permute.xlu0 %409
      %413 = vset.pattern.permute.xlu0 0
      %414 = vperm.xlu0 %413, %v346
      %v415 = vpop.permute.xlu0 %414
      %418 = vset.pattern.permute.xlu0 0
      %419 = vperm.xlu0 %418, %v347
      %v420 = vpop.permute.xlu0 %419
      %423 = vset.pattern.permute.xlu0 0
      %424 = vperm.xlu0 %423, %v348
      %v425 = vpop.permute.xlu0 %424
      %428 = vset.pattern.permute.xlu0 0
      %429 = vperm.xlu0 %428, %v349
      %v430 = vpop.permute.xlu0 %429
      %433 = vset.pattern.permute.xlu0 0
      %434 = vperm.xlu0 %433, %v350
      %v435 = vpop.permute.xlu0 %434
      %438 = vset.pattern.permute.xlu0 0
      %439 = vperm.xlu0 %438, %v351
      %v440 = vpop.permute.xlu0 %439
      %443 = vset.pattern.permute.xlu0 0
      %444 = vperm.xlu0 %443, %v352
      %v445 = vpop.permute.xlu0 %444
      %448 = vset.pattern.permute.xlu0 0
      %449 = vperm.xlu0 %448, %v353
      %v450 = vpop.permute.xlu0 %449
      %453 = vset.pattern.permute.xlu0 0
      %454 = vperm.xlu0 %453, %v354
      %v455 = vpop.permute.xlu0 %454
      %458 = vset.pattern.permute.xlu0 0
      %459 = vperm.xlu0 %458, %v355
      %v460 = vpop.permute.xlu0 %459
      %463 = vset.pattern.permute.xlu0 0
      %464 = vperm.xlu0 %463, %v356
      %v465 = vpop.permute.xlu0 %464
      %468 = vset.pattern.permute.xlu0 0
      %469 = vperm.xlu0 %468, %v357
      %v470 = vpop.permute.xlu0 %469
      %473 = vset.pattern.permute.xlu0 0
      %474 = vperm.xlu0 %473, %v358
      %v475 = vpop.permute.xlu0 %474
      %478 = vset.pattern.permute.xlu0 0
      %479 = vperm.xlu0 %478, %v359
      %v480 = vpop.permute.xlu0 %479
      %483 = vset.pattern.permute.xlu0 0
      %484 = vperm.xlu0 %483, %v360
      %v485 = vpop.permute.xlu0 %484
      %488 = vset.pattern.permute.xlu0 0
      %489 = vperm.xlu0 %488, %v361
      %v490 = vpop.permute.xlu0 %489
      %493 = vset.pattern.permute.xlu0 0
      %494 = vperm.xlu0 %493, %v362
      %v495 = vpop.permute.xlu0 %494
      %498 = vset.pattern.permute.xlu0 0
      %499 = vperm.xlu0 %498, %v363
      %v500 = vpop.permute.xlu0 %499
      %503 = vset.pattern.permute.xlu0 0
      %504 = vperm.xlu0 %503, %v364
      %v505 = vpop.permute.xlu0 %504
      %508 = vset.pattern.permute.xlu0 0
      %509 = vperm.xlu0 %508, %v365
      %v510 = vpop.permute.xlu0 %509
      %513 = vset.pattern.permute.xlu0 0
      %514 = vperm.xlu0 %513, %v366
      %v515 = vpop.permute.xlu0 %514
      %518 = vset.pattern.permute.xlu0 0
      %519 = vperm.xlu0 %518, %v367
      %v520 = vpop.permute.xlu0 %519
      %523 = vset.pattern.permute.xlu0 0
      %524 = vperm.xlu0 %523, %v368
      %v525 = vpop.permute.xlu0 %524
      %528 = vset.pattern.permute.xlu0 0
      %529 = vperm.xlu0 %528, %v369
      %v530 = vpop.permute.xlu0 %529
      %v532 = vlaneseq
      %v533 = vshrl.u32 %v532, 7
      %v534 = vsub.s32 0, %v533
      %v535 = vrot.slane %v370, %v534
      %v536 = vmul.f32 %v375, %v535
      %v537 = vmul.f32 %v380, %v535
      %v538 = vmul.f32 %v385, %v535
      %v539 = vmul.f32 %v390, %v535
      %v540 = vmul.f32 %v395, %v535
      %v541 = vmul.f32 %v400, %v535
      %v542 = vmul.f32 %v405, %v535
      %v543 = vmul.f32 %v410, %v535
      %v544 = vmul.f32 %v415, %v535
      %v545 = vmul.f32 %v420, %v535
      %v546 = vmul.f32 %v425, %v535
      %v547 = vmul.f32 %v430, %v535
      %v548 = vmul.f32 %v435, %v535
      %v549 = vmul.f32 %v440, %v535
      %v550 = vmul.f32 %v445, %v535
      %v551 = vmul.f32 %v450, %v535
      %v552 = vmul.f32 %v455, %v535
      %v553 = vmul.f32 %v460, %v535
      %v554 = vmul.f32 %v465, %v535
      %v555 = vmul.f32 %v470, %v535
      %v556 = vmul.f32 %v475, %v535
      %v557 = vmul.f32 %v480, %v535
      %v558 = vmul.f32 %v485, %v535
      %v559 = vmul.f32 %v490, %v535
      %v560 = vmul.f32 %v495, %v535
      %v561 = vmul.f32 %v500, %v535
      %v562 = vmul.f32 %v505, %v535
      %v563 = vmul.f32 %v510, %v535
      %v564 = vmul.f32 %v515, %v535
      %v565 = vmul.f32 %v520, %v535
      %v566 = vmul.f32 %v525, %v535
      %v567 = vmul.f32 %v530, %v535
      %v569 = vlaneseq
      %v570 = vshrl.u32 %v569, 7
      %v571 = vsub.s32 0, %v570
      %v572 = vrot.slane %v371, %v571
      %v574 = vadd.f32 %v572, %v536
      %v575 = vadd.f32 %v572, %v537
      %v576 = vadd.f32 %v572, %v538
      %v577 = vadd.f32 %v572, %v539
      %v578 = vadd.f32 %v572, %v540
      %v579 = vadd.f32 %v572, %v541
      %v580 = vadd.f32 %v572, %v542
      %v581 = vadd.f32 %v572, %v543
      %v582 = vadd.f32 %v572, %v544
      %v583 = vadd.f32 %v572, %v545
      %v584 = vadd.f32 %v572, %v546
      %v585 = vadd.f32 %v572, %v547
      %v586 = vadd.f32 %v572, %v548
      %v587 = vadd.f32 %v572, %v549
      %v588 = vadd.f32 %v572, %v550
      %v589 = vadd.f32 %v572, %v551
      %v590 = vadd.f32 %v572, %v552
      %v591 = vadd.f32 %v572, %v553
      %v592 = vadd.f32 %v572, %v554
      %v593 = vadd.f32 %v572, %v555
      %v594 = vadd.f32 %v572, %v556
      %v595 = vadd.f32 %v572, %v557
      %v596 = vadd.f32 %v572, %v558
      %v597 = vadd.f32 %v572, %v559
      %v598 = vadd.f32 %v572, %v560
      %v599 = vadd.f32 %v572, %v561
      %v600 = vadd.f32 %v572, %v562
      %v601 = vadd.f32 %v572, %v563
      %v602 = vadd.f32 %v572, %v564
      %v603 = vadd.f32 %v572, %v565
      %v604 = vadd.f32 %v572, %v566
      %v605 = vadd.f32 %v572, %v567
      %606 = vset.pattern.permute.xlu0 1
      %607 = vperm.xlu0 %606, %v338
      %v608 = vpop.permute.xlu0 %607
      %610 = vset.pattern.permute.xlu0 1
      %611 = vperm.xlu0 %610, %v339
      %v612 = vpop.permute.xlu0 %611
      %614 = vset.pattern.permute.xlu0 1
      %615 = vperm.xlu0 %614, %v340
      %v616 = vpop.permute.xlu0 %615
      %618 = vset.pattern.permute.xlu0 1
      %619 = vperm.xlu0 %618, %v341
      %v620 = vpop.permute.xlu0 %619
      %622 = vset.pattern.permute.xlu0 1
      %623 = vperm.xlu0 %622, %v342
      %v624 = vpop.permute.xlu0 %623
      %626 = vset.pattern.permute.xlu0 1
      %627 = vperm.xlu0 %626, %v343
      %v628 = vpop.permute.xlu0 %627
      %630 = vset.pattern.permute.xlu0 1
      %631 = vperm.xlu0 %630, %v344
      %v632 = vpop.permute.xlu0 %631
      %634 = vset.pattern.permute.xlu0 1
      %635 = vperm.xlu0 %634, %v345
      %v636 = vpop.permute.xlu0 %635
      %638 = vset.pattern.permute.xlu0 1
      %639 = vperm.xlu0 %638, %v346
      %v640 = vpop.permute.xlu0 %639
      %642 = vset.pattern.permute.xlu0 1
      %643 = vperm.xlu0 %642, %v347
      %v644 = vpop.permute.xlu0 %643
      %646 = vset.pattern.permute.xlu0 1
      %647 = vperm.xlu0 %646, %v348
      %v648 = vpop.permute.xlu0 %647
      %650 = vset.pattern.permute.xlu0 1
      %651 = vperm.xlu0 %650, %v349
      %v652 = vpop.permute.xlu0 %651
      %654 = vset.pattern.permute.xlu0 1
      %655 = vperm.xlu0 %654, %v350
      %v656 = vpop.permute.xlu0 %655
      %658 = vset.pattern.permute.xlu0 1
      %659 = vperm.xlu0 %658, %v351
      %v660 = vpop.permute.xlu0 %659
      %662 = vset.pattern.permute.xlu0 1
      %663 = vperm.xlu0 %662, %v352
      %v664 = vpop.permute.xlu0 %663
      %666 = vset.pattern.permute.xlu0 1
      %667 = vperm.xlu0 %666, %v353
      %v668 = vpop.permute.xlu0 %667
      %670 = vset.pattern.permute.xlu0 1
      %671 = vperm.xlu0 %670, %v354
      %v672 = vpop.permute.xlu0 %671
      %674 = vset.pattern.permute.xlu0 1
      %675 = vperm.xlu0 %674, %v355
      %v676 = vpop.permute.xlu0 %675
      %678 = vset.pattern.permute.xlu0 1
      %679 = vperm.xlu0 %678, %v356
      %v680 = vpop.permute.xlu0 %679
      %682 = vset.pattern.permute.xlu0 1
      %683 = vperm.xlu0 %682, %v357
      %v684 = vpop.permute.xlu0 %683
      %686 = vset.pattern.permute.xlu0 1
      %687 = vperm.xlu0 %686, %v358
      %v688 = vpop.permute.xlu0 %687
      %690 = vset.pattern.permute.xlu0 1
      %691 = vperm.xlu0 %690, %v359
      %v692 = vpop.permute.xlu0 %691
      %694 = vset.pattern.permute.xlu0 1
      %695 = vperm.xlu0 %694, %v360
      %v696 = vpop.permute.xlu0 %695
      %698 = vset.pattern.permute.xlu0 1
      %699 = vperm.xlu0 %698, %v361
      %v700 = vpop.permute.xlu0 %699
      %702 = vset.pattern.permute.xlu0 1
      %703 = vperm.xlu0 %702, %v362
      %v704 = vpop.permute.xlu0 %703
      %706 = vset.pattern.permute.xlu0 1
      %707 = vperm.xlu0 %706, %v363
      %v708 = vpop.permute.xlu0 %707
      %710 = vset.pattern.permute.xlu0 1
      %711 = vperm.xlu0 %710, %v364
      %v712 = vpop.permute.xlu0 %711
      %714 = vset.pattern.permute.xlu0 1
      %715 = vperm.xlu0 %714, %v365
      %v716 = vpop.permute.xlu0 %715
      %718 = vset.pattern.permute.xlu0 1
      %719 = vperm.xlu0 %718, %v366
      %v720 = vpop.permute.xlu0 %719
      %722 = vset.pattern.permute.xlu0 1
      %723 = vperm.xlu0 %722, %v367
      %v724 = vpop.permute.xlu0 %723
      %726 = vset.pattern.permute.xlu0 1
      %727 = vperm.xlu0 %726, %v368
      %v728 = vpop.permute.xlu0 %727
      %730 = vset.pattern.permute.xlu0 1
      %731 = vperm.xlu0 %730, %v369
      %v732 = vpop.permute.xlu0 %731
      %v734 = vlaneseq
      %v735 = vshrl.u32 %v734, 7
      %v736 = vsub.s32 1, %v735
      %v737 = vrot.slane %v370, %v736
      %v738 = vmul.f32 %v608, %v737
      %v739 = vmul.f32 %v612, %v737
      %v740 = vmul.f32 %v616, %v737
      %v741 = vmul.f32 %v620, %v737
      %v742 = vmul.f32 %v624, %v737
      %v743 = vmul.f32 %v628, %v737
      %v744 = vmul.f32 %v632, %v737
      %v745 = vmul.f32 %v636, %v737
      %v746 = vmul.f32 %v640, %v737
      %v747 = vmul.f32 %v644, %v737
      %v748 = vmul.f32 %v648, %v737
      %v749 = vmul.f32 %v652, %v737
      %v750 = vmul.f32 %v656, %v737
      %v751 = vmul.f32 %v660, %v737
      %v752 = vmul.f32 %v664, %v737
      %v753 = vmul.f32 %v668, %v737
      %v754 = vmul.f32 %v672, %v737
      %v755 = vmul.f32 %v676, %v737
      %v756 = vmul.f32 %v680, %v737
      %v757 = vmul.f32 %v684, %v737
      %v758 = vmul.f32 %v688, %v737
      %v759 = vmul.f32 %v692, %v737
      %v760 = vmul.f32 %v696, %v737
      %v761 = vmul.f32 %v700, %v737
      %v762 = vmul.f32 %v704, %v737
      %v763 = vmul.f32 %v708, %v737
      %v764 = vmul.f32 %v712, %v737
      %v765 = vmul.f32 %v716, %v737
      %v766 = vmul.f32 %v720, %v737
      %v767 = vmul.f32 %v724, %v737
      %v768 = vmul.f32 %v728, %v737
      %v769 = vmul.f32 %v732, %v737
      %v770 = vadd.f32 %v574, %v738
      %v771 = vadd.f32 %v575, %v739
      %v772 = vadd.f32 %v576, %v740
      %v773 = vadd.f32 %v577, %v741
      %v774 = vadd.f32 %v578, %v742
      %v775 = vadd.f32 %v579, %v743
      %v776 = vadd.f32 %v580, %v744
      %v777 = vadd.f32 %v581, %v745
      %v778 = vadd.f32 %v582, %v746
      %v779 = vadd.f32 %v583, %v747
      %v780 = vadd.f32 %v584, %v748
      %v781 = vadd.f32 %v585, %v749
      %v782 = vadd.f32 %v586, %v750
      %v783 = vadd.f32 %v587, %v751
      %v784 = vadd.f32 %v588, %v752
      %v785 = vadd.f32 %v589, %v753
      %v786 = vadd.f32 %v590, %v754
      %v787 = vadd.f32 %v591, %v755
      %v788 = vadd.f32 %v592, %v756
      %v789 = vadd.f32 %v593, %v757
      %v790 = vadd.f32 %v594, %v758
      %v791 = vadd.f32 %v595, %v759
      %v792 = vadd.f32 %v596, %v760
      %v793 = vadd.f32 %v597, %v761
      %v794 = vadd.f32 %v598, %v762
      %v795 = vadd.f32 %v599, %v763
      %v796 = vadd.f32 %v600, %v764
      %v797 = vadd.f32 %v601, %v765
      %v798 = vadd.f32 %v602, %v766
      %v799 = vadd.f32 %v603, %v767
      %v800 = vadd.f32 %v604, %v768
      %v801 = vadd.f32 %v605, %v769
      %v802 = vtanh.pop %v770
      %v803 = vtanh.pop %v771
      %v804 = vtanh.pop %v772
      %v805 = vtanh.pop %v773
      %v806 = vtanh.pop %v774
      %v807 = vtanh.pop %v775
      %v808 = vtanh.pop %v776
      %v809 = vtanh.pop %v777
      %v810 = vtanh.pop %v778
      %v811 = vtanh.pop %v779
      %v812 = vtanh.pop %v780
      %v813 = vtanh.pop %v781
      %v814 = vtanh.pop %v782
      %v815 = vtanh.pop %v783
      %v816 = vtanh.pop %v784
      %v817 = vtanh.pop %v785
      %v818 = vtanh.pop %v786
      %v819 = vtanh.pop %v787
      %v820 = vtanh.pop %v788
      %v821 = vtanh.pop %v789
      %v822 = vtanh.pop %v790
      %v823 = vtanh.pop %v791
      %v824 = vtanh.pop %v792
      %v825 = vtanh.pop %v793
      %v826 = vtanh.pop %v794
      %v827 = vtanh.pop %v795
      %v828 = vtanh.pop %v796
      %v829 = vtanh.pop %v797
      %v830 = vtanh.pop %v798
      %v831 = vtanh.pop %v799
      %v832 = vtanh.pop %v800
      %v833 = vtanh.pop %v801
      %v834 = vld [vmem:[%s3] sm:$0xff]
      %v835 = vld [vmem:[%s3 + $0x8] sm:$0xff]
      %v836 = vld [vmem:[%s3 + $0x10] sm:$0xff]
      %v837 = vld [vmem:[%s3 + $0x18] sm:$0xff]
      %v838 = vld [vmem:[%s4] sm:$0x1]
      %v840 = vlaneseq
      %v841 = vshrl.u32 %v840, 7
      %v842 = vsub.s32 0, %v841
      %v843 = vrot.slane %v838, %v842
      %vm845 = vcmask 261120
      %v847 = vsel %vm845, %v802, 0
      %v850 = vsel %vm845, %v803, 0
      %v853 = vsel %vm845, %v804, 0
      %v856 = vsel %vm845, %v805, 0
      %v859 = vsel %vm845, %v806, 0
      %v862 = vsel %vm845, %v807, 0
      %v865 = vsel %vm845, %v808, 0
      %v868 = vsel %vm845, %v809, 0
      %v871 = vsel %vm845, %v810, 0
      %v874 = vsel %vm845, %v811, 0
      %v877 = vsel %vm845, %v812, 0
      %v880 = vsel %vm845, %v813, 0
      %v883 = vsel %vm845, %v814, 0
      %v886 = vsel %vm845, %v815, 0
      %v889 = vsel %vm845, %v816, 0
      %v892 = vsel %vm845, %v817, 0
      %v895 = vsel %vm845, %v818, 0
      %v898 = vsel %vm845, %v819, 0
      %v901 = vsel %vm845, %v820, 0
      %v904 = vsel %vm845, %v821, 0
      %v907 = vsel %vm845, %v822, 0
      %v910 = vsel %vm845, %v823, 0
      %v913 = vsel %vm845, %v824, 0
      %v916 = vsel %vm845, %v825, 0
      %v919 = vsel %vm845, %v826, 0
      %v922 = vsel %vm845, %v827, 0
      %v925 = vsel %vm845, %v828, 0
      %v928 = vsel %vm845, %v829, 0
      %v931 = vsel %vm845, %v830, 0
      %v934 = vsel %vm845, %v831, 0
      %v937 = vsel %vm845, %v832, 0
      %v940 = vsel %vm845, %v833, 0
      %942 = vmatprep.subr.mxu0 0.0
      %v943 = vand.u32 %v834, 4294901760
      %944 = vmatpush1.msra.mxu0 %v943
      %945 = vmatprep.subr.mxu0 0.0
      %v946 = vand.u32 %v835, 4294901760
      %947 = vmatpush1.msra.mxu0 %v946
      %948 = vmatprep.subr.mxu0 0.0
      %v949 = vand.u32 %v836, 4294901760
      %950 = vmatpush1.msra.mxu0 %v949
      %951 = vmatprep.subr.mxu0 0.0
      %v952 = vand.u32 %v837, 4294901760
      %953 = vmatpush1.msra.mxu0 %v952
      %954 = vmatprep.subr.mxu0 0.0
      %955 = vmatpush1.msra.mxu0 0.0
      %956 = vmatprep.subr.mxu0 0.0
      %957 = vmatpush1.msra.mxu0 0.0
      %958 = vmatprep.subr.mxu0 0.0
      %959 = vmatpush1.msra.mxu0 0.0
      %960 = vmatprep.subr.mxu0 0.0
      %961 = vmatpush1.msra.mxu0 0.0
      %962 = vmatprep.subr.mxu0 0.0
      %963 = vmatpush1.msra.mxu0 0.0
      %964 = vmatprep.subr.mxu0 0.0
      %965 = vmatpush1.msra.mxu0 0.0
      %966 = vmatprep.subr.mxu0 0.0
      %967 = vmatpush1.msra.mxu0 0.0
      %968 = vmatprep.subr.mxu0 0.0
      %969 = vmatpush1.msra.mxu0 0.0
      %970 = vmatprep.subr.mxu0 0.0
      %971 = vmatpush1.msra.mxu0 0.0
      %972 = vmatprep.subr.mxu0 0.0
      %973 = vmatpush1.msra.mxu0 0.0
      %974 = vmatprep.subr.mxu0 0.0
      %975 = vmatpush1.msra.mxu0 0.0
      %976 = vmatprep.subr.mxu0 0.0
      %977 = vmatpush1.msra.mxu0 0.0
      %978 = vmatprep.subr.mxu0 0.0
      %979 = vmatpush1.msra.mxu0 0.0
      %980 = vmatprep.subr.mxu0 0.0
      %981 = vmatpush1.msra.mxu0 0.0
      %982 = vmatprep.subr.mxu0 0.0
      %983 = vmatpush1.msra.mxu0 0.0
      %984 = vmatprep.subr.mxu0 0.0
      %985 = vmatpush1.msra.mxu0 0.0
      %986 = vmatprep.subr.mxu0 0.0
      %987 = vmatpush1.msra.mxu0 0.0
      %988 = vmatprep.subr.mxu0 0.0
      %989 = vmatpush1.msra.mxu0 0.0
      %990 = vmatprep.subr.mxu0 0.0
      %991 = vmatpush1.msra.mxu0 0.0
      %992 = vmatprep.subr.mxu0 0.0
      %993 = vmatpush1.msra.mxu0 0.0
      %994 = vmatprep.subr.mxu0 0.0
      %995 = vmatpush1.msra.mxu0 0.0
      %996 = vmatprep.subr.mxu0 0.0
      %997 = vmatpush1.msra.mxu0 0.0
      %998 = vmatprep.subr.mxu0 0.0
      %999 = vmatpush1.msra.mxu0 0.0
      %1000 = vmatprep.subr.mxu0 0.0
      %1001 = vmatpush1.msra.mxu0 0.0
      %1002 = vmatprep.subr.mxu0 0.0
      %1003 = vmatpush1.msra.mxu0 0.0
      %1004 = vmatprep.subr.mxu0 0.0
      %1005 = vmatpush1.msra.mxu0 0.0
      %1006 = vmatprep.subr.mxu0 0.0
      %1007 = vmatpush1.msra.mxu0 0.0
      %1008 = vmatprep.subr.mxu0 0.0
      %1009 = vmatpush1.msra.mxu0 0.0
      %1010 = vmatprep.mubr.f32.mxu0 0.0
      %v1011 = vand.u32 %v847, 4294901760
      %v1012 = vsub.f32 %v847, %v1011
      %v1013 = vand.u32 %v1012, 4294901760
      %v1014 = vsub.f32 %v1012, %v1013
      %v1015 = vand.u32 %v1014, 4294901760
      %1016 = vmatmul.mubr.f32.gmra.mrb[0].mxu0 %v1015
      %v1017 = vpop.f32.mrb[0].mxu0
      %v1018 = vadd.f32 %v843, %v1017
      %v1019 = vpop.f32.mrb[0].mxu0
      %1020 = vmatprep.mubr.f32.mxu0 0.0
      %v1021 = vand.u32 %v850, 4294901760
      %v1022 = vsub.f32 %v850, %v1021
      %v1023 = vand.u32 %v1022, 4294901760
      %v1024 = vsub.f32 %v1022, %v1023
      %v1025 = vand.u32 %v1024, 4294901760
      %1026 = vmatmul.mubr.f32.gmra.mrb[0].mxu0 %v1025
      %v1027 = vpop.f32.mrb[0].mxu0
      %v1028 = vadd.f32 %v843, %v1027
      %v1029 = vpop.f32.mrb[0].mxu0
      %1030 = vmatprep.mubr.f32.mxu0 0.0
      %v1031 = vand.u32 %v853, 4294901760
      %v1032 = vsub.f32 %v853, %v1031
      %v1033 = vand.u32 %v1032, 4294901760
      %v1034 = vsub.f32 %v1032, %v1033
      %v1035 = vand.u32 %v1034, 4294901760
      %1036 = vmatmul.mubr.f32.gmra.mrb[0].mxu0 %v1035
      %v1037 = vpop.f32.mrb[0].mxu0
      %v1038 = vadd.f32 %v843, %v1037
      %v1039 = vpop.f32.mrb[0].mxu0
      %1040 = vmatprep.mubr.f32.mxu0 0.0
      %v1041 = vand.u32 %v856, 4294901760
      %v1042 = vsub.f32 %v856, %v1041
      %v1043 = vand.u32 %v1042, 4294901760
      %v1044 = vsub.f32 %v1042, %v1043
      %v1045 = vand.u32 %v1044, 4294901760
      %1046 = vmatmul.mubr.f32.gmra.mrb[0].mxu0 %v1045
      %v1047 = vpop.f32.mrb[0].mxu0
      %v1048 = vadd.f32 %v843, %v1047
      %v1049 = vpop.f32.mrb[0].mxu0
      %1050 = vmatprep.mubr.f32.mxu0 0.0
      %v1051 = vand.u32 %v859, 4294901760
      %v1052 = vsub.f32 %v859, %v1051
      %v1053 = vand.u32 %v1052, 4294901760
      %v1054 = vsub.f32 %v1052, %v1053
      %v1055 = vand.u32 %v1054, 4294901760
      %1056 = vmatmul.mubr.f32.gmra.mrb[0].mxu0 %v1055
      %v1057 = vpop.f32.mrb[0].mxu0
      %v1058 = vadd.f32 %v843, %v1057
      %v1059 = vpop.f32.mrb[0].mxu0
      %1060 = vmatprep.mubr.f32.mxu0 0.0
      %v1061 = vand.u32 %v862, 4294901760
      %v1062 = vsub.f32 %v862, %v1061
      %v1063 = vand.u32 %v1062, 4294901760
      %v1064 = vsub.f32 %v1062, %v1063
      %v1065 = vand.u32 %v1064, 4294901760
      %1066 = vmatmul.mubr.f32.gmra.mrb[0].mxu0 %v1065
      %v1067 = vpop.f32.mrb[0].mxu0
      %v1068 = vadd.f32 %v843, %v1067
      %v1069 = vpop.f32.mrb[0].mxu0
      %1070 = vmatprep.mubr.f32.mxu0 0.0
      %v1071 = vand.u32 %v865, 4294901760
      %v1072 = vsub.f32 %v865, %v1071
      %v1073 = vand.u32 %v1072, 4294901760
      %v1074 = vsub.f32 %v1072, %v1073
      %v1075 = vand.u32 %v1074, 4294901760
      %1076 = vmatmul.mubr.f32.gmra.mrb[0].mxu0 %v1075
      %v1077 = vpop.f32.mrb[0].mxu0
      %v1078 = vadd.f32 %v843, %v1077
      %v1079 = vpop.f32.mrb[0].mxu0
      %1080 = vmatprep.mubr.f32.mxu0 0.0
      %v1081 = vand.u32 %v868, 4294901760
      %v1082 = vsub.f32 %v868, %v1081
      %v1083 = vand.u32 %v1082, 4294901760
      %v1084 = vsub.f32 %v1082, %v1083
      %v1085 = vand.u32 %v1084, 4294901760
      %1086 = vmatmul.mubr.f32.gmra.mrb[0].mxu0 %v1085
      %v1087 = vpop.f32.mrb[0].mxu0
      %v1088 = vadd.f32 %v843, %v1087
      %v1089 = vpop.f32.mrb[0].mxu0
      %1090 = vmatprep.mubr.f32.mxu0 0.0
      %v1091 = vand.u32 %v871, 4294901760
      %v1092 = vsub.f32 %v871, %v1091
      %v1093 = vand.u32 %v1092, 4294901760
      %v1094 = vsub.f32 %v1092, %v1093
      %v1095 = vand.u32 %v1094, 4294901760
      %1096 = vmatmul.mubr.f32.gmra.mrb[0].mxu0 %v1095
      %v1097 = vpop.f32.mrb[0].mxu0
      %v1098 = vadd.f32 %v843, %v1097
      %v1099 = vpop.f32.mrb[0].mxu0
      %1100 = vmatprep.mubr.f32.mxu0 0.0
      %v1101 = vand.u32 %v874, 4294901760
      %v1102 = vsub.f32 %v874, %v1101
      %v1103 = vand.u32 %v1102, 4294901760
      %v1104 = vsub.f32 %v1102, %v1103
      %v1105 = vand.u32 %v1104, 4294901760
      %1106 = vmatmul.mubr.f32.gmra.mrb[0].mxu0 %v1105
      %v1107 = vpop.f32.mrb[0].mxu0
      %v1108 = vadd.f32 %v843, %v1107
      %v1109 = vpop.f32.mrb[0].mxu0
      %1110 = vmatprep.mubr.f32.mxu0 0.0
      %v1111 = vand.u32 %v877, 4294901760
      %v1112 = vsub.f32 %v877, %v1111
      %v1113 = vand.u32 %v1112, 4294901760
      %v1114 = vsub.f32 %v1112, %v1113
      %v1115 = vand.u32 %v1114, 4294901760
      %1116 = vmatmul.mubr.f32.gmra.mrb[0].mxu0 %v1115
      %v1117 = vpop.f32.mrb[0].mxu0
      %v1118 = vadd.f32 %v843, %v1117
      %v1119 = vpop.f32.mrb[0].mxu0
      %1120 = vmatprep.mubr.f32.mxu0 0.0
      %v1121 = vand.u32 %v880, 4294901760
      %v1122 = vsub.f32 %v880, %v1121
      %v1123 = vand.u32 %v1122, 4294901760
      %v1124 = vsub.f32 %v1122, %v1123
      %v1125 = vand.u32 %v1124, 4294901760
      %1126 = vmatmul.mubr.f32.gmra.mrb[0].mxu0 %v1125
      %v1127 = vpop.f32.mrb[0].mxu0
      %v1128 = vadd.f32 %v843, %v1127
      %v1129 = vpop.f32.mrb[0].mxu0
      %1130 = vmatprep.mubr.f32.mxu0 0.0
      %v1131 = vand.u32 %v883, 4294901760
      %v1132 = vsub.f32 %v883, %v1131
      %v1133 = vand.u32 %v1132, 4294901760
      %v1134 = vsub.f32 %v1132, %v1133
      %v1135 = vand.u32 %v1134, 4294901760
      %1136 = vmatmul.mubr.f32.gmra.mrb[0].mxu0 %v1135
      %v1137 = vpop.f32.mrb[0].mxu0
      %v1138 = vadd.f32 %v843, %v1137
      %v1139 = vpop.f32.mrb[0].mxu0
      %1140 = vmatprep.mubr.f32.mxu0 0.0
      %v1141 = vand.u32 %v886, 4294901760
      %v1142 = vsub.f32 %v886, %v1141
      %v1143 = vand.u32 %v1142, 4294901760
      %v1144 = vsub.f32 %v1142, %v1143
      %v1145 = vand.u32 %v1144, 4294901760
      %1146 = vmatmul.mubr.f32.gmra.mrb[0].mxu0 %v1145
      %v1147 = vpop.f32.mrb[0].mxu0
      %v1148 = vadd.f32 %v843, %v1147
      %v1149 = vpop.f32.mrb[0].mxu0
      %1150 = vmatprep.mubr.f32.mxu0 0.0
      %v1151 = vand.u32 %v889, 4294901760
      %v1152 = vsub.f32 %v889, %v1151
      %v1153 = vand.u32 %v1152, 4294901760
      %v1154 = vsub.f32 %v1152, %v1153
      %v1155 = vand.u32 %v1154, 4294901760
      %1156 = vmatmul.mubr.f32.gmra.mrb[0].mxu0 %v1155
      %v1157 = vpop.f32.mrb[0].mxu0
      %v1158 = vadd.f32 %v843, %v1157
      %v1159 = vpop.f32.mrb[0].mxu0
      %1160 = vmatprep.mubr.f32.mxu0 0.0
      %v1161 = vand.u32 %v892, 4294901760
      %v1162 = vsub.f32 %v892, %v1161
      %v1163 = vand.u32 %v1162, 4294901760
      %v1164 = vsub.f32 %v1162, %v1163
      %v1165 = vand.u32 %v1164, 4294901760
      %1166 = vmatmul.mubr.f32.gmra.mrb[0].mxu0 %v1165
      %v1167 = vpop.f32.mrb[0].mxu0
      %v1168 = vadd.f32 %v843, %v1167
      %v1169 = vpop.f32.mrb[0].mxu0
      %1170 = vmatprep.mubr.f32.mxu0 0.0
      %v1171 = vand.u32 %v895, 4294901760
      %v1172 = vsub.f32 %v895, %v1171
      %v1173 = vand.u32 %v1172, 4294901760
      %v1174 = vsub.f32 %v1172, %v1173
      %v1175 = vand.u32 %v1174, 4294901760
      %1176 = vmatmul.mubr.f32.gmra.mrb[0].mxu0 %v1175
      %v1177 = vpop.f32.mrb[0].mxu0
      %v1178 = vadd.f32 %v843, %v1177
      %v1179 = vpop.f32.mrb[0].mxu0
      %1180 = vmatprep.mubr.f32.mxu0 0.0
      %v1181 = vand.u32 %v898, 4294901760
      %v1182 = vsub.f32 %v898, %v1181
      %v1183 = vand.u32 %v1182, 4294901760
      %v1184 = vsub.f32 %v1182, %v1183
      %v1185 = vand.u32 %v1184, 4294901760
      %1186 = vmatmul.mubr.f32.gmra.mrb[0].mxu0 %v1185
      %v1187 = vpop.f32.mrb[0].mxu0
      %v1188 = vadd.f32 %v843, %v1187
      %v1189 = vpop.f32.mrb[0].mxu0
      %1190 = vmatprep.mubr.f32.mxu0 0.0
      %v1191 = vand.u32 %v901, 4294901760
      %v1192 = vsub.f32 %v901, %v1191
      %v1193 = vand.u32 %v1192, 4294901760
      %v1194 = vsub.f32 %v1192, %v1193
      %v1195 = vand.u32 %v1194, 4294901760
      %1196 = vmatmul.mubr.f32.gmra.mrb[0].mxu0 %v1195
      %v1197 = vpop.f32.mrb[0].mxu0
      %v1198 = vadd.f32 %v843, %v1197
      %v1199 = vpop.f32.mrb[0].mxu0
      %1200 = vmatprep.mubr.f32.mxu0 0.0
      %v1201 = vand.u32 %v904, 4294901760
      %v1202 = vsub.f32 %v904, %v1201
      %v1203 = vand.u32 %v1202, 4294901760
      %v1204 = vsub.f32 %v1202, %v1203
      %v1205 = vand.u32 %v1204, 4294901760
      %1206 = vmatmul.mubr.f32.gmra.mrb[0].mxu0 %v1205
      %v1207 = vpop.f32.mrb[0].mxu0
      %v1208 = vadd.f32 %v843, %v1207
      %v1209 = vpop.f32.mrb[0].mxu0
      %1210 = vmatprep.mubr.f32.mxu0 0.0
      %v1211 = vand.u32 %v907, 4294901760
      %v1212 = vsub.f32 %v907, %v1211
      %v1213 = vand.u32 %v1212, 4294901760
      %v1214 = vsub.f32 %v1212, %v1213
      %v1215 = vand.u32 %v1214, 4294901760
      %1216 = vmatmul.mubr.f32.gmra.mrb[0].mxu0 %v1215
      %v1217 = vpop.f32.mrb[0].mxu0
      %v1218 = vadd.f32 %v843, %v1217
      %v1219 = vpop.f32.mrb[0].mxu0
      %1220 = vmatprep.mubr.f32.mxu0 0.0
      %v1221 = vand.u32 %v910, 4294901760
      %v1222 = vsub.f32 %v910, %v1221
      %v1223 = vand.u32 %v1222, 4294901760
      %v1224 = vsub.f32 %v1222, %v1223
      %v1225 = vand.u32 %v1224, 4294901760
      %1226 = vmatmul.mubr.f32.gmra.mrb[0].mxu0 %v1225
      %v1227 = vpop.f32.mrb[0].mxu0
      %v1228 = vadd.f32 %v843, %v1227
      %v1229 = vpop.f32.mrb[0].mxu0
      %1230 = vmatprep.mubr.f32.mxu0 0.0
      %v1231 = vand.u32 %v913, 4294901760
      %v1232 = vsub.f32 %v913, %v1231
      %v1233 = vand.u32 %v1232, 4294901760
      %v1234 = vsub.f32 %v1232, %v1233
      %v1235 = vand.u32 %v1234, 4294901760
      %1236 = vmatmul.mubr.f32.gmra.mrb[0].mxu0 %v1235
      %v1237 = vpop.f32.mrb[0].mxu0
      %v1238 = vadd.f32 %v843, %v1237
      %v1239 = vpop.f32.mrb[0].mxu0
      %1240 = vmatprep.mubr.f32.mxu0 0.0
      %v1241 = vand.u32 %v916, 4294901760
      %v1242 = vsub.f32 %v916, %v1241
      %v1243 = vand.u32 %v1242, 4294901760
      %v1244 = vsub.f32 %v1242, %v1243
      %v1245 = vand.u32 %v1244, 4294901760
      %1246 = vmatmul.mubr.f32.gmra.mrb[0].mxu0 %v1245
      %v1247 = vpop.f32.mrb[0].mxu0
      %v1248 = vadd.f32 %v843, %v1247
      %v1249 = vpop.f32.mrb[0].mxu0
      %1250 = vmatprep.mubr.f32.mxu0 0.0
      %v1251 = vand.u32 %v919, 4294901760
      %v1252 = vsub.f32 %v919, %v1251
      %v1253 = vand.u32 %v1252, 4294901760
      %v1254 = vsub.f32 %v1252, %v1253
      %v1255 = vand.u32 %v1254, 4294901760
      %1256 = vmatmul.mubr.f32.gmra.mrb[0].mxu0 %v1255
      %v1257 = vpop.f32.mrb[0].mxu0
      %v1258 = vadd.f32 %v843, %v1257
      %v1259 = vpop.f32.mrb[0].mxu0
      %1260 = vmatprep.mubr.f32.mxu0 0.0
      %v1261 = vand.u32 %v922, 4294901760
      %v1262 = vsub.f32 %v922, %v1261
      %v1263 = vand.u32 %v1262, 4294901760
      %v1264 = vsub.f32 %v1262, %v1263
      %v1265 = vand.u32 %v1264, 4294901760
      %1266 = vmatmul.mubr.f32.gmra.mrb[0].mxu0 %v1265
      %v1267 = vpop.f32.mrb[0].mxu0
      %v1268 = vadd.f32 %v843, %v1267
      %v1269 = vpop.f32.mrb[0].mxu0
      %1270 = vmatprep.mubr.f32.mxu0 0.0
      %v1271 = vand.u32 %v925, 4294901760
      %v1272 = vsub.f32 %v925, %v1271
      %v1273 = vand.u32 %v1272, 4294901760
      %v1274 = vsub.f32 %v1272, %v1273
      %v1275 = vand.u32 %v1274, 4294901760
      %1276 = vmatmul.mubr.f32.gmra.mrb[0].mxu0 %v1275
      %v1277 = vpop.f32.mrb[0].mxu0
      %v1278 = vadd.f32 %v843, %v1277
      %v1279 = vpop.f32.mrb[0].mxu0
      %1280 = vmatprep.mubr.f32.mxu0 0.0
      %v1281 = vand.u32 %v928, 4294901760
      %v1282 = vsub.f32 %v928, %v1281
      %v1283 = vand.u32 %v1282, 4294901760
      %v1284 = vsub.f32 %v1282, %v1283
      %v1285 = vand.u32 %v1284, 4294901760
      %1286 = vmatmul.mubr.f32.gmra.mrb[0].mxu0 %v1285
      %v1287 = vpop.f32.mrb[0].mxu0
      %v1288 = vadd.f32 %v843, %v1287
      %v1289 = vpop.f32.mrb[0].mxu0
      %1290 = vmatprep.mubr.f32.mxu0 0.0
      %v1291 = vand.u32 %v931, 4294901760
      %v1292 = vsub.f32 %v931, %v1291
      %v1293 = vand.u32 %v1292, 4294901760
      %v1294 = vsub.f32 %v1292, %v1293
      %v1295 = vand.u32 %v1294, 4294901760
      %1296 = vmatmul.mubr.f32.gmra.mrb[0].mxu0 %v1295
      %v1297 = vpop.f32.mrb[0].mxu0
      %v1298 = vadd.f32 %v843, %v1297
      %v1299 = vpop.f32.mrb[0].mxu0
      %1300 = vmatprep.mubr.f32.mxu0 0.0
      %v1301 = vand.u32 %v934, 4294901760
      %v1302 = vsub.f32 %v934, %v1301
      %v1303 = vand.u32 %v1302, 4294901760
      %v1304 = vsub.f32 %v1302, %v1303
      %v1305 = vand.u32 %v1304, 4294901760
      %1306 = vmatmul.mubr.f32.gmra.mrb[0].mxu0 %v1305
      %v1307 = vpop.f32.mrb[0].mxu0
      %v1308 = vadd.f32 %v843, %v1307
      %v1309 = vpop.f32.mrb[0].mxu0
      %1310 = vmatprep.mubr.f32.mxu0 0.0
      %v1311 = vand.u32 %v937, 4294901760
      %v1312 = vsub.f32 %v937, %v1311
      %v1313 = vand.u32 %v1312, 4294901760
      %v1314 = vsub.f32 %v1312, %v1313
      %v1315 = vand.u32 %v1314, 4294901760
      %1316 = vmatmul.mubr.f32.gmra.mrb[0].mxu0 %v1315
      %v1317 = vpop.f32.mrb[0].mxu0
      %v1318 = vadd.f32 %v843, %v1317
      %v1319 = vpop.f32.mrb[0].mxu0
      %1320 = vmatprep.mubr.f32.mxu0 0.0
      %v1321 = vand.u32 %v940, 4294901760
      %v1322 = vsub.f32 %v940, %v1321
      %v1323 = vand.u32 %v1322, 4294901760
      %v1324 = vsub.f32 %v1322, %v1323
      %v1325 = vand.u32 %v1324, 4294901760
      %1326 = vmatmul.mubr.f32.gmra.mrb[0].mxu0 %v1325
      %v1327 = vpop.f32.mrb[0].mxu0
      %v1328 = vadd.f32 %v843, %v1327
      %v1329 = vpop.f32.mrb[0].mxu0
      %1330 = vdwg.mxu0
      %1331 = vmatprep.subr.mxu0 0.0
      %v1332 = vand.u32 %v834, 4294901760
      %v1333 = vsub.f32 %v834, %v1332
      %v1334 = vand.u32 %v1333, 4294901760
      %v1335 = vsub.f32 %v1333, %v1334
      %v1336 = vand.u32 %v1335, 4294901760
      %1337 = vmatpush1.msra.mxu0 %v1336
      %1338 = vmatprep.subr.mxu0 0.0
      %v1339 = vand.u32 %v835, 4294901760
      %v1340 = vsub.f32 %v835, %v1339
      %v1341 = vand.u32 %v1340, 4294901760
      %v1342 = vsub.f32 %v1340, %v1341
      %v1343 = vand.u32 %v1342, 4294901760
      %1344 = vmatpush1.msra.mxu0 %v1343
      %1345 = vmatprep.subr.mxu0 0.0
      %v1346 = vand.u32 %v836, 4294901760
      %v1347 = vsub.f32 %v836, %v1346
      %v1348 = vand.u32 %v1347, 4294901760
      %v1349 = vsub.f32 %v1347, %v1348
      %v1350 = vand.u32 %v1349, 4294901760
      %1351 = vmatpush1.msra.mxu0 %v1350
      %1352 = vmatprep.subr.mxu0 0.0
      %v1353 = vand.u32 %v837, 4294901760
      %v1354 = vsub.f32 %v837, %v1353
      %v1355 = vand.u32 %v1354, 4294901760
      %v1356 = vsub.f32 %v1354, %v1355
      %v1357 = vand.u32 %v1356, 4294901760
      %1358 = vmatpush1.msra.mxu0 %v1357
      %1359 = vmatprep.subr.mxu0 0.0
      %1360 = vmatpush1.msra.mxu0 0.0
      %1361 = vmatprep.subr.mxu0 0.0
      %1362 = vmatpush1.msra.mxu0 0.0
      %1363 = vmatprep.subr.mxu0 0.0
      %1364 = vmatpush1.msra.mxu0 0.0
      %1365 = vmatprep.subr.mxu0 0.0
      %1366 = vmatpush1.msra.mxu0 0.0
      %1367 = vmatprep.subr.mxu0 0.0
      %1368 = vmatpush1.msra.mxu0 0.0
      %1369 = vmatprep.subr.mxu0 0.0
      %1370 = vmatpush1.msra.mxu0 0.0
      %1371 = vmatprep.subr.mxu0 0.0
      %1372 = vmatpush1.msra.mxu0 0.0
      %1373 = vmatprep.subr.mxu0 0.0
      %1374 = vmatpush1.msra.mxu0 0.0
      %1375 = vmatprep.subr.mxu0 0.0
      %1376 = vmatpush1.msra.mxu0 0.0
      %1377 = vmatprep.subr.mxu0 0.0
      %1378 = vmatpush1.msra.mxu0 0.0
      %1379 = vmatprep.subr.mxu0 0.0
      %1380 = vmatpush1.msra.mxu0 0.0
      %1381 = vmatprep.subr.mxu0 0.0
      %1382 = vmatpush1.msra.mxu0 0.0
      %1383 = vmatprep.subr.mxu0 0.0
      %1384 = vmatpush1.msra.mxu0 0.0
      %1385 = vmatprep.subr.mxu0 0.0
      %1386 = vmatpush1.msra.mxu0 0.0
      %1387 = vmatprep.subr.mxu0 0.0
      %1388 = vmatpush1.msra.mxu0 0.0
      %1389 = vmatprep.subr.mxu0 0.0
      %1390 = vmatpush1.msra.mxu0 0.0
      %1391 = vmatprep.subr.mxu0 0.0
      %1392 = vmatpush1.msra.mxu0 0.0
      %1393 = vmatprep.subr.mxu0 0.0
      %1394 = vmatpush1.msra.mxu0 0.0
      %1395 = vmatprep.subr.mxu0 0.0
      %1396 = vmatpush1.msra.mxu0 0.0
      %1397 = vmatprep.subr.mxu0 0.0
      %1398 = vmatpush1.msra.mxu0 0.0
      %1399 = vmatprep.subr.mxu0 0.0
      %1400 = vmatpush1.msra.mxu0 0.0
      %1401 = vmatprep.subr.mxu0 0.0
      %1402 = vmatpush1.msra.mxu0 0.0
      %1403 = vmatprep.subr.mxu0 0.0
      %1404 = vmatpush1.msra.mxu0 0.0
      %1405 = vmatprep.subr.mxu0 0.0
      %1406 = vmatpush1.msra.mxu0 0.0
      %1407 = vmatprep.subr.mxu0 0.0
      %1408 = vmatpush1.msra.mxu0 0.0
      %1409 = vmatprep.subr.mxu0 0.0
      %1410 = vmatpush1.msra.mxu0 0.0
      %1411 = vmatprep.subr.mxu0 0.0
      %1412 = vmatpush1.msra.mxu0 0.0
      %1413 = vmatprep.subr.mxu0 0.0
      %1414 = vmatpush1.msra.mxu0 0.0
      %1415 = vmatprep.mubr.f32.mxu0 0.0
      %v1416 = vand.u32 %v847, 4294901760
      %1417 = vmatmul.mubr.f32.gmra.mrb[0].mxu0 %v1416
      %v1418 = vpop.f32.mrb[0].mxu0
      %v1419 = vadd.f32 %v1018, %v1418
      %v1420 = vpop.f32.mrb[0].mxu0
      %1421 = vmatprep.mubr.f32.mxu0 0.0
      %v1422 = vand.u32 %v850, 4294901760
      %1423 = vmatmul.mubr.f32.gmra.mrb[0].mxu0 %v1422
      %v1424 = vpop.f32.mrb[0].mxu0
      %v1425 = vadd.f32 %v1028, %v1424
      %v1426 = vpop.f32.mrb[0].mxu0
      %1427 = vmatprep.mubr.f32.mxu0 0.0
      %v1428 = vand.u32 %v853, 4294901760
      %1429 = vmatmul.mubr.f32.gmra.mrb[0].mxu0 %v1428
      %v1430 = vpop.f32.mrb[0].mxu0
      %v1431 = vadd.f32 %v1038, %v1430
      %v1432 = vpop.f32.mrb[0].mxu0
      %1433 = vmatprep.mubr.f32.mxu0 0.0
      %v1434 = vand.u32 %v856, 4294901760
      %1435 = vmatmul.mubr.f32.gmra.mrb[0].mxu0 %v1434
      %v1436 = vpop.f32.mrb[0].mxu0
      %v1437 = vadd.f32 %v1048, %v1436
      %v1438 = vpop.f32.mrb[0].mxu0
      %1439 = vmatprep.mubr.f32.mxu0 0.0
      %v1440 = vand.u32 %v859, 4294901760
      %1441 = vmatmul.mubr.f32.gmra.mrb[0].mxu0 %v1440
      %v1442 = vpop.f32.mrb[0].mxu0
      %v1443 = vadd.f32 %v1058, %v1442
      %v1444 = vpop.f32.mrb[0].mxu0
      %1445 = vmatprep.mubr.f32.mxu0 0.0
      %v1446 = vand.u32 %v862, 4294901760
      %1447 = vmatmul.mubr.f32.gmra.mrb[0].mxu0 %v1446
      %v1448 = vpop.f32.mrb[0].mxu0
      %v1449 = vadd.f32 %v1068, %v1448
      %v1450 = vpop.f32.mrb[0].mxu0
      %1451 = vmatprep.mubr.f32.mxu0 0.0
      %v1452 = vand.u32 %v865, 4294901760
      %1453 = vmatmul.mubr.f32.gmra.mrb[0].mxu0 %v1452
      %v1454 = vpop.f32.mrb[0].mxu0
      %v1455 = vadd.f32 %v1078, %v1454
      %v1456 = vpop.f32.mrb[0].mxu0
      %1457 = vmatprep.mubr.f32.mxu0 0.0
      %v1458 = vand.u32 %v868, 4294901760
      %1459 = vmatmul.mubr.f32.gmra.mrb[0].mxu0 %v1458
      %v1460 = vpop.f32.mrb[0].mxu0
      %v1461 = vadd.f32 %v1088, %v1460
      %v1462 = vpop.f32.mrb[0].mxu0
      %1463 = vmatprep.mubr.f32.mxu0 0.0
      %v1464 = vand.u32 %v871, 4294901760
      %1465 = vmatmul.mubr.f32.gmra.mrb[0].mxu0 %v1464
      %v1466 = vpop.f32.mrb[0].mxu0
      %v1467 = vadd.f32 %v1098, %v1466
      %v1468 = vpop.f32.mrb[0].mxu0
      %1469 = vmatprep.mubr.f32.mxu0 0.0
      %v1470 = vand.u32 %v874, 4294901760
      %1471 = vmatmul.mubr.f32.gmra.mrb[0].mxu0 %v1470
      %v1472 = vpop.f32.mrb[0].mxu0
      %v1473 = vadd.f32 %v1108, %v1472
      %v1474 = vpop.f32.mrb[0].mxu0
      %1475 = vmatprep.mubr.f32.mxu0 0.0
      %v1476 = vand.u32 %v877, 4294901760
      %1477 = vmatmul.mubr.f32.gmra.mrb[0].mxu0 %v1476
      %v1478 = vpop.f32.mrb[0].mxu0
      %v1479 = vadd.f32 %v1118, %v1478
      %v1480 = vpop.f32.mrb[0].mxu0
      %1481 = vmatprep.mubr.f32.mxu0 0.0
      %v1482 = vand.u32 %v880, 4294901760
      %1483 = vmatmul.mubr.f32.gmra.mrb[0].mxu0 %v1482
      %v1484 = vpop.f32.mrb[0].mxu0
      %v1485 = vadd.f32 %v1128, %v1484
      %v1486 = vpop.f32.mrb[0].mxu0
      %1487 = vmatprep.mubr.f32.mxu0 0.0
      %v1488 = vand.u32 %v883, 4294901760
      %1489 = vmatmul.mubr.f32.gmra.mrb[0].mxu0 %v1488
      %v1490 = vpop.f32.mrb[0].mxu0
      %v1491 = vadd.f32 %v1138, %v1490
      %v1492 = vpop.f32.mrb[0].mxu0
      %1493 = vmatprep.mubr.f32.mxu0 0.0
      %v1494 = vand.u32 %v886, 4294901760
      %1495 = vmatmul.mubr.f32.gmra.mrb[0].mxu0 %v1494
      %v1496 = vpop.f32.mrb[0].mxu0
      %v1497 = vadd.f32 %v1148, %v1496
      %v1498 = vpop.f32.mrb[0].mxu0
      %1499 = vmatprep.mubr.f32.mxu0 0.0
      %v1500 = vand.u32 %v889, 4294901760
      %1501 = vmatmul.mubr.f32.gmra.mrb[0].mxu0 %v1500
      %v1502 = vpop.f32.mrb[0].mxu0
      %v1503 = vadd.f32 %v1158, %v1502
      %v1504 = vpop.f32.mrb[0].mxu0
      %1505 = vmatprep.mubr.f32.mxu0 0.0
      %v1506 = vand.u32 %v892, 4294901760
      %1507 = vmatmul.mubr.f32.gmra.mrb[0].mxu0 %v1506
      %v1508 = vpop.f32.mrb[0].mxu0
      %v1509 = vadd.f32 %v1168, %v1508
      %v1510 = vpop.f32.mrb[0].mxu0
      %1511 = vmatprep.mubr.f32.mxu0 0.0
      %v1512 = vand.u32 %v895, 4294901760
      %1513 = vmatmul.mubr.f32.gmra.mrb[0].mxu0 %v1512
      %v1514 = vpop.f32.mrb[0].mxu0
      %v1515 = vadd.f32 %v1178, %v1514
      %v1516 = vpop.f32.mrb[0].mxu0
      %1517 = vmatprep.mubr.f32.mxu0 0.0
      %v1518 = vand.u32 %v898, 4294901760
      %1519 = vmatmul.mubr.f32.gmra.mrb[0].mxu0 %v1518
      %v1520 = vpop.f32.mrb[0].mxu0
      %v1521 = vadd.f32 %v1188, %v1520
      %v1522 = vpop.f32.mrb[0].mxu0
      %1523 = vmatprep.mubr.f32.mxu0 0.0
      %v1524 = vand.u32 %v901, 4294901760
      %1525 = vmatmul.mubr.f32.gmra.mrb[0].mxu0 %v1524
      %v1526 = vpop.f32.mrb[0].mxu0
      %v1527 = vadd.f32 %v1198, %v1526
      %v1528 = vpop.f32.mrb[0].mxu0
      %1529 = vmatprep.mubr.f32.mxu0 0.0
      %v1530 = vand.u32 %v904, 4294901760
      %1531 = vmatmul.mubr.f32.gmra.mrb[0].mxu0 %v1530
      %v1532 = vpop.f32.mrb[0].mxu0
      %v1533 = vadd.f32 %v1208, %v1532
      %v1534 = vpop.f32.mrb[0].mxu0
      %1535 = vmatprep.mubr.f32.mxu0 0.0
      %v1536 = vand.u32 %v907, 4294901760
      %1537 = vmatmul.mubr.f32.gmra.mrb[0].mxu0 %v1536
      %v1538 = vpop.f32.mrb[0].mxu0
      %v1539 = vadd.f32 %v1218, %v1538
      %v1540 = vpop.f32.mrb[0].mxu0
      %1541 = vmatprep.mubr.f32.mxu0 0.0
      %v1542 = vand.u32 %v910, 4294901760
      %1543 = vmatmul.mubr.f32.gmra.mrb[0].mxu0 %v1542
      %v1544 = vpop.f32.mrb[0].mxu0
      %v1545 = vadd.f32 %v1228, %v1544
      %v1546 = vpop.f32.mrb[0].mxu0
      %1547 = vmatprep.mubr.f32.mxu0 0.0
      %v1548 = vand.u32 %v913, 4294901760
      %1549 = vmatmul.mubr.f32.gmra.mrb[0].mxu0 %v1548
      %v1550 = vpop.f32.mrb[0].mxu0
      %v1551 = vadd.f32 %v1238, %v1550
      %v1552 = vpop.f32.mrb[0].mxu0
      %1553 = vmatprep.mubr.f32.mxu0 0.0
      %v1554 = vand.u32 %v916, 4294901760
      %1555 = vmatmul.mubr.f32.gmra.mrb[0].mxu0 %v1554
      %v1556 = vpop.f32.mrb[0].mxu0
      %v1557 = vadd.f32 %v1248, %v1556
      %v1558 = vpop.f32.mrb[0].mxu0
      %1559 = vmatprep.mubr.f32.mxu0 0.0
      %v1560 = vand.u32 %v919, 4294901760
      %1561 = vmatmul.mubr.f32.gmra.mrb[0].mxu0 %v1560
      %v1562 = vpop.f32.mrb[0].mxu0
      %v1563 = vadd.f32 %v1258, %v1562
      %v1564 = vpop.f32.mrb[0].mxu0
      %1565 = vmatprep.mubr.f32.mxu0 0.0
      %v1566 = vand.u32 %v922, 4294901760
      %1567 = vmatmul.mubr.f32.gmra.mrb[0].mxu0 %v1566
      %v1568 = vpop.f32.mrb[0].mxu0
      %v1569 = vadd.f32 %v1268, %v1568
      %v1570 = vpop.f32.mrb[0].mxu0
      %1571 = vmatprep.mubr.f32.mxu0 0.0
      %v1572 = vand.u32 %v925, 4294901760
      %1573 = vmatmul.mubr.f32.gmra.mrb[0].mxu0 %v1572
      %v1574 = vpop.f32.mrb[0].mxu0
      %v1575 = vadd.f32 %v1278, %v1574
      %v1576 = vpop.f32.mrb[0].mxu0
      %1577 = vmatprep.mubr.f32.mxu0 0.0
      %v1578 = vand.u32 %v928, 4294901760
      %1579 = vmatmul.mubr.f32.gmra.mrb[0].mxu0 %v1578
      %v1580 = vpop.f32.mrb[0].mxu0
      %v1581 = vadd.f32 %v1288, %v1580
      %v1582 = vpop.f32.mrb[0].mxu0
      %1583 = vmatprep.mubr.f32.mxu0 0.0
      %v1584 = vand.u32 %v931, 4294901760
      %1585 = vmatmul.mubr.f32.gmra.mrb[0].mxu0 %v1584
      %v1586 = vpop.f32.mrb[0].mxu0
      %v1587 = vadd.f32 %v1298, %v1586
      %v1588 = vpop.f32.mrb[0].mxu0
      %1589 = vmatprep.mubr.f32.mxu0 0.0
      %v1590 = vand.u32 %v934, 4294901760
      %1591 = vmatmul.mubr.f32.gmra.mrb[0].mxu0 %v1590
      %v1592 = vpop.f32.mrb[0].mxu0
      %v1593 = vadd.f32 %v1308, %v1592
      %v1594 = vpop.f32.mrb[0].mxu0
      %1595 = vmatprep.mubr.f32.mxu0 0.0
      %v1596 = vand.u32 %v937, 4294901760
      %1597 = vmatmul.mubr.f32.gmra.mrb[0].mxu0 %v1596
      %v1598 = vpop.f32.mrb[0].mxu0
      %v1599 = vadd.f32 %v1318, %v1598
      %v1600 = vpop.f32.mrb[0].mxu0
      %1601 = vmatprep.mubr.f32.mxu0 0.0
      %v1602 = vand.u32 %v940, 4294901760
      %1603 = vmatmul.mubr.f32.gmra.mrb[0].mxu0 %v1602
      %v1604 = vpop.f32.mrb[0].mxu0
      %v1605 = vadd.f32 %v1328, %v1604
      %v1606 = vpop.f32.mrb[0].mxu0
      %1607 = vdwg.mxu0
      %1608 = vmatprep.subr.mxu0 0.0
      %v1609 = vand.u32 %v834, 4294901760
      %v1610 = vsub.f32 %v834, %v1609
      %1611 = vmatpush1.msra.mxu0 %v1610
      %1612 = vmatprep.subr.mxu0 0.0
      %v1613 = vand.u32 %v835, 4294901760
      %v1614 = vsub.f32 %v835, %v1613
      %1615 = vmatpush1.msra.mxu0 %v1614
      %1616 = vmatprep.subr.mxu0 0.0
      %v1617 = vand.u32 %v836, 4294901760
      %v1618 = vsub.f32 %v836, %v1617
      %1619 = vmatpush1.msra.mxu0 %v1618
      %1620 = vmatprep.subr.mxu0 0.0
      %v1621 = vand.u32 %v837, 4294901760
      %v1622 = vsub.f32 %v837, %v1621
      %1623 = vmatpush1.msra.mxu0 %v1622
      %1624 = vmatprep.subr.mxu0 0.0
      %1625 = vmatpush1.msra.mxu0 0.0
      %1626 = vmatprep.subr.mxu0 0.0
      %1627 = vmatpush1.msra.mxu0 0.0
      %1628 = vmatprep.subr.mxu0 0.0
      %1629 = vmatpush1.msra.mxu0 0.0
      %1630 = vmatprep.subr.mxu0 0.0
      %1631 = vmatpush1.msra.mxu0 0.0
      %1632 = vmatprep.subr.mxu0 0.0
      %1633 = vmatpush1.msra.mxu0 0.0
      %1634 = vmatprep.subr.mxu0 0.0
      %1635 = vmatpush1.msra.mxu0 0.0
      %1636 = vmatprep.subr.mxu0 0.0
      %1637 = vmatpush1.msra.mxu0 0.0
      %1638 = vmatprep.subr.mxu0 0.0
      %1639 = vmatpush1.msra.mxu0 0.0
      %1640 = vmatprep.subr.mxu0 0.0
      %1641 = vmatpush1.msra.mxu0 0.0
      %1642 = vmatprep.subr.mxu0 0.0
      %1643 = vmatpush1.msra.mxu0 0.0
      %1644 = vmatprep.subr.mxu0 0.0
      %1645 = vmatpush1.msra.mxu0 0.0
      %1646 = vmatprep.subr.mxu0 0.0
      %1647 = vmatpush1.msra.mxu0 0.0
      %1648 = vmatprep.subr.mxu0 0.0
      %1649 = vmatpush1.msra.mxu0 0.0
      %1650 = vmatprep.subr.mxu0 0.0
      %1651 = vmatpush1.msra.mxu0 0.0
      %1652 = vmatprep.subr.mxu0 0.0
      %1653 = vmatpush1.msra.mxu0 0.0
      %1654 = vmatprep.subr.mxu0 0.0
      %1655 = vmatpush1.msra.mxu0 0.0
      %1656 = vmatprep.subr.mxu0 0.0
      %1657 = vmatpush1.msra.mxu0 0.0
      %1658 = vmatprep.subr.mxu0 0.0
      %1659 = vmatpush1.msra.mxu0 0.0
      %1660 = vmatprep.subr.mxu0 0.0
      %1661 = vmatpush1.msra.mxu0 0.0
      %1662 = vmatprep.subr.mxu0 0.0
      %1663 = vmatpush1.msra.mxu0 0.0
      %1664 = vmatprep.subr.mxu0 0.0
      %1665 = vmatpush1.msra.mxu0 0.0
      %1666 = vmatprep.subr.mxu0 0.0
      %1667 = vmatpush1.msra.mxu0 0.0
      %1668 = vmatprep.subr.mxu0 0.0
      %1669 = vmatpush1.msra.mxu0 0.0
      %1670 = vmatprep.subr.mxu0 0.0
      %1671 = vmatpush1.msra.mxu0 0.0
      %1672 = vmatprep.subr.mxu0 0.0
      %1673 = vmatpush1.msra.mxu0 0.0
      %1674 = vmatprep.subr.mxu0 0.0
      %1675 = vmatpush1.msra.mxu0 0.0
      %1676 = vmatprep.subr.mxu0 0.0
      %1677 = vmatpush1.msra.mxu0 0.0
      %1678 = vmatprep.subr.mxu0 0.0
      %1679 = vmatpush1.msra.mxu0 0.0
      %1680 = vmatprep.mubr.f32.mxu0 0.0
      %v1681 = vand.u32 %v847, 4294901760
      %v1682 = vsub.f32 %v847, %v1681
      %1683 = vmatmul.mubr.f32.gmra.mrb[0].mxu0 %v1682
      %v1684 = vpop.f32.mrb[0].mxu0
      %v1685 = vadd.f32 %v1419, %v1684
      %v1686 = vpop.f32.mrb[0].mxu0
      %1687 = vmatprep.mubr.f32.mxu0 0.0
      %v1688 = vand.u32 %v850, 4294901760
      %v1689 = vsub.f32 %v850, %v1688
      %1690 = vmatmul.mubr.f32.gmra.mrb[0].mxu0 %v1689
      %v1691 = vpop.f32.mrb[0].mxu0
      %v1692 = vadd.f32 %v1425, %v1691
      %v1693 = vpop.f32.mrb[0].mxu0
      %1694 = vmatprep.mubr.f32.mxu0 0.0
      %v1695 = vand.u32 %v853, 4294901760
      %v1696 = vsub.f32 %v853, %v1695
      %1697 = vmatmul.mubr.f32.gmra.mrb[0].mxu0 %v1696
      %v1698 = vpop.f32.mrb[0].mxu0
      %v1699 = vadd.f32 %v1431, %v1698
      %v1700 = vpop.f32.mrb[0].mxu0
      %1701 = vmatprep.mubr.f32.mxu0 0.0
      %v1702 = vand.u32 %v856, 4294901760
      %v1703 = vsub.f32 %v856, %v1702
      %1704 = vmatmul.mubr.f32.gmra.mrb[0].mxu0 %v1703
      %v1705 = vpop.f32.mrb[0].mxu0
      %v1706 = vadd.f32 %v1437, %v1705
      %v1707 = vpop.f32.mrb[0].mxu0
      %1708 = vmatprep.mubr.f32.mxu0 0.0
      %v1709 = vand.u32 %v859, 4294901760
      %v1710 = vsub.f32 %v859, %v1709
      %1711 = vmatmul.mubr.f32.gmra.mrb[0].mxu0 %v1710
      %v1712 = vpop.f32.mrb[0].mxu0
      %v1713 = vadd.f32 %v1443, %v1712
      %v1714 = vpop.f32.mrb[0].mxu0
      %1715 = vmatprep.mubr.f32.mxu0 0.0
      %v1716 = vand.u32 %v862, 4294901760
      %v1717 = vsub.f32 %v862, %v1716
      %1718 = vmatmul.mubr.f32.gmra.mrb[0].mxu0 %v1717
      %v1719 = vpop.f32.mrb[0].mxu0
      %v1720 = vadd.f32 %v1449, %v1719
      %v1721 = vpop.f32.mrb[0].mxu0
      %1722 = vmatprep.mubr.f32.mxu0 0.0
      %v1723 = vand.u32 %v865, 4294901760
      %v1724 = vsub.f32 %v865, %v1723
      %1725 = vmatmul.mubr.f32.gmra.mrb[0].mxu0 %v1724
      %v1726 = vpop.f32.mrb[0].mxu0
      %v1727 = vadd.f32 %v1455, %v1726
      %v1728 = vpop.f32.mrb[0].mxu0
      %1729 = vmatprep.mubr.f32.mxu0 0.0
      %v1730 = vand.u32 %v868, 4294901760
      %v1731 = vsub.f32 %v868, %v1730
      %1732 = vmatmul.mubr.f32.gmra.mrb[0].mxu0 %v1731
      %v1733 = vpop.f32.mrb[0].mxu0
      %v1734 = vadd.f32 %v1461, %v1733
      %v1735 = vpop.f32.mrb[0].mxu0
      %1736 = vmatprep.mubr.f32.mxu0 0.0
      %v1737 = vand.u32 %v871, 4294901760
      %v1738 = vsub.f32 %v871, %v1737
      %1739 = vmatmul.mubr.f32.gmra.mrb[0].mxu0 %v1738
      %v1740 = vpop.f32.mrb[0].mxu0
      %v1741 = vadd.f32 %v1467, %v1740
      %v1742 = vpop.f32.mrb[0].mxu0
      %1743 = vmatprep.mubr.f32.mxu0 0.0
      %v1744 = vand.u32 %v874, 4294901760
      %v1745 = vsub.f32 %v874, %v1744
      %1746 = vmatmul.mubr.f32.gmra.mrb[0].mxu0 %v1745
      %v1747 = vpop.f32.mrb[0].mxu0
      %v1748 = vadd.f32 %v1473, %v1747
      %v1749 = vpop.f32.mrb[0].mxu0
      %1750 = vmatprep.mubr.f32.mxu0 0.0
      %v1751 = vand.u32 %v877, 4294901760
      %v1752 = vsub.f32 %v877, %v1751
      %1753 = vmatmul.mubr.f32.gmra.mrb[0].mxu0 %v1752
      %v1754 = vpop.f32.mrb[0].mxu0
      %v1755 = vadd.f32 %v1479, %v1754
      %v1756 = vpop.f32.mrb[0].mxu0
      %1757 = vmatprep.mubr.f32.mxu0 0.0
      %v1758 = vand.u32 %v880, 4294901760
      %v1759 = vsub.f32 %v880, %v1758
      %1760 = vmatmul.mubr.f32.gmra.mrb[0].mxu0 %v1759
      %v1761 = vpop.f32.mrb[0].mxu0
      %v1762 = vadd.f32 %v1485, %v1761
      %v1763 = vpop.f32.mrb[0].mxu0
      %1764 = vmatprep.mubr.f32.mxu0 0.0
      %v1765 = vand.u32 %v883, 4294901760
      %v1766 = vsub.f32 %v883, %v1765
      %1767 = vmatmul.mubr.f32.gmra.mrb[0].mxu0 %v1766
      %v1768 = vpop.f32.mrb[0].mxu0
      %v1769 = vadd.f32 %v1491, %v1768
      %v1770 = vpop.f32.mrb[0].mxu0
      %1771 = vmatprep.mubr.f32.mxu0 0.0
      %v1772 = vand.u32 %v886, 4294901760
      %v1773 = vsub.f32 %v886, %v1772
      %1774 = vmatmul.mubr.f32.gmra.mrb[0].mxu0 %v1773
      %v1775 = vpop.f32.mrb[0].mxu0
      %v1776 = vadd.f32 %v1497, %v1775
      %v1777 = vpop.f32.mrb[0].mxu0
      %1778 = vmatprep.mubr.f32.mxu0 0.0
      %v1779 = vand.u32 %v889, 4294901760
      %v1780 = vsub.f32 %v889, %v1779
      %1781 = vmatmul.mubr.f32.gmra.mrb[0].mxu0 %v1780
      %v1782 = vpop.f32.mrb[0].mxu0
      %v1783 = vadd.f32 %v1503, %v1782
      %v1784 = vpop.f32.mrb[0].mxu0
      %1785 = vmatprep.mubr.f32.mxu0 0.0
      %v1786 = vand.u32 %v892, 4294901760
      %v1787 = vsub.f32 %v892, %v1786
      %1788 = vmatmul.mubr.f32.gmra.mrb[0].mxu0 %v1787
      %v1789 = vpop.f32.mrb[0].mxu0
      %v1790 = vadd.f32 %v1509, %v1789
      %v1791 = vpop.f32.mrb[0].mxu0
      %1792 = vmatprep.mubr.f32.mxu0 0.0
      %v1793 = vand.u32 %v895, 4294901760
      %v1794 = vsub.f32 %v895, %v1793
      %1795 = vmatmul.mubr.f32.gmra.mrb[0].mxu0 %v1794
      %v1796 = vpop.f32.mrb[0].mxu0
      %v1797 = vadd.f32 %v1515, %v1796
      %v1798 = vpop.f32.mrb[0].mxu0
      %1799 = vmatprep.mubr.f32.mxu0 0.0
      %v1800 = vand.u32 %v898, 4294901760
      %v1801 = vsub.f32 %v898, %v1800
      %1802 = vmatmul.mubr.f32.gmra.mrb[0].mxu0 %v1801
      %v1803 = vpop.f32.mrb[0].mxu0
      %v1804 = vadd.f32 %v1521, %v1803
      %v1805 = vpop.f32.mrb[0].mxu0
      %1806 = vmatprep.mubr.f32.mxu0 0.0
      %v1807 = vand.u32 %v901, 4294901760
      %v1808 = vsub.f32 %v901, %v1807
      %1809 = vmatmul.mubr.f32.gmra.mrb[0].mxu0 %v1808
      %v1810 = vpop.f32.mrb[0].mxu0
      %v1811 = vadd.f32 %v1527, %v1810
      %v1812 = vpop.f32.mrb[0].mxu0
      %1813 = vmatprep.mubr.f32.mxu0 0.0
      %v1814 = vand.u32 %v904, 4294901760
      %v1815 = vsub.f32 %v904, %v1814
      %1816 = vmatmul.mubr.f32.gmra.mrb[0].mxu0 %v1815
      %v1817 = vpop.f32.mrb[0].mxu0
      %v1818 = vadd.f32 %v1533, %v1817
      %v1819 = vpop.f32.mrb[0].mxu0
      %1820 = vmatprep.mubr.f32.mxu0 0.0
      %v1821 = vand.u32 %v907, 4294901760
      %v1822 = vsub.f32 %v907, %v1821
      %1823 = vmatmul.mubr.f32.gmra.mrb[0].mxu0 %v1822
      %v1824 = vpop.f32.mrb[0].mxu0
      %v1825 = vadd.f32 %v1539, %v1824
      %v1826 = vpop.f32.mrb[0].mxu0
      %1827 = vmatprep.mubr.f32.mxu0 0.0
      %v1828 = vand.u32 %v910, 4294901760
      %v1829 = vsub.f32 %v910, %v1828
      %1830 = vmatmul.mubr.f32.gmra.mrb[0].mxu0 %v1829
      %v1831 = vpop.f32.mrb[0].mxu0
      %v1832 = vadd.f32 %v1545, %v1831
      %v1833 = vpop.f32.mrb[0].mxu0
      %1834 = vmatprep.mubr.f32.mxu0 0.0
      %v1835 = vand.u32 %v913, 4294901760
      %v1836 = vsub.f32 %v913, %v1835
      %1837 = vmatmul.mubr.f32.gmra.mrb[0].mxu0 %v1836
      %v1838 = vpop.f32.mrb[0].mxu0
      %v1839 = vadd.f32 %v1551, %v1838
      %v1840 = vpop.f32.mrb[0].mxu0
      %1841 = vmatprep.mubr.f32.mxu0 0.0
      %v1842 = vand.u32 %v916, 4294901760
      %v1843 = vsub.f32 %v916, %v1842
      %1844 = vmatmul.mubr.f32.gmra.mrb[0].mxu0 %v1843
      %v1845 = vpop.f32.mrb[0].mxu0
      %v1846 = vadd.f32 %v1557, %v1845
      %v1847 = vpop.f32.mrb[0].mxu0
      %1848 = vmatprep.mubr.f32.mxu0 0.0
      %v1849 = vand.u32 %v919, 4294901760
      %v1850 = vsub.f32 %v919, %v1849
      %1851 = vmatmul.mubr.f32.gmra.mrb[0].mxu0 %v1850
      %v1852 = vpop.f32.mrb[0].mxu0
      %v1853 = vadd.f32 %v1563, %v1852
      %v1854 = vpop.f32.mrb[0].mxu0
      %1855 = vmatprep.mubr.f32.mxu0 0.0
      %v1856 = vand.u32 %v922, 4294901760
      %v1857 = vsub.f32 %v922, %v1856
      %1858 = vmatmul.mubr.f32.gmra.mrb[0].mxu0 %v1857
      %v1859 = vpop.f32.mrb[0].mxu0
      %v1860 = vadd.f32 %v1569, %v1859
      %v1861 = vpop.f32.mrb[0].mxu0
      %1862 = vmatprep.mubr.f32.mxu0 0.0
      %v1863 = vand.u32 %v925, 4294901760
      %v1864 = vsub.f32 %v925, %v1863
      %1865 = vmatmul.mubr.f32.gmra.mrb[0].mxu0 %v1864
      %v1866 = vpop.f32.mrb[0].mxu0
      %v1867 = vadd.f32 %v1575, %v1866
      %v1868 = vpop.f32.mrb[0].mxu0
      %1869 = vmatprep.mubr.f32.mxu0 0.0
      %v1870 = vand.u32 %v928, 4294901760
      %v1871 = vsub.f32 %v928, %v1870
      %1872 = vmatmul.mubr.f32.gmra.mrb[0].mxu0 %v1871
      %v1873 = vpop.f32.mrb[0].mxu0
      %v1874 = vadd.f32 %v1581, %v1873
      %v1875 = vpop.f32.mrb[0].mxu0
      %1876 = vmatprep.mubr.f32.mxu0 0.0
      %v1877 = vand.u32 %v931, 4294901760
      %v1878 = vsub.f32 %v931, %v1877
      %1879 = vmatmul.mubr.f32.gmra.mrb[0].mxu0 %v1878
      %v1880 = vpop.f32.mrb[0].mxu0
      %v1881 = vadd.f32 %v1587, %v1880
      %v1882 = vpop.f32.mrb[0].mxu0
      %1883 = vmatprep.mubr.f32.mxu0 0.0
      %v1884 = vand.u32 %v934, 4294901760
      %v1885 = vsub.f32 %v934, %v1884
      %1886 = vmatmul.mubr.f32.gmra.mrb[0].mxu0 %v1885
      %v1887 = vpop.f32.mrb[0].mxu0
      %v1888 = vadd.f32 %v1593, %v1887
      %v1889 = vpop.f32.mrb[0].mxu0
      %1890 = vmatprep.mubr.f32.mxu0 0.0
      %v1891 = vand.u32 %v937, 4294901760
      %v1892 = vsub.f32 %v937, %v1891
      %1893 = vmatmul.mubr.f32.gmra.mrb[0].mxu0 %v1892
      %v1894 = vpop.f32.mrb[0].mxu0
      %v1895 = vadd.f32 %v1599, %v1894
      %v1896 = vpop.f32.mrb[0].mxu0
      %1897 = vmatprep.mubr.f32.mxu0 0.0
      %v1898 = vand.u32 %v940, 4294901760
      %v1899 = vsub.f32 %v940, %v1898
      %1900 = vmatmul.mubr.f32.gmra.mrb[0].mxu0 %v1899
      %v1901 = vpop.f32.mrb[0].mxu0
      %v1902 = vadd.f32 %v1605, %v1901
      %v1903 = vpop.f32.mrb[0].mxu0
      %1904 = vdwg.mxu0
      %1905 = vmatprep.subr.mxu0 0.0
      %v1906 = vand.u32 %v834, 4294901760
      %1907 = vmatpush1.msra.mxu0 %v1906
      %1908 = vmatprep.subr.mxu0 0.0
      %v1909 = vand.u32 %v835, 4294901760
      %1910 = vmatpush1.msra.mxu0 %v1909
      %1911 = vmatprep.subr.mxu0 0.0
      %v1912 = vand.u32 %v836, 4294901760
      %1913 = vmatpush1.msra.mxu0 %v1912
      %1914 = vmatprep.subr.mxu0 0.0
      %v1915 = vand.u32 %v837, 4294901760
      %1916 = vmatpush1.msra.mxu0 %v1915
      %1917 = vmatprep.subr.mxu0 0.0
      %1918 = vmatpush1.msra.mxu0 0.0
      %1919 = vmatprep.subr.mxu0 0.0
      %1920 = vmatpush1.msra.mxu0 0.0
      %1921 = vmatprep.subr.mxu0 0.0
      %1922 = vmatpush1.msra.mxu0 0.0
      %1923 = vmatprep.subr.mxu0 0.0
      %1924 = vmatpush1.msra.mxu0 0.0
      %1925 = vmatprep.subr.mxu0 0.0
      %1926 = vmatpush1.msra.mxu0 0.0
      %1927 = vmatprep.subr.mxu0 0.0
      %1928 = vmatpush1.msra.mxu0 0.0
      %1929 = vmatprep.subr.mxu0 0.0
      %1930 = vmatpush1.msra.mxu0 0.0
      %1931 = vmatprep.subr.mxu0 0.0
      %1932 = vmatpush1.msra.mxu0 0.0
      %1933 = vmatprep.subr.mxu0 0.0
      %1934 = vmatpush1.msra.mxu0 0.0
      %1935 = vmatprep.subr.mxu0 0.0
      %1936 = vmatpush1.msra.mxu0 0.0
      %1937 = vmatprep.subr.mxu0 0.0
      %1938 = vmatpush1.msra.mxu0 0.0
      %1939 = vmatprep.subr.mxu0 0.0
      %1940 = vmatpush1.msra.mxu0 0.0
      %1941 = vmatprep.subr.mxu0 0.0
      %1942 = vmatpush1.msra.mxu0 0.0
      %1943 = vmatprep.subr.mxu0 0.0
      %1944 = vmatpush1.msra.mxu0 0.0
      %1945 = vmatprep.subr.mxu0 0.0
      %1946 = vmatpush1.msra.mxu0 0.0
      %1947 = vmatprep.subr.mxu0 0.0
      %1948 = vmatpush1.msra.mxu0 0.0
      %1949 = vmatprep.subr.mxu0 0.0
      %1950 = vmatpush1.msra.mxu0 0.0
      %1951 = vmatprep.subr.mxu0 0.0
      %1952 = vmatpush1.msra.mxu0 0.0
      %1953 = vmatprep.subr.mxu0 0.0
      %1954 = vmatpush1.msra.mxu0 0.0
      %1955 = vmatprep.subr.mxu0 0.0
      %1956 = vmatpush1.msra.mxu0 0.0
      %1957 = vmatprep.subr.mxu0 0.0
      %1958 = vmatpush1.msra.mxu0 0.0
      %1959 = vmatprep.subr.mxu0 0.0
      %1960 = vmatpush1.msra.mxu0 0.0
      %1961 = vmatprep.subr.mxu0 0.0
      %1962 = vmatpush1.msra.mxu0 0.0
      %1963 = vmatprep.subr.mxu0 0.0
      %1964 = vmatpush1.msra.mxu0 0.0
      %1965 = vmatprep.subr.mxu0 0.0
      %1966 = vmatpush1.msra.mxu0 0.0
      %1967 = vmatprep.subr.mxu0 0.0
      %1968 = vmatpush1.msra.mxu0 0.0
      %1969 = vmatprep.subr.mxu0 0.0
      %1970 = vmatpush1.msra.mxu0 0.0
      %1971 = vmatprep.subr.mxu0 0.0
      %1972 = vmatpush1.msra.mxu0 0.0
      %1973 = vmatprep.mubr.f32.mxu0 0.0
      %v1974 = vand.u32 %v847, 4294901760
      %v1975 = vsub.f32 %v847, %v1974
      %v1976 = vand.u32 %v1975, 4294901760
      %1977 = vmatmul.mubr.f32.gmra.mrb[0].mxu0 %v1976
      %v1978 = vpop.f32.mrb[0].mxu0
      %v1979 = vadd.f32 %v1685, %v1978
      %v1980 = vpop.f32.mrb[0].mxu0
      %1981 = vmatprep.mubr.f32.mxu0 0.0
      %v1982 = vand.u32 %v850, 4294901760
      %v1983 = vsub.f32 %v850, %v1982
      %v1984 = vand.u32 %v1983, 4294901760
      %1985 = vmatmul.mubr.f32.gmra.mrb[0].mxu0 %v1984
      %v1986 = vpop.f32.mrb[0].mxu0
      %v1987 = vadd.f32 %v1692, %v1986
      %v1988 = vpop.f32.mrb[0].mxu0
      %1989 = vmatprep.mubr.f32.mxu0 0.0
      %v1990 = vand.u32 %v853, 4294901760
      %v1991 = vsub.f32 %v853, %v1990
      %v1992 = vand.u32 %v1991, 4294901760
      %1993 = vmatmul.mubr.f32.gmra.mrb[0].mxu0 %v1992
      %v1994 = vpop.f32.mrb[0].mxu0
      %v1995 = vadd.f32 %v1699, %v1994
      %v1996 = vpop.f32.mrb[0].mxu0
      %1997 = vmatprep.mubr.f32.mxu0 0.0
      %v1998 = vand.u32 %v856, 4294901760
      %v1999 = vsub.f32 %v856, %v1998
      %v2000 = vand.u32 %v1999, 4294901760
      %2001 = vmatmul.mubr.f32.gmra.mrb[0].mxu0 %v2000
      %v2002 = vpop.f32.mrb[0].mxu0
      %v2003 = vadd.f32 %v1706, %v2002
      %v2004 = vpop.f32.mrb[0].mxu0
      %2005 = vmatprep.mubr.f32.mxu0 0.0
      %v2006 = vand.u32 %v859, 4294901760
      %v2007 = vsub.f32 %v859, %v2006
      %v2008 = vand.u32 %v2007, 4294901760
      %2009 = vmatmul.mubr.f32.gmra.mrb[0].mxu0 %v2008
      %v2010 = vpop.f32.mrb[0].mxu0
      %v2011 = vadd.f32 %v1713, %v2010
      %v2012 = vpop.f32.mrb[0].mxu0
      %2013 = vmatprep.mubr.f32.mxu0 0.0
      %v2014 = vand.u32 %v862, 4294901760
      %v2015 = vsub.f32 %v862, %v2014
      %v2016 = vand.u32 %v2015, 4294901760
      %2017 = vmatmul.mubr.f32.gmra.mrb[0].mxu0 %v2016
      %v2018 = vpop.f32.mrb[0].mxu0
      %v2019 = vadd.f32 %v1720, %v2018
      %v2020 = vpop.f32.mrb[0].mxu0
      %2021 = vmatprep.mubr.f32.mxu0 0.0
      %v2022 = vand.u32 %v865, 4294901760
      %v2023 = vsub.f32 %v865, %v2022
      %v2024 = vand.u32 %v2023, 4294901760
      %2025 = vmatmul.mubr.f32.gmra.mrb[0].mxu0 %v2024
      %v2026 = vpop.f32.mrb[0].mxu0
      %v2027 = vadd.f32 %v1727, %v2026
      %v2028 = vpop.f32.mrb[0].mxu0
      %2029 = vmatprep.mubr.f32.mxu0 0.0
      %v2030 = vand.u32 %v868, 4294901760
      %v2031 = vsub.f32 %v868, %v2030
      %v2032 = vand.u32 %v2031, 4294901760
      %2033 = vmatmul.mubr.f32.gmra.mrb[0].mxu0 %v2032
      %v2034 = vpop.f32.mrb[0].mxu0
      %v2035 = vadd.f32 %v1734, %v2034
      %v2036 = vpop.f32.mrb[0].mxu0
      %2037 = vmatprep.mubr.f32.mxu0 0.0
      %v2038 = vand.u32 %v871, 4294901760
      %v2039 = vsub.f32 %v871, %v2038
      %v2040 = vand.u32 %v2039, 4294901760
      %2041 = vmatmul.mubr.f32.gmra.mrb[0].mxu0 %v2040
      %v2042 = vpop.f32.mrb[0].mxu0
      %v2043 = vadd.f32 %v1741, %v2042
      %v2044 = vpop.f32.mrb[0].mxu0
      %2045 = vmatprep.mubr.f32.mxu0 0.0
      %v2046 = vand.u32 %v874, 4294901760
      %v2047 = vsub.f32 %v874, %v2046
      %v2048 = vand.u32 %v2047, 4294901760
      %2049 = vmatmul.mubr.f32.gmra.mrb[0].mxu0 %v2048
      %v2050 = vpop.f32.mrb[0].mxu0
      %v2051 = vadd.f32 %v1748, %v2050
      %v2052 = vpop.f32.mrb[0].mxu0
      %2053 = vmatprep.mubr.f32.mxu0 0.0
      %v2054 = vand.u32 %v877, 4294901760
      %v2055 = vsub.f32 %v877, %v2054
      %v2056 = vand.u32 %v2055, 4294901760
      %2057 = vmatmul.mubr.f32.gmra.mrb[0].mxu0 %v2056
      %v2058 = vpop.f32.mrb[0].mxu0
      %v2059 = vadd.f32 %v1755, %v2058
      %v2060 = vpop.f32.mrb[0].mxu0
      %2061 = vmatprep.mubr.f32.mxu0 0.0
      %v2062 = vand.u32 %v880, 4294901760
      %v2063 = vsub.f32 %v880, %v2062
      %v2064 = vand.u32 %v2063, 4294901760
      %2065 = vmatmul.mubr.f32.gmra.mrb[0].mxu0 %v2064
      %v2066 = vpop.f32.mrb[0].mxu0
      %v2067 = vadd.f32 %v1762, %v2066
      %v2068 = vpop.f32.mrb[0].mxu0
      %2069 = vmatprep.mubr.f32.mxu0 0.0
      %v2070 = vand.u32 %v883, 4294901760
      %v2071 = vsub.f32 %v883, %v2070
      %v2072 = vand.u32 %v2071, 4294901760
      %2073 = vmatmul.mubr.f32.gmra.mrb[0].mxu0 %v2072
      %v2074 = vpop.f32.mrb[0].mxu0
      %v2075 = vadd.f32 %v1769, %v2074
      %v2076 = vpop.f32.mrb[0].mxu0
      %2077 = vmatprep.mubr.f32.mxu0 0.0
      %v2078 = vand.u32 %v886, 4294901760
      %v2079 = vsub.f32 %v886, %v2078
      %v2080 = vand.u32 %v2079, 4294901760
      %2081 = vmatmul.mubr.f32.gmra.mrb[0].mxu0 %v2080
      %v2082 = vpop.f32.mrb[0].mxu0
      %v2083 = vadd.f32 %v1776, %v2082
      %v2084 = vpop.f32.mrb[0].mxu0
      %2085 = vmatprep.mubr.f32.mxu0 0.0
      %v2086 = vand.u32 %v889, 4294901760
      %v2087 = vsub.f32 %v889, %v2086
      %v2088 = vand.u32 %v2087, 4294901760
      %2089 = vmatmul.mubr.f32.gmra.mrb[0].mxu0 %v2088
      %v2090 = vpop.f32.mrb[0].mxu0
      %v2091 = vadd.f32 %v1783, %v2090
      %v2092 = vpop.f32.mrb[0].mxu0
      %2093 = vmatprep.mubr.f32.mxu0 0.0
      %v2094 = vand.u32 %v892, 4294901760
      %v2095 = vsub.f32 %v892, %v2094
      %v2096 = vand.u32 %v2095, 4294901760
      %2097 = vmatmul.mubr.f32.gmra.mrb[0].mxu0 %v2096
      %v2098 = vpop.f32.mrb[0].mxu0
      %v2099 = vadd.f32 %v1790, %v2098
      %v2100 = vpop.f32.mrb[0].mxu0
      %2101 = vmatprep.mubr.f32.mxu0 0.0
      %v2102 = vand.u32 %v895, 4294901760
      %v2103 = vsub.f32 %v895, %v2102
      %v2104 = vand.u32 %v2103, 4294901760
      %2105 = vmatmul.mubr.f32.gmra.mrb[0].mxu0 %v2104
      %v2106 = vpop.f32.mrb[0].mxu0
      %v2107 = vadd.f32 %v1797, %v2106
      %v2108 = vpop.f32.mrb[0].mxu0
      %2109 = vmatprep.mubr.f32.mxu0 0.0
      %v2110 = vand.u32 %v898, 4294901760
      %v2111 = vsub.f32 %v898, %v2110
      %v2112 = vand.u32 %v2111, 4294901760
      %2113 = vmatmul.mubr.f32.gmra.mrb[0].mxu0 %v2112
      %v2114 = vpop.f32.mrb[0].mxu0
      %v2115 = vadd.f32 %v1804, %v2114
      %v2116 = vpop.f32.mrb[0].mxu0
      %2117 = vmatprep.mubr.f32.mxu0 0.0
      %v2118 = vand.u32 %v901, 4294901760
      %v2119 = vsub.f32 %v901, %v2118
      %v2120 = vand.u32 %v2119, 4294901760
      %2121 = vmatmul.mubr.f32.gmra.mrb[0].mxu0 %v2120
      %v2122 = vpop.f32.mrb[0].mxu0
      %v2123 = vadd.f32 %v1811, %v2122
      %v2124 = vpop.f32.mrb[0].mxu0
      %2125 = vmatprep.mubr.f32.mxu0 0.0
      %v2126 = vand.u32 %v904, 4294901760
      %v2127 = vsub.f32 %v904, %v2126
      %v2128 = vand.u32 %v2127, 4294901760
      %2129 = vmatmul.mubr.f32.gmra.mrb[0].mxu0 %v2128
      %v2130 = vpop.f32.mrb[0].mxu0
      %v2131 = vadd.f32 %v1818, %v2130
      %v2132 = vpop.f32.mrb[0].mxu0
      %2133 = vmatprep.mubr.f32.mxu0 0.0
      %v2134 = vand.u32 %v907, 4294901760
      %v2135 = vsub.f32 %v907, %v2134
      %v2136 = vand.u32 %v2135, 4294901760
      %2137 = vmatmul.mubr.f32.gmra.mrb[0].mxu0 %v2136
      %v2138 = vpop.f32.mrb[0].mxu0
      %v2139 = vadd.f32 %v1825, %v2138
      %v2140 = vpop.f32.mrb[0].mxu0
      %2141 = vmatprep.mubr.f32.mxu0 0.0
      %v2142 = vand.u32 %v910, 4294901760
      %v2143 = vsub.f32 %v910, %v2142
      %v2144 = vand.u32 %v2143, 4294901760
      %2145 = vmatmul.mubr.f32.gmra.mrb[0].mxu0 %v2144
      %v2146 = vpop.f32.mrb[0].mxu0
      %v2147 = vadd.f32 %v1832, %v2146
      %v2148 = vpop.f32.mrb[0].mxu0
      %2149 = vmatprep.mubr.f32.mxu0 0.0
      %v2150 = vand.u32 %v913, 4294901760
      %v2151 = vsub.f32 %v913, %v2150
      %v2152 = vand.u32 %v2151, 4294901760
      %2153 = vmatmul.mubr.f32.gmra.mrb[0].mxu0 %v2152
      %v2154 = vpop.f32.mrb[0].mxu0
      %v2155 = vadd.f32 %v1839, %v2154
      %v2156 = vpop.f32.mrb[0].mxu0
      %2157 = vmatprep.mubr.f32.mxu0 0.0
      %v2158 = vand.u32 %v916, 4294901760
      %v2159 = vsub.f32 %v916, %v2158
      %v2160 = vand.u32 %v2159, 4294901760
      %2161 = vmatmul.mubr.f32.gmra.mrb[0].mxu0 %v2160
      %v2162 = vpop.f32.mrb[0].mxu0
      %v2163 = vadd.f32 %v1846, %v2162
      %v2164 = vpop.f32.mrb[0].mxu0
      %2165 = vmatprep.mubr.f32.mxu0 0.0
      %v2166 = vand.u32 %v919, 4294901760
      %v2167 = vsub.f32 %v919, %v2166
      %v2168 = vand.u32 %v2167, 4294901760
      %2169 = vmatmul.mubr.f32.gmra.mrb[0].mxu0 %v2168
      %v2170 = vpop.f32.mrb[0].mxu0
      %v2171 = vadd.f32 %v1853, %v2170
      %v2172 = vpop.f32.mrb[0].mxu0
      %2173 = vmatprep.mubr.f32.mxu0 0.0
      %v2174 = vand.u32 %v922, 4294901760
      %v2175 = vsub.f32 %v922, %v2174
      %v2176 = vand.u32 %v2175, 4294901760
      %2177 = vmatmul.mubr.f32.gmra.mrb[0].mxu0 %v2176
      %v2178 = vpop.f32.mrb[0].mxu0
      %v2179 = vadd.f32 %v1860, %v2178
      %v2180 = vpop.f32.mrb[0].mxu0
      %2181 = vmatprep.mubr.f32.mxu0 0.0
      %v2182 = vand.u32 %v925, 4294901760
      %v2183 = vsub.f32 %v925, %v2182
      %v2184 = vand.u32 %v2183, 4294901760
      %2185 = vmatmul.mubr.f32.gmra.mrb[0].mxu0 %v2184
      %v2186 = vpop.f32.mrb[0].mxu0
      %v2187 = vadd.f32 %v1867, %v2186
      %v2188 = vpop.f32.mrb[0].mxu0
      %2189 = vmatprep.mubr.f32.mxu0 0.0
      %v2190 = vand.u32 %v928, 4294901760
      %v2191 = vsub.f32 %v928, %v2190
      %v2192 = vand.u32 %v2191, 4294901760
      %2193 = vmatmul.mubr.f32.gmra.mrb[0].mxu0 %v2192
      %v2194 = vpop.f32.mrb[0].mxu0
      %v2195 = vadd.f32 %v1874, %v2194
      %v2196 = vpop.f32.mrb[0].mxu0
      %2197 = vmatprep.mubr.f32.mxu0 0.0
      %v2198 = vand.u32 %v931, 4294901760
      %v2199 = vsub.f32 %v931, %v2198
      %v2200 = vand.u32 %v2199, 4294901760
      %2201 = vmatmul.mubr.f32.gmra.mrb[0].mxu0 %v2200
      %v2202 = vpop.f32.mrb[0].mxu0
      %v2203 = vadd.f32 %v1881, %v2202
      %v2204 = vpop.f32.mrb[0].mxu0
      %2205 = vmatprep.mubr.f32.mxu0 0.0
      %v2206 = vand.u32 %v934, 4294901760
      %v2207 = vsub.f32 %v934, %v2206
      %v2208 = vand.u32 %v2207, 4294901760
      %2209 = vmatmul.mubr.f32.gmra.mrb[0].mxu0 %v2208
      %v2210 = vpop.f32.mrb[0].mxu0
      %v2211 = vadd.f32 %v1888, %v2210
      %v2212 = vpop.f32.mrb[0].mxu0
      %2213 = vmatprep.mubr.f32.mxu0 0.0
      %v2214 = vand.u32 %v937, 4294901760
      %v2215 = vsub.f32 %v937, %v2214
      %v2216 = vand.u32 %v2215, 4294901760
      %2217 = vmatmul.mubr.f32.gmra.mrb[0].mxu0 %v2216
      %v2218 = vpop.f32.mrb[0].mxu0
      %v2219 = vadd.f32 %v1895, %v2218
      %v2220 = vpop.f32.mrb[0].mxu0
      %2221 = vmatprep.mubr.f32.mxu0 0.0
      %v2222 = vand.u32 %v940, 4294901760
      %v2223 = vsub.f32 %v940, %v2222
      %v2224 = vand.u32 %v2223, 4294901760
      %2225 = vmatmul.mubr.f32.gmra.mrb[0].mxu0 %v2224
      %v2226 = vpop.f32.mrb[0].mxu0
      %v2227 = vadd.f32 %v1902, %v2226
      %v2228 = vpop.f32.mrb[0].mxu0
      %2229 = vdwg.mxu0
      %2230 = vmatprep.subr.mxu0 0.0
      %v2231 = vand.u32 %v834, 4294901760
      %v2232 = vsub.f32 %v834, %v2231
      %v2233 = vand.u32 %v2232, 4294901760
      %2234 = vmatpush1.msra.mxu0 %v2233
      %2235 = vmatprep.subr.mxu0 0.0
      %v2236 = vand.u32 %v835, 4294901760
      %v2237 = vsub.f32 %v835, %v2236
      %v2238 = vand.u32 %v2237, 4294901760
      %2239 = vmatpush1.msra.mxu0 %v2238
      %2240 = vmatprep.subr.mxu0 0.0
      %v2241 = vand.u32 %v836, 4294901760
      %v2242 = vsub.f32 %v836, %v2241
      %v2243 = vand.u32 %v2242, 4294901760
      %2244 = vmatpush1.msra.mxu0 %v2243
      %2245 = vmatprep.subr.mxu0 0.0
      %v2246 = vand.u32 %v837, 4294901760
      %v2247 = vsub.f32 %v837, %v2246
      %v2248 = vand.u32 %v2247, 4294901760
      %2249 = vmatpush1.msra.mxu0 %v2248
      %2250 = vmatprep.subr.mxu0 0.0
      %2251 = vmatpush1.msra.mxu0 0.0
      %2252 = vmatprep.subr.mxu0 0.0
      %2253 = vmatpush1.msra.mxu0 0.0
      %2254 = vmatprep.subr.mxu0 0.0
      %2255 = vmatpush1.msra.mxu0 0.0
      %2256 = vmatprep.subr.mxu0 0.0
      %2257 = vmatpush1.msra.mxu0 0.0
      %2258 = vmatprep.subr.mxu0 0.0
      %2259 = vmatpush1.msra.mxu0 0.0
      %2260 = vmatprep.subr.mxu0 0.0
      %2261 = vmatpush1.msra.mxu0 0.0
      %2262 = vmatprep.subr.mxu0 0.0
      %2263 = vmatpush1.msra.mxu0 0.0
      %2264 = vmatprep.subr.mxu0 0.0
      %2265 = vmatpush1.msra.mxu0 0.0
      %2266 = vmatprep.subr.mxu0 0.0
      %2267 = vmatpush1.msra.mxu0 0.0
      %2268 = vmatprep.subr.mxu0 0.0
      %2269 = vmatpush1.msra.mxu0 0.0
      %2270 = vmatprep.subr.mxu0 0.0
      %2271 = vmatpush1.msra.mxu0 0.0
      %2272 = vmatprep.subr.mxu0 0.0
      %2273 = vmatpush1.msra.mxu0 0.0
      %2274 = vmatprep.subr.mxu0 0.0
      %2275 = vmatpush1.msra.mxu0 0.0
      %2276 = vmatprep.subr.mxu0 0.0
      %2277 = vmatpush1.msra.mxu0 0.0
      %2278 = vmatprep.subr.mxu0 0.0
      %2279 = vmatpush1.msra.mxu0 0.0
      %2280 = vmatprep.subr.mxu0 0.0
      %2281 = vmatpush1.msra.mxu0 0.0
      %2282 = vmatprep.subr.mxu0 0.0
      %2283 = vmatpush1.msra.mxu0 0.0
      %2284 = vmatprep.subr.mxu0 0.0
      %2285 = vmatpush1.msra.mxu0 0.0
      %2286 = vmatprep.subr.mxu0 0.0
      %2287 = vmatpush1.msra.mxu0 0.0
      %2288 = vmatprep.subr.mxu0 0.0
      %2289 = vmatpush1.msra.mxu0 0.0
      %2290 = vmatprep.subr.mxu0 0.0
      %2291 = vmatpush1.msra.mxu0 0.0
      %2292 = vmatprep.subr.mxu0 0.0
      %2293 = vmatpush1.msra.mxu0 0.0
      %2294 = vmatprep.subr.mxu0 0.0
      %2295 = vmatpush1.msra.mxu0 0.0
      %2296 = vmatprep.subr.mxu0 0.0
      %2297 = vmatpush1.msra.mxu0 0.0
      %2298 = vmatprep.subr.mxu0 0.0
      %2299 = vmatpush1.msra.mxu0 0.0
      %2300 = vmatprep.subr.mxu0 0.0
      %2301 = vmatpush1.msra.mxu0 0.0
      %2302 = vmatprep.subr.mxu0 0.0
      %2303 = vmatpush1.msra.mxu0 0.0
      %2304 = vmatprep.subr.mxu0 0.0
      %2305 = vmatpush1.msra.mxu0 0.0
      %2306 = vmatprep.mubr.f32.mxu0 0.0
      %v2307 = vand.u32 %v847, 4294901760
      %2308 = vmatmul.mubr.f32.gmra.mrb[0].mxu0 %v2307
      %v2309 = vpop.f32.mrb[0].mxu0
      %v2310 = vadd.f32 %v1979, %v2309
      %v2311 = vpop.f32.mrb[0].mxu0
      %2312 = vmatprep.mubr.f32.mxu0 0.0
      %v2313 = vand.u32 %v850, 4294901760
      %2314 = vmatmul.mubr.f32.gmra.mrb[0].mxu0 %v2313
      %v2315 = vpop.f32.mrb[0].mxu0
      %v2316 = vadd.f32 %v1987, %v2315
      %v2317 = vpop.f32.mrb[0].mxu0
      %2318 = vmatprep.mubr.f32.mxu0 0.0
      %v2319 = vand.u32 %v853, 4294901760
      %2320 = vmatmul.mubr.f32.gmra.mrb[0].mxu0 %v2319
      %v2321 = vpop.f32.mrb[0].mxu0
      %v2322 = vadd.f32 %v1995, %v2321
      %v2323 = vpop.f32.mrb[0].mxu0
      %2324 = vmatprep.mubr.f32.mxu0 0.0
      %v2325 = vand.u32 %v856, 4294901760
      %2326 = vmatmul.mubr.f32.gmra.mrb[0].mxu0 %v2325
      %v2327 = vpop.f32.mrb[0].mxu0
      %v2328 = vadd.f32 %v2003, %v2327
      %v2329 = vpop.f32.mrb[0].mxu0
      %2330 = vmatprep.mubr.f32.mxu0 0.0
      %v2331 = vand.u32 %v859, 4294901760
      %2332 = vmatmul.mubr.f32.gmra.mrb[0].mxu0 %v2331
      %v2333 = vpop.f32.mrb[0].mxu0
      %v2334 = vadd.f32 %v2011, %v2333
      %v2335 = vpop.f32.mrb[0].mxu0
      %2336 = vmatprep.mubr.f32.mxu0 0.0
      %v2337 = vand.u32 %v862, 4294901760
      %2338 = vmatmul.mubr.f32.gmra.mrb[0].mxu0 %v2337
      %v2339 = vpop.f32.mrb[0].mxu0
      %v2340 = vadd.f32 %v2019, %v2339
      %v2341 = vpop.f32.mrb[0].mxu0
      %2342 = vmatprep.mubr.f32.mxu0 0.0
      %v2343 = vand.u32 %v865, 4294901760
      %2344 = vmatmul.mubr.f32.gmra.mrb[0].mxu0 %v2343
      %v2345 = vpop.f32.mrb[0].mxu0
      %v2346 = vadd.f32 %v2027, %v2345
      %v2347 = vpop.f32.mrb[0].mxu0
      %2348 = vmatprep.mubr.f32.mxu0 0.0
      %v2349 = vand.u32 %v868, 4294901760
      %2350 = vmatmul.mubr.f32.gmra.mrb[0].mxu0 %v2349
      %v2351 = vpop.f32.mrb[0].mxu0
      %v2352 = vadd.f32 %v2035, %v2351
      %v2353 = vpop.f32.mrb[0].mxu0
      %2354 = vmatprep.mubr.f32.mxu0 0.0
      %v2355 = vand.u32 %v871, 4294901760
      %2356 = vmatmul.mubr.f32.gmra.mrb[0].mxu0 %v2355
      %v2357 = vpop.f32.mrb[0].mxu0
      %v2358 = vadd.f32 %v2043, %v2357
      %v2359 = vpop.f32.mrb[0].mxu0
      %2360 = vmatprep.mubr.f32.mxu0 0.0
      %v2361 = vand.u32 %v874, 4294901760
      %2362 = vmatmul.mubr.f32.gmra.mrb[0].mxu0 %v2361
      %v2363 = vpop.f32.mrb[0].mxu0
      %v2364 = vadd.f32 %v2051, %v2363
      %v2365 = vpop.f32.mrb[0].mxu0
      %2366 = vmatprep.mubr.f32.mxu0 0.0
      %v2367 = vand.u32 %v877, 4294901760
      %2368 = vmatmul.mubr.f32.gmra.mrb[0].mxu0 %v2367
      %v2369 = vpop.f32.mrb[0].mxu0
      %v2370 = vadd.f32 %v2059, %v2369
      %v2371 = vpop.f32.mrb[0].mxu0
      %2372 = vmatprep.mubr.f32.mxu0 0.0
      %v2373 = vand.u32 %v880, 4294901760
      %2374 = vmatmul.mubr.f32.gmra.mrb[0].mxu0 %v2373
      %v2375 = vpop.f32.mrb[0].mxu0
      %v2376 = vadd.f32 %v2067, %v2375
      %v2377 = vpop.f32.mrb[0].mxu0
      %2378 = vmatprep.mubr.f32.mxu0 0.0
      %v2379 = vand.u32 %v883, 4294901760
      %2380 = vmatmul.mubr.f32.gmra.mrb[0].mxu0 %v2379
      %v2381 = vpop.f32.mrb[0].mxu0
      %v2382 = vadd.f32 %v2075, %v2381
      %v2383 = vpop.f32.mrb[0].mxu0
      %2384 = vmatprep.mubr.f32.mxu0 0.0
      %v2385 = vand.u32 %v886, 4294901760
      %2386 = vmatmul.mubr.f32.gmra.mrb[0].mxu0 %v2385
      %v2387 = vpop.f32.mrb[0].mxu0
      %v2388 = vadd.f32 %v2083, %v2387
      %v2389 = vpop.f32.mrb[0].mxu0
      %2390 = vmatprep.mubr.f32.mxu0 0.0
      %v2391 = vand.u32 %v889, 4294901760
      %2392 = vmatmul.mubr.f32.gmra.mrb[0].mxu0 %v2391
      %v2393 = vpop.f32.mrb[0].mxu0
      %v2394 = vadd.f32 %v2091, %v2393
      %v2395 = vpop.f32.mrb[0].mxu0
      %2396 = vmatprep.mubr.f32.mxu0 0.0
      %v2397 = vand.u32 %v892, 4294901760
      %2398 = vmatmul.mubr.f32.gmra.mrb[0].mxu0 %v2397
      %v2399 = vpop.f32.mrb[0].mxu0
      %v2400 = vadd.f32 %v2099, %v2399
      %v2401 = vpop.f32.mrb[0].mxu0
      %2402 = vmatprep.mubr.f32.mxu0 0.0
      %v2403 = vand.u32 %v895, 4294901760
      %2404 = vmatmul.mubr.f32.gmra.mrb[0].mxu0 %v2403
      %v2405 = vpop.f32.mrb[0].mxu0
      %v2406 = vadd.f32 %v2107, %v2405
      %v2407 = vpop.f32.mrb[0].mxu0
      %2408 = vmatprep.mubr.f32.mxu0 0.0
      %v2409 = vand.u32 %v898, 4294901760
      %2410 = vmatmul.mubr.f32.gmra.mrb[0].mxu0 %v2409
      %v2411 = vpop.f32.mrb[0].mxu0
      %v2412 = vadd.f32 %v2115, %v2411
      %v2413 = vpop.f32.mrb[0].mxu0
      %2414 = vmatprep.mubr.f32.mxu0 0.0
      %v2415 = vand.u32 %v901, 4294901760
      %2416 = vmatmul.mubr.f32.gmra.mrb[0].mxu0 %v2415
      %v2417 = vpop.f32.mrb[0].mxu0
      %v2418 = vadd.f32 %v2123, %v2417
      %v2419 = vpop.f32.mrb[0].mxu0
      %2420 = vmatprep.mubr.f32.mxu0 0.0
      %v2421 = vand.u32 %v904, 4294901760
      %2422 = vmatmul.mubr.f32.gmra.mrb[0].mxu0 %v2421
      %v2423 = vpop.f32.mrb[0].mxu0
      %v2424 = vadd.f32 %v2131, %v2423
      %v2425 = vpop.f32.mrb[0].mxu0
      %2426 = vmatprep.mubr.f32.mxu0 0.0
      %v2427 = vand.u32 %v907, 4294901760
      %2428 = vmatmul.mubr.f32.gmra.mrb[0].mxu0 %v2427
      %v2429 = vpop.f32.mrb[0].mxu0
      %v2430 = vadd.f32 %v2139, %v2429
      %v2431 = vpop.f32.mrb[0].mxu0
      %2432 = vmatprep.mubr.f32.mxu0 0.0
      %v2433 = vand.u32 %v910, 4294901760
      %2434 = vmatmul.mubr.f32.gmra.mrb[0].mxu0 %v2433
      %v2435 = vpop.f32.mrb[0].mxu0
      %v2436 = vadd.f32 %v2147, %v2435
      %v2437 = vpop.f32.mrb[0].mxu0
      %2438 = vmatprep.mubr.f32.mxu0 0.0
      %v2439 = vand.u32 %v913, 4294901760
      %2440 = vmatmul.mubr.f32.gmra.mrb[0].mxu0 %v2439
      %v2441 = vpop.f32.mrb[0].mxu0
      %v2442 = vadd.f32 %v2155, %v2441
      %v2443 = vpop.f32.mrb[0].mxu0
      %2444 = vmatprep.mubr.f32.mxu0 0.0
      %v2445 = vand.u32 %v916, 4294901760
      %2446 = vmatmul.mubr.f32.gmra.mrb[0].mxu0 %v2445
      %v2447 = vpop.f32.mrb[0].mxu0
      %v2448 = vadd.f32 %v2163, %v2447
      %v2449 = vpop.f32.mrb[0].mxu0
      %2450 = vmatprep.mubr.f32.mxu0 0.0
      %v2451 = vand.u32 %v919, 4294901760
      %2452 = vmatmul.mubr.f32.gmra.mrb[0].mxu0 %v2451
      %v2453 = vpop.f32.mrb[0].mxu0
      %v2454 = vadd.f32 %v2171, %v2453
      %v2455 = vpop.f32.mrb[0].mxu0
      %2456 = vmatprep.mubr.f32.mxu0 0.0
      %v2457 = vand.u32 %v922, 4294901760
      %2458 = vmatmul.mubr.f32.gmra.mrb[0].mxu0 %v2457
      %v2459 = vpop.f32.mrb[0].mxu0
      %v2460 = vadd.f32 %v2179, %v2459
      %v2461 = vpop.f32.mrb[0].mxu0
      %2462 = vmatprep.mubr.f32.mxu0 0.0
      %v2463 = vand.u32 %v925, 4294901760
      %2464 = vmatmul.mubr.f32.gmra.mrb[0].mxu0 %v2463
      %v2465 = vpop.f32.mrb[0].mxu0
      %v2466 = vadd.f32 %v2187, %v2465
      %v2467 = vpop.f32.mrb[0].mxu0
      %2468 = vmatprep.mubr.f32.mxu0 0.0
      %v2469 = vand.u32 %v928, 4294901760
      %2470 = vmatmul.mubr.f32.gmra.mrb[0].mxu0 %v2469
      %v2471 = vpop.f32.mrb[0].mxu0
      %v2472 = vadd.f32 %v2195, %v2471
      %v2473 = vpop.f32.mrb[0].mxu0
      %2474 = vmatprep.mubr.f32.mxu0 0.0
      %v2475 = vand.u32 %v931, 4294901760
      %2476 = vmatmul.mubr.f32.gmra.mrb[0].mxu0 %v2475
      %v2477 = vpop.f32.mrb[0].mxu0
      %v2478 = vadd.f32 %v2203, %v2477
      %v2479 = vpop.f32.mrb[0].mxu0
      %2480 = vmatprep.mubr.f32.mxu0 0.0
      %v2481 = vand.u32 %v934, 4294901760
      %2482 = vmatmul.mubr.f32.gmra.mrb[0].mxu0 %v2481
      %v2483 = vpop.f32.mrb[0].mxu0
      %v2484 = vadd.f32 %v2211, %v2483
      %v2485 = vpop.f32.mrb[0].mxu0
      %2486 = vmatprep.mubr.f32.mxu0 0.0
      %v2487 = vand.u32 %v937, 4294901760
      %2488 = vmatmul.mubr.f32.gmra.mrb[0].mxu0 %v2487
      %v2489 = vpop.f32.mrb[0].mxu0
      %v2490 = vadd.f32 %v2219, %v2489
      %v2491 = vpop.f32.mrb[0].mxu0
      %2492 = vmatprep.mubr.f32.mxu0 0.0
      %v2493 = vand.u32 %v940, 4294901760
      %2494 = vmatmul.mubr.f32.gmra.mrb[0].mxu0 %v2493
      %v2495 = vpop.f32.mrb[0].mxu0
      %v2496 = vadd.f32 %v2227, %v2495
      %v2497 = vpop.f32.mrb[0].mxu0
      %2498 = vdwg.mxu0
      %2499 = vmatprep.subr.mxu0 0.0
      %v2500 = vand.u32 %v834, 4294901760
      %2501 = vmatpush1.msra.mxu0 %v2500
      %2502 = vmatprep.subr.mxu0 0.0
      %v2503 = vand.u32 %v835, 4294901760
      %2504 = vmatpush1.msra.mxu0 %v2503
      %2505 = vmatprep.subr.mxu0 0.0
      %v2506 = vand.u32 %v836, 4294901760
      %2507 = vmatpush1.msra.mxu0 %v2506
      %2508 = vmatprep.subr.mxu0 0.0
      %v2509 = vand.u32 %v837, 4294901760
      %2510 = vmatpush1.msra.mxu0 %v2509
      %2511 = vmatprep.subr.mxu0 0.0
      %2512 = vmatpush1.msra.mxu0 0.0
      %2513 = vmatprep.subr.mxu0 0.0
      %2514 = vmatpush1.msra.mxu0 0.0
      %2515 = vmatprep.subr.mxu0 0.0
      %2516 = vmatpush1.msra.mxu0 0.0
      %2517 = vmatprep.subr.mxu0 0.0
      %2518 = vmatpush1.msra.mxu0 0.0
      %2519 = vmatprep.subr.mxu0 0.0
      %2520 = vmatpush1.msra.mxu0 0.0
      %2521 = vmatprep.subr.mxu0 0.0
      %2522 = vmatpush1.msra.mxu0 0.0
      %2523 = vmatprep.subr.mxu0 0.0
      %2524 = vmatpush1.msra.mxu0 0.0
      %2525 = vmatprep.subr.mxu0 0.0
      %2526 = vmatpush1.msra.mxu0 0.0
      %2527 = vmatprep.subr.mxu0 0.0
      %2528 = vmatpush1.msra.mxu0 0.0
      %2529 = vmatprep.subr.mxu0 0.0
      %2530 = vmatpush1.msra.mxu0 0.0
      %2531 = vmatprep.subr.mxu0 0.0
      %2532 = vmatpush1.msra.mxu0 0.0
      %2533 = vmatprep.subr.mxu0 0.0
      %2534 = vmatpush1.msra.mxu0 0.0
      %2535 = vmatprep.subr.mxu0 0.0
      %2536 = vmatpush1.msra.mxu0 0.0
      %2537 = vmatprep.subr.mxu0 0.0
      %2538 = vmatpush1.msra.mxu0 0.0
      %2539 = vmatprep.subr.mxu0 0.0
      %2540 = vmatpush1.msra.mxu0 0.0
      %2541 = vmatprep.subr.mxu0 0.0
      %2542 = vmatpush1.msra.mxu0 0.0
      %2543 = vmatprep.subr.mxu0 0.0
      %2544 = vmatpush1.msra.mxu0 0.0
      %2545 = vmatprep.subr.mxu0 0.0
      %2546 = vmatpush1.msra.mxu0 0.0
      %2547 = vmatprep.subr.mxu0 0.0
      %2548 = vmatpush1.msra.mxu0 0.0
      %2549 = vmatprep.subr.mxu0 0.0
      %2550 = vmatpush1.msra.mxu0 0.0
      %2551 = vmatprep.subr.mxu0 0.0
      %2552 = vmatpush1.msra.mxu0 0.0
      %2553 = vmatprep.subr.mxu0 0.0
      %2554 = vmatpush1.msra.mxu0 0.0
      %2555 = vmatprep.subr.mxu0 0.0
      %2556 = vmatpush1.msra.mxu0 0.0
      %2557 = vmatprep.subr.mxu0 0.0
      %2558 = vmatpush1.msra.mxu0 0.0
      %2559 = vmatprep.subr.mxu0 0.0
      %2560 = vmatpush1.msra.mxu0 0.0
      %2561 = vmatprep.subr.mxu0 0.0
      %2562 = vmatpush1.msra.mxu0 0.0
      %2563 = vmatprep.subr.mxu0 0.0
      %2564 = vmatpush1.msra.mxu0 0.0
      %2565 = vmatprep.subr.mxu0 0.0
      %2566 = vmatpush1.msra.mxu0 0.0
      %2567 = vmatprep.mubr.f32.mxu0 0.0
      %v2568 = vand.u32 %v847, 4294901760
      %2569 = vmatmul.mubr.f32.gmra.mrb[0].mxu0 %v2568
      %v2570 = vpop.f32.mrb[0].mxu0
      %v2571 = vadd.f32 %v2310, %v2570
      %v2572 = vpop.f32.mrb[0].mxu0
      %2573 = vmatprep.mubr.f32.mxu0 0.0
      %v2574 = vand.u32 %v850, 4294901760
      %2575 = vmatmul.mubr.f32.gmra.mrb[0].mxu0 %v2574
      %v2576 = vpop.f32.mrb[0].mxu0
      %v2577 = vadd.f32 %v2316, %v2576
      %v2578 = vpop.f32.mrb[0].mxu0
      %2579 = vmatprep.mubr.f32.mxu0 0.0
      %v2580 = vand.u32 %v853, 4294901760
      %2581 = vmatmul.mubr.f32.gmra.mrb[0].mxu0 %v2580
      %v2582 = vpop.f32.mrb[0].mxu0
      %v2583 = vadd.f32 %v2322, %v2582
      %v2584 = vpop.f32.mrb[0].mxu0
      %2585 = vmatprep.mubr.f32.mxu0 0.0
      %v2586 = vand.u32 %v856, 4294901760
      %2587 = vmatmul.mubr.f32.gmra.mrb[0].mxu0 %v2586
      %v2588 = vpop.f32.mrb[0].mxu0
      %v2589 = vadd.f32 %v2328, %v2588
      %v2590 = vpop.f32.mrb[0].mxu0
      %2591 = vmatprep.mubr.f32.mxu0 0.0
      %v2592 = vand.u32 %v859, 4294901760
      %2593 = vmatmul.mubr.f32.gmra.mrb[0].mxu0 %v2592
      %v2594 = vpop.f32.mrb[0].mxu0
      %v2595 = vadd.f32 %v2334, %v2594
      %v2596 = vpop.f32.mrb[0].mxu0
      %2597 = vmatprep.mubr.f32.mxu0 0.0
      %v2598 = vand.u32 %v862, 4294901760
      %2599 = vmatmul.mubr.f32.gmra.mrb[0].mxu0 %v2598
      %v2600 = vpop.f32.mrb[0].mxu0
      %v2601 = vadd.f32 %v2340, %v2600
      %v2602 = vpop.f32.mrb[0].mxu0
      %2603 = vmatprep.mubr.f32.mxu0 0.0
      %v2604 = vand.u32 %v865, 4294901760
      %2605 = vmatmul.mubr.f32.gmra.mrb[0].mxu0 %v2604
      %v2606 = vpop.f32.mrb[0].mxu0
      %v2607 = vadd.f32 %v2346, %v2606
      %v2608 = vpop.f32.mrb[0].mxu0
      %2609 = vmatprep.mubr.f32.mxu0 0.0
      %v2610 = vand.u32 %v868, 4294901760
      %2611 = vmatmul.mubr.f32.gmra.mrb[0].mxu0 %v2610
      %v2612 = vpop.f32.mrb[0].mxu0
      %v2613 = vadd.f32 %v2352, %v2612
      %v2614 = vpop.f32.mrb[0].mxu0
      %2615 = vmatprep.mubr.f32.mxu0 0.0
      %v2616 = vand.u32 %v871, 4294901760
      %2617 = vmatmul.mubr.f32.gmra.mrb[0].mxu0 %v2616
      %v2618 = vpop.f32.mrb[0].mxu0
      %v2619 = vadd.f32 %v2358, %v2618
      %v2620 = vpop.f32.mrb[0].mxu0
      %2621 = vmatprep.mubr.f32.mxu0 0.0
      %v2622 = vand.u32 %v874, 4294901760
      %2623 = vmatmul.mubr.f32.gmra.mrb[0].mxu0 %v2622
      %v2624 = vpop.f32.mrb[0].mxu0
      %v2625 = vadd.f32 %v2364, %v2624
      %v2626 = vpop.f32.mrb[0].mxu0
      %2627 = vmatprep.mubr.f32.mxu0 0.0
      %v2628 = vand.u32 %v877, 4294901760
      %2629 = vmatmul.mubr.f32.gmra.mrb[0].mxu0 %v2628
      %v2630 = vpop.f32.mrb[0].mxu0
      %v2631 = vadd.f32 %v2370, %v2630
      %v2632 = vpop.f32.mrb[0].mxu0
      %2633 = vmatprep.mubr.f32.mxu0 0.0
      %v2634 = vand.u32 %v880, 4294901760
      %2635 = vmatmul.mubr.f32.gmra.mrb[0].mxu0 %v2634
      %v2636 = vpop.f32.mrb[0].mxu0
      %v2637 = vadd.f32 %v2376, %v2636
      %v2638 = vpop.f32.mrb[0].mxu0
      %2639 = vmatprep.mubr.f32.mxu0 0.0
      %v2640 = vand.u32 %v883, 4294901760
      %2641 = vmatmul.mubr.f32.gmra.mrb[0].mxu0 %v2640
      %v2642 = vpop.f32.mrb[0].mxu0
      %v2643 = vadd.f32 %v2382, %v2642
      %v2644 = vpop.f32.mrb[0].mxu0
      %2645 = vmatprep.mubr.f32.mxu0 0.0
      %v2646 = vand.u32 %v886, 4294901760
      %2647 = vmatmul.mubr.f32.gmra.mrb[0].mxu0 %v2646
      %v2648 = vpop.f32.mrb[0].mxu0
      %v2649 = vadd.f32 %v2388, %v2648
      %v2650 = vpop.f32.mrb[0].mxu0
      %2651 = vmatprep.mubr.f32.mxu0 0.0
      %v2652 = vand.u32 %v889, 4294901760
      %2653 = vmatmul.mubr.f32.gmra.mrb[0].mxu0 %v2652
      %v2654 = vpop.f32.mrb[0].mxu0
      %v2655 = vadd.f32 %v2394, %v2654
      %v2656 = vpop.f32.mrb[0].mxu0
      %2657 = vmatprep.mubr.f32.mxu0 0.0
      %v2658 = vand.u32 %v892, 4294901760
      %2659 = vmatmul.mubr.f32.gmra.mrb[0].mxu0 %v2658
      %v2660 = vpop.f32.mrb[0].mxu0
      %v2661 = vadd.f32 %v2400, %v2660
      %v2662 = vpop.f32.mrb[0].mxu0
      %2663 = vmatprep.mubr.f32.mxu0 0.0
      %v2664 = vand.u32 %v895, 4294901760
      %2665 = vmatmul.mubr.f32.gmra.mrb[0].mxu0 %v2664
      %v2666 = vpop.f32.mrb[0].mxu0
      %v2667 = vadd.f32 %v2406, %v2666
      %v2668 = vpop.f32.mrb[0].mxu0
      %2669 = vmatprep.mubr.f32.mxu0 0.0
      %v2670 = vand.u32 %v898, 4294901760
      %2671 = vmatmul.mubr.f32.gmra.mrb[0].mxu0 %v2670
      %v2672 = vpop.f32.mrb[0].mxu0
      %v2673 = vadd.f32 %v2412, %v2672
      %v2674 = vpop.f32.mrb[0].mxu0
      %2675 = vmatprep.mubr.f32.mxu0 0.0
      %v2676 = vand.u32 %v901, 4294901760
      %2677 = vmatmul.mubr.f32.gmra.mrb[0].mxu0 %v2676
      %v2678 = vpop.f32.mrb[0].mxu0
      %v2679 = vadd.f32 %v2418, %v2678
      %v2680 = vpop.f32.mrb[0].mxu0
      %2681 = vmatprep.mubr.f32.mxu0 0.0
      %v2682 = vand.u32 %v904, 4294901760
      %2683 = vmatmul.mubr.f32.gmra.mrb[0].mxu0 %v2682
      %v2684 = vpop.f32.mrb[0].mxu0
      %v2685 = vadd.f32 %v2424, %v2684
      %v2686 = vpop.f32.mrb[0].mxu0
      %2687 = vmatprep.mubr.f32.mxu0 0.0
      %v2688 = vand.u32 %v907, 4294901760
      %2689 = vmatmul.mubr.f32.gmra.mrb[0].mxu0 %v2688
      %v2690 = vpop.f32.mrb[0].mxu0
      %v2691 = vadd.f32 %v2430, %v2690
      %v2692 = vpop.f32.mrb[0].mxu0
      %2693 = vmatprep.mubr.f32.mxu0 0.0
      %v2694 = vand.u32 %v910, 4294901760
      %2695 = vmatmul.mubr.f32.gmra.mrb[0].mxu0 %v2694
      %v2696 = vpop.f32.mrb[0].mxu0
      %v2697 = vadd.f32 %v2436, %v2696
      %v2698 = vpop.f32.mrb[0].mxu0
      %2699 = vmatprep.mubr.f32.mxu0 0.0
      %v2700 = vand.u32 %v913, 4294901760
      %2701 = vmatmul.mubr.f32.gmra.mrb[0].mxu0 %v2700
      %v2702 = vpop.f32.mrb[0].mxu0
      %v2703 = vadd.f32 %v2442, %v2702
      %v2704 = vpop.f32.mrb[0].mxu0
      %2705 = vmatprep.mubr.f32.mxu0 0.0
      %v2706 = vand.u32 %v916, 4294901760
      %2707 = vmatmul.mubr.f32.gmra.mrb[0].mxu0 %v2706
      %v2708 = vpop.f32.mrb[0].mxu0
      %v2709 = vadd.f32 %v2448, %v2708
      %v2710 = vpop.f32.mrb[0].mxu0
      %2711 = vmatprep.mubr.f32.mxu0 0.0
      %v2712 = vand.u32 %v919, 4294901760
      %2713 = vmatmul.mubr.f32.gmra.mrb[0].mxu0 %v2712
      %v2714 = vpop.f32.mrb[0].mxu0
      %v2715 = vadd.f32 %v2454, %v2714
      %v2716 = vpop.f32.mrb[0].mxu0
      %2717 = vmatprep.mubr.f32.mxu0 0.0
      %v2718 = vand.u32 %v922, 4294901760
      %2719 = vmatmul.mubr.f32.gmra.mrb[0].mxu0 %v2718
      %v2720 = vpop.f32.mrb[0].mxu0
      %v2721 = vadd.f32 %v2460, %v2720
      %v2722 = vpop.f32.mrb[0].mxu0
      %2723 = vmatprep.mubr.f32.mxu0 0.0
      %v2724 = vand.u32 %v925, 4294901760
      %2725 = vmatmul.mubr.f32.gmra.mrb[0].mxu0 %v2724
      %v2726 = vpop.f32.mrb[0].mxu0
      %v2727 = vadd.f32 %v2466, %v2726
      %v2728 = vpop.f32.mrb[0].mxu0
      %2729 = vmatprep.mubr.f32.mxu0 0.0
      %v2730 = vand.u32 %v928, 4294901760
      %2731 = vmatmul.mubr.f32.gmra.mrb[0].mxu0 %v2730
      %v2732 = vpop.f32.mrb[0].mxu0
      %v2733 = vadd.f32 %v2472, %v2732
      %v2734 = vpop.f32.mrb[0].mxu0
      %2735 = vmatprep.mubr.f32.mxu0 0.0
      %v2736 = vand.u32 %v931, 4294901760
      %2737 = vmatmul.mubr.f32.gmra.mrb[0].mxu0 %v2736
      %v2738 = vpop.f32.mrb[0].mxu0
      %v2739 = vadd.f32 %v2478, %v2738
      %v2740 = vpop.f32.mrb[0].mxu0
      %2741 = vmatprep.mubr.f32.mxu0 0.0
      %v2742 = vand.u32 %v934, 4294901760
      %2743 = vmatmul.mubr.f32.gmra.mrb[0].mxu0 %v2742
      %v2744 = vpop.f32.mrb[0].mxu0
      %v2745 = vadd.f32 %v2484, %v2744
      %v2746 = vpop.f32.mrb[0].mxu0
      %2747 = vmatprep.mubr.f32.mxu0 0.0
      %v2748 = vand.u32 %v937, 4294901760
      %2749 = vmatmul.mubr.f32.gmra.mrb[0].mxu0 %v2748
      %v2750 = vpop.f32.mrb[0].mxu0
      %v2751 = vadd.f32 %v2490, %v2750
      %v2752 = vpop.f32.mrb[0].mxu0
      %2753 = vmatprep.mubr.f32.mxu0 0.0
      %v2754 = vand.u32 %v940, 4294901760
      %2755 = vmatmul.mubr.f32.gmra.mrb[0].mxu0 %v2754
      %v2756 = vpop.f32.mrb[0].mxu0
      %v2757 = vadd.f32 %v2496, %v2756
      %v2758 = vpop.f32.mrb[0].mxu0
      %2759 = vdwg.mxu0
      %v2760 = vtanh.pop %v2571
      %v2761 = vtanh.pop %v2577
      %v2762 = vtanh.pop %v2583
      %v2763 = vtanh.pop %v2589
      %v2764 = vtanh.pop %v2595
      %v2765 = vtanh.pop %v2601
      %v2766 = vtanh.pop %v2607
      %v2767 = vtanh.pop %v2613
      %v2768 = vtanh.pop %v2619
      %v2769 = vtanh.pop %v2625
      %v2770 = vtanh.pop %v2631
      %v2771 = vtanh.pop %v2637
      %v2772 = vtanh.pop %v2643
      %v2773 = vtanh.pop %v2649
      %v2774 = vtanh.pop %v2655
      %v2775 = vtanh.pop %v2661
      %v2776 = vtanh.pop %v2667
      %v2777 = vtanh.pop %v2673
      %v2778 = vtanh.pop %v2679
      %v2779 = vtanh.pop %v2685
      %v2780 = vtanh.pop %v2691
      %v2781 = vtanh.pop %v2697
      %v2782 = vtanh.pop %v2703
      %v2783 = vtanh.pop %v2709
      %v2784 = vtanh.pop %v2715
      %v2785 = vtanh.pop %v2721
      %v2786 = vtanh.pop %v2727
      %v2787 = vtanh.pop %v2733
      %v2788 = vtanh.pop %v2739
      %v2789 = vtanh.pop %v2745
      %v2790 = vtanh.pop %v2751
      %v2791 = vtanh.pop %v2757
      %v2792 = vld [vmem:[%s5] sm:$0xff]
      %v2793 = vld [vmem:[%s5 + $0x8] sm:$0xff]
      %v2794 = vld [vmem:[%s5 + $0x10] sm:$0xff]
      %v2795 = vld [vmem:[%s5 + $0x18] sm:$0xff]
      %v2796 = vld [vmem:[%s6] sm:$0x1]
      %v2798 = vlaneseq
      %v2799 = vshrl.u32 %v2798, 7
      %v2800 = vsub.s32 0, %v2799
      %v2801 = vrot.slane %v2796, %v2800
      %v2804 = vsel %vm845, %v2760, 0
      %v2807 = vsel %vm845, %v2761, 0
      %v2810 = vsel %vm845, %v2762, 0
      %v2813 = vsel %vm845, %v2763, 0
      %v2816 = vsel %vm845, %v2764, 0
      %v2819 = vsel %vm845, %v2765, 0
      %v2822 = vsel %vm845, %v2766, 0
      %v2825 = vsel %vm845, %v2767, 0
      %v2828 = vsel %vm845, %v2768, 0
      %v2831 = vsel %vm845, %v2769, 0
      %v2834 = vsel %vm845, %v2770, 0
      %v2837 = vsel %vm845, %v2771, 0
      %v2840 = vsel %vm845, %v2772, 0
      %v2843 = vsel %vm845, %v2773, 0
      %v2846 = vsel %vm845, %v2774, 0
      %v2849 = vsel %vm845, %v2775, 0
      %v2852 = vsel %vm845, %v2776, 0
      %v2855 = vsel %vm845, %v2777, 0
      %v2858 = vsel %vm845, %v2778, 0
      %v2861 = vsel %vm845, %v2779, 0
      %v2864 = vsel %vm845, %v2780, 0
      %v2867 = vsel %vm845, %v2781, 0
      %v2870 = vsel %vm845, %v2782, 0
      %v2873 = vsel %vm845, %v2783, 0
      %v2876 = vsel %vm845, %v2784, 0
      %v2879 = vsel %vm845, %v2785, 0
      %v2882 = vsel %vm845, %v2786, 0
      %v2885 = vsel %vm845, %v2787, 0
      %v2888 = vsel %vm845, %v2788, 0
      %v2891 = vsel %vm845, %v2789, 0
      %v2894 = vsel %vm845, %v2790, 0
      %v2897 = vsel %vm845, %v2791, 0
      %2899 = vmatprep.subr.mxu0 0.0
      %v2900 = vand.u32 %v2792, 4294901760
      %2901 = vmatpush1.msra.mxu0 %v2900
      %2902 = vmatprep.subr.mxu0 0.0
      %v2903 = vand.u32 %v2793, 4294901760
      %2904 = vmatpush1.msra.mxu0 %v2903
      %2905 = vmatprep.subr.mxu0 0.0
      %v2906 = vand.u32 %v2794, 4294901760
      %2907 = vmatpush1.msra.mxu0 %v2906
      %2908 = vmatprep.subr.mxu0 0.0
      %v2909 = vand.u32 %v2795, 4294901760
      %2910 = vmatpush1.msra.mxu0 %v2909
      %2911 = vmatprep.subr.mxu0 0.0
      %2912 = vmatpush1.msra.mxu0 0.0
      %2913 = vmatprep.subr.mxu0 0.0
      %2914 = vmatpush1.msra.mxu0 0.0
      %2915 = vmatprep.subr.mxu0 0.0
      %2916 = vmatpush1.msra.mxu0 0.0
      %2917 = vmatprep.subr.mxu0 0.0
      %2918 = vmatpush1.msra.mxu0 0.0
      %2919 = vmatprep.subr.mxu0 0.0
      %2920 = vmatpush1.msra.mxu0 0.0
      %2921 = vmatprep.subr.mxu0 0.0
      %2922 = vmatpush1.msra.mxu0 0.0
      %2923 = vmatprep.subr.mxu0 0.0
      %2924 = vmatpush1.msra.mxu0 0.0
      %2925 = vmatprep.subr.mxu0 0.0
      %2926 = vmatpush1.msra.mxu0 0.0
      %2927 = vmatprep.subr.mxu0 0.0
      %2928 = vmatpush1.msra.mxu0 0.0
      %2929 = vmatprep.subr.mxu0 0.0
      %2930 = vmatpush1.msra.mxu0 0.0
      %2931 = vmatprep.subr.mxu0 0.0
      %2932 = vmatpush1.msra.mxu0 0.0
      %2933 = vmatprep.subr.mxu0 0.0
      %2934 = vmatpush1.msra.mxu0 0.0
      %2935 = vmatprep.subr.mxu0 0.0
      %2936 = vmatpush1.msra.mxu0 0.0
      %2937 = vmatprep.subr.mxu0 0.0
      %2938 = vmatpush1.msra.mxu0 0.0
      %2939 = vmatprep.subr.mxu0 0.0
      %2940 = vmatpush1.msra.mxu0 0.0
      %2941 = vmatprep.subr.mxu0 0.0
      %2942 = vmatpush1.msra.mxu0 0.0
      %2943 = vmatprep.subr.mxu0 0.0
      %2944 = vmatpush1.msra.mxu0 0.0
      %2945 = vmatprep.subr.mxu0 0.0
      %2946 = vmatpush1.msra.mxu0 0.0
      %2947 = vmatprep.subr.mxu0 0.0
      %2948 = vmatpush1.msra.mxu0 0.0
      %2949 = vmatprep.subr.mxu0 0.0
      %2950 = vmatpush1.msra.mxu0 0.0
      %2951 = vmatprep.subr.mxu0 0.0
      %2952 = vmatpush1.msra.mxu0 0.0
      %2953 = vmatprep.subr.mxu0 0.0
      %2954 = vmatpush1.msra.mxu0 0.0
      %2955 = vmatprep.subr.mxu0 0.0
      %2956 = vmatpush1.msra.mxu0 0.0
      %2957 = vmatprep.subr.mxu0 0.0
      %2958 = vmatpush1.msra.mxu0 0.0
      %2959 = vmatprep.subr.mxu0 0.0
      %2960 = vmatpush1.msra.mxu0 0.0
      %2961 = vmatprep.subr.mxu0 0.0
      %2962 = vmatpush1.msra.mxu0 0.0
      %2963 = vmatprep.subr.mxu0 0.0
      %2964 = vmatpush1.msra.mxu0 0.0
      %2965 = vmatprep.subr.mxu0 0.0
      %2966 = vmatpush1.msra.mxu0 0.0
      %2967 = vmatprep.mubr.f32.mxu0 0.0
      %v2968 = vand.u32 %v2804, 4294901760
      %v2969 = vsub.f32 %v2804, %v2968
      %v2970 = vand.u32 %v2969, 4294901760
      %v2971 = vsub.f32 %v2969, %v2970
      %v2972 = vand.u32 %v2971, 4294901760
      %2973 = vmatmul.mubr.f32.gmra.mrb[0].mxu0 %v2972
      %v2974 = vpop.f32.mrb[0].mxu0
      %v2975 = vadd.f32 %v2801, %v2974
      %v2976 = vpop.f32.mrb[0].mxu0
      %2977 = vmatprep.mubr.f32.mxu0 0.0
      %v2978 = vand.u32 %v2807, 4294901760
      %v2979 = vsub.f32 %v2807, %v2978
      %v2980 = vand.u32 %v2979, 4294901760
      %v2981 = vsub.f32 %v2979, %v2980
      %v2982 = vand.u32 %v2981, 4294901760
      %2983 = vmatmul.mubr.f32.gmra.mrb[0].mxu0 %v2982
      %v2984 = vpop.f32.mrb[0].mxu0
      %v2985 = vadd.f32 %v2801, %v2984
      %v2986 = vpop.f32.mrb[0].mxu0
      %2987 = vmatprep.mubr.f32.mxu0 0.0
      %v2988 = vand.u32 %v2810, 4294901760
      %v2989 = vsub.f32 %v2810, %v2988
      %v2990 = vand.u32 %v2989, 4294901760
      %v2991 = vsub.f32 %v2989, %v2990
      %v2992 = vand.u32 %v2991, 4294901760
      %2993 = vmatmul.mubr.f32.gmra.mrb[0].mxu0 %v2992
      %v2994 = vpop.f32.mrb[0].mxu0
      %v2995 = vadd.f32 %v2801, %v2994
      %v2996 = vpop.f32.mrb[0].mxu0
      %2997 = vmatprep.mubr.f32.mxu0 0.0
      %v2998 = vand.u32 %v2813, 4294901760
      %v2999 = vsub.f32 %v2813, %v2998
      %v3000 = vand.u32 %v2999, 4294901760
      %v3001 = vsub.f32 %v2999, %v3000
      %v3002 = vand.u32 %v3001, 4294901760
      %3003 = vmatmul.mubr.f32.gmra.mrb[0].mxu0 %v3002
      %v3004 = vpop.f32.mrb[0].mxu0
      %v3005 = vadd.f32 %v2801, %v3004
      %v3006 = vpop.f32.mrb[0].mxu0
      %3007 = vmatprep.mubr.f32.mxu0 0.0
      %v3008 = vand.u32 %v2816, 4294901760
      %v3009 = vsub.f32 %v2816, %v3008
      %v3010 = vand.u32 %v3009, 4294901760
      %v3011 = vsub.f32 %v3009, %v3010
      %v3012 = vand.u32 %v3011, 4294901760
      %3013 = vmatmul.mubr.f32.gmra.mrb[0].mxu0 %v3012
      %v3014 = vpop.f32.mrb[0].mxu0
      %v3015 = vadd.f32 %v2801, %v3014
      %v3016 = vpop.f32.mrb[0].mxu0
      %3017 = vmatprep.mubr.f32.mxu0 0.0
      %v3018 = vand.u32 %v2819, 4294901760
      %v3019 = vsub.f32 %v2819, %v3018
      %v3020 = vand.u32 %v3019, 4294901760
      %v3021 = vsub.f32 %v3019, %v3020
      %v3022 = vand.u32 %v3021, 4294901760
      %3023 = vmatmul.mubr.f32.gmra.mrb[0].mxu0 %v3022
      %v3024 = vpop.f32.mrb[0].mxu0
      %v3025 = vadd.f32 %v2801, %v3024
      %v3026 = vpop.f32.mrb[0].mxu0
      %3027 = vmatprep.mubr.f32.mxu0 0.0
      %v3028 = vand.u32 %v2822, 4294901760
      %v3029 = vsub.f32 %v2822, %v3028
      %v3030 = vand.u32 %v3029, 4294901760
      %v3031 = vsub.f32 %v3029, %v3030
      %v3032 = vand.u32 %v3031, 4294901760
      %3033 = vmatmul.mubr.f32.gmra.mrb[0].mxu0 %v3032
      %v3034 = vpop.f32.mrb[0].mxu0
      %v3035 = vadd.f32 %v2801, %v3034
      %v3036 = vpop.f32.mrb[0].mxu0
      %3037 = vmatprep.mubr.f32.mxu0 0.0
      %v3038 = vand.u32 %v2825, 4294901760
      %v3039 = vsub.f32 %v2825, %v3038
      %v3040 = vand.u32 %v3039, 4294901760
      %v3041 = vsub.f32 %v3039, %v3040
      %v3042 = vand.u32 %v3041, 4294901760
      %3043 = vmatmul.mubr.f32.gmra.mrb[0].mxu0 %v3042
      %v3044 = vpop.f32.mrb[0].mxu0
      %v3045 = vadd.f32 %v2801, %v3044
      %v3046 = vpop.f32.mrb[0].mxu0
      %3047 = vmatprep.mubr.f32.mxu0 0.0
      %v3048 = vand.u32 %v2828, 4294901760
      %v3049 = vsub.f32 %v2828, %v3048
      %v3050 = vand.u32 %v3049, 4294901760
      %v3051 = vsub.f32 %v3049, %v3050
      %v3052 = vand.u32 %v3051, 4294901760
      %3053 = vmatmul.mubr.f32.gmra.mrb[0].mxu0 %v3052
      %v3054 = vpop.f32.mrb[0].mxu0
      %v3055 = vadd.f32 %v2801, %v3054
      %v3056 = vpop.f32.mrb[0].mxu0
      %3057 = vmatprep.mubr.f32.mxu0 0.0
      %v3058 = vand.u32 %v2831, 4294901760
      %v3059 = vsub.f32 %v2831, %v3058
      %v3060 = vand.u32 %v3059, 4294901760
      %v3061 = vsub.f32 %v3059, %v3060
      %v3062 = vand.u32 %v3061, 4294901760
      %3063 = vmatmul.mubr.f32.gmra.mrb[0].mxu0 %v3062
      %v3064 = vpop.f32.mrb[0].mxu0
      %v3065 = vadd.f32 %v2801, %v3064
      %v3066 = vpop.f32.mrb[0].mxu0
      %3067 = vmatprep.mubr.f32.mxu0 0.0
      %v3068 = vand.u32 %v2834, 4294901760
      %v3069 = vsub.f32 %v2834, %v3068
      %v3070 = vand.u32 %v3069, 4294901760
      %v3071 = vsub.f32 %v3069, %v3070
      %v3072 = vand.u32 %v3071, 4294901760
      %3073 = vmatmul.mubr.f32.gmra.mrb[0].mxu0 %v3072
      %v3074 = vpop.f32.mrb[0].mxu0
      %v3075 = vadd.f32 %v2801, %v3074
      %v3076 = vpop.f32.mrb[0].mxu0
      %3077 = vmatprep.mubr.f32.mxu0 0.0
      %v3078 = vand.u32 %v2837, 4294901760
      %v3079 = vsub.f32 %v2837, %v3078
      %v3080 = vand.u32 %v3079, 4294901760
      %v3081 = vsub.f32 %v3079, %v3080
      %v3082 = vand.u32 %v3081, 4294901760
      %3083 = vmatmul.mubr.f32.gmra.mrb[0].mxu0 %v3082
      %v3084 = vpop.f32.mrb[0].mxu0
      %v3085 = vadd.f32 %v2801, %v3084
      %v3086 = vpop.f32.mrb[0].mxu0
      %3087 = vmatprep.mubr.f32.mxu0 0.0
      %v3088 = vand.u32 %v2840, 4294901760
      %v3089 = vsub.f32 %v2840, %v3088
      %v3090 = vand.u32 %v3089, 4294901760
      %v3091 = vsub.f32 %v3089, %v3090
      %v3092 = vand.u32 %v3091, 4294901760
      %3093 = vmatmul.mubr.f32.gmra.mrb[0].mxu0 %v3092
      %v3094 = vpop.f32.mrb[0].mxu0
      %v3095 = vadd.f32 %v2801, %v3094
      %v3096 = vpop.f32.mrb[0].mxu0
      %3097 = vmatprep.mubr.f32.mxu0 0.0
      %v3098 = vand.u32 %v2843, 4294901760
      %v3099 = vsub.f32 %v2843, %v3098
      %v3100 = vand.u32 %v3099, 4294901760
      %v3101 = vsub.f32 %v3099, %v3100
      %v3102 = vand.u32 %v3101, 4294901760
      %3103 = vmatmul.mubr.f32.gmra.mrb[0].mxu0 %v3102
      %v3104 = vpop.f32.mrb[0].mxu0
      %v3105 = vadd.f32 %v2801, %v3104
      %v3106 = vpop.f32.mrb[0].mxu0
      %3107 = vmatprep.mubr.f32.mxu0 0.0
      %v3108 = vand.u32 %v2846, 4294901760
      %v3109 = vsub.f32 %v2846, %v3108
      %v3110 = vand.u32 %v3109, 4294901760
      %v3111 = vsub.f32 %v3109, %v3110
      %v3112 = vand.u32 %v3111, 4294901760
      %3113 = vmatmul.mubr.f32.gmra.mrb[0].mxu0 %v3112
      %v3114 = vpop.f32.mrb[0].mxu0
      %v3115 = vadd.f32 %v2801, %v3114
      %v3116 = vpop.f32.mrb[0].mxu0
      %3117 = vmatprep.mubr.f32.mxu0 0.0
      %v3118 = vand.u32 %v2849, 4294901760
      %v3119 = vsub.f32 %v2849, %v3118
      %v3120 = vand.u32 %v3119, 4294901760
      %v3121 = vsub.f32 %v3119, %v3120
      %v3122 = vand.u32 %v3121, 4294901760
      %3123 = vmatmul.mubr.f32.gmra.mrb[0].mxu0 %v3122
      %v3124 = vpop.f32.mrb[0].mxu0
      %v3125 = vadd.f32 %v2801, %v3124
      %v3126 = vpop.f32.mrb[0].mxu0
      %3127 = vmatprep.mubr.f32.mxu0 0.0
      %v3128 = vand.u32 %v2852, 4294901760
      %v3129 = vsub.f32 %v2852, %v3128
      %v3130 = vand.u32 %v3129, 4294901760
      %v3131 = vsub.f32 %v3129, %v3130
      %v3132 = vand.u32 %v3131, 4294901760
      %3133 = vmatmul.mubr.f32.gmra.mrb[0].mxu0 %v3132
      %v3134 = vpop.f32.mrb[0].mxu0
      %v3135 = vadd.f32 %v2801, %v3134
      %v3136 = vpop.f32.mrb[0].mxu0
      %3137 = vmatprep.mubr.f32.mxu0 0.0
      %v3138 = vand.u32 %v2855, 4294901760
      %v3139 = vsub.f32 %v2855, %v3138
      %v3140 = vand.u32 %v3139, 4294901760
      %v3141 = vsub.f32 %v3139, %v3140
      %v3142 = vand.u32 %v3141, 4294901760
      %3143 = vmatmul.mubr.f32.gmra.mrb[0].mxu0 %v3142
      %v3144 = vpop.f32.mrb[0].mxu0
      %v3145 = vadd.f32 %v2801, %v3144
      %v3146 = vpop.f32.mrb[0].mxu0
      %3147 = vmatprep.mubr.f32.mxu0 0.0
      %v3148 = vand.u32 %v2858, 4294901760
      %v3149 = vsub.f32 %v2858, %v3148
      %v3150 = vand.u32 %v3149, 4294901760
      %v3151 = vsub.f32 %v3149, %v3150
      %v3152 = vand.u32 %v3151, 4294901760
      %3153 = vmatmul.mubr.f32.gmra.mrb[0].mxu0 %v3152
      %v3154 = vpop.f32.mrb[0].mxu0
      %v3155 = vadd.f32 %v2801, %v3154
      %v3156 = vpop.f32.mrb[0].mxu0
      %3157 = vmatprep.mubr.f32.mxu0 0.0
      %v3158 = vand.u32 %v2861, 4294901760
      %v3159 = vsub.f32 %v2861, %v3158
      %v3160 = vand.u32 %v3159, 4294901760
      %v3161 = vsub.f32 %v3159, %v3160
      %v3162 = vand.u32 %v3161, 4294901760
      %3163 = vmatmul.mubr.f32.gmra.mrb[0].mxu0 %v3162
      %v3164 = vpop.f32.mrb[0].mxu0
      %v3165 = vadd.f32 %v2801, %v3164
      %v3166 = vpop.f32.mrb[0].mxu0
      %3167 = vmatprep.mubr.f32.mxu0 0.0
      %v3168 = vand.u32 %v2864, 4294901760
      %v3169 = vsub.f32 %v2864, %v3168
      %v3170 = vand.u32 %v3169, 4294901760
      %v3171 = vsub.f32 %v3169, %v3170
      %v3172 = vand.u32 %v3171, 4294901760
      %3173 = vmatmul.mubr.f32.gmra.mrb[0].mxu0 %v3172
      %v3174 = vpop.f32.mrb[0].mxu0
      %v3175 = vadd.f32 %v2801, %v3174
      %v3176 = vpop.f32.mrb[0].mxu0
      %3177 = vmatprep.mubr.f32.mxu0 0.0
      %v3178 = vand.u32 %v2867, 4294901760
      %v3179 = vsub.f32 %v2867, %v3178
      %v3180 = vand.u32 %v3179, 4294901760
      %v3181 = vsub.f32 %v3179, %v3180
      %v3182 = vand.u32 %v3181, 4294901760
      %3183 = vmatmul.mubr.f32.gmra.mrb[0].mxu0 %v3182
      %v3184 = vpop.f32.mrb[0].mxu0
      %v3185 = vadd.f32 %v2801, %v3184
      %v3186 = vpop.f32.mrb[0].mxu0
      %3187 = vmatprep.mubr.f32.mxu0 0.0
      %v3188 = vand.u32 %v2870, 4294901760
      %v3189 = vsub.f32 %v2870, %v3188
      %v3190 = vand.u32 %v3189, 4294901760
      %v3191 = vsub.f32 %v3189, %v3190
      %v3192 = vand.u32 %v3191, 4294901760
      %3193 = vmatmul.mubr.f32.gmra.mrb[0].mxu0 %v3192
      %v3194 = vpop.f32.mrb[0].mxu0
      %v3195 = vadd.f32 %v2801, %v3194
      %v3196 = vpop.f32.mrb[0].mxu0
      %3197 = vmatprep.mubr.f32.mxu0 0.0
      %v3198 = vand.u32 %v2873, 4294901760
      %v3199 = vsub.f32 %v2873, %v3198
      %v3200 = vand.u32 %v3199, 4294901760
      %v3201 = vsub.f32 %v3199, %v3200
      %v3202 = vand.u32 %v3201, 4294901760
      %3203 = vmatmul.mubr.f32.gmra.mrb[0].mxu0 %v3202
      %v3204 = vpop.f32.mrb[0].mxu0
      %v3205 = vadd.f32 %v2801, %v3204
      %v3206 = vpop.f32.mrb[0].mxu0
      %3207 = vmatprep.mubr.f32.mxu0 0.0
      %v3208 = vand.u32 %v2876, 4294901760
      %v3209 = vsub.f32 %v2876, %v3208
      %v3210 = vand.u32 %v3209, 4294901760
      %v3211 = vsub.f32 %v3209, %v3210
      %v3212 = vand.u32 %v3211, 4294901760
      %3213 = vmatmul.mubr.f32.gmra.mrb[0].mxu0 %v3212
      %v3214 = vpop.f32.mrb[0].mxu0
      %v3215 = vadd.f32 %v2801, %v3214
      %v3216 = vpop.f32.mrb[0].mxu0
      %3217 = vmatprep.mubr.f32.mxu0 0.0
      %v3218 = vand.u32 %v2879, 4294901760
      %v3219 = vsub.f32 %v2879, %v3218
      %v3220 = vand.u32 %v3219, 4294901760
      %v3221 = vsub.f32 %v3219, %v3220
      %v3222 = vand.u32 %v3221, 4294901760
      %3223 = vmatmul.mubr.f32.gmra.mrb[0].mxu0 %v3222
      %v3224 = vpop.f32.mrb[0].mxu0
      %v3225 = vadd.f32 %v2801, %v3224
      %v3226 = vpop.f32.mrb[0].mxu0
      %3227 = vmatprep.mubr.f32.mxu0 0.0
      %v3228 = vand.u32 %v2882, 4294901760
      %v3229 = vsub.f32 %v2882, %v3228
      %v3230 = vand.u32 %v3229, 4294901760
      %v3231 = vsub.f32 %v3229, %v3230
      %v3232 = vand.u32 %v3231, 4294901760
      %3233 = vmatmul.mubr.f32.gmra.mrb[0].mxu0 %v3232
      %v3234 = vpop.f32.mrb[0].mxu0
      %v3235 = vadd.f32 %v2801, %v3234
      %v3236 = vpop.f32.mrb[0].mxu0
      %3237 = vmatprep.mubr.f32.mxu0 0.0
      %v3238 = vand.u32 %v2885, 4294901760
      %v3239 = vsub.f32 %v2885, %v3238
      %v3240 = vand.u32 %v3239, 4294901760
      %v3241 = vsub.f32 %v3239, %v3240
      %v3242 = vand.u32 %v3241, 4294901760
      %3243 = vmatmul.mubr.f32.gmra.mrb[0].mxu0 %v3242
      %v3244 = vpop.f32.mrb[0].mxu0
      %v3245 = vadd.f32 %v2801, %v3244
      %v3246 = vpop.f32.mrb[0].mxu0
      %3247 = vmatprep.mubr.f32.mxu0 0.0
      %v3248 = vand.u32 %v2888, 4294901760
      %v3249 = vsub.f32 %v2888, %v3248
      %v3250 = vand.u32 %v3249, 4294901760
      %v3251 = vsub.f32 %v3249, %v3250
      %v3252 = vand.u32 %v3251, 4294901760
      %3253 = vmatmul.mubr.f32.gmra.mrb[0].mxu0 %v3252
      %v3254 = vpop.f32.mrb[0].mxu0
      %v3255 = vadd.f32 %v2801, %v3254
      %v3256 = vpop.f32.mrb[0].mxu0
      %3257 = vmatprep.mubr.f32.mxu0 0.0
      %v3258 = vand.u32 %v2891, 4294901760
      %v3259 = vsub.f32 %v2891, %v3258
      %v3260 = vand.u32 %v3259, 4294901760
      %v3261 = vsub.f32 %v3259, %v3260
      %v3262 = vand.u32 %v3261, 4294901760
      %3263 = vmatmul.mubr.f32.gmra.mrb[0].mxu0 %v3262
      %v3264 = vpop.f32.mrb[0].mxu0
      %v3265 = vadd.f32 %v2801, %v3264
      %v3266 = vpop.f32.mrb[0].mxu0
      %3267 = vmatprep.mubr.f32.mxu0 0.0
      %v3268 = vand.u32 %v2894, 4294901760
      %v3269 = vsub.f32 %v2894, %v3268
      %v3270 = vand.u32 %v3269, 4294901760
      %v3271 = vsub.f32 %v3269, %v3270
      %v3272 = vand.u32 %v3271, 4294901760
      %3273 = vmatmul.mubr.f32.gmra.mrb[0].mxu0 %v3272
      %v3274 = vpop.f32.mrb[0].mxu0
      %v3275 = vadd.f32 %v2801, %v3274
      %v3276 = vpop.f32.mrb[0].mxu0
      %3277 = vmatprep.mubr.f32.mxu0 0.0
      %v3278 = vand.u32 %v2897, 4294901760
      %v3279 = vsub.f32 %v2897, %v3278
      %v3280 = vand.u32 %v3279, 4294901760
      %v3281 = vsub.f32 %v3279, %v3280
      %v3282 = vand.u32 %v3281, 4294901760
      %3283 = vmatmul.mubr.f32.gmra.mrb[0].mxu0 %v3282
      %v3284 = vpop.f32.mrb[0].mxu0
      %v3285 = vadd.f32 %v2801, %v3284
      %v3286 = vpop.f32.mrb[0].mxu0
      %3287 = vdwg.mxu0
      %3288 = vmatprep.subr.mxu0 0.0
      %v3289 = vand.u32 %v2792, 4294901760
      %v3290 = vsub.f32 %v2792, %v3289
      %v3291 = vand.u32 %v3290, 4294901760
      %v3292 = vsub.f32 %v3290, %v3291
      %v3293 = vand.u32 %v3292, 4294901760
      %3294 = vmatpush1.msra.mxu0 %v3293
      %3295 = vmatprep.subr.mxu0 0.0
      %v3296 = vand.u32 %v2793, 4294901760
      %v3297 = vsub.f32 %v2793, %v3296
      %v3298 = vand.u32 %v3297, 4294901760
      %v3299 = vsub.f32 %v3297, %v3298
      %v3300 = vand.u32 %v3299, 4294901760
      %3301 = vmatpush1.msra.mxu0 %v3300
      %3302 = vmatprep.subr.mxu0 0.0
      %v3303 = vand.u32 %v2794, 4294901760
      %v3304 = vsub.f32 %v2794, %v3303
      %v3305 = vand.u32 %v3304, 4294901760
      %v3306 = vsub.f32 %v3304, %v3305
      %v3307 = vand.u32 %v3306, 4294901760
      %3308 = vmatpush1.msra.mxu0 %v3307
      %3309 = vmatprep.subr.mxu0 0.0
      %v3310 = vand.u32 %v2795, 4294901760
      %v3311 = vsub.f32 %v2795, %v3310
      %v3312 = vand.u32 %v3311, 4294901760
      %v3313 = vsub.f32 %v3311, %v3312
      %v3314 = vand.u32 %v3313, 4294901760
      %3315 = vmatpush1.msra.mxu0 %v3314
      %3316 = vmatprep.subr.mxu0 0.0
      %3317 = vmatpush1.msra.mxu0 0.0
      %3318 = vmatprep.subr.mxu0 0.0
      %3319 = vmatpush1.msra.mxu0 0.0
      %3320 = vmatprep.subr.mxu0 0.0
      %3321 = vmatpush1.msra.mxu0 0.0
      %3322 = vmatprep.subr.mxu0 0.0
      %3323 = vmatpush1.msra.mxu0 0.0
      %3324 = vmatprep.subr.mxu0 0.0
      %3325 = vmatpush1.msra.mxu0 0.0
      %3326 = vmatprep.subr.mxu0 0.0
      %3327 = vmatpush1.msra.mxu0 0.0
      %3328 = vmatprep.subr.mxu0 0.0
      %3329 = vmatpush1.msra.mxu0 0.0
      %3330 = vmatprep.subr.mxu0 0.0
      %3331 = vmatpush1.msra.mxu0 0.0
      %3332 = vmatprep.subr.mxu0 0.0
      %3333 = vmatpush1.msra.mxu0 0.0
      %3334 = vmatprep.subr.mxu0 0.0
      %3335 = vmatpush1.msra.mxu0 0.0
      %3336 = vmatprep.subr.mxu0 0.0
      %3337 = vmatpush1.msra.mxu0 0.0
      %3338 = vmatprep.subr.mxu0 0.0
      %3339 = vmatpush1.msra.mxu0 0.0
      %3340 = vmatprep.subr.mxu0 0.0
      %3341 = vmatpush1.msra.mxu0 0.0
      %3342 = vmatprep.subr.mxu0 0.0
      %3343 = vmatpush1.msra.mxu0 0.0
      %3344 = vmatprep.subr.mxu0 0.0
      %3345 = vmatpush1.msra.mxu0 0.0
      %3346 = vmatprep.subr.mxu0 0.0
      %3347 = vmatpush1.msra.mxu0 0.0
      %3348 = vmatprep.subr.mxu0 0.0
      %3349 = vmatpush1.msra.mxu0 0.0
      %3350 = vmatprep.subr.mxu0 0.0
      %3351 = vmatpush1.msra.mxu0 0.0
      %3352 = vmatprep.subr.mxu0 0.0
      %3353 = vmatpush1.msra.mxu0 0.0
      %3354 = vmatprep.subr.mxu0 0.0
      %3355 = vmatpush1.msra.mxu0 0.0
      %3356 = vmatprep.subr.mxu0 0.0
      %3357 = vmatpush1.msra.mxu0 0.0
      %3358 = vmatprep.subr.mxu0 0.0
      %3359 = vmatpush1.msra.mxu0 0.0
      %3360 = vmatprep.subr.mxu0 0.0
      %3361 = vmatpush1.msra.mxu0 0.0
      %3362 = vmatprep.subr.mxu0 0.0
      %3363 = vmatpush1.msra.mxu0 0.0
      %3364 = vmatprep.subr.mxu0 0.0
      %3365 = vmatpush1.msra.mxu0 0.0
      %3366 = vmatprep.subr.mxu0 0.0
      %3367 = vmatpush1.msra.mxu0 0.0
      %3368 = vmatprep.subr.mxu0 0.0
      %3369 = vmatpush1.msra.mxu0 0.0
      %3370 = vmatprep.subr.mxu0 0.0
      %3371 = vmatpush1.msra.mxu0 0.0
      %3372 = vmatprep.mubr.f32.mxu0 0.0
      %v3373 = vand.u32 %v2804, 4294901760
      %3374 = vmatmul.mubr.f32.gmra.mrb[0].mxu0 %v3373
      %v3375 = vpop.f32.mrb[0].mxu0
      %v3376 = vadd.f32 %v2975, %v3375
      %v3377 = vpop.f32.mrb[0].mxu0
      %3378 = vmatprep.mubr.f32.mxu0 0.0
      %v3379 = vand.u32 %v2807, 4294901760
      %3380 = vmatmul.mubr.f32.gmra.mrb[0].mxu0 %v3379
      %v3381 = vpop.f32.mrb[0].mxu0
      %v3382 = vadd.f32 %v2985, %v3381
      %v3383 = vpop.f32.mrb[0].mxu0
      %3384 = vmatprep.mubr.f32.mxu0 0.0
      %v3385 = vand.u32 %v2810, 4294901760
      %3386 = vmatmul.mubr.f32.gmra.mrb[0].mxu0 %v3385
      %v3387 = vpop.f32.mrb[0].mxu0
      %v3388 = vadd.f32 %v2995, %v3387
      %v3389 = vpop.f32.mrb[0].mxu0
      %3390 = vmatprep.mubr.f32.mxu0 0.0
      %v3391 = vand.u32 %v2813, 4294901760
      %3392 = vmatmul.mubr.f32.gmra.mrb[0].mxu0 %v3391
      %v3393 = vpop.f32.mrb[0].mxu0
      %v3394 = vadd.f32 %v3005, %v3393
      %v3395 = vpop.f32.mrb[0].mxu0
      %3396 = vmatprep.mubr.f32.mxu0 0.0
      %v3397 = vand.u32 %v2816, 4294901760
      %3398 = vmatmul.mubr.f32.gmra.mrb[0].mxu0 %v3397
      %v3399 = vpop.f32.mrb[0].mxu0
      %v3400 = vadd.f32 %v3015, %v3399
      %v3401 = vpop.f32.mrb[0].mxu0
      %3402 = vmatprep.mubr.f32.mxu0 0.0
      %v3403 = vand.u32 %v2819, 4294901760
      %3404 = vmatmul.mubr.f32.gmra.mrb[0].mxu0 %v3403
      %v3405 = vpop.f32.mrb[0].mxu0
      %v3406 = vadd.f32 %v3025, %v3405
      %v3407 = vpop.f32.mrb[0].mxu0
      %3408 = vmatprep.mubr.f32.mxu0 0.0
      %v3409 = vand.u32 %v2822, 4294901760
      %3410 = vmatmul.mubr.f32.gmra.mrb[0].mxu0 %v3409
      %v3411 = vpop.f32.mrb[0].mxu0
      %v3412 = vadd.f32 %v3035, %v3411
      %v3413 = vpop.f32.mrb[0].mxu0
      %3414 = vmatprep.mubr.f32.mxu0 0.0
      %v3415 = vand.u32 %v2825, 4294901760
      %3416 = vmatmul.mubr.f32.gmra.mrb[0].mxu0 %v3415
      %v3417 = vpop.f32.mrb[0].mxu0
      %v3418 = vadd.f32 %v3045, %v3417
      %v3419 = vpop.f32.mrb[0].mxu0
      %3420 = vmatprep.mubr.f32.mxu0 0.0
      %v3421 = vand.u32 %v2828, 4294901760
      %3422 = vmatmul.mubr.f32.gmra.mrb[0].mxu0 %v3421
      %v3423 = vpop.f32.mrb[0].mxu0
      %v3424 = vadd.f32 %v3055, %v3423
      %v3425 = vpop.f32.mrb[0].mxu0
      %3426 = vmatprep.mubr.f32.mxu0 0.0
      %v3427 = vand.u32 %v2831, 4294901760
      %3428 = vmatmul.mubr.f32.gmra.mrb[0].mxu0 %v3427
      %v3429 = vpop.f32.mrb[0].mxu0
      %v3430 = vadd.f32 %v3065, %v3429
      %v3431 = vpop.f32.mrb[0].mxu0
      %3432 = vmatprep.mubr.f32.mxu0 0.0
      %v3433 = vand.u32 %v2834, 4294901760
      %3434 = vmatmul.mubr.f32.gmra.mrb[0].mxu0 %v3433
      %v3435 = vpop.f32.mrb[0].mxu0
      %v3436 = vadd.f32 %v3075, %v3435
      %v3437 = vpop.f32.mrb[0].mxu0
      %3438 = vmatprep.mubr.f32.mxu0 0.0
      %v3439 = vand.u32 %v2837, 4294901760
      %3440 = vmatmul.mubr.f32.gmra.mrb[0].mxu0 %v3439
      %v3441 = vpop.f32.mrb[0].mxu0
      %v3442 = vadd.f32 %v3085, %v3441
      %v3443 = vpop.f32.mrb[0].mxu0
      %3444 = vmatprep.mubr.f32.mxu0 0.0
      %v3445 = vand.u32 %v2840, 4294901760
      %3446 = vmatmul.mubr.f32.gmra.mrb[0].mxu0 %v3445
      %v3447 = vpop.f32.mrb[0].mxu0
      %v3448 = vadd.f32 %v3095, %v3447
      %v3449 = vpop.f32.mrb[0].mxu0
      %3450 = vmatprep.mubr.f32.mxu0 0.0
      %v3451 = vand.u32 %v2843, 4294901760
      %3452 = vmatmul.mubr.f32.gmra.mrb[0].mxu0 %v3451
      %v3453 = vpop.f32.mrb[0].mxu0
      %v3454 = vadd.f32 %v3105, %v3453
      %v3455 = vpop.f32.mrb[0].mxu0
      %3456 = vmatprep.mubr.f32.mxu0 0.0
      %v3457 = vand.u32 %v2846, 4294901760
      %3458 = vmatmul.mubr.f32.gmra.mrb[0].mxu0 %v3457
      %v3459 = vpop.f32.mrb[0].mxu0
      %v3460 = vadd.f32 %v3115, %v3459
      %v3461 = vpop.f32.mrb[0].mxu0
      %3462 = vmatprep.mubr.f32.mxu0 0.0
      %v3463 = vand.u32 %v2849, 4294901760
      %3464 = vmatmul.mubr.f32.gmra.mrb[0].mxu0 %v3463
      %v3465 = vpop.f32.mrb[0].mxu0
      %v3466 = vadd.f32 %v3125, %v3465
      %v3467 = vpop.f32.mrb[0].mxu0
      %3468 = vmatprep.mubr.f32.mxu0 0.0
      %v3469 = vand.u32 %v2852, 4294901760
      %3470 = vmatmul.mubr.f32.gmra.mrb[0].mxu0 %v3469
      %v3471 = vpop.f32.mrb[0].mxu0
      %v3472 = vadd.f32 %v3135, %v3471
      %v3473 = vpop.f32.mrb[0].mxu0
      %3474 = vmatprep.mubr.f32.mxu0 0.0
      %v3475 = vand.u32 %v2855, 4294901760
      %3476 = vmatmul.mubr.f32.gmra.mrb[0].mxu0 %v3475
      %v3477 = vpop.f32.mrb[0].mxu0
      %v3478 = vadd.f32 %v3145, %v3477
      %v3479 = vpop.f32.mrb[0].mxu0
      %3480 = vmatprep.mubr.f32.mxu0 0.0
      %v3481 = vand.u32 %v2858, 4294901760
      %3482 = vmatmul.mubr.f32.gmra.mrb[0].mxu0 %v3481
      %v3483 = vpop.f32.mrb[0].mxu0
      %v3484 = vadd.f32 %v3155, %v3483
      %v3485 = vpop.f32.mrb[0].mxu0
      %3486 = vmatprep.mubr.f32.mxu0 0.0
      %v3487 = vand.u32 %v2861, 4294901760
      %3488 = vmatmul.mubr.f32.gmra.mrb[0].mxu0 %v3487
      %v3489 = vpop.f32.mrb[0].mxu0
      %v3490 = vadd.f32 %v3165, %v3489
      %v3491 = vpop.f32.mrb[0].mxu0
      %3492 = vmatprep.mubr.f32.mxu0 0.0
      %v3493 = vand.u32 %v2864, 4294901760
      %3494 = vmatmul.mubr.f32.gmra.mrb[0].mxu0 %v3493
      %v3495 = vpop.f32.mrb[0].mxu0
      %v3496 = vadd.f32 %v3175, %v3495
      %v3497 = vpop.f32.mrb[0].mxu0
      %3498 = vmatprep.mubr.f32.mxu0 0.0
      %v3499 = vand.u32 %v2867, 4294901760
      %3500 = vmatmul.mubr.f32.gmra.mrb[0].mxu0 %v3499
      %v3501 = vpop.f32.mrb[0].mxu0
      %v3502 = vadd.f32 %v3185, %v3501
      %v3503 = vpop.f32.mrb[0].mxu0
      %3504 = vmatprep.mubr.f32.mxu0 0.0
      %v3505 = vand.u32 %v2870, 4294901760
      %3506 = vmatmul.mubr.f32.gmra.mrb[0].mxu0 %v3505
      %v3507 = vpop.f32.mrb[0].mxu0
      %v3508 = vadd.f32 %v3195, %v3507
      %v3509 = vpop.f32.mrb[0].mxu0
      %3510 = vmatprep.mubr.f32.mxu0 0.0
      %v3511 = vand.u32 %v2873, 4294901760
      %3512 = vmatmul.mubr.f32.gmra.mrb[0].mxu0 %v3511
      %v3513 = vpop.f32.mrb[0].mxu0
      %v3514 = vadd.f32 %v3205, %v3513
      %v3515 = vpop.f32.mrb[0].mxu0
      %3516 = vmatprep.mubr.f32.mxu0 0.0
      %v3517 = vand.u32 %v2876, 4294901760
      %3518 = vmatmul.mubr.f32.gmra.mrb[0].mxu0 %v3517
      %v3519 = vpop.f32.mrb[0].mxu0
      %v3520 = vadd.f32 %v3215, %v3519
      %v3521 = vpop.f32.mrb[0].mxu0
      %3522 = vmatprep.mubr.f32.mxu0 0.0
      %v3523 = vand.u32 %v2879, 4294901760
      %3524 = vmatmul.mubr.f32.gmra.mrb[0].mxu0 %v3523
      %v3525 = vpop.f32.mrb[0].mxu0
      %v3526 = vadd.f32 %v3225, %v3525
      %v3527 = vpop.f32.mrb[0].mxu0
      %3528 = vmatprep.mubr.f32.mxu0 0.0
      %v3529 = vand.u32 %v2882, 4294901760
      %3530 = vmatmul.mubr.f32.gmra.mrb[0].mxu0 %v3529
      %v3531 = vpop.f32.mrb[0].mxu0
      %v3532 = vadd.f32 %v3235, %v3531
      %v3533 = vpop.f32.mrb[0].mxu0
      %3534 = vmatprep.mubr.f32.mxu0 0.0
      %v3535 = vand.u32 %v2885, 4294901760
      %3536 = vmatmul.mubr.f32.gmra.mrb[0].mxu0 %v3535
      %v3537 = vpop.f32.mrb[0].mxu0
      %v3538 = vadd.f32 %v3245, %v3537
      %v3539 = vpop.f32.mrb[0].mxu0
      %3540 = vmatprep.mubr.f32.mxu0 0.0
      %v3541 = vand.u32 %v2888, 4294901760
      %3542 = vmatmul.mubr.f32.gmra.mrb[0].mxu0 %v3541
      %v3543 = vpop.f32.mrb[0].mxu0
      %v3544 = vadd.f32 %v3255, %v3543
      %v3545 = vpop.f32.mrb[0].mxu0
      %3546 = vmatprep.mubr.f32.mxu0 0.0
      %v3547 = vand.u32 %v2891, 4294901760
      %3548 = vmatmul.mubr.f32.gmra.mrb[0].mxu0 %v3547
      %v3549 = vpop.f32.mrb[0].mxu0
      %v3550 = vadd.f32 %v3265, %v3549
      %v3551 = vpop.f32.mrb[0].mxu0
      %3552 = vmatprep.mubr.f32.mxu0 0.0
      %v3553 = vand.u32 %v2894, 4294901760
      %3554 = vmatmul.mubr.f32.gmra.mrb[0].mxu0 %v3553
      %v3555 = vpop.f32.mrb[0].mxu0
      %v3556 = vadd.f32 %v3275, %v3555
      %v3557 = vpop.f32.mrb[0].mxu0
      %3558 = vmatprep.mubr.f32.mxu0 0.0
      %v3559 = vand.u32 %v2897, 4294901760
      %3560 = vmatmul.mubr.f32.gmra.mrb[0].mxu0 %v3559
      %v3561 = vpop.f32.mrb[0].mxu0
      %v3562 = vadd.f32 %v3285, %v3561
      %v3563 = vpop.f32.mrb[0].mxu0
      %3564 = vdwg.mxu0
      %3565 = vmatprep.subr.mxu0 0.0
      %v3566 = vand.u32 %v2792, 4294901760
      %v3567 = vsub.f32 %v2792, %v3566
      %3568 = vmatpush1.msra.mxu0 %v3567
      %3569 = vmatprep.subr.mxu0 0.0
      %v3570 = vand.u32 %v2793, 4294901760
      %v3571 = vsub.f32 %v2793, %v3570
      %3572 = vmatpush1.msra.mxu0 %v3571
      %3573 = vmatprep.subr.mxu0 0.0
      %v3574 = vand.u32 %v2794, 4294901760
      %v3575 = vsub.f32 %v2794, %v3574
      %3576 = vmatpush1.msra.mxu0 %v3575
      %3577 = vmatprep.subr.mxu0 0.0
      %v3578 = vand.u32 %v2795, 4294901760
      %v3579 = vsub.f32 %v2795, %v3578
      %3580 = vmatpush1.msra.mxu0 %v3579
      %3581 = vmatprep.subr.mxu0 0.0
      %3582 = vmatpush1.msra.mxu0 0.0
      %3583 = vmatprep.subr.mxu0 0.0
      %3584 = vmatpush1.msra.mxu0 0.0
      %3585 = vmatprep.subr.mxu0 0.0
      %3586 = vmatpush1.msra.mxu0 0.0
      %3587 = vmatprep.subr.mxu0 0.0
      %3588 = vmatpush1.msra.mxu0 0.0
      %3589 = vmatprep.subr.mxu0 0.0
      %3590 = vmatpush1.msra.mxu0 0.0
      %3591 = vmatprep.subr.mxu0 0.0
      %3592 = vmatpush1.msra.mxu0 0.0
      %3593 = vmatprep.subr.mxu0 0.0
      %3594 = vmatpush1.msra.mxu0 0.0
      %3595 = vmatprep.subr.mxu0 0.0
      %3596 = vmatpush1.msra.mxu0 0.0
      %3597 = vmatprep.subr.mxu0 0.0
      %3598 = vmatpush1.msra.mxu0 0.0
      %3599 = vmatprep.subr.mxu0 0.0
      %3600 = vmatpush1.msra.mxu0 0.0
      %3601 = vmatprep.subr.mxu0 0.0
      %3602 = vmatpush1.msra.mxu0 0.0
      %3603 = vmatprep.subr.mxu0 0.0
      %3604 = vmatpush1.msra.mxu0 0.0
      %3605 = vmatprep.subr.mxu0 0.0
      %3606 = vmatpush1.msra.mxu0 0.0
      %3607 = vmatprep.subr.mxu0 0.0
      %3608 = vmatpush1.msra.mxu0 0.0
      %3609 = vmatprep.subr.mxu0 0.0
      %3610 = vmatpush1.msra.mxu0 0.0
      %3611 = vmatprep.subr.mxu0 0.0
      %3612 = vmatpush1.msra.mxu0 0.0
      %3613 = vmatprep.subr.mxu0 0.0
      %3614 = vmatpush1.msra.mxu0 0.0
      %3615 = vmatprep.subr.mxu0 0.0
      %3616 = vmatpush1.msra.mxu0 0.0
      %3617 = vmatprep.subr.mxu0 0.0
      %3618 = vmatpush1.msra.mxu0 0.0
      %3619 = vmatprep.subr.mxu0 0.0
      %3620 = vmatpush1.msra.mxu0 0.0
      %3621 = vmatprep.subr.mxu0 0.0
      %3622 = vmatpush1.msra.mxu0 0.0
      %3623 = vmatprep.subr.mxu0 0.0
      %3624 = vmatpush1.msra.mxu0 0.0
      %3625 = vmatprep.subr.mxu0 0.0
      %3626 = vmatpush1.msra.mxu0 0.0
      %3627 = vmatprep.subr.mxu0 0.0
      %3628 = vmatpush1.msra.mxu0 0.0
      %3629 = vmatprep.subr.mxu0 0.0
      %3630 = vmatpush1.msra.mxu0 0.0
      %3631 = vmatprep.subr.mxu0 0.0
      %3632 = vmatpush1.msra.mxu0 0.0
      %3633 = vmatprep.subr.mxu0 0.0
      %3634 = vmatpush1.msra.mxu0 0.0
      %3635 = vmatprep.subr.mxu0 0.0
      %3636 = vmatpush1.msra.mxu0 0.0
      %3637 = vmatprep.mubr.f32.mxu0 0.0
      %v3638 = vand.u32 %v2804, 4294901760
      %v3639 = vsub.f32 %v2804, %v3638
      %3640 = vmatmul.mubr.f32.gmra.mrb[0].mxu0 %v3639
      %v3641 = vpop.f32.mrb[0].mxu0
      %v3642 = vadd.f32 %v3376, %v3641
      %v3643 = vpop.f32.mrb[0].mxu0
      %3644 = vmatprep.mubr.f32.mxu0 0.0
      %v3645 = vand.u32 %v2807, 4294901760
      %v3646 = vsub.f32 %v2807, %v3645
      %3647 = vmatmul.mubr.f32.gmra.mrb[0].mxu0 %v3646
      %v3648 = vpop.f32.mrb[0].mxu0
      %v3649 = vadd.f32 %v3382, %v3648
      %v3650 = vpop.f32.mrb[0].mxu0
      %3651 = vmatprep.mubr.f32.mxu0 0.0
      %v3652 = vand.u32 %v2810, 4294901760
      %v3653 = vsub.f32 %v2810, %v3652
      %3654 = vmatmul.mubr.f32.gmra.mrb[0].mxu0 %v3653
      %v3655 = vpop.f32.mrb[0].mxu0
      %v3656 = vadd.f32 %v3388, %v3655
      %v3657 = vpop.f32.mrb[0].mxu0
      %3658 = vmatprep.mubr.f32.mxu0 0.0
      %v3659 = vand.u32 %v2813, 4294901760
      %v3660 = vsub.f32 %v2813, %v3659
      %3661 = vmatmul.mubr.f32.gmra.mrb[0].mxu0 %v3660
      %v3662 = vpop.f32.mrb[0].mxu0
      %v3663 = vadd.f32 %v3394, %v3662
      %v3664 = vpop.f32.mrb[0].mxu0
      %3665 = vmatprep.mubr.f32.mxu0 0.0
      %v3666 = vand.u32 %v2816, 4294901760
      %v3667 = vsub.f32 %v2816, %v3666
      %3668 = vmatmul.mubr.f32.gmra.mrb[0].mxu0 %v3667
      %v3669 = vpop.f32.mrb[0].mxu0
      %v3670 = vadd.f32 %v3400, %v3669
      %v3671 = vpop.f32.mrb[0].mxu0
      %3672 = vmatprep.mubr.f32.mxu0 0.0
      %v3673 = vand.u32 %v2819, 4294901760
      %v3674 = vsub.f32 %v2819, %v3673
      %3675 = vmatmul.mubr.f32.gmra.mrb[0].mxu0 %v3674
      %v3676 = vpop.f32.mrb[0].mxu0
      %v3677 = vadd.f32 %v3406, %v3676
      %v3678 = vpop.f32.mrb[0].mxu0
      %3679 = vmatprep.mubr.f32.mxu0 0.0
      %v3680 = vand.u32 %v2822, 4294901760
      %v3681 = vsub.f32 %v2822, %v3680
      %3682 = vmatmul.mubr.f32.gmra.mrb[0].mxu0 %v3681
      %v3683 = vpop.f32.mrb[0].mxu0
      %v3684 = vadd.f32 %v3412, %v3683
      %v3685 = vpop.f32.mrb[0].mxu0
      %3686 = vmatprep.mubr.f32.mxu0 0.0
      %v3687 = vand.u32 %v2825, 4294901760
      %v3688 = vsub.f32 %v2825, %v3687
      %3689 = vmatmul.mubr.f32.gmra.mrb[0].mxu0 %v3688
      %v3690 = vpop.f32.mrb[0].mxu0
      %v3691 = vadd.f32 %v3418, %v3690
      %v3692 = vpop.f32.mrb[0].mxu0
      %3693 = vmatprep.mubr.f32.mxu0 0.0
      %v3694 = vand.u32 %v2828, 4294901760
      %v3695 = vsub.f32 %v2828, %v3694
      %3696 = vmatmul.mubr.f32.gmra.mrb[0].mxu0 %v3695
      %v3697 = vpop.f32.mrb[0].mxu0
      %v3698 = vadd.f32 %v3424, %v3697
      %v3699 = vpop.f32.mrb[0].mxu0
      %3700 = vmatprep.mubr.f32.mxu0 0.0
      %v3701 = vand.u32 %v2831, 4294901760
      %v3702 = vsub.f32 %v2831, %v3701
      %3703 = vmatmul.mubr.f32.gmra.mrb[0].mxu0 %v3702
      %v3704 = vpop.f32.mrb[0].mxu0
      %v3705 = vadd.f32 %v3430, %v3704
      %v3706 = vpop.f32.mrb[0].mxu0
      %3707 = vmatprep.mubr.f32.mxu0 0.0
      %v3708 = vand.u32 %v2834, 4294901760
      %v3709 = vsub.f32 %v2834, %v3708
      %3710 = vmatmul.mubr.f32.gmra.mrb[0].mxu0 %v3709
      %v3711 = vpop.f32.mrb[0].mxu0
      %v3712 = vadd.f32 %v3436, %v3711
      %v3713 = vpop.f32.mrb[0].mxu0
      %3714 = vmatprep.mubr.f32.mxu0 0.0
      %v3715 = vand.u32 %v2837, 4294901760
      %v3716 = vsub.f32 %v2837, %v3715
      %3717 = vmatmul.mubr.f32.gmra.mrb[0].mxu0 %v3716
      %v3718 = vpop.f32.mrb[0].mxu0
      %v3719 = vadd.f32 %v3442, %v3718
      %v3720 = vpop.f32.mrb[0].mxu0
      %3721 = vmatprep.mubr.f32.mxu0 0.0
      %v3722 = vand.u32 %v2840, 4294901760
      %v3723 = vsub.f32 %v2840, %v3722
      %3724 = vmatmul.mubr.f32.gmra.mrb[0].mxu0 %v3723
      %v3725 = vpop.f32.mrb[0].mxu0
      %v3726 = vadd.f32 %v3448, %v3725
      %v3727 = vpop.f32.mrb[0].mxu0
      %3728 = vmatprep.mubr.f32.mxu0 0.0
      %v3729 = vand.u32 %v2843, 4294901760
      %v3730 = vsub.f32 %v2843, %v3729
      %3731 = vmatmul.mubr.f32.gmra.mrb[0].mxu0 %v3730
      %v3732 = vpop.f32.mrb[0].mxu0
      %v3733 = vadd.f32 %v3454, %v3732
      %v3734 = vpop.f32.mrb[0].mxu0
      %3735 = vmatprep.mubr.f32.mxu0 0.0
      %v3736 = vand.u32 %v2846, 4294901760
      %v3737 = vsub.f32 %v2846, %v3736
      %3738 = vmatmul.mubr.f32.gmra.mrb[0].mxu0 %v3737
      %v3739 = vpop.f32.mrb[0].mxu0
      %v3740 = vadd.f32 %v3460, %v3739
      %v3741 = vpop.f32.mrb[0].mxu0
      %3742 = vmatprep.mubr.f32.mxu0 0.0
      %v3743 = vand.u32 %v2849, 4294901760
      %v3744 = vsub.f32 %v2849, %v3743
      %3745 = vmatmul.mubr.f32.gmra.mrb[0].mxu0 %v3744
      %v3746 = vpop.f32.mrb[0].mxu0
      %v3747 = vadd.f32 %v3466, %v3746
      %v3748 = vpop.f32.mrb[0].mxu0
      %3749 = vmatprep.mubr.f32.mxu0 0.0
      %v3750 = vand.u32 %v2852, 4294901760
      %v3751 = vsub.f32 %v2852, %v3750
      %3752 = vmatmul.mubr.f32.gmra.mrb[0].mxu0 %v3751
      %v3753 = vpop.f32.mrb[0].mxu0
      %v3754 = vadd.f32 %v3472, %v3753
      %v3755 = vpop.f32.mrb[0].mxu0
      %3756 = vmatprep.mubr.f32.mxu0 0.0
      %v3757 = vand.u32 %v2855, 4294901760
      %v3758 = vsub.f32 %v2855, %v3757
      %3759 = vmatmul.mubr.f32.gmra.mrb[0].mxu0 %v3758
      %v3760 = vpop.f32.mrb[0].mxu0
      %v3761 = vadd.f32 %v3478, %v3760
      %v3762 = vpop.f32.mrb[0].mxu0
      %3763 = vmatprep.mubr.f32.mxu0 0.0
      %v3764 = vand.u32 %v2858, 4294901760
      %v3765 = vsub.f32 %v2858, %v3764
      %3766 = vmatmul.mubr.f32.gmra.mrb[0].mxu0 %v3765
      %v3767 = vpop.f32.mrb[0].mxu0
      %v3768 = vadd.f32 %v3484, %v3767
      %v3769 = vpop.f32.mrb[0].mxu0
      %3770 = vmatprep.mubr.f32.mxu0 0.0
      %v3771 = vand.u32 %v2861, 4294901760
      %v3772 = vsub.f32 %v2861, %v3771
      %3773 = vmatmul.mubr.f32.gmra.mrb[0].mxu0 %v3772
      %v3774 = vpop.f32.mrb[0].mxu0
      %v3775 = vadd.f32 %v3490, %v3774
      %v3776 = vpop.f32.mrb[0].mxu0
      %3777 = vmatprep.mubr.f32.mxu0 0.0
      %v3778 = vand.u32 %v2864, 4294901760
      %v3779 = vsub.f32 %v2864, %v3778
      %3780 = vmatmul.mubr.f32.gmra.mrb[0].mxu0 %v3779
      %v3781 = vpop.f32.mrb[0].mxu0
      %v3782 = vadd.f32 %v3496, %v3781
      %v3783 = vpop.f32.mrb[0].mxu0
      %3784 = vmatprep.mubr.f32.mxu0 0.0
      %v3785 = vand.u32 %v2867, 4294901760
      %v3786 = vsub.f32 %v2867, %v3785
      %3787 = vmatmul.mubr.f32.gmra.mrb[0].mxu0 %v3786
      %v3788 = vpop.f32.mrb[0].mxu0
      %v3789 = vadd.f32 %v3502, %v3788
      %v3790 = vpop.f32.mrb[0].mxu0
      %3791 = vmatprep.mubr.f32.mxu0 0.0
      %v3792 = vand.u32 %v2870, 4294901760
      %v3793 = vsub.f32 %v2870, %v3792
      %3794 = vmatmul.mubr.f32.gmra.mrb[0].mxu0 %v3793
      %v3795 = vpop.f32.mrb[0].mxu0
      %v3796 = vadd.f32 %v3508, %v3795
      %v3797 = vpop.f32.mrb[0].mxu0
      %3798 = vmatprep.mubr.f32.mxu0 0.0
      %v3799 = vand.u32 %v2873, 4294901760
      %v3800 = vsub.f32 %v2873, %v3799
      %3801 = vmatmul.mubr.f32.gmra.mrb[0].mxu0 %v3800
      %v3802 = vpop.f32.mrb[0].mxu0
      %v3803 = vadd.f32 %v3514, %v3802
      %v3804 = vpop.f32.mrb[0].mxu0
      %3805 = vmatprep.mubr.f32.mxu0 0.0
      %v3806 = vand.u32 %v2876, 4294901760
      %v3807 = vsub.f32 %v2876, %v3806
      %3808 = vmatmul.mubr.f32.gmra.mrb[0].mxu0 %v3807
      %v3809 = vpop.f32.mrb[0].mxu0
      %v3810 = vadd.f32 %v3520, %v3809
      %v3811 = vpop.f32.mrb[0].mxu0
      %3812 = vmatprep.mubr.f32.mxu0 0.0
      %v3813 = vand.u32 %v2879, 4294901760
      %v3814 = vsub.f32 %v2879, %v3813
      %3815 = vmatmul.mubr.f32.gmra.mrb[0].mxu0 %v3814
      %v3816 = vpop.f32.mrb[0].mxu0
      %v3817 = vadd.f32 %v3526, %v3816
      %v3818 = vpop.f32.mrb[0].mxu0
      %3819 = vmatprep.mubr.f32.mxu0 0.0
      %v3820 = vand.u32 %v2882, 4294901760
      %v3821 = vsub.f32 %v2882, %v3820
      %3822 = vmatmul.mubr.f32.gmra.mrb[0].mxu0 %v3821
      %v3823 = vpop.f32.mrb[0].mxu0
      %v3824 = vadd.f32 %v3532, %v3823
      %v3825 = vpop.f32.mrb[0].mxu0
      %3826 = vmatprep.mubr.f32.mxu0 0.0
      %v3827 = vand.u32 %v2885, 4294901760
      %v3828 = vsub.f32 %v2885, %v3827
      %3829 = vmatmul.mubr.f32.gmra.mrb[0].mxu0 %v3828
      %v3830 = vpop.f32.mrb[0].mxu0
      %v3831 = vadd.f32 %v3538, %v3830
      %v3832 = vpop.f32.mrb[0].mxu0
      %3833 = vmatprep.mubr.f32.mxu0 0.0
      %v3834 = vand.u32 %v2888, 4294901760
      %v3835 = vsub.f32 %v2888, %v3834
      %3836 = vmatmul.mubr.f32.gmra.mrb[0].mxu0 %v3835
      %v3837 = vpop.f32.mrb[0].mxu0
      %v3838 = vadd.f32 %v3544, %v3837
      %v3839 = vpop.f32.mrb[0].mxu0
      %3840 = vmatprep.mubr.f32.mxu0 0.0
      %v3841 = vand.u32 %v2891, 4294901760
      %v3842 = vsub.f32 %v2891, %v3841
      %3843 = vmatmul.mubr.f32.gmra.mrb[0].mxu0 %v3842
      %v3844 = vpop.f32.mrb[0].mxu0
      %v3845 = vadd.f32 %v3550, %v3844
      %v3846 = vpop.f32.mrb[0].mxu0
      %3847 = vmatprep.mubr.f32.mxu0 0.0
      %v3848 = vand.u32 %v2894, 4294901760
      %v3849 = vsub.f32 %v2894, %v3848
      %3850 = vmatmul.mubr.f32.gmra.mrb[0].mxu0 %v3849
      %v3851 = vpop.f32.mrb[0].mxu0
      %v3852 = vadd.f32 %v3556, %v3851
      %v3853 = vpop.f32.mrb[0].mxu0
      %3854 = vmatprep.mubr.f32.mxu0 0.0
      %v3855 = vand.u32 %v2897, 4294901760
      %v3856 = vsub.f32 %v2897, %v3855
      %3857 = vmatmul.mubr.f32.gmra.mrb[0].mxu0 %v3856
      %v3858 = vpop.f32.mrb[0].mxu0
      %v3859 = vadd.f32 %v3562, %v3858
      %v3860 = vpop.f32.mrb[0].mxu0
      %3861 = vdwg.mxu0
      %3862 = vmatprep.subr.mxu0 0.0
      %v3863 = vand.u32 %v2792, 4294901760
      %3864 = vmatpush1.msra.mxu0 %v3863
      %3865 = vmatprep.subr.mxu0 0.0
      %v3866 = vand.u32 %v2793, 4294901760
      %3867 = vmatpush1.msra.mxu0 %v3866
      %3868 = vmatprep.subr.mxu0 0.0
      %v3869 = vand.u32 %v2794, 4294901760
      %3870 = vmatpush1.msra.mxu0 %v3869
      %3871 = vmatprep.subr.mxu0 0.0
      %v3872 = vand.u32 %v2795, 4294901760
      %3873 = vmatpush1.msra.mxu0 %v3872
      %3874 = vmatprep.subr.mxu0 0.0
      %3875 = vmatpush1.msra.mxu0 0.0
      %3876 = vmatprep.subr.mxu0 0.0
      %3877 = vmatpush1.msra.mxu0 0.0
      %3878 = vmatprep.subr.mxu0 0.0
      %3879 = vmatpush1.msra.mxu0 0.0
      %3880 = vmatprep.subr.mxu0 0.0
      %3881 = vmatpush1.msra.mxu0 0.0
      %3882 = vmatprep.subr.mxu0 0.0
      %3883 = vmatpush1.msra.mxu0 0.0
      %3884 = vmatprep.subr.mxu0 0.0
      %3885 = vmatpush1.msra.mxu0 0.0
      %3886 = vmatprep.subr.mxu0 0.0
      %3887 = vmatpush1.msra.mxu0 0.0
      %3888 = vmatprep.subr.mxu0 0.0
      %3889 = vmatpush1.msra.mxu0 0.0
      %3890 = vmatprep.subr.mxu0 0.0
      %3891 = vmatpush1.msra.mxu0 0.0
      %3892 = vmatprep.subr.mxu0 0.0
      %3893 = vmatpush1.msra.mxu0 0.0
      %3894 = vmatprep.subr.mxu0 0.0
      %3895 = vmatpush1.msra.mxu0 0.0
      %3896 = vmatprep.subr.mxu0 0.0
      %3897 = vmatpush1.msra.mxu0 0.0
      %3898 = vmatprep.subr.mxu0 0.0
      %3899 = vmatpush1.msra.mxu0 0.0
      %3900 = vmatprep.subr.mxu0 0.0
      %3901 = vmatpush1.msra.mxu0 0.0
      %3902 = vmatprep.subr.mxu0 0.0
      %3903 = vmatpush1.msra.mxu0 0.0
      %3904 = vmatprep.subr.mxu0 0.0
      %3905 = vmatpush1.msra.mxu0 0.0
      %3906 = vmatprep.subr.mxu0 0.0
      %3907 = vmatpush1.msra.mxu0 0.0
      %3908 = vmatprep.subr.mxu0 0.0
      %3909 = vmatpush1.msra.mxu0 0.0
      %3910 = vmatprep.subr.mxu0 0.0
      %3911 = vmatpush1.msra.mxu0 0.0
      %3912 = vmatprep.subr.mxu0 0.0
      %3913 = vmatpush1.msra.mxu0 0.0
      %3914 = vmatprep.subr.mxu0 0.0
      %3915 = vmatpush1.msra.mxu0 0.0
      %3916 = vmatprep.subr.mxu0 0.0
      %3917 = vmatpush1.msra.mxu0 0.0
      %3918 = vmatprep.subr.mxu0 0.0
      %3919 = vmatpush1.msra.mxu0 0.0
      %3920 = vmatprep.subr.mxu0 0.0
      %3921 = vmatpush1.msra.mxu0 0.0
      %3922 = vmatprep.subr.mxu0 0.0
      %3923 = vmatpush1.msra.mxu0 0.0
      %3924 = vmatprep.subr.mxu0 0.0
      %3925 = vmatpush1.msra.mxu0 0.0
      %3926 = vmatprep.subr.mxu0 0.0
      %3927 = vmatpush1.msra.mxu0 0.0
      %3928 = vmatprep.subr.mxu0 0.0
      %3929 = vmatpush1.msra.mxu0 0.0
      %3930 = vmatprep.mubr.f32.mxu0 0.0
      %v3931 = vand.u32 %v2804, 4294901760
      %v3932 = vsub.f32 %v2804, %v3931
      %v3933 = vand.u32 %v3932, 4294901760
      %3934 = vmatmul.mubr.f32.gmra.mrb[0].mxu0 %v3933
      %v3935 = vpop.f32.mrb[0].mxu0
      %v3936 = vadd.f32 %v3642, %v3935
      %v3937 = vpop.f32.mrb[0].mxu0
      %3938 = vmatprep.mubr.f32.mxu0 0.0
      %v3939 = vand.u32 %v2807, 4294901760
      %v3940 = vsub.f32 %v2807, %v3939
      %v3941 = vand.u32 %v3940, 4294901760
      %3942 = vmatmul.mubr.f32.gmra.mrb[0].mxu0 %v3941
      %v3943 = vpop.f32.mrb[0].mxu0
      %v3944 = vadd.f32 %v3649, %v3943
      %v3945 = vpop.f32.mrb[0].mxu0
      %3946 = vmatprep.mubr.f32.mxu0 0.0
      %v3947 = vand.u32 %v2810, 4294901760
      %v3948 = vsub.f32 %v2810, %v3947
      %v3949 = vand.u32 %v3948, 4294901760
      %3950 = vmatmul.mubr.f32.gmra.mrb[0].mxu0 %v3949
      %v3951 = vpop.f32.mrb[0].mxu0
      %v3952 = vadd.f32 %v3656, %v3951
      %v3953 = vpop.f32.mrb[0].mxu0
      %3954 = vmatprep.mubr.f32.mxu0 0.0
      %v3955 = vand.u32 %v2813, 4294901760
      %v3956 = vsub.f32 %v2813, %v3955
      %v3957 = vand.u32 %v3956, 4294901760
      %3958 = vmatmul.mubr.f32.gmra.mrb[0].mxu0 %v3957
      %v3959 = vpop.f32.mrb[0].mxu0
      %v3960 = vadd.f32 %v3663, %v3959
      %v3961 = vpop.f32.mrb[0].mxu0
      %3962 = vmatprep.mubr.f32.mxu0 0.0
      %v3963 = vand.u32 %v2816, 4294901760
      %v3964 = vsub.f32 %v2816, %v3963
      %v3965 = vand.u32 %v3964, 4294901760
      %3966 = vmatmul.mubr.f32.gmra.mrb[0].mxu0 %v3965
      %v3967 = vpop.f32.mrb[0].mxu0
      %v3968 = vadd.f32 %v3670, %v3967
      %v3969 = vpop.f32.mrb[0].mxu0
      %3970 = vmatprep.mubr.f32.mxu0 0.0
      %v3971 = vand.u32 %v2819, 4294901760
      %v3972 = vsub.f32 %v2819, %v3971
      %v3973 = vand.u32 %v3972, 4294901760
      %3974 = vmatmul.mubr.f32.gmra.mrb[0].mxu0 %v3973
      %v3975 = vpop.f32.mrb[0].mxu0
      %v3976 = vadd.f32 %v3677, %v3975
      %v3977 = vpop.f32.mrb[0].mxu0
      %3978 = vmatprep.mubr.f32.mxu0 0.0
      %v3979 = vand.u32 %v2822, 4294901760
      %v3980 = vsub.f32 %v2822, %v3979
      %v3981 = vand.u32 %v3980, 4294901760
      %3982 = vmatmul.mubr.f32.gmra.mrb[0].mxu0 %v3981
      %v3983 = vpop.f32.mrb[0].mxu0
      %v3984 = vadd.f32 %v3684, %v3983
      %v3985 = vpop.f32.mrb[0].mxu0
      %3986 = vmatprep.mubr.f32.mxu0 0.0
      %v3987 = vand.u32 %v2825, 4294901760
      %v3988 = vsub.f32 %v2825, %v3987
      %v3989 = vand.u32 %v3988, 4294901760
      %3990 = vmatmul.mubr.f32.gmra.mrb[0].mxu0 %v3989
      %v3991 = vpop.f32.mrb[0].mxu0
      %v3992 = vadd.f32 %v3691, %v3991
      %v3993 = vpop.f32.mrb[0].mxu0
      %3994 = vmatprep.mubr.f32.mxu0 0.0
      %v3995 = vand.u32 %v2828, 4294901760
      %v3996 = vsub.f32 %v2828, %v3995
      %v3997 = vand.u32 %v3996, 4294901760
      %3998 = vmatmul.mubr.f32.gmra.mrb[0].mxu0 %v3997
      %v3999 = vpop.f32.mrb[0].mxu0
      %v4000 = vadd.f32 %v3698, %v3999
      %v4001 = vpop.f32.mrb[0].mxu0
      %4002 = vmatprep.mubr.f32.mxu0 0.0
      %v4003 = vand.u32 %v2831, 4294901760
      %v4004 = vsub.f32 %v2831, %v4003
      %v4005 = vand.u32 %v4004, 4294901760
      %4006 = vmatmul.mubr.f32.gmra.mrb[0].mxu0 %v4005
      %v4007 = vpop.f32.mrb[0].mxu0
      %v4008 = vadd.f32 %v3705, %v4007
      %v4009 = vpop.f32.mrb[0].mxu0
      %4010 = vmatprep.mubr.f32.mxu0 0.0
      %v4011 = vand.u32 %v2834, 4294901760
      %v4012 = vsub.f32 %v2834, %v4011
      %v4013 = vand.u32 %v4012, 4294901760
      %4014 = vmatmul.mubr.f32.gmra.mrb[0].mxu0 %v4013
      %v4015 = vpop.f32.mrb[0].mxu0
      %v4016 = vadd.f32 %v3712, %v4015
      %v4017 = vpop.f32.mrb[0].mxu0
      %4018 = vmatprep.mubr.f32.mxu0 0.0
      %v4019 = vand.u32 %v2837, 4294901760
      %v4020 = vsub.f32 %v2837, %v4019
      %v4021 = vand.u32 %v4020, 4294901760
      %4022 = vmatmul.mubr.f32.gmra.mrb[0].mxu0 %v4021
      %v4023 = vpop.f32.mrb[0].mxu0
      %v4024 = vadd.f32 %v3719, %v4023
      %v4025 = vpop.f32.mrb[0].mxu0
      %4026 = vmatprep.mubr.f32.mxu0 0.0
      %v4027 = vand.u32 %v2840, 4294901760
      %v4028 = vsub.f32 %v2840, %v4027
      %v4029 = vand.u32 %v4028, 4294901760
      %4030 = vmatmul.mubr.f32.gmra.mrb[0].mxu0 %v4029
      %v4031 = vpop.f32.mrb[0].mxu0
      %v4032 = vadd.f32 %v3726, %v4031
      %v4033 = vpop.f32.mrb[0].mxu0
      %4034 = vmatprep.mubr.f32.mxu0 0.0
      %v4035 = vand.u32 %v2843, 4294901760
      %v4036 = vsub.f32 %v2843, %v4035
      %v4037 = vand.u32 %v4036, 4294901760
      %4038 = vmatmul.mubr.f32.gmra.mrb[0].mxu0 %v4037
      %v4039 = vpop.f32.mrb[0].mxu0
      %v4040 = vadd.f32 %v3733, %v4039
      %v4041 = vpop.f32.mrb[0].mxu0
      %4042 = vmatprep.mubr.f32.mxu0 0.0
      %v4043 = vand.u32 %v2846, 4294901760
      %v4044 = vsub.f32 %v2846, %v4043
      %v4045 = vand.u32 %v4044, 4294901760
      %4046 = vmatmul.mubr.f32.gmra.mrb[0].mxu0 %v4045
      %v4047 = vpop.f32.mrb[0].mxu0
      %v4048 = vadd.f32 %v3740, %v4047
      %v4049 = vpop.f32.mrb[0].mxu0
      %4050 = vmatprep.mubr.f32.mxu0 0.0
      %v4051 = vand.u32 %v2849, 4294901760
      %v4052 = vsub.f32 %v2849, %v4051
      %v4053 = vand.u32 %v4052, 4294901760
      %4054 = vmatmul.mubr.f32.gmra.mrb[0].mxu0 %v4053
      %v4055 = vpop.f32.mrb[0].mxu0
      %v4056 = vadd.f32 %v3747, %v4055
      %v4057 = vpop.f32.mrb[0].mxu0
      %4058 = vmatprep.mubr.f32.mxu0 0.0
      %v4059 = vand.u32 %v2852, 4294901760
      %v4060 = vsub.f32 %v2852, %v4059
      %v4061 = vand.u32 %v4060, 4294901760
      %4062 = vmatmul.mubr.f32.gmra.mrb[0].mxu0 %v4061
      %v4063 = vpop.f32.mrb[0].mxu0
      %v4064 = vadd.f32 %v3754, %v4063
      %v4065 = vpop.f32.mrb[0].mxu0
      %4066 = vmatprep.mubr.f32.mxu0 0.0
      %v4067 = vand.u32 %v2855, 4294901760
      %v4068 = vsub.f32 %v2855, %v4067
      %v4069 = vand.u32 %v4068, 4294901760
      %4070 = vmatmul.mubr.f32.gmra.mrb[0].mxu0 %v4069
      %v4071 = vpop.f32.mrb[0].mxu0
      %v4072 = vadd.f32 %v3761, %v4071
      %v4073 = vpop.f32.mrb[0].mxu0
      %4074 = vmatprep.mubr.f32.mxu0 0.0
      %v4075 = vand.u32 %v2858, 4294901760
      %v4076 = vsub.f32 %v2858, %v4075
      %v4077 = vand.u32 %v4076, 4294901760
      %4078 = vmatmul.mubr.f32.gmra.mrb[0].mxu0 %v4077
      %v4079 = vpop.f32.mrb[0].mxu0
      %v4080 = vadd.f32 %v3768, %v4079
      %v4081 = vpop.f32.mrb[0].mxu0
      %4082 = vmatprep.mubr.f32.mxu0 0.0
      %v4083 = vand.u32 %v2861, 4294901760
      %v4084 = vsub.f32 %v2861, %v4083
      %v4085 = vand.u32 %v4084, 4294901760
      %4086 = vmatmul.mubr.f32.gmra.mrb[0].mxu0 %v4085
      %v4087 = vpop.f32.mrb[0].mxu0
      %v4088 = vadd.f32 %v3775, %v4087
      %v4089 = vpop.f32.mrb[0].mxu0
      %4090 = vmatprep.mubr.f32.mxu0 0.0
      %v4091 = vand.u32 %v2864, 4294901760
      %v4092 = vsub.f32 %v2864, %v4091
      %v4093 = vand.u32 %v4092, 4294901760
      %4094 = vmatmul.mubr.f32.gmra.mrb[0].mxu0 %v4093
      %v4095 = vpop.f32.mrb[0].mxu0
      %v4096 = vadd.f32 %v3782, %v4095
      %v4097 = vpop.f32.mrb[0].mxu0
      %4098 = vmatprep.mubr.f32.mxu0 0.0
      %v4099 = vand.u32 %v2867, 4294901760
      %v4100 = vsub.f32 %v2867, %v4099
      %v4101 = vand.u32 %v4100, 4294901760
      %4102 = vmatmul.mubr.f32.gmra.mrb[0].mxu0 %v4101
      %v4103 = vpop.f32.mrb[0].mxu0
      %v4104 = vadd.f32 %v3789, %v4103
      %v4105 = vpop.f32.mrb[0].mxu0
      %4106 = vmatprep.mubr.f32.mxu0 0.0
      %v4107 = vand.u32 %v2870, 4294901760
      %v4108 = vsub.f32 %v2870, %v4107
      %v4109 = vand.u32 %v4108, 4294901760
      %4110 = vmatmul.mubr.f32.gmra.mrb[0].mxu0 %v4109
      %v4111 = vpop.f32.mrb[0].mxu0
      %v4112 = vadd.f32 %v3796, %v4111
      %v4113 = vpop.f32.mrb[0].mxu0
      %4114 = vmatprep.mubr.f32.mxu0 0.0
      %v4115 = vand.u32 %v2873, 4294901760
      %v4116 = vsub.f32 %v2873, %v4115
      %v4117 = vand.u32 %v4116, 4294901760
      %4118 = vmatmul.mubr.f32.gmra.mrb[0].mxu0 %v4117
      %v4119 = vpop.f32.mrb[0].mxu0
      %v4120 = vadd.f32 %v3803, %v4119
      %v4121 = vpop.f32.mrb[0].mxu0
      %4122 = vmatprep.mubr.f32.mxu0 0.0
      %v4123 = vand.u32 %v2876, 4294901760
      %v4124 = vsub.f32 %v2876, %v4123
      %v4125 = vand.u32 %v4124, 4294901760
      %4126 = vmatmul.mubr.f32.gmra.mrb[0].mxu0 %v4125
      %v4127 = vpop.f32.mrb[0].mxu0
      %v4128 = vadd.f32 %v3810, %v4127
      %v4129 = vpop.f32.mrb[0].mxu0
      %4130 = vmatprep.mubr.f32.mxu0 0.0
      %v4131 = vand.u32 %v2879, 4294901760
      %v4132 = vsub.f32 %v2879, %v4131
      %v4133 = vand.u32 %v4132, 4294901760
      %4134 = vmatmul.mubr.f32.gmra.mrb[0].mxu0 %v4133
      %v4135 = vpop.f32.mrb[0].mxu0
      %v4136 = vadd.f32 %v3817, %v4135
      %v4137 = vpop.f32.mrb[0].mxu0
      %4138 = vmatprep.mubr.f32.mxu0 0.0
      %v4139 = vand.u32 %v2882, 4294901760
      %v4140 = vsub.f32 %v2882, %v4139
      %v4141 = vand.u32 %v4140, 4294901760
      %4142 = vmatmul.mubr.f32.gmra.mrb[0].mxu0 %v4141
      %v4143 = vpop.f32.mrb[0].mxu0
      %v4144 = vadd.f32 %v3824, %v4143
      %v4145 = vpop.f32.mrb[0].mxu0
      %4146 = vmatprep.mubr.f32.mxu0 0.0
      %v4147 = vand.u32 %v2885, 4294901760
      %v4148 = vsub.f32 %v2885, %v4147
      %v4149 = vand.u32 %v4148, 4294901760
      %4150 = vmatmul.mubr.f32.gmra.mrb[0].mxu0 %v4149
      %v4151 = vpop.f32.mrb[0].mxu0
      %v4152 = vadd.f32 %v3831, %v4151
      %v4153 = vpop.f32.mrb[0].mxu0
      %4154 = vmatprep.mubr.f32.mxu0 0.0
      %v4155 = vand.u32 %v2888, 4294901760
      %v4156 = vsub.f32 %v2888, %v4155
      %v4157 = vand.u32 %v4156, 4294901760
      %4158 = vmatmul.mubr.f32.gmra.mrb[0].mxu0 %v4157
      %v4159 = vpop.f32.mrb[0].mxu0
      %v4160 = vadd.f32 %v3838, %v4159
      %v4161 = vpop.f32.mrb[0].mxu0
      %4162 = vmatprep.mubr.f32.mxu0 0.0
      %v4163 = vand.u32 %v2891, 4294901760
      %v4164 = vsub.f32 %v2891, %v4163
      %v4165 = vand.u32 %v4164, 4294901760
      %4166 = vmatmul.mubr.f32.gmra.mrb[0].mxu0 %v4165
      %v4167 = vpop.f32.mrb[0].mxu0
      %v4168 = vadd.f32 %v3845, %v4167
      %v4169 = vpop.f32.mrb[0].mxu0
      %4170 = vmatprep.mubr.f32.mxu0 0.0
      %v4171 = vand.u32 %v2894, 4294901760
      %v4172 = vsub.f32 %v2894, %v4171
      %v4173 = vand.u32 %v4172, 4294901760
      %4174 = vmatmul.mubr.f32.gmra.mrb[0].mxu0 %v4173
      %v4175 = vpop.f32.mrb[0].mxu0
      %v4176 = vadd.f32 %v3852, %v4175
      %v4177 = vpop.f32.mrb[0].mxu0
      %4178 = vmatprep.mubr.f32.mxu0 0.0
      %v4179 = vand.u32 %v2897, 4294901760
      %v4180 = vsub.f32 %v2897, %v4179
      %v4181 = vand.u32 %v4180, 4294901760
      %4182 = vmatmul.mubr.f32.gmra.mrb[0].mxu0 %v4181
      %v4183 = vpop.f32.mrb[0].mxu0
      %v4184 = vadd.f32 %v3859, %v4183
      %v4185 = vpop.f32.mrb[0].mxu0
      %4186 = vdwg.mxu0
      %4187 = vmatprep.subr.mxu0 0.0
      %v4188 = vand.u32 %v2792, 4294901760
      %v4189 = vsub.f32 %v2792, %v4188
      %v4190 = vand.u32 %v4189, 4294901760
      %4191 = vmatpush1.msra.mxu0 %v4190
      %4192 = vmatprep.subr.mxu0 0.0
      %v4193 = vand.u32 %v2793, 4294901760
      %v4194 = vsub.f32 %v2793, %v4193
      %v4195 = vand.u32 %v4194, 4294901760
      %4196 = vmatpush1.msra.mxu0 %v4195
      %4197 = vmatprep.subr.mxu0 0.0
      %v4198 = vand.u32 %v2794, 4294901760
      %v4199 = vsub.f32 %v2794, %v4198
      %v4200 = vand.u32 %v4199, 4294901760
      %4201 = vmatpush1.msra.mxu0 %v4200
      %4202 = vmatprep.subr.mxu0 0.0
      %v4203 = vand.u32 %v2795, 4294901760
      %v4204 = vsub.f32 %v2795, %v4203
      %v4205 = vand.u32 %v4204, 4294901760
      %4206 = vmatpush1.msra.mxu0 %v4205
      %4207 = vmatprep.subr.mxu0 0.0
      %4208 = vmatpush1.msra.mxu0 0.0
      %4209 = vmatprep.subr.mxu0 0.0
      %4210 = vmatpush1.msra.mxu0 0.0
      %4211 = vmatprep.subr.mxu0 0.0
      %4212 = vmatpush1.msra.mxu0 0.0
      %4213 = vmatprep.subr.mxu0 0.0
      %4214 = vmatpush1.msra.mxu0 0.0
      %4215 = vmatprep.subr.mxu0 0.0
      %4216 = vmatpush1.msra.mxu0 0.0
      %4217 = vmatprep.subr.mxu0 0.0
      %4218 = vmatpush1.msra.mxu0 0.0
      %4219 = vmatprep.subr.mxu0 0.0
      %4220 = vmatpush1.msra.mxu0 0.0
      %4221 = vmatprep.subr.mxu0 0.0
      %4222 = vmatpush1.msra.mxu0 0.0
      %4223 = vmatprep.subr.mxu0 0.0
      %4224 = vmatpush1.msra.mxu0 0.0
      %4225 = vmatprep.subr.mxu0 0.0
      %4226 = vmatpush1.msra.mxu0 0.0
      %4227 = vmatprep.subr.mxu0 0.0
      %4228 = vmatpush1.msra.mxu0 0.0
      %4229 = vmatprep.subr.mxu0 0.0
      %4230 = vmatpush1.msra.mxu0 0.0
      %4231 = vmatprep.subr.mxu0 0.0
      %4232 = vmatpush1.msra.mxu0 0.0
      %4233 = vmatprep.subr.mxu0 0.0
      %4234 = vmatpush1.msra.mxu0 0.0
      %4235 = vmatprep.subr.mxu0 0.0
      %4236 = vmatpush1.msra.mxu0 0.0
      %4237 = vmatprep.subr.mxu0 0.0
      %4238 = vmatpush1.msra.mxu0 0.0
      %4239 = vmatprep.subr.mxu0 0.0
      %4240 = vmatpush1.msra.mxu0 0.0
      %4241 = vmatprep.subr.mxu0 0.0
      %4242 = vmatpush1.msra.mxu0 0.0
      %4243 = vmatprep.subr.mxu0 0.0
      %4244 = vmatpush1.msra.mxu0 0.0
      %4245 = vmatprep.subr.mxu0 0.0
      %4246 = vmatpush1.msra.mxu0 0.0
      %4247 = vmatprep.subr.mxu0 0.0
      %4248 = vmatpush1.msra.mxu0 0.0
      %4249 = vmatprep.subr.mxu0 0.0
      %4250 = vmatpush1.msra.mxu0 0.0
      %4251 = vmatprep.subr.mxu0 0.0
      %4252 = vmatpush1.msra.mxu0 0.0
      %4253 = vmatprep.subr.mxu0 0.0
      %4254 = vmatpush1.msra.mxu0 0.0
      %4255 = vmatprep.subr.mxu0 0.0
      %4256 = vmatpush1.msra.mxu0 0.0
      %4257 = vmatprep.subr.mxu0 0.0
      %4258 = vmatpush1.msra.mxu0 0.0
      %4259 = vmatprep.subr.mxu0 0.0
      %4260 = vmatpush1.msra.mxu0 0.0
      %4261 = vmatprep.subr.mxu0 0.0
      %4262 = vmatpush1.msra.mxu0 0.0
      %4263 = vmatprep.mubr.f32.mxu0 0.0
      %v4264 = vand.u32 %v2804, 4294901760
      %4265 = vmatmul.mubr.f32.gmra.mrb[0].mxu0 %v4264
      %v4266 = vpop.f32.mrb[0].mxu0
      %v4267 = vadd.f32 %v3936, %v4266
      %v4268 = vpop.f32.mrb[0].mxu0
      %4269 = vmatprep.mubr.f32.mxu0 0.0
      %v4270 = vand.u32 %v2807, 4294901760
      %4271 = vmatmul.mubr.f32.gmra.mrb[0].mxu0 %v4270
      %v4272 = vpop.f32.mrb[0].mxu0
      %v4273 = vadd.f32 %v3944, %v4272
      %v4274 = vpop.f32.mrb[0].mxu0
      %4275 = vmatprep.mubr.f32.mxu0 0.0
      %v4276 = vand.u32 %v2810, 4294901760
      %4277 = vmatmul.mubr.f32.gmra.mrb[0].mxu0 %v4276
      %v4278 = vpop.f32.mrb[0].mxu0
      %v4279 = vadd.f32 %v3952, %v4278
      %v4280 = vpop.f32.mrb[0].mxu0
      %4281 = vmatprep.mubr.f32.mxu0 0.0
      %v4282 = vand.u32 %v2813, 4294901760
      %4283 = vmatmul.mubr.f32.gmra.mrb[0].mxu0 %v4282
      %v4284 = vpop.f32.mrb[0].mxu0
      %v4285 = vadd.f32 %v3960, %v4284
      %v4286 = vpop.f32.mrb[0].mxu0
      %4287 = vmatprep.mubr.f32.mxu0 0.0
      %v4288 = vand.u32 %v2816, 4294901760
      %4289 = vmatmul.mubr.f32.gmra.mrb[0].mxu0 %v4288
      %v4290 = vpop.f32.mrb[0].mxu0
      %v4291 = vadd.f32 %v3968, %v4290
      %v4292 = vpop.f32.mrb[0].mxu0
      %4293 = vmatprep.mubr.f32.mxu0 0.0
      %v4294 = vand.u32 %v2819, 4294901760
      %4295 = vmatmul.mubr.f32.gmra.mrb[0].mxu0 %v4294
      %v4296 = vpop.f32.mrb[0].mxu0
      %v4297 = vadd.f32 %v3976, %v4296
      %v4298 = vpop.f32.mrb[0].mxu0
      %4299 = vmatprep.mubr.f32.mxu0 0.0
      %v4300 = vand.u32 %v2822, 4294901760
      %4301 = vmatmul.mubr.f32.gmra.mrb[0].mxu0 %v4300
      %v4302 = vpop.f32.mrb[0].mxu0
      %v4303 = vadd.f32 %v3984, %v4302
      %v4304 = vpop.f32.mrb[0].mxu0
      %4305 = vmatprep.mubr.f32.mxu0 0.0
      %v4306 = vand.u32 %v2825, 4294901760
      %4307 = vmatmul.mubr.f32.gmra.mrb[0].mxu0 %v4306
      %v4308 = vpop.f32.mrb[0].mxu0
      %v4309 = vadd.f32 %v3992, %v4308
      %v4310 = vpop.f32.mrb[0].mxu0
      %4311 = vmatprep.mubr.f32.mxu0 0.0
      %v4312 = vand.u32 %v2828, 4294901760
      %4313 = vmatmul.mubr.f32.gmra.mrb[0].mxu0 %v4312
      %v4314 = vpop.f32.mrb[0].mxu0
      %v4315 = vadd.f32 %v4000, %v4314
      %v4316 = vpop.f32.mrb[0].mxu0
      %4317 = vmatprep.mubr.f32.mxu0 0.0
      %v4318 = vand.u32 %v2831, 4294901760
      %4319 = vmatmul.mubr.f32.gmra.mrb[0].mxu0 %v4318
      %v4320 = vpop.f32.mrb[0].mxu0
      %v4321 = vadd.f32 %v4008, %v4320
      %v4322 = vpop.f32.mrb[0].mxu0
      %4323 = vmatprep.mubr.f32.mxu0 0.0
      %v4324 = vand.u32 %v2834, 4294901760
      %4325 = vmatmul.mubr.f32.gmra.mrb[0].mxu0 %v4324
      %v4326 = vpop.f32.mrb[0].mxu0
      %v4327 = vadd.f32 %v4016, %v4326
      %v4328 = vpop.f32.mrb[0].mxu0
      %4329 = vmatprep.mubr.f32.mxu0 0.0
      %v4330 = vand.u32 %v2837, 4294901760
      %4331 = vmatmul.mubr.f32.gmra.mrb[0].mxu0 %v4330
      %v4332 = vpop.f32.mrb[0].mxu0
      %v4333 = vadd.f32 %v4024, %v4332
      %v4334 = vpop.f32.mrb[0].mxu0
      %4335 = vmatprep.mubr.f32.mxu0 0.0
      %v4336 = vand.u32 %v2840, 4294901760
      %4337 = vmatmul.mubr.f32.gmra.mrb[0].mxu0 %v4336
      %v4338 = vpop.f32.mrb[0].mxu0
      %v4339 = vadd.f32 %v4032, %v4338
      %v4340 = vpop.f32.mrb[0].mxu0
      %4341 = vmatprep.mubr.f32.mxu0 0.0
      %v4342 = vand.u32 %v2843, 4294901760
      %4343 = vmatmul.mubr.f32.gmra.mrb[0].mxu0 %v4342
      %v4344 = vpop.f32.mrb[0].mxu0
      %v4345 = vadd.f32 %v4040, %v4344
      %v4346 = vpop.f32.mrb[0].mxu0
      %4347 = vmatprep.mubr.f32.mxu0 0.0
      %v4348 = vand.u32 %v2846, 4294901760
      %4349 = vmatmul.mubr.f32.gmra.mrb[0].mxu0 %v4348
      %v4350 = vpop.f32.mrb[0].mxu0
      %v4351 = vadd.f32 %v4048, %v4350
      %v4352 = vpop.f32.mrb[0].mxu0
      %4353 = vmatprep.mubr.f32.mxu0 0.0
      %v4354 = vand.u32 %v2849, 4294901760
      %4355 = vmatmul.mubr.f32.gmra.mrb[0].mxu0 %v4354
      %v4356 = vpop.f32.mrb[0].mxu0
      %v4357 = vadd.f32 %v4056, %v4356
      %v4358 = vpop.f32.mrb[0].mxu0
      %4359 = vmatprep.mubr.f32.mxu0 0.0
      %v4360 = vand.u32 %v2852, 4294901760
      %4361 = vmatmul.mubr.f32.gmra.mrb[0].mxu0 %v4360
      %v4362 = vpop.f32.mrb[0].mxu0
      %v4363 = vadd.f32 %v4064, %v4362
      %v4364 = vpop.f32.mrb[0].mxu0
      %4365 = vmatprep.mubr.f32.mxu0 0.0
      %v4366 = vand.u32 %v2855, 4294901760
      %4367 = vmatmul.mubr.f32.gmra.mrb[0].mxu0 %v4366
      %v4368 = vpop.f32.mrb[0].mxu0
      %v4369 = vadd.f32 %v4072, %v4368
      %v4370 = vpop.f32.mrb[0].mxu0
      %4371 = vmatprep.mubr.f32.mxu0 0.0
      %v4372 = vand.u32 %v2858, 4294901760
      %4373 = vmatmul.mubr.f32.gmra.mrb[0].mxu0 %v4372
      %v4374 = vpop.f32.mrb[0].mxu0
      %v4375 = vadd.f32 %v4080, %v4374
      %v4376 = vpop.f32.mrb[0].mxu0
      %4377 = vmatprep.mubr.f32.mxu0 0.0
      %v4378 = vand.u32 %v2861, 4294901760
      %4379 = vmatmul.mubr.f32.gmra.mrb[0].mxu0 %v4378
      %v4380 = vpop.f32.mrb[0].mxu0
      %v4381 = vadd.f32 %v4088, %v4380
      %v4382 = vpop.f32.mrb[0].mxu0
      %4383 = vmatprep.mubr.f32.mxu0 0.0
      %v4384 = vand.u32 %v2864, 4294901760
      %4385 = vmatmul.mubr.f32.gmra.mrb[0].mxu0 %v4384
      %v4386 = vpop.f32.mrb[0].mxu0
      %v4387 = vadd.f32 %v4096, %v4386
      %v4388 = vpop.f32.mrb[0].mxu0
      %4389 = vmatprep.mubr.f32.mxu0 0.0
      %v4390 = vand.u32 %v2867, 4294901760
      %4391 = vmatmul.mubr.f32.gmra.mrb[0].mxu0 %v4390
      %v4392 = vpop.f32.mrb[0].mxu0
      %v4393 = vadd.f32 %v4104, %v4392
      %v4394 = vpop.f32.mrb[0].mxu0
      %4395 = vmatprep.mubr.f32.mxu0 0.0
      %v4396 = vand.u32 %v2870, 4294901760
      %4397 = vmatmul.mubr.f32.gmra.mrb[0].mxu0 %v4396
      %v4398 = vpop.f32.mrb[0].mxu0
      %v4399 = vadd.f32 %v4112, %v4398
      %v4400 = vpop.f32.mrb[0].mxu0
      %4401 = vmatprep.mubr.f32.mxu0 0.0
      %v4402 = vand.u32 %v2873, 4294901760
      %4403 = vmatmul.mubr.f32.gmra.mrb[0].mxu0 %v4402
      %v4404 = vpop.f32.mrb[0].mxu0
      %v4405 = vadd.f32 %v4120, %v4404
      %v4406 = vpop.f32.mrb[0].mxu0
      %4407 = vmatprep.mubr.f32.mxu0 0.0
      %v4408 = vand.u32 %v2876, 4294901760
      %4409 = vmatmul.mubr.f32.gmra.mrb[0].mxu0 %v4408
      %v4410 = vpop.f32.mrb[0].mxu0
      %v4411 = vadd.f32 %v4128, %v4410
      %v4412 = vpop.f32.mrb[0].mxu0
      %4413 = vmatprep.mubr.f32.mxu0 0.0
      %v4414 = vand.u32 %v2879, 4294901760
      %4415 = vmatmul.mubr.f32.gmra.mrb[0].mxu0 %v4414
      %v4416 = vpop.f32.mrb[0].mxu0
      %v4417 = vadd.f32 %v4136, %v4416
      %v4418 = vpop.f32.mrb[0].mxu0
      %4419 = vmatprep.mubr.f32.mxu0 0.0
      %v4420 = vand.u32 %v2882, 4294901760
      %4421 = vmatmul.mubr.f32.gmra.mrb[0].mxu0 %v4420
      %v4422 = vpop.f32.mrb[0].mxu0
      %v4423 = vadd.f32 %v4144, %v4422
      %v4424 = vpop.f32.mrb[0].mxu0
      %4425 = vmatprep.mubr.f32.mxu0 0.0
      %v4426 = vand.u32 %v2885, 4294901760
      %4427 = vmatmul.mubr.f32.gmra.mrb[0].mxu0 %v4426
      %v4428 = vpop.f32.mrb[0].mxu0
      %v4429 = vadd.f32 %v4152, %v4428
      %v4430 = vpop.f32.mrb[0].mxu0
      %4431 = vmatprep.mubr.f32.mxu0 0.0
      %v4432 = vand.u32 %v2888, 4294901760
      %4433 = vmatmul.mubr.f32.gmra.mrb[0].mxu0 %v4432
      %v4434 = vpop.f32.mrb[0].mxu0
      %v4435 = vadd.f32 %v4160, %v4434
      %v4436 = vpop.f32.mrb[0].mxu0
      %4437 = vmatprep.mubr.f32.mxu0 0.0
      %v4438 = vand.u32 %v2891, 4294901760
      %4439 = vmatmul.mubr.f32.gmra.mrb[0].mxu0 %v4438
      %v4440 = vpop.f32.mrb[0].mxu0
      %v4441 = vadd.f32 %v4168, %v4440
      %v4442 = vpop.f32.mrb[0].mxu0
      %4443 = vmatprep.mubr.f32.mxu0 0.0
      %v4444 = vand.u32 %v2894, 4294901760
      %4445 = vmatmul.mubr.f32.gmra.mrb[0].mxu0 %v4444
      %v4446 = vpop.f32.mrb[0].mxu0
      %v4447 = vadd.f32 %v4176, %v4446
      %v4448 = vpop.f32.mrb[0].mxu0
      %4449 = vmatprep.mubr.f32.mxu0 0.0
      %v4450 = vand.u32 %v2897, 4294901760
      %4451 = vmatmul.mubr.f32.gmra.mrb[0].mxu0 %v4450
      %v4452 = vpop.f32.mrb[0].mxu0
      %v4453 = vadd.f32 %v4184, %v4452
      %v4454 = vpop.f32.mrb[0].mxu0
      %4455 = vdwg.mxu0
      %4456 = vmatprep.subr.mxu0 0.0
      %v4457 = vand.u32 %v2792, 4294901760
      %4458 = vmatpush1.msra.mxu0 %v4457
      %4459 = vmatprep.subr.mxu0 0.0
      %v4460 = vand.u32 %v2793, 4294901760
      %4461 = vmatpush1.msra.mxu0 %v4460
      %4462 = vmatprep.subr.mxu0 0.0
      %v4463 = vand.u32 %v2794, 4294901760
      %4464 = vmatpush1.msra.mxu0 %v4463
      %4465 = vmatprep.subr.mxu0 0.0
      %v4466 = vand.u32 %v2795, 4294901760
      %4467 = vmatpush1.msra.mxu0 %v4466
      %4468 = vmatprep.subr.mxu0 0.0
      %4469 = vmatpush1.msra.mxu0 0.0
      %4470 = vmatprep.subr.mxu0 0.0
      %4471 = vmatpush1.msra.mxu0 0.0
      %4472 = vmatprep.subr.mxu0 0.0
      %4473 = vmatpush1.msra.mxu0 0.0
      %4474 = vmatprep.subr.mxu0 0.0
      %4475 = vmatpush1.msra.mxu0 0.0
      %4476 = vmatprep.subr.mxu0 0.0
      %4477 = vmatpush1.msra.mxu0 0.0
      %4478 = vmatprep.subr.mxu0 0.0
      %4479 = vmatpush1.msra.mxu0 0.0
      %4480 = vmatprep.subr.mxu0 0.0
      %4481 = vmatpush1.msra.mxu0 0.0
      %4482 = vmatprep.subr.mxu0 0.0
      %4483 = vmatpush1.msra.mxu0 0.0
      %4484 = vmatprep.subr.mxu0 0.0
      %4485 = vmatpush1.msra.mxu0 0.0
      %4486 = vmatprep.subr.mxu0 0.0
      %4487 = vmatpush1.msra.mxu0 0.0
      %4488 = vmatprep.subr.mxu0 0.0
      %4489 = vmatpush1.msra.mxu0 0.0
      %4490 = vmatprep.subr.mxu0 0.0
      %4491 = vmatpush1.msra.mxu0 0.0
      %4492 = vmatprep.subr.mxu0 0.0
      %4493 = vmatpush1.msra.mxu0 0.0
      %4494 = vmatprep.subr.mxu0 0.0
      %4495 = vmatpush1.msra.mxu0 0.0
      %4496 = vmatprep.subr.mxu0 0.0
      %4497 = vmatpush1.msra.mxu0 0.0
      %4498 = vmatprep.subr.mxu0 0.0
      %4499 = vmatpush1.msra.mxu0 0.0
      %4500 = vmatprep.subr.mxu0 0.0
      %4501 = vmatpush1.msra.mxu0 0.0
      %4502 = vmatprep.subr.mxu0 0.0
      %4503 = vmatpush1.msra.mxu0 0.0
      %4504 = vmatprep.subr.mxu0 0.0
      %4505 = vmatpush1.msra.mxu0 0.0
      %4506 = vmatprep.subr.mxu0 0.0
      %4507 = vmatpush1.msra.mxu0 0.0
      %4508 = vmatprep.subr.mxu0 0.0
      %4509 = vmatpush1.msra.mxu0 0.0
      %4510 = vmatprep.subr.mxu0 0.0
      %4511 = vmatpush1.msra.mxu0 0.0
      %4512 = vmatprep.subr.mxu0 0.0
      %4513 = vmatpush1.msra.mxu0 0.0
      %4514 = vmatprep.subr.mxu0 0.0
      %4515 = vmatpush1.msra.mxu0 0.0
      %4516 = vmatprep.subr.mxu0 0.0
      %4517 = vmatpush1.msra.mxu0 0.0
      %4518 = vmatprep.subr.mxu0 0.0
      %4519 = vmatpush1.msra.mxu0 0.0
      %4520 = vmatprep.subr.mxu0 0.0
      %4521 = vmatpush1.msra.mxu0 0.0
      %4522 = vmatprep.subr.mxu0 0.0
      %4523 = vmatpush1.msra.mxu0 0.0
      %4524 = vmatprep.mubr.f32.mxu0 0.0
      %v4525 = vand.u32 %v2804, 4294901760
      %4526 = vmatmul.mubr.f32.gmra.mrb[0].mxu0 %v4525
      %v4527 = vpop.f32.mrb[0].mxu0
      %v4528 = vadd.f32 %v4267, %v4527
      %v4529 = vpop.f32.mrb[0].mxu0
      %4530 = vmatprep.mubr.f32.mxu0 0.0
      %v4531 = vand.u32 %v2807, 4294901760
      %4532 = vmatmul.mubr.f32.gmra.mrb[0].mxu0 %v4531
      %v4533 = vpop.f32.mrb[0].mxu0
      %v4534 = vadd.f32 %v4273, %v4533
      %v4535 = vpop.f32.mrb[0].mxu0
      %4536 = vmatprep.mubr.f32.mxu0 0.0
      %v4537 = vand.u32 %v2810, 4294901760
      %4538 = vmatmul.mubr.f32.gmra.mrb[0].mxu0 %v4537
      %v4539 = vpop.f32.mrb[0].mxu0
      %v4540 = vadd.f32 %v4279, %v4539
      %v4541 = vpop.f32.mrb[0].mxu0
      %4542 = vmatprep.mubr.f32.mxu0 0.0
      %v4543 = vand.u32 %v2813, 4294901760
      %4544 = vmatmul.mubr.f32.gmra.mrb[0].mxu0 %v4543
      %v4545 = vpop.f32.mrb[0].mxu0
      %v4546 = vadd.f32 %v4285, %v4545
      %v4547 = vpop.f32.mrb[0].mxu0
      %4548 = vmatprep.mubr.f32.mxu0 0.0
      %v4549 = vand.u32 %v2816, 4294901760
      %4550 = vmatmul.mubr.f32.gmra.mrb[0].mxu0 %v4549
      %v4551 = vpop.f32.mrb[0].mxu0
      %v4552 = vadd.f32 %v4291, %v4551
      %v4553 = vpop.f32.mrb[0].mxu0
      %4554 = vmatprep.mubr.f32.mxu0 0.0
      %v4555 = vand.u32 %v2819, 4294901760
      %4556 = vmatmul.mubr.f32.gmra.mrb[0].mxu0 %v4555
      %v4557 = vpop.f32.mrb[0].mxu0
      %v4558 = vadd.f32 %v4297, %v4557
      %v4559 = vpop.f32.mrb[0].mxu0
      %4560 = vmatprep.mubr.f32.mxu0 0.0
      %v4561 = vand.u32 %v2822, 4294901760
      %4562 = vmatmul.mubr.f32.gmra.mrb[0].mxu0 %v4561
      %v4563 = vpop.f32.mrb[0].mxu0
      %v4564 = vadd.f32 %v4303, %v4563
      %v4565 = vpop.f32.mrb[0].mxu0
      %4566 = vmatprep.mubr.f32.mxu0 0.0
      %v4567 = vand.u32 %v2825, 4294901760
      %4568 = vmatmul.mubr.f32.gmra.mrb[0].mxu0 %v4567
      %v4569 = vpop.f32.mrb[0].mxu0
      %v4570 = vadd.f32 %v4309, %v4569
      %v4571 = vpop.f32.mrb[0].mxu0
      %4572 = vmatprep.mubr.f32.mxu0 0.0
      %v4573 = vand.u32 %v2828, 4294901760
      %4574 = vmatmul.mubr.f32.gmra.mrb[0].mxu0 %v4573
      %v4575 = vpop.f32.mrb[0].mxu0
      %v4576 = vadd.f32 %v4315, %v4575
      %v4577 = vpop.f32.mrb[0].mxu0
      %4578 = vmatprep.mubr.f32.mxu0 0.0
      %v4579 = vand.u32 %v2831, 4294901760
      %4580 = vmatmul.mubr.f32.gmra.mrb[0].mxu0 %v4579
      %v4581 = vpop.f32.mrb[0].mxu0
      %v4582 = vadd.f32 %v4321, %v4581
      %v4583 = vpop.f32.mrb[0].mxu0
      %4584 = vmatprep.mubr.f32.mxu0 0.0
      %v4585 = vand.u32 %v2834, 4294901760
      %4586 = vmatmul.mubr.f32.gmra.mrb[0].mxu0 %v4585
      %v4587 = vpop.f32.mrb[0].mxu0
      %v4588 = vadd.f32 %v4327, %v4587
      %v4589 = vpop.f32.mrb[0].mxu0
      %4590 = vmatprep.mubr.f32.mxu0 0.0
      %v4591 = vand.u32 %v2837, 4294901760
      %4592 = vmatmul.mubr.f32.gmra.mrb[0].mxu0 %v4591
      %v4593 = vpop.f32.mrb[0].mxu0
      %v4594 = vadd.f32 %v4333, %v4593
      %v4595 = vpop.f32.mrb[0].mxu0
      %4596 = vmatprep.mubr.f32.mxu0 0.0
      %v4597 = vand.u32 %v2840, 4294901760
      %4598 = vmatmul.mubr.f32.gmra.mrb[0].mxu0 %v4597
      %v4599 = vpop.f32.mrb[0].mxu0
      %v4600 = vadd.f32 %v4339, %v4599
      %v4601 = vpop.f32.mrb[0].mxu0
      %4602 = vmatprep.mubr.f32.mxu0 0.0
      %v4603 = vand.u32 %v2843, 4294901760
      %4604 = vmatmul.mubr.f32.gmra.mrb[0].mxu0 %v4603
      %v4605 = vpop.f32.mrb[0].mxu0
      %v4606 = vadd.f32 %v4345, %v4605
      %v4607 = vpop.f32.mrb[0].mxu0
      %4608 = vmatprep.mubr.f32.mxu0 0.0
      %v4609 = vand.u32 %v2846, 4294901760
      %4610 = vmatmul.mubr.f32.gmra.mrb[0].mxu0 %v4609
      %v4611 = vpop.f32.mrb[0].mxu0
      %v4612 = vadd.f32 %v4351, %v4611
      %v4613 = vpop.f32.mrb[0].mxu0
      %4614 = vmatprep.mubr.f32.mxu0 0.0
      %v4615 = vand.u32 %v2849, 4294901760
      %4616 = vmatmul.mubr.f32.gmra.mrb[0].mxu0 %v4615
      %v4617 = vpop.f32.mrb[0].mxu0
      %v4618 = vadd.f32 %v4357, %v4617
      %v4619 = vpop.f32.mrb[0].mxu0
      %4620 = vmatprep.mubr.f32.mxu0 0.0
      %v4621 = vand.u32 %v2852, 4294901760
      %4622 = vmatmul.mubr.f32.gmra.mrb[0].mxu0 %v4621
      %v4623 = vpop.f32.mrb[0].mxu0
      %v4624 = vadd.f32 %v4363, %v4623
      %v4625 = vpop.f32.mrb[0].mxu0
      %4626 = vmatprep.mubr.f32.mxu0 0.0
      %v4627 = vand.u32 %v2855, 4294901760
      %4628 = vmatmul.mubr.f32.gmra.mrb[0].mxu0 %v4627
      %v4629 = vpop.f32.mrb[0].mxu0
      %v4630 = vadd.f32 %v4369, %v4629
      %v4631 = vpop.f32.mrb[0].mxu0
      %4632 = vmatprep.mubr.f32.mxu0 0.0
      %v4633 = vand.u32 %v2858, 4294901760
      %4634 = vmatmul.mubr.f32.gmra.mrb[0].mxu0 %v4633
      %v4635 = vpop.f32.mrb[0].mxu0
      %v4636 = vadd.f32 %v4375, %v4635
      %v4637 = vpop.f32.mrb[0].mxu0
      %4638 = vmatprep.mubr.f32.mxu0 0.0
      %v4639 = vand.u32 %v2861, 4294901760
      %4640 = vmatmul.mubr.f32.gmra.mrb[0].mxu0 %v4639
      %v4641 = vpop.f32.mrb[0].mxu0
      %v4642 = vadd.f32 %v4381, %v4641
      %v4643 = vpop.f32.mrb[0].mxu0
      %4644 = vmatprep.mubr.f32.mxu0 0.0
      %v4645 = vand.u32 %v2864, 4294901760
      %4646 = vmatmul.mubr.f32.gmra.mrb[0].mxu0 %v4645
      %v4647 = vpop.f32.mrb[0].mxu0
      %v4648 = vadd.f32 %v4387, %v4647
      %v4649 = vpop.f32.mrb[0].mxu0
      %4650 = vmatprep.mubr.f32.mxu0 0.0
      %v4651 = vand.u32 %v2867, 4294901760
      %4652 = vmatmul.mubr.f32.gmra.mrb[0].mxu0 %v4651
      %v4653 = vpop.f32.mrb[0].mxu0
      %v4654 = vadd.f32 %v4393, %v4653
      %v4655 = vpop.f32.mrb[0].mxu0
      %4656 = vmatprep.mubr.f32.mxu0 0.0
      %v4657 = vand.u32 %v2870, 4294901760
      %4658 = vmatmul.mubr.f32.gmra.mrb[0].mxu0 %v4657
      %v4659 = vpop.f32.mrb[0].mxu0
      %v4660 = vadd.f32 %v4399, %v4659
      %v4661 = vpop.f32.mrb[0].mxu0
      %4662 = vmatprep.mubr.f32.mxu0 0.0
      %v4663 = vand.u32 %v2873, 4294901760
      %4664 = vmatmul.mubr.f32.gmra.mrb[0].mxu0 %v4663
      %v4665 = vpop.f32.mrb[0].mxu0
      %v4666 = vadd.f32 %v4405, %v4665
      %v4667 = vpop.f32.mrb[0].mxu0
      %4668 = vmatprep.mubr.f32.mxu0 0.0
      %v4669 = vand.u32 %v2876, 4294901760
      %4670 = vmatmul.mubr.f32.gmra.mrb[0].mxu0 %v4669
      %v4671 = vpop.f32.mrb[0].mxu0
      %v4672 = vadd.f32 %v4411, %v4671
      %v4673 = vpop.f32.mrb[0].mxu0
      %4674 = vmatprep.mubr.f32.mxu0 0.0
      %v4675 = vand.u32 %v2879, 4294901760
      %4676 = vmatmul.mubr.f32.gmra.mrb[0].mxu0 %v4675
      %v4677 = vpop.f32.mrb[0].mxu0
      %v4678 = vadd.f32 %v4417, %v4677
      %v4679 = vpop.f32.mrb[0].mxu0
      %4680 = vmatprep.mubr.f32.mxu0 0.0
      %v4681 = vand.u32 %v2882, 4294901760
      %4682 = vmatmul.mubr.f32.gmra.mrb[0].mxu0 %v4681
      %v4683 = vpop.f32.mrb[0].mxu0
      %v4684 = vadd.f32 %v4423, %v4683
      %v4685 = vpop.f32.mrb[0].mxu0
      %4686 = vmatprep.mubr.f32.mxu0 0.0
      %v4687 = vand.u32 %v2885, 4294901760
      %4688 = vmatmul.mubr.f32.gmra.mrb[0].mxu0 %v4687
      %v4689 = vpop.f32.mrb[0].mxu0
      %v4690 = vadd.f32 %v4429, %v4689
      %v4691 = vpop.f32.mrb[0].mxu0
      %4692 = vmatprep.mubr.f32.mxu0 0.0
      %v4693 = vand.u32 %v2888, 4294901760
      %4694 = vmatmul.mubr.f32.gmra.mrb[0].mxu0 %v4693
      %v4695 = vpop.f32.mrb[0].mxu0
      %v4696 = vadd.f32 %v4435, %v4695
      %v4697 = vpop.f32.mrb[0].mxu0
      %4698 = vmatprep.mubr.f32.mxu0 0.0
      %v4699 = vand.u32 %v2891, 4294901760
      %4700 = vmatmul.mubr.f32.gmra.mrb[0].mxu0 %v4699
      %v4701 = vpop.f32.mrb[0].mxu0
      %v4702 = vadd.f32 %v4441, %v4701
      %v4703 = vpop.f32.mrb[0].mxu0
      %4704 = vmatprep.mubr.f32.mxu0 0.0
      %v4705 = vand.u32 %v2894, 4294901760
      %4706 = vmatmul.mubr.f32.gmra.mrb[0].mxu0 %v4705
      %v4707 = vpop.f32.mrb[0].mxu0
      %v4708 = vadd.f32 %v4447, %v4707
      %v4709 = vpop.f32.mrb[0].mxu0
      %4710 = vmatprep.mubr.f32.mxu0 0.0
      %v4711 = vand.u32 %v2897, 4294901760
      %4712 = vmatmul.mubr.f32.gmra.mrb[0].mxu0 %v4711
      %v4713 = vpop.f32.mrb[0].mxu0
      %v4714 = vadd.f32 %v4453, %v4713
      %v4715 = vpop.f32.mrb[0].mxu0
      %4716 = vdwg.mxu0
      %v4717 = vtanh.pop %v4528
      %v4718 = vtanh.pop %v4534
      %v4719 = vtanh.pop %v4540
      %v4720 = vtanh.pop %v4546
      %v4721 = vtanh.pop %v4552
      %v4722 = vtanh.pop %v4558
      %v4723 = vtanh.pop %v4564
      %v4724 = vtanh.pop %v4570
      %v4725 = vtanh.pop %v4576
      %v4726 = vtanh.pop %v4582
      %v4727 = vtanh.pop %v4588
      %v4728 = vtanh.pop %v4594
      %v4729 = vtanh.pop %v4600
      %v4730 = vtanh.pop %v4606
      %v4731 = vtanh.pop %v4612
      %v4732 = vtanh.pop %v4618
      %v4733 = vtanh.pop %v4624
      %v4734 = vtanh.pop %v4630
      %v4735 = vtanh.pop %v4636
      %v4736 = vtanh.pop %v4642
      %v4737 = vtanh.pop %v4648
      %v4738 = vtanh.pop %v4654
      %v4739 = vtanh.pop %v4660
      %v4740 = vtanh.pop %v4666
      %v4741 = vtanh.pop %v4672
      %v4742 = vtanh.pop %v4678
      %v4743 = vtanh.pop %v4684
      %v4744 = vtanh.pop %v4690
      %v4745 = vtanh.pop %v4696
      %v4746 = vtanh.pop %v4702
      %v4747 = vtanh.pop %v4708
      %v4748 = vtanh.pop %v4714
      %v4749 = vld [vmem:[%s7] sm:$0xff]
      %v4750 = vld [vmem:[%s7 + $0x8] sm:$0xff]
      %v4751 = vld [vmem:[%s7 + $0x10] sm:$0xff]
      %v4752 = vld [vmem:[%s7 + $0x18] sm:$0xff]
      %v4753 = vld [vmem:[#allocation2] sm:$0x1]
      %v4755 = vlaneseq
      %v4756 = vshrl.u32 %v4755, 7
      %v4757 = vsub.s32 0, %v4756
      %v4758 = vrot.slane %v4753, %v4757
      %v4761 = vsel %vm845, %v4717, 0
      %v4764 = vsel %vm845, %v4718, 0
      %v4767 = vsel %vm845, %v4719, 0
      %v4770 = vsel %vm845, %v4720, 0
      %v4773 = vsel %vm845, %v4721, 0
      %v4776 = vsel %vm845, %v4722, 0
      %v4779 = vsel %vm845, %v4723, 0
      %v4782 = vsel %vm845, %v4724, 0
      %v4785 = vsel %vm845, %v4725, 0
      %v4788 = vsel %vm845, %v4726, 0
      %v4791 = vsel %vm845, %v4727, 0
      %v4794 = vsel %vm845, %v4728, 0
      %v4797 = vsel %vm845, %v4729, 0
      %v4800 = vsel %vm845, %v4730, 0
      %v4803 = vsel %vm845, %v4731, 0
      %v4806 = vsel %vm845, %v4732, 0
      %v4809 = vsel %vm845, %v4733, 0
      %v4812 = vsel %vm845, %v4734, 0
      %v4815 = vsel %vm845, %v4735, 0
      %v4818 = vsel %vm845, %v4736, 0
      %v4821 = vsel %vm845, %v4737, 0
      %v4824 = vsel %vm845, %v4738, 0
      %v4827 = vsel %vm845, %v4739, 0
      %v4830 = vsel %vm845, %v4740, 0
      %v4833 = vsel %vm845, %v4741, 0
      %v4836 = vsel %vm845, %v4742, 0
      %v4839 = vsel %vm845, %v4743, 0
      %v4842 = vsel %vm845, %v4744, 0
      %v4845 = vsel %vm845, %v4745, 0
      %v4848 = vsel %vm845, %v4746, 0
      %v4851 = vsel %vm845, %v4747, 0
      %v4854 = vsel %vm845, %v4748, 0
      %4856 = vmatprep.subr.mxu0 0.0
      %v4857 = vand.u32 %v4749, 4294901760
      %4858 = vmatpush1.msra.mxu0 %v4857
      %4859 = vmatprep.subr.mxu0 0.0
      %v4860 = vand.u32 %v4750, 4294901760
      %4861 = vmatpush1.msra.mxu0 %v4860
      %4862 = vmatprep.subr.mxu0 0.0
      %v4863 = vand.u32 %v4751, 4294901760
      %4864 = vmatpush1.msra.mxu0 %v4863
      %4865 = vmatprep.subr.mxu0 0.0
      %v4866 = vand.u32 %v4752, 4294901760
      %4867 = vmatpush1.msra.mxu0 %v4866
      %4868 = vmatprep.subr.mxu0 0.0
      %4869 = vmatpush1.msra.mxu0 0.0
      %4870 = vmatprep.subr.mxu0 0.0
      %4871 = vmatpush1.msra.mxu0 0.0
      %4872 = vmatprep.subr.mxu0 0.0
      %4873 = vmatpush1.msra.mxu0 0.0
      %4874 = vmatprep.subr.mxu0 0.0
      %4875 = vmatpush1.msra.mxu0 0.0
      %4876 = vmatprep.subr.mxu0 0.0
      %4877 = vmatpush1.msra.mxu0 0.0
      %4878 = vmatprep.subr.mxu0 0.0
      %4879 = vmatpush1.msra.mxu0 0.0
      %4880 = vmatprep.subr.mxu0 0.0
      %4881 = vmatpush1.msra.mxu0 0.0
      %4882 = vmatprep.subr.mxu0 0.0
      %4883 = vmatpush1.msra.mxu0 0.0
      %4884 = vmatprep.subr.mxu0 0.0
      %4885 = vmatpush1.msra.mxu0 0.0
      %4886 = vmatprep.subr.mxu0 0.0
      %4887 = vmatpush1.msra.mxu0 0.0
      %4888 = vmatprep.subr.mxu0 0.0
      %4889 = vmatpush1.msra.mxu0 0.0
      %4890 = vmatprep.subr.mxu0 0.0
      %4891 = vmatpush1.msra.mxu0 0.0
      %4892 = vmatprep.subr.mxu0 0.0
      %4893 = vmatpush1.msra.mxu0 0.0
      %4894 = vmatprep.subr.mxu0 0.0
      %4895 = vmatpush1.msra.mxu0 0.0
      %4896 = vmatprep.subr.mxu0 0.0
      %4897 = vmatpush1.msra.mxu0 0.0
      %4898 = vmatprep.subr.mxu0 0.0
      %4899 = vmatpush1.msra.mxu0 0.0
      %4900 = vmatprep.subr.mxu0 0.0
      %4901 = vmatpush1.msra.mxu0 0.0
      %4902 = vmatprep.subr.mxu0 0.0
      %4903 = vmatpush1.msra.mxu0 0.0
      %4904 = vmatprep.subr.mxu0 0.0
      %4905 = vmatpush1.msra.mxu0 0.0
      %4906 = vmatprep.subr.mxu0 0.0
      %4907 = vmatpush1.msra.mxu0 0.0
      %4908 = vmatprep.subr.mxu0 0.0
      %4909 = vmatpush1.msra.mxu0 0.0
      %4910 = vmatprep.subr.mxu0 0.0
      %4911 = vmatpush1.msra.mxu0 0.0
      %4912 = vmatprep.subr.mxu0 0.0
      %4913 = vmatpush1.msra.mxu0 0.0
      %4914 = vmatprep.subr.mxu0 0.0
      %4915 = vmatpush1.msra.mxu0 0.0
      %4916 = vmatprep.subr.mxu0 0.0
      %4917 = vmatpush1.msra.mxu0 0.0
      %4918 = vmatprep.subr.mxu0 0.0
      %4919 = vmatpush1.msra.mxu0 0.0
      %4920 = vmatprep.subr.mxu0 0.0
      %4921 = vmatpush1.msra.mxu0 0.0
      %4922 = vmatprep.subr.mxu0 0.0
      %4923 = vmatpush1.msra.mxu0 0.0
      %4924 = vmatprep.mubr.f32.mxu0 0.0
      %v4925 = vand.u32 %v4761, 4294901760
      %v4926 = vsub.f32 %v4761, %v4925
      %v4927 = vand.u32 %v4926, 4294901760
      %v4928 = vsub.f32 %v4926, %v4927
      %v4929 = vand.u32 %v4928, 4294901760
      %4930 = vmatmul.mubr.f32.gmra.mrb[0].mxu0 %v4929
      %v4931 = vpop.f32.mrb[0].mxu0
      %v4932 = vadd.f32 %v4758, %v4931
      %v4933 = vpop.f32.mrb[0].mxu0
      %4934 = vmatprep.mubr.f32.mxu0 0.0
      %v4935 = vand.u32 %v4764, 4294901760
      %v4936 = vsub.f32 %v4764, %v4935
      %v4937 = vand.u32 %v4936, 4294901760
      %v4938 = vsub.f32 %v4936, %v4937
      %v4939 = vand.u32 %v4938, 4294901760
      %4940 = vmatmul.mubr.f32.gmra.mrb[0].mxu0 %v4939
      %v4941 = vpop.f32.mrb[0].mxu0
      %v4942 = vadd.f32 %v4758, %v4941
      %v4943 = vpop.f32.mrb[0].mxu0
      %4944 = vmatprep.mubr.f32.mxu0 0.0
      %v4945 = vand.u32 %v4767, 4294901760
      %v4946 = vsub.f32 %v4767, %v4945
      %v4947 = vand.u32 %v4946, 4294901760
      %v4948 = vsub.f32 %v4946, %v4947
      %v4949 = vand.u32 %v4948, 4294901760
      %4950 = vmatmul.mubr.f32.gmra.mrb[0].mxu0 %v4949
      %v4951 = vpop.f32.mrb[0].mxu0
      %v4952 = vadd.f32 %v4758, %v4951
      %v4953 = vpop.f32.mrb[0].mxu0
      %4954 = vmatprep.mubr.f32.mxu0 0.0
      %v4955 = vand.u32 %v4770, 4294901760
      %v4956 = vsub.f32 %v4770, %v4955
      %v4957 = vand.u32 %v4956, 4294901760
      %v4958 = vsub.f32 %v4956, %v4957
      %v4959 = vand.u32 %v4958, 4294901760
      %4960 = vmatmul.mubr.f32.gmra.mrb[0].mxu0 %v4959
      %v4961 = vpop.f32.mrb[0].mxu0
      %v4962 = vadd.f32 %v4758, %v4961
      %v4963 = vpop.f32.mrb[0].mxu0
      %4964 = vmatprep.mubr.f32.mxu0 0.0
      %v4965 = vand.u32 %v4773, 4294901760
      %v4966 = vsub.f32 %v4773, %v4965
      %v4967 = vand.u32 %v4966, 4294901760
      %v4968 = vsub.f32 %v4966, %v4967
      %v4969 = vand.u32 %v4968, 4294901760
      %4970 = vmatmul.mubr.f32.gmra.mrb[0].mxu0 %v4969
      %v4971 = vpop.f32.mrb[0].mxu0
      %v4972 = vadd.f32 %v4758, %v4971
      %v4973 = vpop.f32.mrb[0].mxu0
      %4974 = vmatprep.mubr.f32.mxu0 0.0
      %v4975 = vand.u32 %v4776, 4294901760
      %v4976 = vsub.f32 %v4776, %v4975
      %v4977 = vand.u32 %v4976, 4294901760
      %v4978 = vsub.f32 %v4976, %v4977
      %v4979 = vand.u32 %v4978, 4294901760
      %4980 = vmatmul.mubr.f32.gmra.mrb[0].mxu0 %v4979
      %v4981 = vpop.f32.mrb[0].mxu0
      %v4982 = vadd.f32 %v4758, %v4981
      %v4983 = vpop.f32.mrb[0].mxu0
      %4984 = vmatprep.mubr.f32.mxu0 0.0
      %v4985 = vand.u32 %v4779, 4294901760
      %v4986 = vsub.f32 %v4779, %v4985
      %v4987 = vand.u32 %v4986, 4294901760
      %v4988 = vsub.f32 %v4986, %v4987
      %v4989 = vand.u32 %v4988, 4294901760
      %4990 = vmatmul.mubr.f32.gmra.mrb[0].mxu0 %v4989
      %v4991 = vpop.f32.mrb[0].mxu0
      %v4992 = vadd.f32 %v4758, %v4991
      %v4993 = vpop.f32.mrb[0].mxu0
      %4994 = vmatprep.mubr.f32.mxu0 0.0
      %v4995 = vand.u32 %v4782, 4294901760
      %v4996 = vsub.f32 %v4782, %v4995
      %v4997 = vand.u32 %v4996, 4294901760
      %v4998 = vsub.f32 %v4996, %v4997
      %v4999 = vand.u32 %v4998, 4294901760
      %5000 = vmatmul.mubr.f32.gmra.mrb[0].mxu0 %v4999
      %v5001 = vpop.f32.mrb[0].mxu0
      %v5002 = vadd.f32 %v4758, %v5001
      %v5003 = vpop.f32.mrb[0].mxu0
      %5004 = vmatprep.mubr.f32.mxu0 0.0
      %v5005 = vand.u32 %v4785, 4294901760
      %v5006 = vsub.f32 %v4785, %v5005
      %v5007 = vand.u32 %v5006, 4294901760
      %v5008 = vsub.f32 %v5006, %v5007
      %v5009 = vand.u32 %v5008, 4294901760
      %5010 = vmatmul.mubr.f32.gmra.mrb[0].mxu0 %v5009
      %v5011 = vpop.f32.mrb[0].mxu0
      %v5012 = vadd.f32 %v4758, %v5011
      %v5013 = vpop.f32.mrb[0].mxu0
      %5014 = vmatprep.mubr.f32.mxu0 0.0
      %v5015 = vand.u32 %v4788, 4294901760
      %v5016 = vsub.f32 %v4788, %v5015
      %v5017 = vand.u32 %v5016, 4294901760
      %v5018 = vsub.f32 %v5016, %v5017
      %v5019 = vand.u32 %v5018, 4294901760
      %5020 = vmatmul.mubr.f32.gmra.mrb[0].mxu0 %v5019
      %v5021 = vpop.f32.mrb[0].mxu0
      %v5022 = vadd.f32 %v4758, %v5021
      %v5023 = vpop.f32.mrb[0].mxu0
      %5024 = vmatprep.mubr.f32.mxu0 0.0
      %v5025 = vand.u32 %v4791, 4294901760
      %v5026 = vsub.f32 %v4791, %v5025
      %v5027 = vand.u32 %v5026, 4294901760
      %v5028 = vsub.f32 %v5026, %v5027
      %v5029 = vand.u32 %v5028, 4294901760
      %5030 = vmatmul.mubr.f32.gmra.mrb[0].mxu0 %v5029
      %v5031 = vpop.f32.mrb[0].mxu0
      %v5032 = vadd.f32 %v4758, %v5031
      %v5033 = vpop.f32.mrb[0].mxu0
      %5034 = vmatprep.mubr.f32.mxu0 0.0
      %v5035 = vand.u32 %v4794, 4294901760
      %v5036 = vsub.f32 %v4794, %v5035
      %v5037 = vand.u32 %v5036, 4294901760
      %v5038 = vsub.f32 %v5036, %v5037
      %v5039 = vand.u32 %v5038, 4294901760
      %5040 = vmatmul.mubr.f32.gmra.mrb[0].mxu0 %v5039
      %v5041 = vpop.f32.mrb[0].mxu0
      %v5042 = vadd.f32 %v4758, %v5041
      %v5043 = vpop.f32.mrb[0].mxu0
      %5044 = vmatprep.mubr.f32.mxu0 0.0
      %v5045 = vand.u32 %v4797, 4294901760
      %v5046 = vsub.f32 %v4797, %v5045
      %v5047 = vand.u32 %v5046, 4294901760
      %v5048 = vsub.f32 %v5046, %v5047
      %v5049 = vand.u32 %v5048, 4294901760
      %5050 = vmatmul.mubr.f32.gmra.mrb[0].mxu0 %v5049
      %v5051 = vpop.f32.mrb[0].mxu0
      %v5052 = vadd.f32 %v4758, %v5051
      %v5053 = vpop.f32.mrb[0].mxu0
      %5054 = vmatprep.mubr.f32.mxu0 0.0
      %v5055 = vand.u32 %v4800, 4294901760
      %v5056 = vsub.f32 %v4800, %v5055
      %v5057 = vand.u32 %v5056, 4294901760
      %v5058 = vsub.f32 %v5056, %v5057
      %v5059 = vand.u32 %v5058, 4294901760
      %5060 = vmatmul.mubr.f32.gmra.mrb[0].mxu0 %v5059
      %v5061 = vpop.f32.mrb[0].mxu0
      %v5062 = vadd.f32 %v4758, %v5061
      %v5063 = vpop.f32.mrb[0].mxu0
      %5064 = vmatprep.mubr.f32.mxu0 0.0
      %v5065 = vand.u32 %v4803, 4294901760
      %v5066 = vsub.f32 %v4803, %v5065
      %v5067 = vand.u32 %v5066, 4294901760
      %v5068 = vsub.f32 %v5066, %v5067
      %v5069 = vand.u32 %v5068, 4294901760
      %5070 = vmatmul.mubr.f32.gmra.mrb[0].mxu0 %v5069
      %v5071 = vpop.f32.mrb[0].mxu0
      %v5072 = vadd.f32 %v4758, %v5071
      %v5073 = vpop.f32.mrb[0].mxu0
      %5074 = vmatprep.mubr.f32.mxu0 0.0
      %v5075 = vand.u32 %v4806, 4294901760
      %v5076 = vsub.f32 %v4806, %v5075
      %v5077 = vand.u32 %v5076, 4294901760
      %v5078 = vsub.f32 %v5076, %v5077
      %v5079 = vand.u32 %v5078, 4294901760
      %5080 = vmatmul.mubr.f32.gmra.mrb[0].mxu0 %v5079
      %v5081 = vpop.f32.mrb[0].mxu0
      %v5082 = vadd.f32 %v4758, %v5081
      %v5083 = vpop.f32.mrb[0].mxu0
      %5084 = vmatprep.mubr.f32.mxu0 0.0
      %v5085 = vand.u32 %v4809, 4294901760
      %v5086 = vsub.f32 %v4809, %v5085
      %v5087 = vand.u32 %v5086, 4294901760
      %v5088 = vsub.f32 %v5086, %v5087
      %v5089 = vand.u32 %v5088, 4294901760
      %5090 = vmatmul.mubr.f32.gmra.mrb[0].mxu0 %v5089
      %v5091 = vpop.f32.mrb[0].mxu0
      %v5092 = vadd.f32 %v4758, %v5091
      %v5093 = vpop.f32.mrb[0].mxu0
      %5094 = vmatprep.mubr.f32.mxu0 0.0
      %v5095 = vand.u32 %v4812, 4294901760
      %v5096 = vsub.f32 %v4812, %v5095
      %v5097 = vand.u32 %v5096, 4294901760
      %v5098 = vsub.f32 %v5096, %v5097
      %v5099 = vand.u32 %v5098, 4294901760
      %5100 = vmatmul.mubr.f32.gmra.mrb[0].mxu0 %v5099
      %v5101 = vpop.f32.mrb[0].mxu0
      %v5102 = vadd.f32 %v4758, %v5101
      %v5103 = vpop.f32.mrb[0].mxu0
      %5104 = vmatprep.mubr.f32.mxu0 0.0
      %v5105 = vand.u32 %v4815, 4294901760
      %v5106 = vsub.f32 %v4815, %v5105
      %v5107 = vand.u32 %v5106, 4294901760
      %v5108 = vsub.f32 %v5106, %v5107
      %v5109 = vand.u32 %v5108, 4294901760
      %5110 = vmatmul.mubr.f32.gmra.mrb[0].mxu0 %v5109
      %v5111 = vpop.f32.mrb[0].mxu0
      %v5112 = vadd.f32 %v4758, %v5111
      %v5113 = vpop.f32.mrb[0].mxu0
      %5114 = vmatprep.mubr.f32.mxu0 0.0
      %v5115 = vand.u32 %v4818, 4294901760
      %v5116 = vsub.f32 %v4818, %v5115
      %v5117 = vand.u32 %v5116, 4294901760
      %v5118 = vsub.f32 %v5116, %v5117
      %v5119 = vand.u32 %v5118, 4294901760
      %5120 = vmatmul.mubr.f32.gmra.mrb[0].mxu0 %v5119
      %v5121 = vpop.f32.mrb[0].mxu0
      %v5122 = vadd.f32 %v4758, %v5121
      %v5123 = vpop.f32.mrb[0].mxu0
      %5124 = vmatprep.mubr.f32.mxu0 0.0
      %v5125 = vand.u32 %v4821, 4294901760
      %v5126 = vsub.f32 %v4821, %v5125
      %v5127 = vand.u32 %v5126, 4294901760
      %v5128 = vsub.f32 %v5126, %v5127
      %v5129 = vand.u32 %v5128, 4294901760
      %5130 = vmatmul.mubr.f32.gmra.mrb[0].mxu0 %v5129
      %v5131 = vpop.f32.mrb[0].mxu0
      %v5132 = vadd.f32 %v4758, %v5131
      %v5133 = vpop.f32.mrb[0].mxu0
      %5134 = vmatprep.mubr.f32.mxu0 0.0
      %v5135 = vand.u32 %v4824, 4294901760
      %v5136 = vsub.f32 %v4824, %v5135
      %v5137 = vand.u32 %v5136, 4294901760
      %v5138 = vsub.f32 %v5136, %v5137
      %v5139 = vand.u32 %v5138, 4294901760
      %5140 = vmatmul.mubr.f32.gmra.mrb[0].mxu0 %v5139
      %v5141 = vpop.f32.mrb[0].mxu0
      %v5142 = vadd.f32 %v4758, %v5141
      %v5143 = vpop.f32.mrb[0].mxu0
      %5144 = vmatprep.mubr.f32.mxu0 0.0
      %v5145 = vand.u32 %v4827, 4294901760
      %v5146 = vsub.f32 %v4827, %v5145
      %v5147 = vand.u32 %v5146, 4294901760
      %v5148 = vsub.f32 %v5146, %v5147
      %v5149 = vand.u32 %v5148, 4294901760
      %5150 = vmatmul.mubr.f32.gmra.mrb[0].mxu0 %v5149
      %v5151 = vpop.f32.mrb[0].mxu0
      %v5152 = vadd.f32 %v4758, %v5151
      %v5153 = vpop.f32.mrb[0].mxu0
      %5154 = vmatprep.mubr.f32.mxu0 0.0
      %v5155 = vand.u32 %v4830, 4294901760
      %v5156 = vsub.f32 %v4830, %v5155
      %v5157 = vand.u32 %v5156, 4294901760
      %v5158 = vsub.f32 %v5156, %v5157
      %v5159 = vand.u32 %v5158, 4294901760
      %5160 = vmatmul.mubr.f32.gmra.mrb[0].mxu0 %v5159
      %v5161 = vpop.f32.mrb[0].mxu0
      %v5162 = vadd.f32 %v4758, %v5161
      %v5163 = vpop.f32.mrb[0].mxu0
      %5164 = vmatprep.mubr.f32.mxu0 0.0
      %v5165 = vand.u32 %v4833, 4294901760
      %v5166 = vsub.f32 %v4833, %v5165
      %v5167 = vand.u32 %v5166, 4294901760
      %v5168 = vsub.f32 %v5166, %v5167
      %v5169 = vand.u32 %v5168, 4294901760
      %5170 = vmatmul.mubr.f32.gmra.mrb[0].mxu0 %v5169
      %v5171 = vpop.f32.mrb[0].mxu0
      %v5172 = vadd.f32 %v4758, %v5171
      %v5173 = vpop.f32.mrb[0].mxu0
      %5174 = vmatprep.mubr.f32.mxu0 0.0
      %v5175 = vand.u32 %v4836, 4294901760
      %v5176 = vsub.f32 %v4836, %v5175
      %v5177 = vand.u32 %v5176, 4294901760
      %v5178 = vsub.f32 %v5176, %v5177
      %v5179 = vand.u32 %v5178, 4294901760
      %5180 = vmatmul.mubr.f32.gmra.mrb[0].mxu0 %v5179
      %v5181 = vpop.f32.mrb[0].mxu0
      %v5182 = vadd.f32 %v4758, %v5181
      %v5183 = vpop.f32.mrb[0].mxu0
      %5184 = vmatprep.mubr.f32.mxu0 0.0
      %v5185 = vand.u32 %v4839, 4294901760
      %v5186 = vsub.f32 %v4839, %v5185
      %v5187 = vand.u32 %v5186, 4294901760
      %v5188 = vsub.f32 %v5186, %v5187
      %v5189 = vand.u32 %v5188, 4294901760
      %5190 = vmatmul.mubr.f32.gmra.mrb[0].mxu0 %v5189
      %v5191 = vpop.f32.mrb[0].mxu0
      %v5192 = vadd.f32 %v4758, %v5191
      %v5193 = vpop.f32.mrb[0].mxu0
      %5194 = vmatprep.mubr.f32.mxu0 0.0
      %v5195 = vand.u32 %v4842, 4294901760
      %v5196 = vsub.f32 %v4842, %v5195
      %v5197 = vand.u32 %v5196, 4294901760
      %v5198 = vsub.f32 %v5196, %v5197
      %v5199 = vand.u32 %v5198, 4294901760
      %5200 = vmatmul.mubr.f32.gmra.mrb[0].mxu0 %v5199
      %v5201 = vpop.f32.mrb[0].mxu0
      %v5202 = vadd.f32 %v4758, %v5201
      %v5203 = vpop.f32.mrb[0].mxu0
      %5204 = vmatprep.mubr.f32.mxu0 0.0
      %v5205 = vand.u32 %v4845, 4294901760
      %v5206 = vsub.f32 %v4845, %v5205
      %v5207 = vand.u32 %v5206, 4294901760
      %v5208 = vsub.f32 %v5206, %v5207
      %v5209 = vand.u32 %v5208, 4294901760
      %5210 = vmatmul.mubr.f32.gmra.mrb[0].mxu0 %v5209
      %v5211 = vpop.f32.mrb[0].mxu0
      %v5212 = vadd.f32 %v4758, %v5211
      %v5213 = vpop.f32.mrb[0].mxu0
      %5214 = vmatprep.mubr.f32.mxu0 0.0
      %v5215 = vand.u32 %v4848, 4294901760
      %v5216 = vsub.f32 %v4848, %v5215
      %v5217 = vand.u32 %v5216, 4294901760
      %v5218 = vsub.f32 %v5216, %v5217
      %v5219 = vand.u32 %v5218, 4294901760
      %5220 = vmatmul.mubr.f32.gmra.mrb[0].mxu0 %v5219
      %v5221 = vpop.f32.mrb[0].mxu0
      %v5222 = vadd.f32 %v4758, %v5221
      %v5223 = vpop.f32.mrb[0].mxu0
      %5224 = vmatprep.mubr.f32.mxu0 0.0
      %v5225 = vand.u32 %v4851, 4294901760
      %v5226 = vsub.f32 %v4851, %v5225
      %v5227 = vand.u32 %v5226, 4294901760
      %v5228 = vsub.f32 %v5226, %v5227
      %v5229 = vand.u32 %v5228, 4294901760
      %5230 = vmatmul.mubr.f32.gmra.mrb[0].mxu0 %v5229
      %v5231 = vpop.f32.mrb[0].mxu0
      %v5232 = vadd.f32 %v4758, %v5231
      %v5233 = vpop.f32.mrb[0].mxu0
      %5234 = vmatprep.mubr.f32.mxu0 0.0
      %v5235 = vand.u32 %v4854, 4294901760
      %v5236 = vsub.f32 %v4854, %v5235
      %v5237 = vand.u32 %v5236, 4294901760
      %v5238 = vsub.f32 %v5236, %v5237
      %v5239 = vand.u32 %v5238, 4294901760
      %5240 = vmatmul.mubr.f32.gmra.mrb[0].mxu0 %v5239
      %v5241 = vpop.f32.mrb[0].mxu0
      %v5242 = vadd.f32 %v4758, %v5241
      %v5243 = vpop.f32.mrb[0].mxu0
      %5244 = vdwg.mxu0
      %5245 = vmatprep.subr.mxu0 0.0
      %v5246 = vand.u32 %v4749, 4294901760
      %v5247 = vsub.f32 %v4749, %v5246
      %v5248 = vand.u32 %v5247, 4294901760
      %v5249 = vsub.f32 %v5247, %v5248
      %v5250 = vand.u32 %v5249, 4294901760
      %5251 = vmatpush1.msra.mxu0 %v5250
      %5252 = vmatprep.subr.mxu0 0.0
      %v5253 = vand.u32 %v4750, 4294901760
      %v5254 = vsub.f32 %v4750, %v5253
      %v5255 = vand.u32 %v5254, 4294901760
      %v5256 = vsub.f32 %v5254, %v5255
      %v5257 = vand.u32 %v5256, 4294901760
      %5258 = vmatpush1.msra.mxu0 %v5257
      %5259 = vmatprep.subr.mxu0 0.0
      %v5260 = vand.u32 %v4751, 4294901760
      %v5261 = vsub.f32 %v4751, %v5260
      %v5262 = vand.u32 %v5261, 4294901760
      %v5263 = vsub.f32 %v5261, %v5262
      %v5264 = vand.u32 %v5263, 4294901760
      %5265 = vmatpush1.msra.mxu0 %v5264
      %5266 = vmatprep.subr.mxu0 0.0
      %v5267 = vand.u32 %v4752, 4294901760
      %v5268 = vsub.f32 %v4752, %v5267
      %v5269 = vand.u32 %v5268, 4294901760
      %v5270 = vsub.f32 %v5268, %v5269
      %v5271 = vand.u32 %v5270, 4294901760
      %5272 = vmatpush1.msra.mxu0 %v5271
      %5273 = vmatprep.subr.mxu0 0.0
      %5274 = vmatpush1.msra.mxu0 0.0
      %5275 = vmatprep.subr.mxu0 0.0
      %5276 = vmatpush1.msra.mxu0 0.0
      %5277 = vmatprep.subr.mxu0 0.0
      %5278 = vmatpush1.msra.mxu0 0.0
      %5279 = vmatprep.subr.mxu0 0.0
      %5280 = vmatpush1.msra.mxu0 0.0
      %5281 = vmatprep.subr.mxu0 0.0
      %5282 = vmatpush1.msra.mxu0 0.0
      %5283 = vmatprep.subr.mxu0 0.0
      %5284 = vmatpush1.msra.mxu0 0.0
      %5285 = vmatprep.subr.mxu0 0.0
      %5286 = vmatpush1.msra.mxu0 0.0
      %5287 = vmatprep.subr.mxu0 0.0
      %5288 = vmatpush1.msra.mxu0 0.0
      %5289 = vmatprep.subr.mxu0 0.0
      %5290 = vmatpush1.msra.mxu0 0.0
      %5291 = vmatprep.subr.mxu0 0.0
      %5292 = vmatpush1.msra.mxu0 0.0
      %5293 = vmatprep.subr.mxu0 0.0
      %5294 = vmatpush1.msra.mxu0 0.0
      %5295 = vmatprep.subr.mxu0 0.0
      %5296 = vmatpush1.msra.mxu0 0.0
      %5297 = vmatprep.subr.mxu0 0.0
      %5298 = vmatpush1.msra.mxu0 0.0
      %5299 = vmatprep.subr.mxu0 0.0
      %5300 = vmatpush1.msra.mxu0 0.0
      %5301 = vmatprep.subr.mxu0 0.0
      %5302 = vmatpush1.msra.mxu0 0.0
      %5303 = vmatprep.subr.mxu0 0.0
      %5304 = vmatpush1.msra.mxu0 0.0
      %5305 = vmatprep.subr.mxu0 0.0
      %5306 = vmatpush1.msra.mxu0 0.0
      %5307 = vmatprep.subr.mxu0 0.0
      %5308 = vmatpush1.msra.mxu0 0.0
      %5309 = vmatprep.subr.mxu0 0.0
      %5310 = vmatpush1.msra.mxu0 0.0
      %5311 = vmatprep.subr.mxu0 0.0
      %5312 = vmatpush1.msra.mxu0 0.0
      %5313 = vmatprep.subr.mxu0 0.0
      %5314 = vmatpush1.msra.mxu0 0.0
      %5315 = vmatprep.subr.mxu0 0.0
      %5316 = vmatpush1.msra.mxu0 0.0
      %5317 = vmatprep.subr.mxu0 0.0
      %5318 = vmatpush1.msra.mxu0 0.0
      %5319 = vmatprep.subr.mxu0 0.0
      %5320 = vmatpush1.msra.mxu0 0.0
      %5321 = vmatprep.subr.mxu0 0.0
      %5322 = vmatpush1.msra.mxu0 0.0
      %5323 = vmatprep.subr.mxu0 0.0
      %5324 = vmatpush1.msra.mxu0 0.0
      %5325 = vmatprep.subr.mxu0 0.0
      %5326 = vmatpush1.msra.mxu0 0.0
      %5327 = vmatprep.subr.mxu0 0.0
      %5328 = vmatpush1.msra.mxu0 0.0
      %5329 = vmatprep.mubr.f32.mxu0 0.0
      %v5330 = vand.u32 %v4761, 4294901760
      %5331 = vmatmul.mubr.f32.gmra.mrb[0].mxu0 %v5330
      %v5332 = vpop.f32.mrb[0].mxu0
      %v5333 = vadd.f32 %v4932, %v5332
      %v5334 = vpop.f32.mrb[0].mxu0
      %5335 = vmatprep.mubr.f32.mxu0 0.0
      %v5336 = vand.u32 %v4764, 4294901760
      %5337 = vmatmul.mubr.f32.gmra.mrb[0].mxu0 %v5336
      %v5338 = vpop.f32.mrb[0].mxu0
      %v5339 = vadd.f32 %v4942, %v5338
      %v5340 = vpop.f32.mrb[0].mxu0
      %5341 = vmatprep.mubr.f32.mxu0 0.0
      %v5342 = vand.u32 %v4767, 4294901760
      %5343 = vmatmul.mubr.f32.gmra.mrb[0].mxu0 %v5342
      %v5344 = vpop.f32.mrb[0].mxu0
      %v5345 = vadd.f32 %v4952, %v5344
      %v5346 = vpop.f32.mrb[0].mxu0
      %5347 = vmatprep.mubr.f32.mxu0 0.0
      %v5348 = vand.u32 %v4770, 4294901760
      %5349 = vmatmul.mubr.f32.gmra.mrb[0].mxu0 %v5348
      %v5350 = vpop.f32.mrb[0].mxu0
      %v5351 = vadd.f32 %v4962, %v5350
      %v5352 = vpop.f32.mrb[0].mxu0
      %5353 = vmatprep.mubr.f32.mxu0 0.0
      %v5354 = vand.u32 %v4773, 4294901760
      %5355 = vmatmul.mubr.f32.gmra.mrb[0].mxu0 %v5354
      %v5356 = vpop.f32.mrb[0].mxu0
      %v5357 = vadd.f32 %v4972, %v5356
      %v5358 = vpop.f32.mrb[0].mxu0
      %5359 = vmatprep.mubr.f32.mxu0 0.0
      %v5360 = vand.u32 %v4776, 4294901760
      %5361 = vmatmul.mubr.f32.gmra.mrb[0].mxu0 %v5360
      %v5362 = vpop.f32.mrb[0].mxu0
      %v5363 = vadd.f32 %v4982, %v5362
      %v5364 = vpop.f32.mrb[0].mxu0
      %5365 = vmatprep.mubr.f32.mxu0 0.0
      %v5366 = vand.u32 %v4779, 4294901760
      %5367 = vmatmul.mubr.f32.gmra.mrb[0].mxu0 %v5366
      %v5368 = vpop.f32.mrb[0].mxu0
      %v5369 = vadd.f32 %v4992, %v5368
      %v5370 = vpop.f32.mrb[0].mxu0
      %5371 = vmatprep.mubr.f32.mxu0 0.0
      %v5372 = vand.u32 %v4782, 4294901760
      %5373 = vmatmul.mubr.f32.gmra.mrb[0].mxu0 %v5372
      %v5374 = vpop.f32.mrb[0].mxu0
      %v5375 = vadd.f32 %v5002, %v5374
      %v5376 = vpop.f32.mrb[0].mxu0
      %5377 = vmatprep.mubr.f32.mxu0 0.0
      %v5378 = vand.u32 %v4785, 4294901760
      %5379 = vmatmul.mubr.f32.gmra.mrb[0].mxu0 %v5378
      %v5380 = vpop.f32.mrb[0].mxu0
      %v5381 = vadd.f32 %v5012, %v5380
      %v5382 = vpop.f32.mrb[0].mxu0
      %5383 = vmatprep.mubr.f32.mxu0 0.0
      %v5384 = vand.u32 %v4788, 4294901760
      %5385 = vmatmul.mubr.f32.gmra.mrb[0].mxu0 %v5384
      %v5386 = vpop.f32.mrb[0].mxu0
      %v5387 = vadd.f32 %v5022, %v5386
      %v5388 = vpop.f32.mrb[0].mxu0
      %5389 = vmatprep.mubr.f32.mxu0 0.0
      %v5390 = vand.u32 %v4791, 4294901760
      %5391 = vmatmul.mubr.f32.gmra.mrb[0].mxu0 %v5390
      %v5392 = vpop.f32.mrb[0].mxu0
      %v5393 = vadd.f32 %v5032, %v5392
      %v5394 = vpop.f32.mrb[0].mxu0
      %5395 = vmatprep.mubr.f32.mxu0 0.0
      %v5396 = vand.u32 %v4794, 4294901760
      %5397 = vmatmul.mubr.f32.gmra.mrb[0].mxu0 %v5396
      %v5398 = vpop.f32.mrb[0].mxu0
      %v5399 = vadd.f32 %v5042, %v5398
      %v5400 = vpop.f32.mrb[0].mxu0
      %5401 = vmatprep.mubr.f32.mxu0 0.0
      %v5402 = vand.u32 %v4797, 4294901760
      %5403 = vmatmul.mubr.f32.gmra.mrb[0].mxu0 %v5402
      %v5404 = vpop.f32.mrb[0].mxu0
      %v5405 = vadd.f32 %v5052, %v5404
      %v5406 = vpop.f32.mrb[0].mxu0
      %5407 = vmatprep.mubr.f32.mxu0 0.0
      %v5408 = vand.u32 %v4800, 4294901760
      %5409 = vmatmul.mubr.f32.gmra.mrb[0].mxu0 %v5408
      %v5410 = vpop.f32.mrb[0].mxu0
      %v5411 = vadd.f32 %v5062, %v5410
      %v5412 = vpop.f32.mrb[0].mxu0
      %5413 = vmatprep.mubr.f32.mxu0 0.0
      %v5414 = vand.u32 %v4803, 4294901760
      %5415 = vmatmul.mubr.f32.gmra.mrb[0].mxu0 %v5414
      %v5416 = vpop.f32.mrb[0].mxu0
      %v5417 = vadd.f32 %v5072, %v5416
      %v5418 = vpop.f32.mrb[0].mxu0
      %5419 = vmatprep.mubr.f32.mxu0 0.0
      %v5420 = vand.u32 %v4806, 4294901760
      %5421 = vmatmul.mubr.f32.gmra.mrb[0].mxu0 %v5420
      %v5422 = vpop.f32.mrb[0].mxu0
      %v5423 = vadd.f32 %v5082, %v5422
      %v5424 = vpop.f32.mrb[0].mxu0
      %5425 = vmatprep.mubr.f32.mxu0 0.0
      %v5426 = vand.u32 %v4809, 4294901760
      %5427 = vmatmul.mubr.f32.gmra.mrb[0].mxu0 %v5426
      %v5428 = vpop.f32.mrb[0].mxu0
      %v5429 = vadd.f32 %v5092, %v5428
      %v5430 = vpop.f32.mrb[0].mxu0
      %5431 = vmatprep.mubr.f32.mxu0 0.0
      %v5432 = vand.u32 %v4812, 4294901760
      %5433 = vmatmul.mubr.f32.gmra.mrb[0].mxu0 %v5432
      %v5434 = vpop.f32.mrb[0].mxu0
      %v5435 = vadd.f32 %v5102, %v5434
      %v5436 = vpop.f32.mrb[0].mxu0
      %5437 = vmatprep.mubr.f32.mxu0 0.0
      %v5438 = vand.u32 %v4815, 4294901760
      %5439 = vmatmul.mubr.f32.gmra.mrb[0].mxu0 %v5438
      %v5440 = vpop.f32.mrb[0].mxu0
      %v5441 = vadd.f32 %v5112, %v5440
      %v5442 = vpop.f32.mrb[0].mxu0
      %5443 = vmatprep.mubr.f32.mxu0 0.0
      %v5444 = vand.u32 %v4818, 4294901760
      %5445 = vmatmul.mubr.f32.gmra.mrb[0].mxu0 %v5444
      %v5446 = vpop.f32.mrb[0].mxu0
      %v5447 = vadd.f32 %v5122, %v5446
      %v5448 = vpop.f32.mrb[0].mxu0
      %5449 = vmatprep.mubr.f32.mxu0 0.0
      %v5450 = vand.u32 %v4821, 4294901760
      %5451 = vmatmul.mubr.f32.gmra.mrb[0].mxu0 %v5450
      %v5452 = vpop.f32.mrb[0].mxu0
      %v5453 = vadd.f32 %v5132, %v5452
      %v5454 = vpop.f32.mrb[0].mxu0
      %5455 = vmatprep.mubr.f32.mxu0 0.0
      %v5456 = vand.u32 %v4824, 4294901760
      %5457 = vmatmul.mubr.f32.gmra.mrb[0].mxu0 %v5456
      %v5458 = vpop.f32.mrb[0].mxu0
      %v5459 = vadd.f32 %v5142, %v5458
      %v5460 = vpop.f32.mrb[0].mxu0
      %5461 = vmatprep.mubr.f32.mxu0 0.0
      %v5462 = vand.u32 %v4827, 4294901760
      %5463 = vmatmul.mubr.f32.gmra.mrb[0].mxu0 %v5462
      %v5464 = vpop.f32.mrb[0].mxu0
      %v5465 = vadd.f32 %v5152, %v5464
      %v5466 = vpop.f32.mrb[0].mxu0
      %5467 = vmatprep.mubr.f32.mxu0 0.0
      %v5468 = vand.u32 %v4830, 4294901760
      %5469 = vmatmul.mubr.f32.gmra.mrb[0].mxu0 %v5468
      %v5470 = vpop.f32.mrb[0].mxu0
      %v5471 = vadd.f32 %v5162, %v5470
      %v5472 = vpop.f32.mrb[0].mxu0
      %5473 = vmatprep.mubr.f32.mxu0 0.0
      %v5474 = vand.u32 %v4833, 4294901760
      %5475 = vmatmul.mubr.f32.gmra.mrb[0].mxu0 %v5474
      %v5476 = vpop.f32.mrb[0].mxu0
      %v5477 = vadd.f32 %v5172, %v5476
      %v5478 = vpop.f32.mrb[0].mxu0
      %5479 = vmatprep.mubr.f32.mxu0 0.0
      %v5480 = vand.u32 %v4836, 4294901760
      %5481 = vmatmul.mubr.f32.gmra.mrb[0].mxu0 %v5480
      %v5482 = vpop.f32.mrb[0].mxu0
      %v5483 = vadd.f32 %v5182, %v5482
      %v5484 = vpop.f32.mrb[0].mxu0
      %5485 = vmatprep.mubr.f32.mxu0 0.0
      %v5486 = vand.u32 %v4839, 4294901760
      %5487 = vmatmul.mubr.f32.gmra.mrb[0].mxu0 %v5486
      %v5488 = vpop.f32.mrb[0].mxu0
      %v5489 = vadd.f32 %v5192, %v5488
      %v5490 = vpop.f32.mrb[0].mxu0
      %5491 = vmatprep.mubr.f32.mxu0 0.0
      %v5492 = vand.u32 %v4842, 4294901760
      %5493 = vmatmul.mubr.f32.gmra.mrb[0].mxu0 %v5492
      %v5494 = vpop.f32.mrb[0].mxu0
      %v5495 = vadd.f32 %v5202, %v5494
      %v5496 = vpop.f32.mrb[0].mxu0
      %5497 = vmatprep.mubr.f32.mxu0 0.0
      %v5498 = vand.u32 %v4845, 4294901760
      %5499 = vmatmul.mubr.f32.gmra.mrb[0].mxu0 %v5498
      %v5500 = vpop.f32.mrb[0].mxu0
      %v5501 = vadd.f32 %v5212, %v5500
      %v5502 = vpop.f32.mrb[0].mxu0
      %5503 = vmatprep.mubr.f32.mxu0 0.0
      %v5504 = vand.u32 %v4848, 4294901760
      %5505 = vmatmul.mubr.f32.gmra.mrb[0].mxu0 %v5504
      %v5506 = vpop.f32.mrb[0].mxu0
      %v5507 = vadd.f32 %v5222, %v5506
      %v5508 = vpop.f32.mrb[0].mxu0
      %5509 = vmatprep.mubr.f32.mxu0 0.0
      %v5510 = vand.u32 %v4851, 4294901760
      %5511 = vmatmul.mubr.f32.gmra.mrb[0].mxu0 %v5510
      %v5512 = vpop.f32.mrb[0].mxu0
      %v5513 = vadd.f32 %v5232, %v5512
      %v5514 = vpop.f32.mrb[0].mxu0
      %5515 = vmatprep.mubr.f32.mxu0 0.0
      %v5516 = vand.u32 %v4854, 4294901760
      %5517 = vmatmul.mubr.f32.gmra.mrb[0].mxu0 %v5516
      %v5518 = vpop.f32.mrb[0].mxu0
      %v5519 = vadd.f32 %v5242, %v5518
      %v5520 = vpop.f32.mrb[0].mxu0
      %5521 = vdwg.mxu0
      %5522 = vmatprep.subr.mxu0 0.0
      %v5523 = vand.u32 %v4749, 4294901760
      %v5524 = vsub.f32 %v4749, %v5523
      %5525 = vmatpush1.msra.mxu0 %v5524
      %5526 = vmatprep.subr.mxu0 0.0
      %v5527 = vand.u32 %v4750, 4294901760
      %v5528 = vsub.f32 %v4750, %v5527
      %5529 = vmatpush1.msra.mxu0 %v5528
      %5530 = vmatprep.subr.mxu0 0.0
      %v5531 = vand.u32 %v4751, 4294901760
      %v5532 = vsub.f32 %v4751, %v5531
      %5533 = vmatpush1.msra.mxu0 %v5532
      %5534 = vmatprep.subr.mxu0 0.0
      %v5535 = vand.u32 %v4752, 4294901760
      %v5536 = vsub.f32 %v4752, %v5535
      %5537 = vmatpush1.msra.mxu0 %v5536
      %5538 = vmatprep.subr.mxu0 0.0
      %5539 = vmatpush1.msra.mxu0 0.0
      %5540 = vmatprep.subr.mxu0 0.0
      %5541 = vmatpush1.msra.mxu0 0.0
      %5542 = vmatprep.subr.mxu0 0.0
      %5543 = vmatpush1.msra.mxu0 0.0
      %5544 = vmatprep.subr.mxu0 0.0
      %5545 = vmatpush1.msra.mxu0 0.0
      %5546 = vmatprep.subr.mxu0 0.0
      %5547 = vmatpush1.msra.mxu0 0.0
      %5548 = vmatprep.subr.mxu0 0.0
      %5549 = vmatpush1.msra.mxu0 0.0
      %5550 = vmatprep.subr.mxu0 0.0
      %5551 = vmatpush1.msra.mxu0 0.0
      %5552 = vmatprep.subr.mxu0 0.0
      %5553 = vmatpush1.msra.mxu0 0.0
      %5554 = vmatprep.subr.mxu0 0.0
      %5555 = vmatpush1.msra.mxu0 0.0
      %5556 = vmatprep.subr.mxu0 0.0
      %5557 = vmatpush1.msra.mxu0 0.0
      %5558 = vmatprep.subr.mxu0 0.0
      %5559 = vmatpush1.msra.mxu0 0.0
      %5560 = vmatprep.subr.mxu0 0.0
      %5561 = vmatpush1.msra.mxu0 0.0
      %5562 = vmatprep.subr.mxu0 0.0
      %5563 = vmatpush1.msra.mxu0 0.0
      %5564 = vmatprep.subr.mxu0 0.0
      %5565 = vmatpush1.msra.mxu0 0.0
      %5566 = vmatprep.subr.mxu0 0.0
      %5567 = vmatpush1.msra.mxu0 0.0
      %5568 = vmatprep.subr.mxu0 0.0
      %5569 = vmatpush1.msra.mxu0 0.0
      %5570 = vmatprep.subr.mxu0 0.0
      %5571 = vmatpush1.msra.mxu0 0.0
      %5572 = vmatprep.subr.mxu0 0.0
      %5573 = vmatpush1.msra.mxu0 0.0
      %5574 = vmatprep.subr.mxu0 0.0
      %5575 = vmatpush1.msra.mxu0 0.0
      %5576 = vmatprep.subr.mxu0 0.0
      %5577 = vmatpush1.msra.mxu0 0.0
      %5578 = vmatprep.subr.mxu0 0.0
      %5579 = vmatpush1.msra.mxu0 0.0
      %5580 = vmatprep.subr.mxu0 0.0
      %5581 = vmatpush1.msra.mxu0 0.0
      %5582 = vmatprep.subr.mxu0 0.0
      %5583 = vmatpush1.msra.mxu0 0.0
      %5584 = vmatprep.subr.mxu0 0.0
      %5585 = vmatpush1.msra.mxu0 0.0
      %5586 = vmatprep.subr.mxu0 0.0
      %5587 = vmatpush1.msra.mxu0 0.0
      %5588 = vmatprep.subr.mxu0 0.0
      %5589 = vmatpush1.msra.mxu0 0.0
      %5590 = vmatprep.subr.mxu0 0.0
      %5591 = vmatpush1.msra.mxu0 0.0
      %5592 = vmatprep.subr.mxu0 0.0
      %5593 = vmatpush1.msra.mxu0 0.0
      %5594 = vmatprep.mubr.f32.mxu0 0.0
      %v5595 = vand.u32 %v4761, 4294901760
      %v5596 = vsub.f32 %v4761, %v5595
      %5597 = vmatmul.mubr.f32.gmra.mrb[0].mxu0 %v5596
      %v5598 = vpop.f32.mrb[0].mxu0
      %v5599 = vadd.f32 %v5333, %v5598
      %v5600 = vpop.f32.mrb[0].mxu0
      %5601 = vmatprep.mubr.f32.mxu0 0.0
      %v5602 = vand.u32 %v4764, 4294901760
      %v5603 = vsub.f32 %v4764, %v5602
      %5604 = vmatmul.mubr.f32.gmra.mrb[0].mxu0 %v5603
      %v5605 = vpop.f32.mrb[0].mxu0
      %v5606 = vadd.f32 %v5339, %v5605
      %v5607 = vpop.f32.mrb[0].mxu0
      %5608 = vmatprep.mubr.f32.mxu0 0.0
      %v5609 = vand.u32 %v4767, 4294901760
      %v5610 = vsub.f32 %v4767, %v5609
      %5611 = vmatmul.mubr.f32.gmra.mrb[0].mxu0 %v5610
      %v5612 = vpop.f32.mrb[0].mxu0
      %v5613 = vadd.f32 %v5345, %v5612
      %v5614 = vpop.f32.mrb[0].mxu0
      %5615 = vmatprep.mubr.f32.mxu0 0.0
      %v5616 = vand.u32 %v4770, 4294901760
      %v5617 = vsub.f32 %v4770, %v5616
      %5618 = vmatmul.mubr.f32.gmra.mrb[0].mxu0 %v5617
      %v5619 = vpop.f32.mrb[0].mxu0
      %v5620 = vadd.f32 %v5351, %v5619
      %v5621 = vpop.f32.mrb[0].mxu0
      %5622 = vmatprep.mubr.f32.mxu0 0.0
      %v5623 = vand.u32 %v4773, 4294901760
      %v5624 = vsub.f32 %v4773, %v5623
      %5625 = vmatmul.mubr.f32.gmra.mrb[0].mxu0 %v5624
      %v5626 = vpop.f32.mrb[0].mxu0
      %v5627 = vadd.f32 %v5357, %v5626
      %v5628 = vpop.f32.mrb[0].mxu0
      %5629 = vmatprep.mubr.f32.mxu0 0.0
      %v5630 = vand.u32 %v4776, 4294901760
      %v5631 = vsub.f32 %v4776, %v5630
      %5632 = vmatmul.mubr.f32.gmra.mrb[0].mxu0 %v5631
      %v5633 = vpop.f32.mrb[0].mxu0
      %v5634 = vadd.f32 %v5363, %v5633
      %v5635 = vpop.f32.mrb[0].mxu0
      %5636 = vmatprep.mubr.f32.mxu0 0.0
      %v5637 = vand.u32 %v4779, 4294901760
      %v5638 = vsub.f32 %v4779, %v5637
      %5639 = vmatmul.mubr.f32.gmra.mrb[0].mxu0 %v5638
      %v5640 = vpop.f32.mrb[0].mxu0
      %v5641 = vadd.f32 %v5369, %v5640
      %v5642 = vpop.f32.mrb[0].mxu0
      %5643 = vmatprep.mubr.f32.mxu0 0.0
      %v5644 = vand.u32 %v4782, 4294901760
      %v5645 = vsub.f32 %v4782, %v5644
      %5646 = vmatmul.mubr.f32.gmra.mrb[0].mxu0 %v5645
      %v5647 = vpop.f32.mrb[0].mxu0
      %v5648 = vadd.f32 %v5375, %v5647
      %v5649 = vpop.f32.mrb[0].mxu0
      %5650 = vmatprep.mubr.f32.mxu0 0.0
      %v5651 = vand.u32 %v4785, 4294901760
      %v5652 = vsub.f32 %v4785, %v5651
      %5653 = vmatmul.mubr.f32.gmra.mrb[0].mxu0 %v5652
      %v5654 = vpop.f32.mrb[0].mxu0
      %v5655 = vadd.f32 %v5381, %v5654
      %v5656 = vpop.f32.mrb[0].mxu0
      %5657 = vmatprep.mubr.f32.mxu0 0.0
      %v5658 = vand.u32 %v4788, 4294901760
      %v5659 = vsub.f32 %v4788, %v5658
      %5660 = vmatmul.mubr.f32.gmra.mrb[0].mxu0 %v5659
      %v5661 = vpop.f32.mrb[0].mxu0
      %v5662 = vadd.f32 %v5387, %v5661
      %v5663 = vpop.f32.mrb[0].mxu0
      %5664 = vmatprep.mubr.f32.mxu0 0.0
      %v5665 = vand.u32 %v4791, 4294901760
      %v5666 = vsub.f32 %v4791, %v5665
      %5667 = vmatmul.mubr.f32.gmra.mrb[0].mxu0 %v5666
      %v5668 = vpop.f32.mrb[0].mxu0
      %v5669 = vadd.f32 %v5393, %v5668
      %v5670 = vpop.f32.mrb[0].mxu0
      %5671 = vmatprep.mubr.f32.mxu0 0.0
      %v5672 = vand.u32 %v4794, 4294901760
      %v5673 = vsub.f32 %v4794, %v5672
      %5674 = vmatmul.mubr.f32.gmra.mrb[0].mxu0 %v5673
      %v5675 = vpop.f32.mrb[0].mxu0
      %v5676 = vadd.f32 %v5399, %v5675
      %v5677 = vpop.f32.mrb[0].mxu0
      %5678 = vmatprep.mubr.f32.mxu0 0.0
      %v5679 = vand.u32 %v4797, 4294901760
      %v5680 = vsub.f32 %v4797, %v5679
      %5681 = vmatmul.mubr.f32.gmra.mrb[0].mxu0 %v5680
      %v5682 = vpop.f32.mrb[0].mxu0
      %v5683 = vadd.f32 %v5405, %v5682
      %v5684 = vpop.f32.mrb[0].mxu0
      %5685 = vmatprep.mubr.f32.mxu0 0.0
      %v5686 = vand.u32 %v4800, 4294901760
      %v5687 = vsub.f32 %v4800, %v5686
      %5688 = vmatmul.mubr.f32.gmra.mrb[0].mxu0 %v5687
      %v5689 = vpop.f32.mrb[0].mxu0
      %v5690 = vadd.f32 %v5411, %v5689
      %v5691 = vpop.f32.mrb[0].mxu0
      %5692 = vmatprep.mubr.f32.mxu0 0.0
      %v5693 = vand.u32 %v4803, 4294901760
      %v5694 = vsub.f32 %v4803, %v5693
      %5695 = vmatmul.mubr.f32.gmra.mrb[0].mxu0 %v5694
      %v5696 = vpop.f32.mrb[0].mxu0
      %v5697 = vadd.f32 %v5417, %v5696
      %v5698 = vpop.f32.mrb[0].mxu0
      %5699 = vmatprep.mubr.f32.mxu0 0.0
      %v5700 = vand.u32 %v4806, 4294901760
      %v5701 = vsub.f32 %v4806, %v5700
      %5702 = vmatmul.mubr.f32.gmra.mrb[0].mxu0 %v5701
      %v5703 = vpop.f32.mrb[0].mxu0
      %v5704 = vadd.f32 %v5423, %v5703
      %v5705 = vpop.f32.mrb[0].mxu0
      %5706 = vmatprep.mubr.f32.mxu0 0.0
      %v5707 = vand.u32 %v4809, 4294901760
      %v5708 = vsub.f32 %v4809, %v5707
      %5709 = vmatmul.mubr.f32.gmra.mrb[0].mxu0 %v5708
      %v5710 = vpop.f32.mrb[0].mxu0
      %v5711 = vadd.f32 %v5429, %v5710
      %v5712 = vpop.f32.mrb[0].mxu0
      %5713 = vmatprep.mubr.f32.mxu0 0.0
      %v5714 = vand.u32 %v4812, 4294901760
      %v5715 = vsub.f32 %v4812, %v5714
      %5716 = vmatmul.mubr.f32.gmra.mrb[0].mxu0 %v5715
      %v5717 = vpop.f32.mrb[0].mxu0
      %v5718 = vadd.f32 %v5435, %v5717
      %v5719 = vpop.f32.mrb[0].mxu0
      %5720 = vmatprep.mubr.f32.mxu0 0.0
      %v5721 = vand.u32 %v4815, 4294901760
      %v5722 = vsub.f32 %v4815, %v5721
      %5723 = vmatmul.mubr.f32.gmra.mrb[0].mxu0 %v5722
      %v5724 = vpop.f32.mrb[0].mxu0
      %v5725 = vadd.f32 %v5441, %v5724
      %v5726 = vpop.f32.mrb[0].mxu0
      %5727 = vmatprep.mubr.f32.mxu0 0.0
      %v5728 = vand.u32 %v4818, 4294901760
      %v5729 = vsub.f32 %v4818, %v5728
      %5730 = vmatmul.mubr.f32.gmra.mrb[0].mxu0 %v5729
      %v5731 = vpop.f32.mrb[0].mxu0
      %v5732 = vadd.f32 %v5447, %v5731
      %v5733 = vpop.f32.mrb[0].mxu0
      %5734 = vmatprep.mubr.f32.mxu0 0.0
      %v5735 = vand.u32 %v4821, 4294901760
      %v5736 = vsub.f32 %v4821, %v5735
      %5737 = vmatmul.mubr.f32.gmra.mrb[0].mxu0 %v5736
      %v5738 = vpop.f32.mrb[0].mxu0
      %v5739 = vadd.f32 %v5453, %v5738
      %v5740 = vpop.f32.mrb[0].mxu0
      %5741 = vmatprep.mubr.f32.mxu0 0.0
      %v5742 = vand.u32 %v4824, 4294901760
      %v5743 = vsub.f32 %v4824, %v5742
      %5744 = vmatmul.mubr.f32.gmra.mrb[0].mxu0 %v5743
      %v5745 = vpop.f32.mrb[0].mxu0
      %v5746 = vadd.f32 %v5459, %v5745
      %v5747 = vpop.f32.mrb[0].mxu0
      %5748 = vmatprep.mubr.f32.mxu0 0.0
      %v5749 = vand.u32 %v4827, 4294901760
      %v5750 = vsub.f32 %v4827, %v5749
      %5751 = vmatmul.mubr.f32.gmra.mrb[0].mxu0 %v5750
      %v5752 = vpop.f32.mrb[0].mxu0
      %v5753 = vadd.f32 %v5465, %v5752
      %v5754 = vpop.f32.mrb[0].mxu0
      %5755 = vmatprep.mubr.f32.mxu0 0.0
      %v5756 = vand.u32 %v4830, 4294901760
      %v5757 = vsub.f32 %v4830, %v5756
      %5758 = vmatmul.mubr.f32.gmra.mrb[0].mxu0 %v5757
      %v5759 = vpop.f32.mrb[0].mxu0
      %v5760 = vadd.f32 %v5471, %v5759
      %v5761 = vpop.f32.mrb[0].mxu0
      %5762 = vmatprep.mubr.f32.mxu0 0.0
      %v5763 = vand.u32 %v4833, 4294901760
      %v5764 = vsub.f32 %v4833, %v5763
      %5765 = vmatmul.mubr.f32.gmra.mrb[0].mxu0 %v5764
      %v5766 = vpop.f32.mrb[0].mxu0
      %v5767 = vadd.f32 %v5477, %v5766
      %v5768 = vpop.f32.mrb[0].mxu0
      %5769 = vmatprep.mubr.f32.mxu0 0.0
      %v5770 = vand.u32 %v4836, 4294901760
      %v5771 = vsub.f32 %v4836, %v5770
      %5772 = vmatmul.mubr.f32.gmra.mrb[0].mxu0 %v5771
      %v5773 = vpop.f32.mrb[0].mxu0
      %v5774 = vadd.f32 %v5483, %v5773
      %v5775 = vpop.f32.mrb[0].mxu0
      %5776 = vmatprep.mubr.f32.mxu0 0.0
      %v5777 = vand.u32 %v4839, 4294901760
      %v5778 = vsub.f32 %v4839, %v5777
      %5779 = vmatmul.mubr.f32.gmra.mrb[0].mxu0 %v5778
      %v5780 = vpop.f32.mrb[0].mxu0
      %v5781 = vadd.f32 %v5489, %v5780
      %v5782 = vpop.f32.mrb[0].mxu0
      %5783 = vmatprep.mubr.f32.mxu0 0.0
      %v5784 = vand.u32 %v4842, 4294901760
      %v5785 = vsub.f32 %v4842, %v5784
      %5786 = vmatmul.mubr.f32.gmra.mrb[0].mxu0 %v5785
      %v5787 = vpop.f32.mrb[0].mxu0
      %v5788 = vadd.f32 %v5495, %v5787
      %v5789 = vpop.f32.mrb[0].mxu0
      %5790 = vmatprep.mubr.f32.mxu0 0.0
      %v5791 = vand.u32 %v4845, 4294901760
      %v5792 = vsub.f32 %v4845, %v5791
      %5793 = vmatmul.mubr.f32.gmra.mrb[0].mxu0 %v5792
      %v5794 = vpop.f32.mrb[0].mxu0
      %v5795 = vadd.f32 %v5501, %v5794
      %v5796 = vpop.f32.mrb[0].mxu0
      %5797 = vmatprep.mubr.f32.mxu0 0.0
      %v5798 = vand.u32 %v4848, 4294901760
      %v5799 = vsub.f32 %v4848, %v5798
      %5800 = vmatmul.mubr.f32.gmra.mrb[0].mxu0 %v5799
      %v5801 = vpop.f32.mrb[0].mxu0
      %v5802 = vadd.f32 %v5507, %v5801
      %v5803 = vpop.f32.mrb[0].mxu0
      %5804 = vmatprep.mubr.f32.mxu0 0.0
      %v5805 = vand.u32 %v4851, 4294901760
      %v5806 = vsub.f32 %v4851, %v5805
      %5807 = vmatmul.mubr.f32.gmra.mrb[0].mxu0 %v5806
      %v5808 = vpop.f32.mrb[0].mxu0
      %v5809 = vadd.f32 %v5513, %v5808
      %v5810 = vpop.f32.mrb[0].mxu0
      %5811 = vmatprep.mubr.f32.mxu0 0.0
      %v5812 = vand.u32 %v4854, 4294901760
      %v5813 = vsub.f32 %v4854, %v5812
      %5814 = vmatmul.mubr.f32.gmra.mrb[0].mxu0 %v5813
      %v5815 = vpop.f32.mrb[0].mxu0
      %v5816 = vadd.f32 %v5519, %v5815
      %v5817 = vpop.f32.mrb[0].mxu0
      %5818 = vdwg.mxu0
      %5819 = vmatprep.subr.mxu0 0.0
      %v5820 = vand.u32 %v4749, 4294901760
      %5821 = vmatpush1.msra.mxu0 %v5820
      %5822 = vmatprep.subr.mxu0 0.0
      %v5823 = vand.u32 %v4750, 4294901760
      %5824 = vmatpush1.msra.mxu0 %v5823
      %5825 = vmatprep.subr.mxu0 0.0
      %v5826 = vand.u32 %v4751, 4294901760
      %5827 = vmatpush1.msra.mxu0 %v5826
      %5828 = vmatprep.subr.mxu0 0.0
      %v5829 = vand.u32 %v4752, 4294901760
      %5830 = vmatpush1.msra.mxu0 %v5829
      %5831 = vmatprep.subr.mxu0 0.0
      %5832 = vmatpush1.msra.mxu0 0.0
      %5833 = vmatprep.subr.mxu0 0.0
      %5834 = vmatpush1.msra.mxu0 0.0
      %5835 = vmatprep.subr.mxu0 0.0
      %5836 = vmatpush1.msra.mxu0 0.0
      %5837 = vmatprep.subr.mxu0 0.0
      %5838 = vmatpush1.msra.mxu0 0.0
      %5839 = vmatprep.subr.mxu0 0.0
      %5840 = vmatpush1.msra.mxu0 0.0
      %5841 = vmatprep.subr.mxu0 0.0
      %5842 = vmatpush1.msra.mxu0 0.0
      %5843 = vmatprep.subr.mxu0 0.0
      %5844 = vmatpush1.msra.mxu0 0.0
      %5845 = vmatprep.subr.mxu0 0.0
      %5846 = vmatpush1.msra.mxu0 0.0
      %5847 = vmatprep.subr.mxu0 0.0
      %5848 = vmatpush1.msra.mxu0 0.0
      %5849 = vmatprep.subr.mxu0 0.0
      %5850 = vmatpush1.msra.mxu0 0.0
      %5851 = vmatprep.subr.mxu0 0.0
      %5852 = vmatpush1.msra.mxu0 0.0
      %5853 = vmatprep.subr.mxu0 0.0
      %5854 = vmatpush1.msra.mxu0 0.0
      %5855 = vmatprep.subr.mxu0 0.0
      %5856 = vmatpush1.msra.mxu0 0.0
      %5857 = vmatprep.subr.mxu0 0.0
      %5858 = vmatpush1.msra.mxu0 0.0
      %5859 = vmatprep.subr.mxu0 0.0
      %5860 = vmatpush1.msra.mxu0 0.0
      %5861 = vmatprep.subr.mxu0 0.0
      %5862 = vmatpush1.msra.mxu0 0.0
      %5863 = vmatprep.subr.mxu0 0.0
      %5864 = vmatpush1.msra.mxu0 0.0
      %5865 = vmatprep.subr.mxu0 0.0
      %5866 = vmatpush1.msra.mxu0 0.0
      %5867 = vmatprep.subr.mxu0 0.0
      %5868 = vmatpush1.msra.mxu0 0.0
      %5869 = vmatprep.subr.mxu0 0.0
      %5870 = vmatpush1.msra.mxu0 0.0
      %5871 = vmatprep.subr.mxu0 0.0
      %5872 = vmatpush1.msra.mxu0 0.0
      %5873 = vmatprep.subr.mxu0 0.0
      %5874 = vmatpush1.msra.mxu0 0.0
      %5875 = vmatprep.subr.mxu0 0.0
      %5876 = vmatpush1.msra.mxu0 0.0
      %5877 = vmatprep.subr.mxu0 0.0
      %5878 = vmatpush1.msra.mxu0 0.0
      %5879 = vmatprep.subr.mxu0 0.0
      %5880 = vmatpush1.msra.mxu0 0.0
      %5881 = vmatprep.subr.mxu0 0.0
      %5882 = vmatpush1.msra.mxu0 0.0
      %5883 = vmatprep.subr.mxu0 0.0
      %5884 = vmatpush1.msra.mxu0 0.0
      %5885 = vmatprep.subr.mxu0 0.0
      %5886 = vmatpush1.msra.mxu0 0.0
      %5887 = vmatprep.mubr.f32.mxu0 0.0
      %v5888 = vand.u32 %v4761, 4294901760
      %v5889 = vsub.f32 %v4761, %v5888
      %v5890 = vand.u32 %v5889, 4294901760
      %5891 = vmatmul.mubr.f32.gmra.mrb[0].mxu0 %v5890
      %v5892 = vpop.f32.mrb[0].mxu0
      %v5893 = vadd.f32 %v5599, %v5892
      %v5894 = vpop.f32.mrb[0].mxu0
      %5895 = vmatprep.mubr.f32.mxu0 0.0
      %v5896 = vand.u32 %v4764, 4294901760
      %v5897 = vsub.f32 %v4764, %v5896
      %v5898 = vand.u32 %v5897, 4294901760
      %5899 = vmatmul.mubr.f32.gmra.mrb[0].mxu0 %v5898
      %v5900 = vpop.f32.mrb[0].mxu0
      %v5901 = vadd.f32 %v5606, %v5900
      %v5902 = vpop.f32.mrb[0].mxu0
      %5903 = vmatprep.mubr.f32.mxu0 0.0
      %v5904 = vand.u32 %v4767, 4294901760
      %v5905 = vsub.f32 %v4767, %v5904
      %v5906 = vand.u32 %v5905, 4294901760
      %5907 = vmatmul.mubr.f32.gmra.mrb[0].mxu0 %v5906
      %v5908 = vpop.f32.mrb[0].mxu0
      %v5909 = vadd.f32 %v5613, %v5908
      %v5910 = vpop.f32.mrb[0].mxu0
      %5911 = vmatprep.mubr.f32.mxu0 0.0
      %v5912 = vand.u32 %v4770, 4294901760
      %v5913 = vsub.f32 %v4770, %v5912
      %v5914 = vand.u32 %v5913, 4294901760
      %5915 = vmatmul.mubr.f32.gmra.mrb[0].mxu0 %v5914
      %v5916 = vpop.f32.mrb[0].mxu0
      %v5917 = vadd.f32 %v5620, %v5916
      %v5918 = vpop.f32.mrb[0].mxu0
      %5919 = vmatprep.mubr.f32.mxu0 0.0
      %v5920 = vand.u32 %v4773, 4294901760
      %v5921 = vsub.f32 %v4773, %v5920
      %v5922 = vand.u32 %v5921, 4294901760
      %5923 = vmatmul.mubr.f32.gmra.mrb[0].mxu0 %v5922
      %v5924 = vpop.f32.mrb[0].mxu0
      %v5925 = vadd.f32 %v5627, %v5924
      %v5926 = vpop.f32.mrb[0].mxu0
      %5927 = vmatprep.mubr.f32.mxu0 0.0
      %v5928 = vand.u32 %v4776, 4294901760
      %v5929 = vsub.f32 %v4776, %v5928
      %v5930 = vand.u32 %v5929, 4294901760
      %5931 = vmatmul.mubr.f32.gmra.mrb[0].mxu0 %v5930
      %v5932 = vpop.f32.mrb[0].mxu0
      %v5933 = vadd.f32 %v5634, %v5932
      %v5934 = vpop.f32.mrb[0].mxu0
      %5935 = vmatprep.mubr.f32.mxu0 0.0
      %v5936 = vand.u32 %v4779, 4294901760
      %v5937 = vsub.f32 %v4779, %v5936
      %v5938 = vand.u32 %v5937, 4294901760
      %5939 = vmatmul.mubr.f32.gmra.mrb[0].mxu0 %v5938
      %v5940 = vpop.f32.mrb[0].mxu0
      %v5941 = vadd.f32 %v5641, %v5940
      %v5942 = vpop.f32.mrb[0].mxu0
      %5943 = vmatprep.mubr.f32.mxu0 0.0
      %v5944 = vand.u32 %v4782, 4294901760
      %v5945 = vsub.f32 %v4782, %v5944
      %v5946 = vand.u32 %v5945, 4294901760
      %5947 = vmatmul.mubr.f32.gmra.mrb[0].mxu0 %v5946
      %v5948 = vpop.f32.mrb[0].mxu0
      %v5949 = vadd.f32 %v5648, %v5948
      %v5950 = vpop.f32.mrb[0].mxu0
      %5951 = vmatprep.mubr.f32.mxu0 0.0
      %v5952 = vand.u32 %v4785, 4294901760
      %v5953 = vsub.f32 %v4785, %v5952
      %v5954 = vand.u32 %v5953, 4294901760
      %5955 = vmatmul.mubr.f32.gmra.mrb[0].mxu0 %v5954
      %v5956 = vpop.f32.mrb[0].mxu0
      %v5957 = vadd.f32 %v5655, %v5956
      %v5958 = vpop.f32.mrb[0].mxu0
      %5959 = vmatprep.mubr.f32.mxu0 0.0
      %v5960 = vand.u32 %v4788, 4294901760
      %v5961 = vsub.f32 %v4788, %v5960
      %v5962 = vand.u32 %v5961, 4294901760
      %5963 = vmatmul.mubr.f32.gmra.mrb[0].mxu0 %v5962
      %v5964 = vpop.f32.mrb[0].mxu0
      %v5965 = vadd.f32 %v5662, %v5964
      %v5966 = vpop.f32.mrb[0].mxu0
      %5967 = vmatprep.mubr.f32.mxu0 0.0
      %v5968 = vand.u32 %v4791, 4294901760
      %v5969 = vsub.f32 %v4791, %v5968
      %v5970 = vand.u32 %v5969, 4294901760
      %5971 = vmatmul.mubr.f32.gmra.mrb[0].mxu0 %v5970
      %v5972 = vpop.f32.mrb[0].mxu0
      %v5973 = vadd.f32 %v5669, %v5972
      %v5974 = vpop.f32.mrb[0].mxu0
      %5975 = vmatprep.mubr.f32.mxu0 0.0
      %v5976 = vand.u32 %v4794, 4294901760
      %v5977 = vsub.f32 %v4794, %v5976
      %v5978 = vand.u32 %v5977, 4294901760
      %5979 = vmatmul.mubr.f32.gmra.mrb[0].mxu0 %v5978
      %v5980 = vpop.f32.mrb[0].mxu0
      %v5981 = vadd.f32 %v5676, %v5980
      %v5982 = vpop.f32.mrb[0].mxu0
      %5983 = vmatprep.mubr.f32.mxu0 0.0
      %v5984 = vand.u32 %v4797, 4294901760
      %v5985 = vsub.f32 %v4797, %v5984
      %v5986 = vand.u32 %v5985, 4294901760
      %5987 = vmatmul.mubr.f32.gmra.mrb[0].mxu0 %v5986
      %v5988 = vpop.f32.mrb[0].mxu0
      %v5989 = vadd.f32 %v5683, %v5988
      %v5990 = vpop.f32.mrb[0].mxu0
      %5991 = vmatprep.mubr.f32.mxu0 0.0
      %v5992 = vand.u32 %v4800, 4294901760
      %v5993 = vsub.f32 %v4800, %v5992
      %v5994 = vand.u32 %v5993, 4294901760
      %5995 = vmatmul.mubr.f32.gmra.mrb[0].mxu0 %v5994
      %v5996 = vpop.f32.mrb[0].mxu0
      %v5997 = vadd.f32 %v5690, %v5996
      %v5998 = vpop.f32.mrb[0].mxu0
      %5999 = vmatprep.mubr.f32.mxu0 0.0
      %v6000 = vand.u32 %v4803, 4294901760
      %v6001 = vsub.f32 %v4803, %v6000
      %v6002 = vand.u32 %v6001, 4294901760
      %6003 = vmatmul.mubr.f32.gmra.mrb[0].mxu0 %v6002
      %v6004 = vpop.f32.mrb[0].mxu0
      %v6005 = vadd.f32 %v5697, %v6004
      %v6006 = vpop.f32.mrb[0].mxu0
      %6007 = vmatprep.mubr.f32.mxu0 0.0
      %v6008 = vand.u32 %v4806, 4294901760
      %v6009 = vsub.f32 %v4806, %v6008
      %v6010 = vand.u32 %v6009, 4294901760
      %6011 = vmatmul.mubr.f32.gmra.mrb[0].mxu0 %v6010
      %v6012 = vpop.f32.mrb[0].mxu0
      %v6013 = vadd.f32 %v5704, %v6012
      %v6014 = vpop.f32.mrb[0].mxu0
      %6015 = vmatprep.mubr.f32.mxu0 0.0
      %v6016 = vand.u32 %v4809, 4294901760
      %v6017 = vsub.f32 %v4809, %v6016
      %v6018 = vand.u32 %v6017, 4294901760
      %6019 = vmatmul.mubr.f32.gmra.mrb[0].mxu0 %v6018
      %v6020 = vpop.f32.mrb[0].mxu0
      %v6021 = vadd.f32 %v5711, %v6020
      %v6022 = vpop.f32.mrb[0].mxu0
      %6023 = vmatprep.mubr.f32.mxu0 0.0
      %v6024 = vand.u32 %v4812, 4294901760
      %v6025 = vsub.f32 %v4812, %v6024
      %v6026 = vand.u32 %v6025, 4294901760
      %6027 = vmatmul.mubr.f32.gmra.mrb[0].mxu0 %v6026
      %v6028 = vpop.f32.mrb[0].mxu0
      %v6029 = vadd.f32 %v5718, %v6028
      %v6030 = vpop.f32.mrb[0].mxu0
      %6031 = vmatprep.mubr.f32.mxu0 0.0
      %v6032 = vand.u32 %v4815, 4294901760
      %v6033 = vsub.f32 %v4815, %v6032
      %v6034 = vand.u32 %v6033, 4294901760
      %6035 = vmatmul.mubr.f32.gmra.mrb[0].mxu0 %v6034
      %v6036 = vpop.f32.mrb[0].mxu0
      %v6037 = vadd.f32 %v5725, %v6036
      %v6038 = vpop.f32.mrb[0].mxu0
      %6039 = vmatprep.mubr.f32.mxu0 0.0
      %v6040 = vand.u32 %v4818, 4294901760
      %v6041 = vsub.f32 %v4818, %v6040
      %v6042 = vand.u32 %v6041, 4294901760
      %6043 = vmatmul.mubr.f32.gmra.mrb[0].mxu0 %v6042
      %v6044 = vpop.f32.mrb[0].mxu0
      %v6045 = vadd.f32 %v5732, %v6044
      %v6046 = vpop.f32.mrb[0].mxu0
      %6047 = vmatprep.mubr.f32.mxu0 0.0
      %v6048 = vand.u32 %v4821, 4294901760
      %v6049 = vsub.f32 %v4821, %v6048
      %v6050 = vand.u32 %v6049, 4294901760
      %6051 = vmatmul.mubr.f32.gmra.mrb[0].mxu0 %v6050
      %v6052 = vpop.f32.mrb[0].mxu0
      %v6053 = vadd.f32 %v5739, %v6052
      %v6054 = vpop.f32.mrb[0].mxu0
      %6055 = vmatprep.mubr.f32.mxu0 0.0
      %v6056 = vand.u32 %v4824, 4294901760
      %v6057 = vsub.f32 %v4824, %v6056
      %v6058 = vand.u32 %v6057, 4294901760
      %6059 = vmatmul.mubr.f32.gmra.mrb[0].mxu0 %v6058
      %v6060 = vpop.f32.mrb[0].mxu0
      %v6061 = vadd.f32 %v5746, %v6060
      %v6062 = vpop.f32.mrb[0].mxu0
      %6063 = vmatprep.mubr.f32.mxu0 0.0
      %v6064 = vand.u32 %v4827, 4294901760
      %v6065 = vsub.f32 %v4827, %v6064
      %v6066 = vand.u32 %v6065, 4294901760
      %6067 = vmatmul.mubr.f32.gmra.mrb[0].mxu0 %v6066
      %v6068 = vpop.f32.mrb[0].mxu0
      %v6069 = vadd.f32 %v5753, %v6068
      %v6070 = vpop.f32.mrb[0].mxu0
      %6071 = vmatprep.mubr.f32.mxu0 0.0
      %v6072 = vand.u32 %v4830, 4294901760
      %v6073 = vsub.f32 %v4830, %v6072
      %v6074 = vand.u32 %v6073, 4294901760
      %6075 = vmatmul.mubr.f32.gmra.mrb[0].mxu0 %v6074
      %v6076 = vpop.f32.mrb[0].mxu0
      %v6077 = vadd.f32 %v5760, %v6076
      %v6078 = vpop.f32.mrb[0].mxu0
      %6079 = vmatprep.mubr.f32.mxu0 0.0
      %v6080 = vand.u32 %v4833, 4294901760
      %v6081 = vsub.f32 %v4833, %v6080
      %v6082 = vand.u32 %v6081, 4294901760
      %6083 = vmatmul.mubr.f32.gmra.mrb[0].mxu0 %v6082
      %v6084 = vpop.f32.mrb[0].mxu0
      %v6085 = vadd.f32 %v5767, %v6084
      %v6086 = vpop.f32.mrb[0].mxu0
      %6087 = vmatprep.mubr.f32.mxu0 0.0
      %v6088 = vand.u32 %v4836, 4294901760
      %v6089 = vsub.f32 %v4836, %v6088
      %v6090 = vand.u32 %v6089, 4294901760
      %6091 = vmatmul.mubr.f32.gmra.mrb[0].mxu0 %v6090
      %v6092 = vpop.f32.mrb[0].mxu0
      %v6093 = vadd.f32 %v5774, %v6092
      %v6094 = vpop.f32.mrb[0].mxu0
      %6095 = vmatprep.mubr.f32.mxu0 0.0
      %v6096 = vand.u32 %v4839, 4294901760
      %v6097 = vsub.f32 %v4839, %v6096
      %v6098 = vand.u32 %v6097, 4294901760
      %6099 = vmatmul.mubr.f32.gmra.mrb[0].mxu0 %v6098
      %v6100 = vpop.f32.mrb[0].mxu0
      %v6101 = vadd.f32 %v5781, %v6100
      %v6102 = vpop.f32.mrb[0].mxu0
      %6103 = vmatprep.mubr.f32.mxu0 0.0
      %v6104 = vand.u32 %v4842, 4294901760
      %v6105 = vsub.f32 %v4842, %v6104
      %v6106 = vand.u32 %v6105, 4294901760
      %6107 = vmatmul.mubr.f32.gmra.mrb[0].mxu0 %v6106
      %v6108 = vpop.f32.mrb[0].mxu0
      %v6109 = vadd.f32 %v5788, %v6108
      %v6110 = vpop.f32.mrb[0].mxu0
      %6111 = vmatprep.mubr.f32.mxu0 0.0
      %v6112 = vand.u32 %v4845, 4294901760
      %v6113 = vsub.f32 %v4845, %v6112
      %v6114 = vand.u32 %v6113, 4294901760
      %6115 = vmatmul.mubr.f32.gmra.mrb[0].mxu0 %v6114
      %v6116 = vpop.f32.mrb[0].mxu0
      %v6117 = vadd.f32 %v5795, %v6116
      %v6118 = vpop.f32.mrb[0].mxu0
      %6119 = vmatprep.mubr.f32.mxu0 0.0
      %v6120 = vand.u32 %v4848, 4294901760
      %v6121 = vsub.f32 %v4848, %v6120
      %v6122 = vand.u32 %v6121, 4294901760
      %6123 = vmatmul.mubr.f32.gmra.mrb[0].mxu0 %v6122
      %v6124 = vpop.f32.mrb[0].mxu0
      %v6125 = vadd.f32 %v5802, %v6124
      %v6126 = vpop.f32.mrb[0].mxu0
      %6127 = vmatprep.mubr.f32.mxu0 0.0
      %v6128 = vand.u32 %v4851, 4294901760
      %v6129 = vsub.f32 %v4851, %v6128
      %v6130 = vand.u32 %v6129, 4294901760
      %6131 = vmatmul.mubr.f32.gmra.mrb[0].mxu0 %v6130
      %v6132 = vpop.f32.mrb[0].mxu0
      %v6133 = vadd.f32 %v5809, %v6132
      %v6134 = vpop.f32.mrb[0].mxu0
      %6135 = vmatprep.mubr.f32.mxu0 0.0
      %v6136 = vand.u32 %v4854, 4294901760
      %v6137 = vsub.f32 %v4854, %v6136
      %v6138 = vand.u32 %v6137, 4294901760
      %6139 = vmatmul.mubr.f32.gmra.mrb[0].mxu0 %v6138
      %v6140 = vpop.f32.mrb[0].mxu0
      %v6141 = vadd.f32 %v5816, %v6140
      %v6142 = vpop.f32.mrb[0].mxu0
      %6143 = vdwg.mxu0
      %6144 = vmatprep.subr.mxu0 0.0
      %v6145 = vand.u32 %v4749, 4294901760
      %v6146 = vsub.f32 %v4749, %v6145
      %v6147 = vand.u32 %v6146, 4294901760
      %6148 = vmatpush1.msra.mxu0 %v6147
      %6149 = vmatprep.subr.mxu0 0.0
      %v6150 = vand.u32 %v4750, 4294901760
      %v6151 = vsub.f32 %v4750, %v6150
      %v6152 = vand.u32 %v6151, 4294901760
      %6153 = vmatpush1.msra.mxu0 %v6152
      %6154 = vmatprep.subr.mxu0 0.0
      %v6155 = vand.u32 %v4751, 4294901760
      %v6156 = vsub.f32 %v4751, %v6155
      %v6157 = vand.u32 %v6156, 4294901760
      %6158 = vmatpush1.msra.mxu0 %v6157
      %6159 = vmatprep.subr.mxu0 0.0
      %v6160 = vand.u32 %v4752, 4294901760
      %v6161 = vsub.f32 %v4752, %v6160
      %v6162 = vand.u32 %v6161, 4294901760
      %6163 = vmatpush1.msra.mxu0 %v6162
      %6164 = vmatprep.subr.mxu0 0.0
      %6165 = vmatpush1.msra.mxu0 0.0
      %6166 = vmatprep.subr.mxu0 0.0
      %6167 = vmatpush1.msra.mxu0 0.0
      %6168 = vmatprep.subr.mxu0 0.0
      %6169 = vmatpush1.msra.mxu0 0.0
      %6170 = vmatprep.subr.mxu0 0.0
      %6171 = vmatpush1.msra.mxu0 0.0
      %6172 = vmatprep.subr.mxu0 0.0
      %6173 = vmatpush1.msra.mxu0 0.0
      %6174 = vmatprep.subr.mxu0 0.0
      %6175 = vmatpush1.msra.mxu0 0.0
      %6176 = vmatprep.subr.mxu0 0.0
      %6177 = vmatpush1.msra.mxu0 0.0
      %6178 = vmatprep.subr.mxu0 0.0
      %6179 = vmatpush1.msra.mxu0 0.0
      %6180 = vmatprep.subr.mxu0 0.0
      %6181 = vmatpush1.msra.mxu0 0.0
      %6182 = vmatprep.subr.mxu0 0.0
      %6183 = vmatpush1.msra.mxu0 0.0
      %6184 = vmatprep.subr.mxu0 0.0
      %6185 = vmatpush1.msra.mxu0 0.0
      %6186 = vmatprep.subr.mxu0 0.0
      %6187 = vmatpush1.msra.mxu0 0.0
      %6188 = vmatprep.subr.mxu0 0.0
      %6189 = vmatpush1.msra.mxu0 0.0
      %6190 = vmatprep.subr.mxu0 0.0
      %6191 = vmatpush1.msra.mxu0 0.0
      %6192 = vmatprep.subr.mxu0 0.0
      %6193 = vmatpush1.msra.mxu0 0.0
      %6194 = vmatprep.subr.mxu0 0.0
      %6195 = vmatpush1.msra.mxu0 0.0
      %6196 = vmatprep.subr.mxu0 0.0
      %6197 = vmatpush1.msra.mxu0 0.0
      %6198 = vmatprep.subr.mxu0 0.0
      %6199 = vmatpush1.msra.mxu0 0.0
      %6200 = vmatprep.subr.mxu0 0.0
      %6201 = vmatpush1.msra.mxu0 0.0
      %6202 = vmatprep.subr.mxu0 0.0
      %6203 = vmatpush1.msra.mxu0 0.0
      %6204 = vmatprep.subr.mxu0 0.0
      %6205 = vmatpush1.msra.mxu0 0.0
      %6206 = vmatprep.subr.mxu0 0.0
      %6207 = vmatpush1.msra.mxu0 0.0
      %6208 = vmatprep.subr.mxu0 0.0
      %6209 = vmatpush1.msra.mxu0 0.0
      %6210 = vmatprep.subr.mxu0 0.0
      %6211 = vmatpush1.msra.mxu0 0.0
      %6212 = vmatprep.subr.mxu0 0.0
      %6213 = vmatpush1.msra.mxu0 0.0
      %6214 = vmatprep.subr.mxu0 0.0
      %6215 = vmatpush1.msra.mxu0 0.0
      %6216 = vmatprep.subr.mxu0 0.0
      %6217 = vmatpush1.msra.mxu0 0.0
      %6218 = vmatprep.subr.mxu0 0.0
      %6219 = vmatpush1.msra.mxu0 0.0
      %6220 = vmatprep.mubr.f32.mxu0 0.0
      %v6221 = vand.u32 %v4761, 4294901760
      %6222 = vmatmul.mubr.f32.gmra.mrb[0].mxu0 %v6221
      %v6223 = vpop.f32.mrb[0].mxu0
      %v6224 = vadd.f32 %v5893, %v6223
      %v6225 = vpop.f32.mrb[0].mxu0
      %6226 = vmatprep.mubr.f32.mxu0 0.0
      %v6227 = vand.u32 %v4764, 4294901760
      %6228 = vmatmul.mubr.f32.gmra.mrb[0].mxu0 %v6227
      %v6229 = vpop.f32.mrb[0].mxu0
      %v6230 = vadd.f32 %v5901, %v6229
      %v6231 = vpop.f32.mrb[0].mxu0
      %6232 = vmatprep.mubr.f32.mxu0 0.0
      %v6233 = vand.u32 %v4767, 4294901760
      %6234 = vmatmul.mubr.f32.gmra.mrb[0].mxu0 %v6233
      %v6235 = vpop.f32.mrb[0].mxu0
      %v6236 = vadd.f32 %v5909, %v6235
      %v6237 = vpop.f32.mrb[0].mxu0
      %6238 = vmatprep.mubr.f32.mxu0 0.0
      %v6239 = vand.u32 %v4770, 4294901760
      %6240 = vmatmul.mubr.f32.gmra.mrb[0].mxu0 %v6239
      %v6241 = vpop.f32.mrb[0].mxu0
      %v6242 = vadd.f32 %v5917, %v6241
      %v6243 = vpop.f32.mrb[0].mxu0
      %6244 = vmatprep.mubr.f32.mxu0 0.0
      %v6245 = vand.u32 %v4773, 4294901760
      %6246 = vmatmul.mubr.f32.gmra.mrb[0].mxu0 %v6245
      %v6247 = vpop.f32.mrb[0].mxu0
      %v6248 = vadd.f32 %v5925, %v6247
      %v6249 = vpop.f32.mrb[0].mxu0
      %6250 = vmatprep.mubr.f32.mxu0 0.0
      %v6251 = vand.u32 %v4776, 4294901760
      %6252 = vmatmul.mubr.f32.gmra.mrb[0].mxu0 %v6251
      %v6253 = vpop.f32.mrb[0].mxu0
      %v6254 = vadd.f32 %v5933, %v6253
      %v6255 = vpop.f32.mrb[0].mxu0
      %6256 = vmatprep.mubr.f32.mxu0 0.0
      %v6257 = vand.u32 %v4779, 4294901760
      %6258 = vmatmul.mubr.f32.gmra.mrb[0].mxu0 %v6257
      %v6259 = vpop.f32.mrb[0].mxu0
      %v6260 = vadd.f32 %v5941, %v6259
      %v6261 = vpop.f32.mrb[0].mxu0
      %6262 = vmatprep.mubr.f32.mxu0 0.0
      %v6263 = vand.u32 %v4782, 4294901760
      %6264 = vmatmul.mubr.f32.gmra.mrb[0].mxu0 %v6263
      %v6265 = vpop.f32.mrb[0].mxu0
      %v6266 = vadd.f32 %v5949, %v6265
      %v6267 = vpop.f32.mrb[0].mxu0
      %6268 = vmatprep.mubr.f32.mxu0 0.0
      %v6269 = vand.u32 %v4785, 4294901760
      %6270 = vmatmul.mubr.f32.gmra.mrb[0].mxu0 %v6269
      %v6271 = vpop.f32.mrb[0].mxu0
      %v6272 = vadd.f32 %v5957, %v6271
      %v6273 = vpop.f32.mrb[0].mxu0
      %6274 = vmatprep.mubr.f32.mxu0 0.0
      %v6275 = vand.u32 %v4788, 4294901760
      %6276 = vmatmul.mubr.f32.gmra.mrb[0].mxu0 %v6275
      %v6277 = vpop.f32.mrb[0].mxu0
      %v6278 = vadd.f32 %v5965, %v6277
      %v6279 = vpop.f32.mrb[0].mxu0
      %6280 = vmatprep.mubr.f32.mxu0 0.0
      %v6281 = vand.u32 %v4791, 4294901760
      %6282 = vmatmul.mubr.f32.gmra.mrb[0].mxu0 %v6281
      %v6283 = vpop.f32.mrb[0].mxu0
      %v6284 = vadd.f32 %v5973, %v6283
      %v6285 = vpop.f32.mrb[0].mxu0
      %6286 = vmatprep.mubr.f32.mxu0 0.0
      %v6287 = vand.u32 %v4794, 4294901760
      %6288 = vmatmul.mubr.f32.gmra.mrb[0].mxu0 %v6287
      %v6289 = vpop.f32.mrb[0].mxu0
      %v6290 = vadd.f32 %v5981, %v6289
      %v6291 = vpop.f32.mrb[0].mxu0
      %6292 = vmatprep.mubr.f32.mxu0 0.0
      %v6293 = vand.u32 %v4797, 4294901760
      %6294 = vmatmul.mubr.f32.gmra.mrb[0].mxu0 %v6293
      %v6295 = vpop.f32.mrb[0].mxu0
      %v6296 = vadd.f32 %v5989, %v6295
      %v6297 = vpop.f32.mrb[0].mxu0
      %6298 = vmatprep.mubr.f32.mxu0 0.0
      %v6299 = vand.u32 %v4800, 4294901760
      %6300 = vmatmul.mubr.f32.gmra.mrb[0].mxu0 %v6299
      %v6301 = vpop.f32.mrb[0].mxu0
      %v6302 = vadd.f32 %v5997, %v6301
      %v6303 = vpop.f32.mrb[0].mxu0
      %6304 = vmatprep.mubr.f32.mxu0 0.0
      %v6305 = vand.u32 %v4803, 4294901760
      %6306 = vmatmul.mubr.f32.gmra.mrb[0].mxu0 %v6305
      %v6307 = vpop.f32.mrb[0].mxu0
      %v6308 = vadd.f32 %v6005, %v6307
      %v6309 = vpop.f32.mrb[0].mxu0
      %6310 = vmatprep.mubr.f32.mxu0 0.0
      %v6311 = vand.u32 %v4806, 4294901760
      %6312 = vmatmul.mubr.f32.gmra.mrb[0].mxu0 %v6311
      %v6313 = vpop.f32.mrb[0].mxu0
      %v6314 = vadd.f32 %v6013, %v6313
      %v6315 = vpop.f32.mrb[0].mxu0
      %6316 = vmatprep.mubr.f32.mxu0 0.0
      %v6317 = vand.u32 %v4809, 4294901760
      %6318 = vmatmul.mubr.f32.gmra.mrb[0].mxu0 %v6317
      %v6319 = vpop.f32.mrb[0].mxu0
      %v6320 = vadd.f32 %v6021, %v6319
      %v6321 = vpop.f32.mrb[0].mxu0
      %6322 = vmatprep.mubr.f32.mxu0 0.0
      %v6323 = vand.u32 %v4812, 4294901760
      %6324 = vmatmul.mubr.f32.gmra.mrb[0].mxu0 %v6323
      %v6325 = vpop.f32.mrb[0].mxu0
      %v6326 = vadd.f32 %v6029, %v6325
      %v6327 = vpop.f32.mrb[0].mxu0
      %6328 = vmatprep.mubr.f32.mxu0 0.0
      %v6329 = vand.u32 %v4815, 4294901760
      %6330 = vmatmul.mubr.f32.gmra.mrb[0].mxu0 %v6329
      %v6331 = vpop.f32.mrb[0].mxu0
      %v6332 = vadd.f32 %v6037, %v6331
      %v6333 = vpop.f32.mrb[0].mxu0
      %6334 = vmatprep.mubr.f32.mxu0 0.0
      %v6335 = vand.u32 %v4818, 4294901760
      %6336 = vmatmul.mubr.f32.gmra.mrb[0].mxu0 %v6335
      %v6337 = vpop.f32.mrb[0].mxu0
      %v6338 = vadd.f32 %v6045, %v6337
      %v6339 = vpop.f32.mrb[0].mxu0
      %6340 = vmatprep.mubr.f32.mxu0 0.0
      %v6341 = vand.u32 %v4821, 4294901760
      %6342 = vmatmul.mubr.f32.gmra.mrb[0].mxu0 %v6341
      %v6343 = vpop.f32.mrb[0].mxu0
      %v6344 = vadd.f32 %v6053, %v6343
      %v6345 = vpop.f32.mrb[0].mxu0
      %6346 = vmatprep.mubr.f32.mxu0 0.0
      %v6347 = vand.u32 %v4824, 4294901760
      %6348 = vmatmul.mubr.f32.gmra.mrb[0].mxu0 %v6347
      %v6349 = vpop.f32.mrb[0].mxu0
      %v6350 = vadd.f32 %v6061, %v6349
      %v6351 = vpop.f32.mrb[0].mxu0
      %6352 = vmatprep.mubr.f32.mxu0 0.0
      %v6353 = vand.u32 %v4827, 4294901760
      %6354 = vmatmul.mubr.f32.gmra.mrb[0].mxu0 %v6353
      %v6355 = vpop.f32.mrb[0].mxu0
      %v6356 = vadd.f32 %v6069, %v6355
      %v6357 = vpop.f32.mrb[0].mxu0
      %6358 = vmatprep.mubr.f32.mxu0 0.0
      %v6359 = vand.u32 %v4830, 4294901760
      %6360 = vmatmul.mubr.f32.gmra.mrb[0].mxu0 %v6359
      %v6361 = vpop.f32.mrb[0].mxu0
      %v6362 = vadd.f32 %v6077, %v6361
      %v6363 = vpop.f32.mrb[0].mxu0
      %6364 = vmatprep.mubr.f32.mxu0 0.0
      %v6365 = vand.u32 %v4833, 4294901760
      %6366 = vmatmul.mubr.f32.gmra.mrb[0].mxu0 %v6365
      %v6367 = vpop.f32.mrb[0].mxu0
      %v6368 = vadd.f32 %v6085, %v6367
      %v6369 = vpop.f32.mrb[0].mxu0
      %6370 = vmatprep.mubr.f32.mxu0 0.0
      %v6371 = vand.u32 %v4836, 4294901760
      %6372 = vmatmul.mubr.f32.gmra.mrb[0].mxu0 %v6371
      %v6373 = vpop.f32.mrb[0].mxu0
      %v6374 = vadd.f32 %v6093, %v6373
      %v6375 = vpop.f32.mrb[0].mxu0
      %6376 = vmatprep.mubr.f32.mxu0 0.0
      %v6377 = vand.u32 %v4839, 4294901760
      %6378 = vmatmul.mubr.f32.gmra.mrb[0].mxu0 %v6377
      %v6379 = vpop.f32.mrb[0].mxu0
      %v6380 = vadd.f32 %v6101, %v6379
      %v6381 = vpop.f32.mrb[0].mxu0
      %6382 = vmatprep.mubr.f32.mxu0 0.0
      %v6383 = vand.u32 %v4842, 4294901760
      %6384 = vmatmul.mubr.f32.gmra.mrb[0].mxu0 %v6383
      %v6385 = vpop.f32.mrb[0].mxu0
      %v6386 = vadd.f32 %v6109, %v6385
      %v6387 = vpop.f32.mrb[0].mxu0
      %6388 = vmatprep.mubr.f32.mxu0 0.0
      %v6389 = vand.u32 %v4845, 4294901760
      %6390 = vmatmul.mubr.f32.gmra.mrb[0].mxu0 %v6389
      %v6391 = vpop.f32.mrb[0].mxu0
      %v6392 = vadd.f32 %v6117, %v6391
      %v6393 = vpop.f32.mrb[0].mxu0
      %6394 = vmatprep.mubr.f32.mxu0 0.0
      %v6395 = vand.u32 %v4848, 4294901760
      %6396 = vmatmul.mubr.f32.gmra.mrb[0].mxu0 %v6395
      %v6397 = vpop.f32.mrb[0].mxu0
      %v6398 = vadd.f32 %v6125, %v6397
      %v6399 = vpop.f32.mrb[0].mxu0
      %6400 = vmatprep.mubr.f32.mxu0 0.0
      %v6401 = vand.u32 %v4851, 4294901760
      %6402 = vmatmul.mubr.f32.gmra.mrb[0].mxu0 %v6401
      %v6403 = vpop.f32.mrb[0].mxu0
      %v6404 = vadd.f32 %v6133, %v6403
      %v6405 = vpop.f32.mrb[0].mxu0
      %6406 = vmatprep.mubr.f32.mxu0 0.0
      %v6407 = vand.u32 %v4854, 4294901760
      %6408 = vmatmul.mubr.f32.gmra.mrb[0].mxu0 %v6407
      %v6409 = vpop.f32.mrb[0].mxu0
      %v6410 = vadd.f32 %v6141, %v6409
      %v6411 = vpop.f32.mrb[0].mxu0
      %6412 = vdwg.mxu0
      %6413 = vmatprep.subr.mxu0 0.0
      %v6414 = vand.u32 %v4749, 4294901760
      %6415 = vmatpush1.msra.mxu0 %v6414
      %6416 = vmatprep.subr.mxu0 0.0
      %v6417 = vand.u32 %v4750, 4294901760
      %6418 = vmatpush1.msra.mxu0 %v6417
      %6419 = vmatprep.subr.mxu0 0.0
      %v6420 = vand.u32 %v4751, 4294901760
      %6421 = vmatpush1.msra.mxu0 %v6420
      %6422 = vmatprep.subr.mxu0 0.0
      %v6423 = vand.u32 %v4752, 4294901760
      %6424 = vmatpush1.msra.mxu0 %v6423
      %6425 = vmatprep.subr.mxu0 0.0
      %6426 = vmatpush1.msra.mxu0 0.0
      %6427 = vmatprep.subr.mxu0 0.0
      %6428 = vmatpush1.msra.mxu0 0.0
      %6429 = vmatprep.subr.mxu0 0.0
      %6430 = vmatpush1.msra.mxu0 0.0
      %6431 = vmatprep.subr.mxu0 0.0
      %6432 = vmatpush1.msra.mxu0 0.0
      %6433 = vmatprep.subr.mxu0 0.0
      %6434 = vmatpush1.msra.mxu0 0.0
      %6435 = vmatprep.subr.mxu0 0.0
      %6436 = vmatpush1.msra.mxu0 0.0
      %6437 = vmatprep.subr.mxu0 0.0
      %6438 = vmatpush1.msra.mxu0 0.0
      %6439 = vmatprep.subr.mxu0 0.0
      %6440 = vmatpush1.msra.mxu0 0.0
      %6441 = vmatprep.subr.mxu0 0.0
      %6442 = vmatpush1.msra.mxu0 0.0
      %6443 = vmatprep.subr.mxu0 0.0
      %6444 = vmatpush1.msra.mxu0 0.0
      %6445 = vmatprep.subr.mxu0 0.0
      %6446 = vmatpush1.msra.mxu0 0.0
      %6447 = vmatprep.subr.mxu0 0.0
      %6448 = vmatpush1.msra.mxu0 0.0
      %6449 = vmatprep.subr.mxu0 0.0
      %6450 = vmatpush1.msra.mxu0 0.0
      %6451 = vmatprep.subr.mxu0 0.0
      %6452 = vmatpush1.msra.mxu0 0.0
      %6453 = vmatprep.subr.mxu0 0.0
      %6454 = vmatpush1.msra.mxu0 0.0
      %6455 = vmatprep.subr.mxu0 0.0
      %6456 = vmatpush1.msra.mxu0 0.0
      %6457 = vmatprep.subr.mxu0 0.0
      %6458 = vmatpush1.msra.mxu0 0.0
      %6459 = vmatprep.subr.mxu0 0.0
      %6460 = vmatpush1.msra.mxu0 0.0
      %6461 = vmatprep.subr.mxu0 0.0
      %6462 = vmatpush1.msra.mxu0 0.0
      %6463 = vmatprep.subr.mxu0 0.0
      %6464 = vmatpush1.msra.mxu0 0.0
      %6465 = vmatprep.subr.mxu0 0.0
      %6466 = vmatpush1.msra.mxu0 0.0
      %6467 = vmatprep.subr.mxu0 0.0
      %6468 = vmatpush1.msra.mxu0 0.0
      %6469 = vmatprep.subr.mxu0 0.0
      %6470 = vmatpush1.msra.mxu0 0.0
      %6471 = vmatprep.subr.mxu0 0.0
      %6472 = vmatpush1.msra.mxu0 0.0
      %6473 = vmatprep.subr.mxu0 0.0
      %6474 = vmatpush1.msra.mxu0 0.0
      %6475 = vmatprep.subr.mxu0 0.0
      %6476 = vmatpush1.msra.mxu0 0.0
      %6477 = vmatprep.subr.mxu0 0.0
      %6478 = vmatpush1.msra.mxu0 0.0
      %6479 = vmatprep.subr.mxu0 0.0
      %6480 = vmatpush1.msra.mxu0 0.0
      %6481 = vmatprep.mubr.f32.mxu0 0.0
      %v6482 = vand.u32 %v4761, 4294901760
      %6483 = vmatmul.mubr.f32.gmra.mrb[0].mxu0 %v6482
      %v6484 = vpop.f32.mrb[0].mxu0
      %v6485 = vadd.f32 %v6224, %v6484
      %v6486 = vpop.f32.mrb[0].mxu0
      %6487 = vmatprep.mubr.f32.mxu0 0.0
      %v6488 = vand.u32 %v4764, 4294901760
      %6489 = vmatmul.mubr.f32.gmra.mrb[0].mxu0 %v6488
      %v6490 = vpop.f32.mrb[0].mxu0
      %v6491 = vadd.f32 %v6230, %v6490
      %v6492 = vpop.f32.mrb[0].mxu0
      %6493 = vmatprep.mubr.f32.mxu0 0.0
      %v6494 = vand.u32 %v4767, 4294901760
      %6495 = vmatmul.mubr.f32.gmra.mrb[0].mxu0 %v6494
      %v6496 = vpop.f32.mrb[0].mxu0
      %v6497 = vadd.f32 %v6236, %v6496
      %v6498 = vpop.f32.mrb[0].mxu0
      %6499 = vmatprep.mubr.f32.mxu0 0.0
      %v6500 = vand.u32 %v4770, 4294901760
      %6501 = vmatmul.mubr.f32.gmra.mrb[0].mxu0 %v6500
      %v6502 = vpop.f32.mrb[0].mxu0
      %v6503 = vadd.f32 %v6242, %v6502
      %v6504 = vpop.f32.mrb[0].mxu0
      %6505 = vmatprep.mubr.f32.mxu0 0.0
      %v6506 = vand.u32 %v4773, 4294901760
      %6507 = vmatmul.mubr.f32.gmra.mrb[0].mxu0 %v6506
      %v6508 = vpop.f32.mrb[0].mxu0
      %v6509 = vadd.f32 %v6248, %v6508
      %v6510 = vpop.f32.mrb[0].mxu0
      %6511 = vmatprep.mubr.f32.mxu0 0.0
      %v6512 = vand.u32 %v4776, 4294901760
      %6513 = vmatmul.mubr.f32.gmra.mrb[0].mxu0 %v6512
      %v6514 = vpop.f32.mrb[0].mxu0
      %v6515 = vadd.f32 %v6254, %v6514
      %v6516 = vpop.f32.mrb[0].mxu0
      %6517 = vmatprep.mubr.f32.mxu0 0.0
      %v6518 = vand.u32 %v4779, 4294901760
      %6519 = vmatmul.mubr.f32.gmra.mrb[0].mxu0 %v6518
      %v6520 = vpop.f32.mrb[0].mxu0
      %v6521 = vadd.f32 %v6260, %v6520
      %v6522 = vpop.f32.mrb[0].mxu0
      %6523 = vmatprep.mubr.f32.mxu0 0.0
      %v6524 = vand.u32 %v4782, 4294901760
      %6525 = vmatmul.mubr.f32.gmra.mrb[0].mxu0 %v6524
      %v6526 = vpop.f32.mrb[0].mxu0
      %v6527 = vadd.f32 %v6266, %v6526
      %v6528 = vpop.f32.mrb[0].mxu0
      %6529 = vmatprep.mubr.f32.mxu0 0.0
      %v6530 = vand.u32 %v4785, 4294901760
      %6531 = vmatmul.mubr.f32.gmra.mrb[0].mxu0 %v6530
      %v6532 = vpop.f32.mrb[0].mxu0
      %v6533 = vadd.f32 %v6272, %v6532
      %v6534 = vpop.f32.mrb[0].mxu0
      %6535 = vmatprep.mubr.f32.mxu0 0.0
      %v6536 = vand.u32 %v4788, 4294901760
      %6537 = vmatmul.mubr.f32.gmra.mrb[0].mxu0 %v6536
      %v6538 = vpop.f32.mrb[0].mxu0
      %v6539 = vadd.f32 %v6278, %v6538
      %v6540 = vpop.f32.mrb[0].mxu0
      %6541 = vmatprep.mubr.f32.mxu0 0.0
      %v6542 = vand.u32 %v4791, 4294901760
      %6543 = vmatmul.mubr.f32.gmra.mrb[0].mxu0 %v6542
      %v6544 = vpop.f32.mrb[0].mxu0
      %v6545 = vadd.f32 %v6284, %v6544
      %v6546 = vpop.f32.mrb[0].mxu0
      %6547 = vmatprep.mubr.f32.mxu0 0.0
      %v6548 = vand.u32 %v4794, 4294901760
      %6549 = vmatmul.mubr.f32.gmra.mrb[0].mxu0 %v6548
      %v6550 = vpop.f32.mrb[0].mxu0
      %v6551 = vadd.f32 %v6290, %v6550
      %v6552 = vpop.f32.mrb[0].mxu0
      %6553 = vmatprep.mubr.f32.mxu0 0.0
      %v6554 = vand.u32 %v4797, 4294901760
      %6555 = vmatmul.mubr.f32.gmra.mrb[0].mxu0 %v6554
      %v6556 = vpop.f32.mrb[0].mxu0
      %v6557 = vadd.f32 %v6296, %v6556
      %v6558 = vpop.f32.mrb[0].mxu0
      %6559 = vmatprep.mubr.f32.mxu0 0.0
      %v6560 = vand.u32 %v4800, 4294901760
      %6561 = vmatmul.mubr.f32.gmra.mrb[0].mxu0 %v6560
      %v6562 = vpop.f32.mrb[0].mxu0
      %v6563 = vadd.f32 %v6302, %v6562
      %v6564 = vpop.f32.mrb[0].mxu0
      %6565 = vmatprep.mubr.f32.mxu0 0.0
      %v6566 = vand.u32 %v4803, 4294901760
      %6567 = vmatmul.mubr.f32.gmra.mrb[0].mxu0 %v6566
      %v6568 = vpop.f32.mrb[0].mxu0
      %v6569 = vadd.f32 %v6308, %v6568
      %v6570 = vpop.f32.mrb[0].mxu0
      %6571 = vmatprep.mubr.f32.mxu0 0.0
      %v6572 = vand.u32 %v4806, 4294901760
      %6573 = vmatmul.mubr.f32.gmra.mrb[0].mxu0 %v6572
      %v6574 = vpop.f32.mrb[0].mxu0
      %v6575 = vadd.f32 %v6314, %v6574
      %v6576 = vpop.f32.mrb[0].mxu0
      %6577 = vmatprep.mubr.f32.mxu0 0.0
      %v6578 = vand.u32 %v4809, 4294901760
      %6579 = vmatmul.mubr.f32.gmra.mrb[0].mxu0 %v6578
      %v6580 = vpop.f32.mrb[0].mxu0
      %v6581 = vadd.f32 %v6320, %v6580
      %v6582 = vpop.f32.mrb[0].mxu0
      %6583 = vmatprep.mubr.f32.mxu0 0.0
      %v6584 = vand.u32 %v4812, 4294901760
      %6585 = vmatmul.mubr.f32.gmra.mrb[0].mxu0 %v6584
      %v6586 = vpop.f32.mrb[0].mxu0
      %v6587 = vadd.f32 %v6326, %v6586
      %v6588 = vpop.f32.mrb[0].mxu0
      %6589 = vmatprep.mubr.f32.mxu0 0.0
      %v6590 = vand.u32 %v4815, 4294901760
      %6591 = vmatmul.mubr.f32.gmra.mrb[0].mxu0 %v6590
      %v6592 = vpop.f32.mrb[0].mxu0
      %v6593 = vadd.f32 %v6332, %v6592
      %v6594 = vpop.f32.mrb[0].mxu0
      %6595 = vmatprep.mubr.f32.mxu0 0.0
      %v6596 = vand.u32 %v4818, 4294901760
      %6597 = vmatmul.mubr.f32.gmra.mrb[0].mxu0 %v6596
      %v6598 = vpop.f32.mrb[0].mxu0
      %v6599 = vadd.f32 %v6338, %v6598
      %v6600 = vpop.f32.mrb[0].mxu0
      %6601 = vmatprep.mubr.f32.mxu0 0.0
      %v6602 = vand.u32 %v4821, 4294901760
      %6603 = vmatmul.mubr.f32.gmra.mrb[0].mxu0 %v6602
      %v6604 = vpop.f32.mrb[0].mxu0
      %v6605 = vadd.f32 %v6344, %v6604
      %v6606 = vpop.f32.mrb[0].mxu0
      %6607 = vmatprep.mubr.f32.mxu0 0.0
      %v6608 = vand.u32 %v4824, 4294901760
      %6609 = vmatmul.mubr.f32.gmra.mrb[0].mxu0 %v6608
      %v6610 = vpop.f32.mrb[0].mxu0
      %v6611 = vadd.f32 %v6350, %v6610
      %v6612 = vpop.f32.mrb[0].mxu0
      %6613 = vmatprep.mubr.f32.mxu0 0.0
      %v6614 = vand.u32 %v4827, 4294901760
      %6615 = vmatmul.mubr.f32.gmra.mrb[0].mxu0 %v6614
      %v6616 = vpop.f32.mrb[0].mxu0
      %v6617 = vadd.f32 %v6356, %v6616
      %v6618 = vpop.f32.mrb[0].mxu0
      %6619 = vmatprep.mubr.f32.mxu0 0.0
      %v6620 = vand.u32 %v4830, 4294901760
      %6621 = vmatmul.mubr.f32.gmra.mrb[0].mxu0 %v6620
      %v6622 = vpop.f32.mrb[0].mxu0
      %v6623 = vadd.f32 %v6362, %v6622
      %v6624 = vpop.f32.mrb[0].mxu0
      %6625 = vmatprep.mubr.f32.mxu0 0.0
      %v6626 = vand.u32 %v4833, 4294901760
      %6627 = vmatmul.mubr.f32.gmra.mrb[0].mxu0 %v6626
      %v6628 = vpop.f32.mrb[0].mxu0
      %v6629 = vadd.f32 %v6368, %v6628
      %v6630 = vpop.f32.mrb[0].mxu0
      %6631 = vmatprep.mubr.f32.mxu0 0.0
      %v6632 = vand.u32 %v4836, 4294901760
      %6633 = vmatmul.mubr.f32.gmra.mrb[0].mxu0 %v6632
      %v6634 = vpop.f32.mrb[0].mxu0
      %v6635 = vadd.f32 %v6374, %v6634
      %v6636 = vpop.f32.mrb[0].mxu0
      %6637 = vmatprep.mubr.f32.mxu0 0.0
      %v6638 = vand.u32 %v4839, 4294901760
      %6639 = vmatmul.mubr.f32.gmra.mrb[0].mxu0 %v6638
      %v6640 = vpop.f32.mrb[0].mxu0
      %v6641 = vadd.f32 %v6380, %v6640
      %v6642 = vpop.f32.mrb[0].mxu0
      %6643 = vmatprep.mubr.f32.mxu0 0.0
      %v6644 = vand.u32 %v4842, 4294901760
      %6645 = vmatmul.mubr.f32.gmra.mrb[0].mxu0 %v6644
      %v6646 = vpop.f32.mrb[0].mxu0
      %v6647 = vadd.f32 %v6386, %v6646
      %v6648 = vpop.f32.mrb[0].mxu0
      %6649 = vmatprep.mubr.f32.mxu0 0.0
      %v6650 = vand.u32 %v4845, 4294901760
      %6651 = vmatmul.mubr.f32.gmra.mrb[0].mxu0 %v6650
      %v6652 = vpop.f32.mrb[0].mxu0
      %v6653 = vadd.f32 %v6392, %v6652
      %v6654 = vpop.f32.mrb[0].mxu0
      %6655 = vmatprep.mubr.f32.mxu0 0.0
      %v6656 = vand.u32 %v4848, 4294901760
      %6657 = vmatmul.mubr.f32.gmra.mrb[0].mxu0 %v6656
      %v6658 = vpop.f32.mrb[0].mxu0
      %v6659 = vadd.f32 %v6398, %v6658
      %v6660 = vpop.f32.mrb[0].mxu0
      %6661 = vmatprep.mubr.f32.mxu0 0.0
      %v6662 = vand.u32 %v4851, 4294901760
      %6663 = vmatmul.mubr.f32.gmra.mrb[0].mxu0 %v6662
      %v6664 = vpop.f32.mrb[0].mxu0
      %v6665 = vadd.f32 %v6404, %v6664
      %v6666 = vpop.f32.mrb[0].mxu0
      %6667 = vmatprep.mubr.f32.mxu0 0.0
      %v6668 = vand.u32 %v4854, 4294901760
      %6669 = vmatmul.mubr.f32.gmra.mrb[0].mxu0 %v6668
      %v6670 = vpop.f32.mrb[0].mxu0
      %v6671 = vadd.f32 %v6410, %v6670
      %v6672 = vpop.f32.mrb[0].mxu0
      %6673 = vdwg.mxu0
      %vm6674 = vcmask 7168
      %6675 = vst.msk [vmem:[%s336] sm:$0xff] %vm6674, %v6485
      %6676 = vst.msk [vmem:[%s336 + $0x8] sm:$0xff] %vm6674, %v6491
      %6677 = vst.msk [vmem:[%s336 + $0x10] sm:$0xff] %vm6674, %v6497
      %6678 = vst.msk [vmem:[%s336 + $0x18] sm:$0xff] %vm6674, %v6503
      %6679 = vst.msk [vmem:[%s336 + $0x20] sm:$0xff] %vm6674, %v6509
      %6680 = vst.msk [vmem:[%s336 + $0x28] sm:$0xff] %vm6674, %v6515
      %6681 = vst.msk [vmem:[%s336 + $0x30] sm:$0xff] %vm6674, %v6521
      %6682 = vst.msk [vmem:[%s336 + $0x38] sm:$0xff] %vm6674, %v6527
      %6683 = vst.msk [vmem:[%s336 + $0x40] sm:$0xff] %vm6674, %v6533
      %6684 = vst.msk [vmem:[%s336 + $0x48] sm:$0xff] %vm6674, %v6539
      %6685 = vst.msk [vmem:[%s336 + $0x50] sm:$0xff] %vm6674, %v6545
      %6686 = vst.msk [vmem:[%s336 + $0x58] sm:$0xff] %vm6674, %v6551
      %6687 = vst.msk [vmem:[%s336 + $0x60] sm:$0xff] %vm6674, %v6557
      %6688 = vst.msk [vmem:[%s336 + $0x68] sm:$0xff] %vm6674, %v6563
      %6689 = vst.msk [vmem:[%s336 + $0x70] sm:$0xff] %vm6674, %v6569
      %6690 = vst.msk [vmem:[%s336 + $0x78] sm:$0xff] %vm6674, %v6575
      %6691 = vst.msk [vmem:[%s336 + $0x80] sm:$0xff] %vm6674, %v6581
      %6692 = vst.msk [vmem:[%s336 + $0x88] sm:$0xff] %vm6674, %v6587
      %6693 = vst.msk [vmem:[%s336 + $0x90] sm:$0xff] %vm6674, %v6593
      %6694 = vst.msk [vmem:[%s336 + $0x98] sm:$0xff] %vm6674, %v6599
      %6695 = vst.msk [vmem:[%s336 + $0xa0] sm:$0xff] %vm6674, %v6605
      %6696 = vst.msk [vmem:[%s336 + $0xa8] sm:$0xff] %vm6674, %v6611
      %6697 = vst.msk [vmem:[%s336 + $0xb0] sm:$0xff] %vm6674, %v6617
      %6698 = vst.msk [vmem:[%s336 + $0xb8] sm:$0xff] %vm6674, %v6623
      %6699 = vst.msk [vmem:[%s336 + $0xc0] sm:$0xff] %vm6674, %v6629
      %6700 = vst.msk [vmem:[%s336 + $0xc8] sm:$0xff] %vm6674, %v6635
      %6701 = vst.msk [vmem:[%s336 + $0xd0] sm:$0xff] %vm6674, %v6641
      %6702 = vst.msk [vmem:[%s336 + $0xd8] sm:$0xff] %vm6674, %v6647
      %6703 = vst.msk [vmem:[%s336 + $0xe0] sm:$0xff] %vm6674, %v6653
      %6704 = vst.msk [vmem:[%s336 + $0xe8] sm:$0xff] %vm6674, %v6659
      %6705 = vst.msk [vmem:[%s336 + $0xf0] sm:$0xff] %vm6674, %v6665
      %6706 = vst.msk [vmem:[%s336 + $0xf8] sm:$0xff] %vm6674, %v6671
      %s6707 = smul.u32 32, %s22
      %p6708 = scmp.lt.s32.totalorder %s6707, 127
      %s6709 = scalar_select %p6708, %s6707, 127
      %s6710 = smul.addr %s6709, 8
      %s6711 = scalar_lea.vmem %s9, %s6710
      // Predicated region
      $region57: #{mlp_forward.1} parent=55 // pred_check
        %p6712 = pneg %p234
      $region58: #{mlp_forward.1} parent=55 // pred_check_branch
        %6714 = sbr.rel (%p6712) target = $region60
      $region59: #{mlp_forward.1} parent=55 // pred_region
        %s6715 = smul.u32 32, %s22
      $region60: #{mlp_forward.1} parent=55 // pred_fallthru
        _
    $region56: #{mlp_forward.1} parent=5 // pred_fallthru
      _
    %p6716 = scmp.le.s32.totalorder 2, %s17
    // Predicated region
    $region61: #{mlp_forward.1} parent=5 // pred_check
      %p6717 = pneg %p6716
    $region62: #{mlp_forward.1} parent=5 // pred_check_branch
      %6719 = sbr.rel (%p6717) target = $region64
    $region63: #{mlp_forward.1} parent=5 // pred_region
      %s6720 = ssub.s32 %s17, 2
      // Predicated region
      $region65: #{mlp_forward.1} parent=63 // pred_check
        %p6721 = pneg %p240
      $region66: #{mlp_forward.1} parent=63 // pred_check_branch
        %6723 = sbr.rel (%p6721) target = $region68
      $region67: #{mlp_forward.1} parent=63 // pred_region
        %s6724 = smul.u32 32, %s23
        %p6725 = scmp.lt.s32.totalorder %s6724, 127
        %s6726 = scalar_select %p6725, %s6724, 127
        %s6727 = smul.addr %s6726, 8
        %s6728 = scalar_lea.vmem %s9, %s6727
      $region68: #{mlp_forward.1} parent=63 // pred_fallthru
        _
    $region64: #{mlp_forward.1} parent=5 // pred_fallthru
      _
  $region6: #{mlp_forward.1} parent=0 // loop_footer
    %s21 = sadd.s32 1, %s17
  $region7: #{mlp_forward.1} parent=0 // loop_footer_branch
    %16 = sbr.rel target = $region3
  $region8: #{mlp_forward.1} parent=0 // loop_exit
    _

</llo_original>
